<compile_context>
chip_gen: v5e
topology: v5e:2x2
jax: 0.10.0
libtpu: 0.0.40
codegen_flags: <defaults>
</compile_context>

<pallas_src>
import functools

import jax
import jax.numpy as jnp
from jax.experimental import pallas as pl
from jax.experimental.pallas import tpu as pltpu

BN_EPS = 1e-5


def convnet_back_kernel(x_ref, w1_ref, s1_ref, b1_ref, w2_ref, s2_ref, b2_ref,
                        o_ref, pad1_ref, acc1_ref, pad2_ref, acc2_ref,
                        *, H, W, C):
    """Fully fused ConvNetBack forward for one batch element (NHWC, C in lanes).

    x_ref:  (1, H, W, C)      input tile
    w*_ref: (9, C, C)         conv weights, tap-major (t = dy*3 + dx)
    s*/b*:  (1, C)            folded per-channel scale / shift (conv bias + BN + r,b)
    o_ref:  (1, 1, C)         final features for this sample
    pad1/pad2: flattened zero-padded images, acc1/acc2: conv accumulators (VMEM).
    """
    Wp = W + 2                 # padded row stride, block 1
    M1 = H * Wp                # virtual conv-1 output rows (incl. 2 junk cols/row)
    H2, W2 = H // 2, W // 2    # 10, 10
    Wp2 = W2 + 2               # padded row stride, block 2
    M2 = H2 * Wp2              # virtual conv-2 output rows

    # ---------- block 1: in-VMEM pad, conv3x3, affine, relu, maxpool2 ----------
    pad1_ref[...] = jnp.zeros_like(pad1_ref)
    for y in range(H):                                   # copy input into padded interior
        pad1_ref[pl.ds((y + 1) * Wp + 1, W), :] = x_ref[0, y]

    for t in range(9):                                   # 9 shifted-window MXU matmuls
        dy, dx = t // 3, t % 3
        lhs = pad1_ref[pl.ds(dy * Wp + dx, M1), :]       # (M1, C) -- direct window, no reshape
        contrib = jnp.dot(lhs, w1_ref[t], preferred_element_type=jnp.float32)
        if t == 0:
            acc1_ref[...] = contrib
        else:
            acc1_ref[...] += contrib

    # affine + relu + 2x2 max pool, written straight into block 2's padded scratch
    pad2_ref[...] = jnp.zeros_like(pad2_ref)
    s1 = s1_ref[...]                                     # (1, C)
    b1 = b1_ref[...]
    for yo in range(H2):
        r0 = acc1_ref[pl.ds((2 * yo) * Wp, W), :]        # valid columns x = 0..W-1 only
        r1 = acc1_ref[pl.ds((2 * yo + 1) * Wp, W), :]
        v = jnp.maximum(r0 * s1 + b1, r1 * s1 + b1)      # (W, C)  row-pair max
        v = jnp.max(v.reshape(W2, 2, C), axis=1)         # (W2, C) column-pair max
        v = jnp.maximum(v, 0.0)                          # relu (commutes with max)
        pad2_ref[pl.ds((yo + 1) * Wp2 + 1, W2), :] = v

    # ---------- block 2: conv3x3, affine, relu, maxpool2 + maxpool5 ----------
    for t in range(9):
        dy, dx = t // 3, t % 3
        lhs = pad2_ref[pl.ds(dy * Wp2 + dx, M2), :]      # (M2, C)
        contrib = jnp.dot(lhs, w2_ref[t], preferred_element_type=jnp.float32)
        if t == 0:
            acc2_ref[...] = contrib
        else:
            acc2_ref[...] += contrib

    # maxpool2 then maxpool5 on a 10x10 map == global max over the 10x10 map
    s2 = s2_ref[...]
    b2 = b2_ref[...]
    m = jnp.full((W2, C), -jnp.inf, dtype=jnp.float32)
    for y in range(H2):
        row = acc2_ref[pl.ds(y * Wp2, W2), :]            # valid columns only
        m = jnp.maximum(m, row * s2 + b2)                # affine before max (scale may be <0)
    fin = jnp.max(m, axis=0, keepdims=True)              # (1, C)
    o_ref[0] = jnp.maximum(fin, 0.0).astype(o_ref.dtype)  # relu folded into the max


def fold_params(p, r, b):
    """Fold conv bias + BN(eval) + affine(r, b) into per-channel scale/shift."""
    bn_scale = p["gamma"] / jnp.sqrt(p["var"] + BN_EPS)
    scale = bn_scale * r
    shift = ((p["conv_b"] - p["mean"]) * bn_scale + p["beta"]) * r + b
    return scale, shift


def convnet_back(x_nchw, r, b, params):
    """Pallas implementation of ConvNetBack.forward (single fused kernel)."""
    x = jnp.transpose(x_nchw, (0, 2, 3, 1))              # NCHW -> NHWC
    N, H, W, C = x.shape

    r1, b1, r2, b2 = r[:64], b[:64], r[64:], b[64:]
    s1, sh1 = fold_params(params["1"], r1, b1)
    s2, sh2 = fold_params(params["2"], r2, b2)
    w1 = params["1"]["w_hwio"].reshape(9, C, C)          # tap-major (dy*3+dx, Cin, Cout)
    w2 = params["2"]["w_hwio"].reshape(9, C, C)

    H2, W2 = H // 2, W // 2
    Wp, Wp2 = W + 2, W2 + 2
    R1 = (H + 3) * Wp                                    # +1 spare row: virtual-column over-reads
    R2 = (H2 + 3) * Wp2
    M1, M2 = H * Wp, H2 * Wp2

    kernel = functools.partial(convnet_back_kernel, H=H, W=W, C=C)

    out = pl.pallas_call(
        kernel,
        out_shape=jax.ShapeDtypeStruct((N, 1, C), jnp.float32),
        grid_spec=pltpu.PrefetchScalarGridSpec(
            num_scalar_prefetch=0,
            grid=(N,),
            in_specs=[
                pl.BlockSpec((1, H, W, C), lambda n: (n, 0, 0, 0)),   # x (NHWC)
                pl.BlockSpec((9, C, C), lambda n: (0, 0, 0)),         # w1
                pl.BlockSpec((1, C), lambda n: (0, 0)),               # scale1
                pl.BlockSpec((1, C), lambda n: (0, 0)),               # shift1
                pl.BlockSpec((9, C, C), lambda n: (0, 0, 0)),         # w2
                pl.BlockSpec((1, C), lambda n: (0, 0)),               # scale2
                pl.BlockSpec((1, C), lambda n: (0, 0)),               # shift2
            ],
            out_specs=pl.BlockSpec((1, 1, C), lambda n: (n, 0, 0)),
            scratch_shapes=[
                pltpu.VMEM((R1, C), jnp.float32),   # padded, flattened input (block 1)
                pltpu.VMEM((M1, C), jnp.float32),   # conv-1 accumulator
                pltpu.VMEM((R2, C), jnp.float32),   # padded, flattened intermediate (block 2)
                pltpu.VMEM((M2, C), jnp.float32),   # conv-2 accumulator
            ],
        ),
        compiler_params=pltpu.CompilerParams(dimension_semantics=("parallel",)),
    )(x, w1, s1.reshape(1, C), sh1.reshape(1, C),
      w2, s2.reshape(1, C), sh2.reshape(1, C))

    return out.reshape(N, C)                             # flatten(x, 1)


# -------------------- pure-JAX reference (for correctness check) --------------------
def ref_forward(x_nchw, r, b, params):
    def block(x, p, rr, bb):
        y = jax.lax.conv_general_dilated(
            x, p["w_oihw"], (1, 1), ((1, 1), (1, 1)),
            dimension_numbers=("NCHW", "OIHW", "NCHW"))
        y = y + p["conv_b"][None, :, None, None]
        s = p["gamma"] / jnp.sqrt(p["var"] + BN_EPS)
        y = (y - p["mean"][None, :, None, None]) * s[None, :, None, None] \
            + p["beta"][None, :, None, None]
        y = y * rr[None, :, None, None] + bb[None, :, None, None]
        y = jnp.maximum(y, 0.0)
        y = jax.lax.reduce_window(y, -jnp.inf, jax.lax.max,
                                  (1, 1, 2, 2), (1, 1, 2, 2), "VALID")
        return y

    x = block(x_nchw, params["1"], r[:64], b[:64])
    x = block(x, params["2"], r[64:], b[64:])
    x = jax.lax.reduce_window(x, -jnp.inf, jax.lax.max,
                              (1, 1, 5, 5), (1, 1, 5, 5), "VALID")
    return x.reshape(x.shape[0], -1)


# -------------------- deterministic parameter init --------------------
def init_block_params(key, cin, cout):
    k1, k2, k3, k4, k5, k6 = jax.random.split(key, 6)
    fan_in = cin * 9
    w_oihw = jax.random.normal(k1, (cout, cin, 3, 3), jnp.float32) / jnp.sqrt(fan_in)
    return dict(
        w_oihw=w_oihw,
        w_hwio=jnp.transpose(w_oihw, (2, 3, 1, 0)),
        conv_b=0.1 * jax.random.normal(k2, (cout,), jnp.float32),
        gamma=1.0 + 0.1 * jax.random.normal(k3, (cout,), jnp.float32),
        beta=0.1 * jax.random.normal(k4, (cout,), jnp.float32),
        mean=0.1 * jax.random.normal(k5, (cout,), jnp.float32),
        var=jax.random.uniform(k6, (cout,), jnp.float32, 0.5, 1.5),
    )


if __name__ == "__main__":
    key = jax.random.PRNGKey(0)
    kx, kr, kb, kp1, kp2 = jax.random.split(key, 5)

    hid_dim = z_dim = 64                          # fixed by r[:64]/r[64:] slicing
    N, H, W = 2, 20, 20                           # 20 -> 10 -> 5 -> MaxPool2d(5) -> 1

    x = jax.random.normal(kx, (N, hid_dim, H, W), jnp.float32)   # NCHW, like PyTorch
    r = jax.random.normal(kr, (hid_dim + z_dim,), jnp.float32)
    b = jax.random.normal(kb, (hid_dim + z_dim,), jnp.float32)

    params = {
        "1": init_block_params(kp1, hid_dim, hid_dim),
        "2": init_block_params(kp2, hid_dim, z_dim),
    }

    out = jax.block_until_ready(convnet_back(x, r, b, params))
    ref = jax.block_until_ready(ref_forward(x, r, b, params))

    assert out.shape == (N, z_dim), out.shape
    assert jnp.allclose(out, ref, rtol=1e-4, atol=1e-4), \
        float(jnp.max(jnp.abs(out - ref)))

    print("KERNEL_OK")
</pallas_src>

<mosaic_0001>
module attributes {stable_mosaic.version = 11 : i64} {
  func.func @convnet_back_kernel(%arg0: i32, %arg1: memref<1x20x20x64xf32, #tpu.memory_space<vmem>>, %arg2: memref<9x64x64xf32, #tpu.memory_space<vmem>>, %arg3: memref<1x64xf32, #tpu.memory_space<vmem>>, %arg4: memref<1x64xf32, #tpu.memory_space<vmem>>, %arg5: memref<9x64x64xf32, #tpu.memory_space<vmem>>, %arg6: memref<1x64xf32, #tpu.memory_space<vmem>>, %arg7: memref<1x64xf32, #tpu.memory_space<vmem>>, %arg8: memref<1x1x64xf32, #tpu.memory_space<vmem>>, %arg9: memref<506x64xf32, #tpu.memory_space<vmem>>, %arg10: memref<440x64xf32, #tpu.memory_space<vmem>>, %arg11: memref<156x64xf32, #tpu.memory_space<vmem>>, %arg12: memref<120x64xf32, #tpu.memory_space<vmem>>) attributes {dimension_semantics = [#tpu.dimension_semantics<parallel>], iteration_bounds = array<i64: 2>, scalar_prefetch = 0 : i64, scratch_operands = 4 : i64, tpu.core_type = #tpu.core_type<tc>, window_params = [{transform_indices = @transform_0, window_bounds = array<i64: 1, 20, 20, 64>}, {pipeline_mode = #tpu.pipeline_mode<synchronous>, transform_indices = @transform_1, window_bounds = array<i64: 9, 64, 64>}, {pipeline_mode = #tpu.pipeline_mode<synchronous>, transform_indices = @transform_2, window_bounds = array<i64: 1, 64>}, {pipeline_mode = #tpu.pipeline_mode<synchronous>, transform_indices = @transform_3, window_bounds = array<i64: 1, 64>}, {pipeline_mode = #tpu.pipeline_mode<synchronous>, transform_indices = @transform_4, window_bounds = array<i64: 9, 64, 64>}, {pipeline_mode = #tpu.pipeline_mode<synchronous>, transform_indices = @transform_5, window_bounds = array<i64: 1, 64>}, {pipeline_mode = #tpu.pipeline_mode<synchronous>, transform_indices = @transform_6, window_bounds = array<i64: 1, 64>}, {transform_indices = @transform_7, window_bounds = array<i64: 1, 1, 64>}]} {
    %cst = arith.constant 0.000000e+00 : f32
    %0 = vector.broadcast %cst : f32 to vector<506x64xf32>
    %c0 = arith.constant 0 : index
    %c0_0 = arith.constant 0 : index
    %1 = vector.load %arg9[%c0, %c0_0] : memref<506x64xf32, #tpu.memory_space<vmem>>, vector<506x64xf32>
    tpu.vector_store %arg9[%c0, %c0_0], %0 {strides = array<i32>} : memref<506x64xf32, #tpu.memory_space<vmem>>, vector<506x64xf32>,
    %c0_1 = arith.constant 0 : index
    %c0_2 = arith.constant 0 : index
    %c0_3 = arith.constant 0 : index
    %c0_4 = arith.constant 0 : index
    %2 = vector.load %arg1[%c0_1, %c0_2, %c0_3, %c0_4] : memref<1x20x20x64xf32, #tpu.memory_space<vmem>>, vector<1x1x20x64xf32>
    %3 = vector.shape_cast %2 : vector<1x1x20x64xf32> to vector<20x64xf32>
    %c23 = arith.constant 23 : index
    %c0_5 = arith.constant 0 : index
    %4 = vector.load %arg9[%c23, %c0_5] : memref<506x64xf32, #tpu.memory_space<vmem>>, vector<20x64xf32>
    tpu.vector_store %arg9[%c23, %c0_5], %3 {strides = array<i32>} : memref<506x64xf32, #tpu.memory_space<vmem>>, vector<20x64xf32>,
    %c0_6 = arith.constant 0 : index
    %c1 = arith.constant 1 : index
    %c0_7 = arith.constant 0 : index
    %c0_8 = arith.constant 0 : index
    %5 = vector.load %arg1[%c0_6, %c1, %c0_7, %c0_8] : memref<1x20x20x64xf32, #tpu.memory_space<vmem>>, vector<1x1x20x64xf32>
    %6 = vector.shape_cast %5 : vector<1x1x20x64xf32> to vector<20x64xf32>
    %c45 = arith.constant 45 : index
    %c0_9 = arith.constant 0 : index
    %7 = vector.load %arg9[%c45, %c0_9] : memref<506x64xf32, #tpu.memory_space<vmem>>, vector<20x64xf32>
    tpu.vector_store %arg9[%c45, %c0_9], %6 {strides = array<i32>} : memref<506x64xf32, #tpu.memory_space<vmem>>, vector<20x64xf32>,
    %c0_10 = arith.constant 0 : index
    %c2 = arith.constant 2 : index
    %c0_11 = arith.constant 0 : index
    %c0_12 = arith.constant 0 : index
    %8 = vector.load %arg1[%c0_10, %c2, %c0_11, %c0_12] : memref<1x20x20x64xf32, #tpu.memory_space<vmem>>, vector<1x1x20x64xf32>
    %9 = vector.shape_cast %8 : vector<1x1x20x64xf32> to vector<20x64xf32>
    %c67 = arith.constant 67 : index
    %c0_13 = arith.constant 0 : index
    %10 = vector.load %arg9[%c67, %c0_13] : memref<506x64xf32, #tpu.memory_space<vmem>>, vector<20x64xf32>
    tpu.vector_store %arg9[%c67, %c0_13], %9 {strides = array<i32>} : memref<506x64xf32, #tpu.memory_space<vmem>>, vector<20x64xf32>,
    %c0_14 = arith.constant 0 : index
    %c3 = arith.constant 3 : index
    %c0_15 = arith.constant 0 : index
    %c0_16 = arith.constant 0 : index
    %11 = vector.load %arg1[%c0_14, %c3, %c0_15, %c0_16] : memref<1x20x20x64xf32, #tpu.memory_space<vmem>>, vector<1x1x20x64xf32>
    %12 = vector.shape_cast %11 : vector<1x1x20x64xf32> to vector<20x64xf32>
    %c89 = arith.constant 89 : index
    %c0_17 = arith.constant 0 : index
    %13 = vector.load %arg9[%c89, %c0_17] : memref<506x64xf32, #tpu.memory_space<vmem>>, vector<20x64xf32>
    tpu.vector_store %arg9[%c89, %c0_17], %12 {strides = array<i32>} : memref<506x64xf32, #tpu.memory_space<vmem>>, vector<20x64xf32>,
    %c0_18 = arith.constant 0 : index
    %c4 = arith.constant 4 : index
    %c0_19 = arith.constant 0 : index
    %c0_20 = arith.constant 0 : index
    %14 = vector.load %arg1[%c0_18, %c4, %c0_19, %c0_20] : memref<1x20x20x64xf32, #tpu.memory_space<vmem>>, vector<1x1x20x64xf32>
    %15 = vector.shape_cast %14 : vector<1x1x20x64xf32> to vector<20x64xf32>
    %c111 = arith.constant 111 : index
    %c0_21 = arith.constant 0 : index
    %16 = vector.load %arg9[%c111, %c0_21] : memref<506x64xf32, #tpu.memory_space<vmem>>, vector<20x64xf32>
    tpu.vector_store %arg9[%c111, %c0_21], %15 {strides = array<i32>} : memref<506x64xf32, #tpu.memory_space<vmem>>, vector<20x64xf32>,
    %c0_22 = arith.constant 0 : index
    %c5 = arith.constant 5 : index
    %c0_23 = arith.constant 0 : index
    %c0_24 = arith.constant 0 : index
    %17 = vector.load %arg1[%c0_22, %c5, %c0_23, %c0_24] : memref<1x20x20x64xf32, #tpu.memory_space<vmem>>, vector<1x1x20x64xf32>
    %18 = vector.shape_cast %17 : vector<1x1x20x64xf32> to vector<20x64xf32>
    %c133 = arith.constant 133 : index
    %c0_25 = arith.constant 0 : index
    %19 = vector.load %arg9[%c133, %c0_25] : memref<506x64xf32, #tpu.memory_space<vmem>>, vector<20x64xf32>
    tpu.vector_store %arg9[%c133, %c0_25], %18 {strides = array<i32>} : memref<506x64xf32, #tpu.memory_space<vmem>>, vector<20x64xf32>,
    %c0_26 = arith.constant 0 : index
    %c6 = arith.constant 6 : index
    %c0_27 = arith.constant 0 : index
    %c0_28 = arith.constant 0 : index
    %20 = vector.load %arg1[%c0_26, %c6, %c0_27, %c0_28] : memref<1x20x20x64xf32, #tpu.memory_space<vmem>>, vector<1x1x20x64xf32>
    %21 = vector.shape_cast %20 : vector<1x1x20x64xf32> to vector<20x64xf32>
    %c155 = arith.constant 155 : index
    %c0_29 = arith.constant 0 : index
    %22 = vector.load %arg9[%c155, %c0_29] : memref<506x64xf32, #tpu.memory_space<vmem>>, vector<20x64xf32>
    tpu.vector_store %arg9[%c155, %c0_29], %21 {strides = array<i32>} : memref<506x64xf32, #tpu.memory_space<vmem>>, vector<20x64xf32>,
    %c0_30 = arith.constant 0 : index
    %c7 = arith.constant 7 : index
    %c0_31 = arith.constant 0 : index
    %c0_32 = arith.constant 0 : index
    %23 = vector.load %arg1[%c0_30, %c7, %c0_31, %c0_32] : memref<1x20x20x64xf32, #tpu.memory_space<vmem>>, vector<1x1x20x64xf32>
    %24 = vector.shape_cast %23 : vector<1x1x20x64xf32> to vector<20x64xf32>
    %c177 = arith.constant 177 : index
    %c0_33 = arith.constant 0 : index
    %25 = vector.load %arg9[%c177, %c0_33] : memref<506x64xf32, #tpu.memory_space<vmem>>, vector<20x64xf32>
    tpu.vector_store %arg9[%c177, %c0_33], %24 {strides = array<i32>} : memref<506x64xf32, #tpu.memory_space<vmem>>, vector<20x64xf32>,
    %c0_34 = arith.constant 0 : index
    %c8 = arith.constant 8 : index
    %c0_35 = arith.constant 0 : index
    %c0_36 = arith.constant 0 : index
    %26 = vector.load %arg1[%c0_34, %c8, %c0_35, %c0_36] : memref<1x20x20x64xf32, #tpu.memory_space<vmem>>, vector<1x1x20x64xf32>
    %27 = vector.shape_cast %26 : vector<1x1x20x64xf32> to vector<20x64xf32>
    %c199 = arith.constant 199 : index
    %c0_37 = arith.constant 0 : index
    %28 = vector.load %arg9[%c199, %c0_37] : memref<506x64xf32, #tpu.memory_space<vmem>>, vector<20x64xf32>
    tpu.vector_store %arg9[%c199, %c0_37], %27 {strides = array<i32>} : memref<506x64xf32, #tpu.memory_space<vmem>>, vector<20x64xf32>,
    %c0_38 = arith.constant 0 : index
    %c9 = arith.constant 9 : index
    %c0_39 = arith.constant 0 : index
    %c0_40 = arith.constant 0 : index
    %29 = vector.load %arg1[%c0_38, %c9, %c0_39, %c0_40] : memref<1x20x20x64xf32, #tpu.memory_space<vmem>>, vector<1x1x20x64xf32>
    %30 = vector.shape_cast %29 : vector<1x1x20x64xf32> to vector<20x64xf32>
    %c221 = arith.constant 221 : index
    %c0_41 = arith.constant 0 : index
    %31 = vector.load %arg9[%c221, %c0_41] : memref<506x64xf32, #tpu.memory_space<vmem>>, vector<20x64xf32>
    tpu.vector_store %arg9[%c221, %c0_41], %30 {strides = array<i32>} : memref<506x64xf32, #tpu.memory_space<vmem>>, vector<20x64xf32>,
    %c0_42 = arith.constant 0 : index
    %c10 = arith.constant 10 : index
    %c0_43 = arith.constant 0 : index
    %c0_44 = arith.constant 0 : index
    %32 = vector.load %arg1[%c0_42, %c10, %c0_43, %c0_44] : memref<1x20x20x64xf32, #tpu.memory_space<vmem>>, vector<1x1x20x64xf32>
    %33 = vector.shape_cast %32 : vector<1x1x20x64xf32> to vector<20x64xf32>
    %c243 = arith.constant 243 : index
    %c0_45 = arith.constant 0 : index
    %34 = vector.load %arg9[%c243, %c0_45] : memref<506x64xf32, #tpu.memory_space<vmem>>, vector<20x64xf32>
    tpu.vector_store %arg9[%c243, %c0_45], %33 {strides = array<i32>} : memref<506x64xf32, #tpu.memory_space<vmem>>, vector<20x64xf32>,
    %c0_46 = arith.constant 0 : index
    %c11 = arith.constant 11 : index
    %c0_47 = arith.constant 0 : index
    %c0_48 = arith.constant 0 : index
    %35 = vector.load %arg1[%c0_46, %c11, %c0_47, %c0_48] : memref<1x20x20x64xf32, #tpu.memory_space<vmem>>, vector<1x1x20x64xf32>
    %36 = vector.shape_cast %35 : vector<1x1x20x64xf32> to vector<20x64xf32>
    %c265 = arith.constant 265 : index
    %c0_49 = arith.constant 0 : index
    %37 = vector.load %arg9[%c265, %c0_49] : memref<506x64xf32, #tpu.memory_space<vmem>>, vector<20x64xf32>
    tpu.vector_store %arg9[%c265, %c0_49], %36 {strides = array<i32>} : memref<506x64xf32, #tpu.memory_space<vmem>>, vector<20x64xf32>,
    %c0_50 = arith.constant 0 : index
    %c12 = arith.constant 12 : index
    %c0_51 = arith.constant 0 : index
    %c0_52 = arith.constant 0 : index
    %38 = vector.load %arg1[%c0_50, %c12, %c0_51, %c0_52] : memref<1x20x20x64xf32, #tpu.memory_space<vmem>>, vector<1x1x20x64xf32>
    %39 = vector.shape_cast %38 : vector<1x1x20x64xf32> to vector<20x64xf32>
    %c287 = arith.constant 287 : index
    %c0_53 = arith.constant 0 : index
    %40 = vector.load %arg9[%c287, %c0_53] : memref<506x64xf32, #tpu.memory_space<vmem>>, vector<20x64xf32>
    tpu.vector_store %arg9[%c287, %c0_53], %39 {strides = array<i32>} : memref<506x64xf32, #tpu.memory_space<vmem>>, vector<20x64xf32>,
    %c0_54 = arith.constant 0 : index
    %c13 = arith.constant 13 : index
    %c0_55 = arith.constant 0 : index
    %c0_56 = arith.constant 0 : index
    %41 = vector.load %arg1[%c0_54, %c13, %c0_55, %c0_56] : memref<1x20x20x64xf32, #tpu.memory_space<vmem>>, vector<1x1x20x64xf32>
    %42 = vector.shape_cast %41 : vector<1x1x20x64xf32> to vector<20x64xf32>
    %c309 = arith.constant 309 : index
    %c0_57 = arith.constant 0 : index
    %43 = vector.load %arg9[%c309, %c0_57] : memref<506x64xf32, #tpu.memory_space<vmem>>, vector<20x64xf32>
    tpu.vector_store %arg9[%c309, %c0_57], %42 {strides = array<i32>} : memref<506x64xf32, #tpu.memory_space<vmem>>, vector<20x64xf32>,
    %c0_58 = arith.constant 0 : index
    %c14 = arith.constant 14 : index
    %c0_59 = arith.constant 0 : index
    %c0_60 = arith.constant 0 : index
    %44 = vector.load %arg1[%c0_58, %c14, %c0_59, %c0_60] : memref<1x20x20x64xf32, #tpu.memory_space<vmem>>, vector<1x1x20x64xf32>
    %45 = vector.shape_cast %44 : vector<1x1x20x64xf32> to vector<20x64xf32>
    %c331 = arith.constant 331 : index
    %c0_61 = arith.constant 0 : index
    %46 = vector.load %arg9[%c331, %c0_61] : memref<506x64xf32, #tpu.memory_space<vmem>>, vector<20x64xf32>
    tpu.vector_store %arg9[%c331, %c0_61], %45 {strides = array<i32>} : memref<506x64xf32, #tpu.memory_space<vmem>>, vector<20x64xf32>,
    %c0_62 = arith.constant 0 : index
    %c15 = arith.constant 15 : index
    %c0_63 = arith.constant 0 : index
    %c0_64 = arith.constant 0 : index
    %47 = vector.load %arg1[%c0_62, %c15, %c0_63, %c0_64] : memref<1x20x20x64xf32, #tpu.memory_space<vmem>>, vector<1x1x20x64xf32>
    %48 = vector.shape_cast %47 : vector<1x1x20x64xf32> to vector<20x64xf32>
    %c353 = arith.constant 353 : index
    %c0_65 = arith.constant 0 : index
    %49 = vector.load %arg9[%c353, %c0_65] : memref<506x64xf32, #tpu.memory_space<vmem>>, vector<20x64xf32>
    tpu.vector_store %arg9[%c353, %c0_65], %48 {strides = array<i32>} : memref<506x64xf32, #tpu.memory_space<vmem>>, vector<20x64xf32>,
    %c0_66 = arith.constant 0 : index
    %c16 = arith.constant 16 : index
    %c0_67 = arith.constant 0 : index
    %c0_68 = arith.constant 0 : index
    %50 = vector.load %arg1[%c0_66, %c16, %c0_67, %c0_68] : memref<1x20x20x64xf32, #tpu.memory_space<vmem>>, vector<1x1x20x64xf32>
    %51 = vector.shape_cast %50 : vector<1x1x20x64xf32> to vector<20x64xf32>
    %c375 = arith.constant 375 : index
    %c0_69 = arith.constant 0 : index
    %52 = vector.load %arg9[%c375, %c0_69] : memref<506x64xf32, #tpu.memory_space<vmem>>, vector<20x64xf32>
    tpu.vector_store %arg9[%c375, %c0_69], %51 {strides = array<i32>} : memref<506x64xf32, #tpu.memory_space<vmem>>, vector<20x64xf32>,
    %c0_70 = arith.constant 0 : index
    %c17 = arith.constant 17 : index
    %c0_71 = arith.constant 0 : index
    %c0_72 = arith.constant 0 : index
    %53 = vector.load %arg1[%c0_70, %c17, %c0_71, %c0_72] : memref<1x20x20x64xf32, #tpu.memory_space<vmem>>, vector<1x1x20x64xf32>
    %54 = vector.shape_cast %53 : vector<1x1x20x64xf32> to vector<20x64xf32>
    %c397 = arith.constant 397 : index
    %c0_73 = arith.constant 0 : index
    %55 = vector.load %arg9[%c397, %c0_73] : memref<506x64xf32, #tpu.memory_space<vmem>>, vector<20x64xf32>
    tpu.vector_store %arg9[%c397, %c0_73], %54 {strides = array<i32>} : memref<506x64xf32, #tpu.memory_space<vmem>>, vector<20x64xf32>,
    %c0_74 = arith.constant 0 : index
    %c18 = arith.constant 18 : index
    %c0_75 = arith.constant 0 : index
    %c0_76 = arith.constant 0 : index
    %56 = vector.load %arg1[%c0_74, %c18, %c0_75, %c0_76] : memref<1x20x20x64xf32, #tpu.memory_space<vmem>>, vector<1x1x20x64xf32>
    %57 = vector.shape_cast %56 : vector<1x1x20x64xf32> to vector<20x64xf32>
    %c419 = arith.constant 419 : index
    %c0_77 = arith.constant 0 : index
    %58 = vector.load %arg9[%c419, %c0_77] : memref<506x64xf32, #tpu.memory_space<vmem>>, vector<20x64xf32>
    tpu.vector_store %arg9[%c419, %c0_77], %57 {strides = array<i32>} : memref<506x64xf32, #tpu.memory_space<vmem>>, vector<20x64xf32>,
    %c0_78 = arith.constant 0 : index
    %c19 = arith.constant 19 : index
    %c0_79 = arith.constant 0 : index
    %c0_80 = arith.constant 0 : index
    %59 = vector.load %arg1[%c0_78, %c19, %c0_79, %c0_80] : memref<1x20x20x64xf32, #tpu.memory_space<vmem>>, vector<1x1x20x64xf32>
    %60 = vector.shape_cast %59 : vector<1x1x20x64xf32> to vector<20x64xf32>
    %c441 = arith.constant 441 : index
    %c0_81 = arith.constant 0 : index
    %61 = vector.load %arg9[%c441, %c0_81] : memref<506x64xf32, #tpu.memory_space<vmem>>, vector<20x64xf32>
    tpu.vector_store %arg9[%c441, %c0_81], %60 {strides = array<i32>} : memref<506x64xf32, #tpu.memory_space<vmem>>, vector<20x64xf32>,
    %c0_82 = arith.constant 0 : index
    %c0_83 = arith.constant 0 : index
    %62 = vector.load %arg9[%c0_82, %c0_83] : memref<506x64xf32, #tpu.memory_space<vmem>>, vector<440x64xf32>
    %c0_84 = arith.constant 0 : index
    %c0_85 = arith.constant 0 : index
    %c0_86 = arith.constant 0 : index
    %63 = vector.load %arg2[%c0_84, %c0_85, %c0_86] : memref<9x64x64xf32, #tpu.memory_space<vmem>>, vector<1x64x64xf32>
    %64 = vector.shape_cast %63 : vector<1x64x64xf32> to vector<64x64xf32>
    %cst_87 = arith.constant dense<0.000000e+00> : vector<440x64xf32>
    %65 = tpu.matmul %62, %64, %cst_87 {dimension_numbers = #tpu.dot_dimension_numbers<[1], [0], [0], [1], [0, 0, 1, 1], [], []>} : vector<440x64xf32>, vector<64x64xf32>, vector<440x64xf32> -> vector<440x64xf32>
    %c0_88 = arith.constant 0 : index
    %c0_89 = arith.constant 0 : index
    %66 = vector.load %arg10[%c0_88, %c0_89] : memref<440x64xf32, #tpu.memory_space<vmem>>, vector<440x64xf32>
    tpu.vector_store %arg10[%c0_88, %c0_89], %65 {strides = array<i32>} : memref<440x64xf32, #tpu.memory_space<vmem>>, vector<440x64xf32>,
    %c1_90 = arith.constant 1 : index
    %c0_91 = arith.constant 0 : index
    %67 = vector.load %arg9[%c1_90, %c0_91] : memref<506x64xf32, #tpu.memory_space<vmem>>, vector<440x64xf32>
    %c1_92 = arith.constant 1 : index
    %c0_93 = arith.constant 0 : index
    %c0_94 = arith.constant 0 : index
    %68 = vector.load %arg2[%c1_92, %c0_93, %c0_94] : memref<9x64x64xf32, #tpu.memory_space<vmem>>, vector<1x64x64xf32>
    %69 = vector.shape_cast %68 : vector<1x64x64xf32> to vector<64x64xf32>
    %cst_95 = arith.constant dense<0.000000e+00> : vector<440x64xf32>
    %70 = tpu.matmul %67, %69, %cst_95 {dimension_numbers = #tpu.dot_dimension_numbers<[1], [0], [0], [1], [0, 0, 1, 1], [], []>} : vector<440x64xf32>, vector<64x64xf32>, vector<440x64xf32> -> vector<440x64xf32>
    %c0_96 = arith.constant 0 : index
    %c0_97 = arith.constant 0 : index
    %71 = vector.load %arg10[%c0_96, %c0_97] : memref<440x64xf32, #tpu.memory_space<vmem>>, vector<440x64xf32>
    %72 = arith.addf %71, %70 : vector<440x64xf32>
    %c0_98 = arith.constant 0 : index
    %c0_99 = arith.constant 0 : index
    %73 = vector.load %arg10[%c0_98, %c0_99] : memref<440x64xf32, #tpu.memory_space<vmem>>, vector<440x64xf32>
    tpu.vector_store %arg10[%c0_98, %c0_99], %72 {strides = array<i32>} : memref<440x64xf32, #tpu.memory_space<vmem>>, vector<440x64xf32>,
    %c2_100 = arith.constant 2 : index
    %c0_101 = arith.constant 0 : index
    %74 = vector.load %arg9[%c2_100, %c0_101] : memref<506x64xf32, #tpu.memory_space<vmem>>, vector<440x64xf32>
    %c2_102 = arith.constant 2 : index
    %c0_103 = arith.constant 0 : index
    %c0_104 = arith.constant 0 : index
    %75 = vector.load %arg2[%c2_102, %c0_103, %c0_104] : memref<9x64x64xf32, #tpu.memory_space<vmem>>, vector<1x64x64xf32>
    %76 = vector.shape_cast %75 : vector<1x64x64xf32> to vector<64x64xf32>
    %cst_105 = arith.constant dense<0.000000e+00> : vector<440x64xf32>
    %77 = tpu.matmul %74, %76, %cst_105 {dimension_numbers = #tpu.dot_dimension_numbers<[1], [0], [0], [1], [0, 0, 1, 1], [], []>} : vector<440x64xf32>, vector<64x64xf32>, vector<440x64xf32> -> vector<440x64xf32>
    %c0_106 = arith.constant 0 : index
    %c0_107 = arith.constant 0 : index
    %78 = vector.load %arg10[%c0_106, %c0_107] : memref<440x64xf32, #tpu.memory_space<vmem>>, vector<440x64xf32>
    %79 = arith.addf %78, %77 : vector<440x64xf32>
    %c0_108 = arith.constant 0 : index
    %c0_109 = arith.constant 0 : index
    %80 = vector.load %arg10[%c0_108, %c0_109] : memref<440x64xf32, #tpu.memory_space<vmem>>, vector<440x64xf32>
    tpu.vector_store %arg10[%c0_108, %c0_109], %79 {strides = array<i32>} : memref<440x64xf32, #tpu.memory_space<vmem>>, vector<440x64xf32>,
    %c22 = arith.constant 22 : index
    %c0_110 = arith.constant 0 : index
    %81 = vector.load %arg9[%c22, %c0_110] : memref<506x64xf32, #tpu.memory_space<vmem>>, vector<440x64xf32>
    %c3_111 = arith.constant 3 : index
    %c0_112 = arith.constant 0 : index
    %c0_113 = arith.constant 0 : index
    %82 = vector.load %arg2[%c3_111, %c0_112, %c0_113] : memref<9x64x64xf32, #tpu.memory_space<vmem>>, vector<1x64x64xf32>
    %83 = vector.shape_cast %82 : vector<1x64x64xf32> to vector<64x64xf32>
    %cst_114 = arith.constant dense<0.000000e+00> : vector<440x64xf32>
    %84 = tpu.matmul %81, %83, %cst_114 {dimension_numbers = #tpu.dot_dimension_numbers<[1], [0], [0], [1], [0, 0, 1, 1], [], []>} : vector<440x64xf32>, vector<64x64xf32>, vector<440x64xf32> -> vector<440x64xf32>
    %c0_115 = arith.constant 0 : index
    %c0_116 = arith.constant 0 : index
    %85 = vector.load %arg10[%c0_115, %c0_116] : memref<440x64xf32, #tpu.memory_space<vmem>>, vector<440x64xf32>
    %86 = arith.addf %85, %84 : vector<440x64xf32>
    %c0_117 = arith.constant 0 : index
    %c0_118 = arith.constant 0 : index
    %87 = vector.load %arg10[%c0_117, %c0_118] : memref<440x64xf32, #tpu.memory_space<vmem>>, vector<440x64xf32>
    tpu.vector_store %arg10[%c0_117, %c0_118], %86 {strides = array<i32>} : memref<440x64xf32, #tpu.memory_space<vmem>>, vector<440x64xf32>,
    %c23_119 = arith.constant 23 : index
    %c0_120 = arith.constant 0 : index
    %88 = vector.load %arg9[%c23_119, %c0_120] : memref<506x64xf32, #tpu.memory_space<vmem>>, vector<440x64xf32>
    %c4_121 = arith.constant 4 : index
    %c0_122 = arith.constant 0 : index
    %c0_123 = arith.constant 0 : index
    %89 = vector.load %arg2[%c4_121, %c0_122, %c0_123] : memref<9x64x64xf32, #tpu.memory_space<vmem>>, vector<1x64x64xf32>
    %90 = vector.shape_cast %89 : vector<1x64x64xf32> to vector<64x64xf32>
    %cst_124 = arith.constant dense<0.000000e+00> : vector<440x64xf32>
    %91 = tpu.matmul %88, %90, %cst_124 {dimension_numbers = #tpu.dot_dimension_numbers<[1], [0], [0], [1], [0, 0, 1, 1], [], []>} : vector<440x64xf32>, vector<64x64xf32>, vector<440x64xf32> -> vector<440x64xf32>
    %c0_125 = arith.constant 0 : index
    %c0_126 = arith.constant 0 : index
    %92 = vector.load %arg10[%c0_125, %c0_126] : memref<440x64xf32, #tpu.memory_space<vmem>>, vector<440x64xf32>
    %93 = arith.addf %92, %91 : vector<440x64xf32>
    %c0_127 = arith.constant 0 : index
    %c0_128 = arith.constant 0 : index
    %94 = vector.load %arg10[%c0_127, %c0_128] : memref<440x64xf32, #tpu.memory_space<vmem>>, vector<440x64xf32>
    tpu.vector_store %arg10[%c0_127, %c0_128], %93 {strides = array<i32>} : memref<440x64xf32, #tpu.memory_space<vmem>>, vector<440x64xf32>,
    %c24 = arith.constant 24 : index
    %c0_129 = arith.constant 0 : index
    %95 = vector.load %arg9[%c24, %c0_129] : memref<506x64xf32, #tpu.memory_space<vmem>>, vector<440x64xf32>
    %c5_130 = arith.constant 5 : index
    %c0_131 = arith.constant 0 : index
    %c0_132 = arith.constant 0 : index
    %96 = vector.load %arg2[%c5_130, %c0_131, %c0_132] : memref<9x64x64xf32, #tpu.memory_space<vmem>>, vector<1x64x64xf32>
    %97 = vector.shape_cast %96 : vector<1x64x64xf32> to vector<64x64xf32>
    %cst_133 = arith.constant dense<0.000000e+00> : vector<440x64xf32>
    %98 = tpu.matmul %95, %97, %cst_133 {dimension_numbers = #tpu.dot_dimension_numbers<[1], [0], [0], [1], [0, 0, 1, 1], [], []>} : vector<440x64xf32>, vector<64x64xf32>, vector<440x64xf32> -> vector<440x64xf32>
    %c0_134 = arith.constant 0 : index
    %c0_135 = arith.constant 0 : index
    %99 = vector.load %arg10[%c0_134, %c0_135] : memref<440x64xf32, #tpu.memory_space<vmem>>, vector<440x64xf32>
    %100 = arith.addf %99, %98 : vector<440x64xf32>
    %c0_136 = arith.constant 0 : index
    %c0_137 = arith.constant 0 : index
    %101 = vector.load %arg10[%c0_136, %c0_137] : memref<440x64xf32, #tpu.memory_space<vmem>>, vector<440x64xf32>
    tpu.vector_store %arg10[%c0_136, %c0_137], %100 {strides = array<i32>} : memref<440x64xf32, #tpu.memory_space<vmem>>, vector<440x64xf32>,
    %c44 = arith.constant 44 : index
    %c0_138 = arith.constant 0 : index
    %102 = vector.load %arg9[%c44, %c0_138] : memref<506x64xf32, #tpu.memory_space<vmem>>, vector<440x64xf32>
    %c6_139 = arith.constant 6 : index
    %c0_140 = arith.constant 0 : index
    %c0_141 = arith.constant 0 : index
    %103 = vector.load %arg2[%c6_139, %c0_140, %c0_141] : memref<9x64x64xf32, #tpu.memory_space<vmem>>, vector<1x64x64xf32>
    %104 = vector.shape_cast %103 : vector<1x64x64xf32> to vector<64x64xf32>
    %cst_142 = arith.constant dense<0.000000e+00> : vector<440x64xf32>
    %105 = tpu.matmul %102, %104, %cst_142 {dimension_numbers = #tpu.dot_dimension_numbers<[1], [0], [0], [1], [0, 0, 1, 1], [], []>} : vector<440x64xf32>, vector<64x64xf32>, vector<440x64xf32> -> vector<440x64xf32>
    %c0_143 = arith.constant 0 : index
    %c0_144 = arith.constant 0 : index
    %106 = vector.load %arg10[%c0_143, %c0_144] : memref<440x64xf32, #tpu.memory_space<vmem>>, vector<440x64xf32>
    %107 = arith.addf %106, %105 : vector<440x64xf32>
    %c0_145 = arith.constant 0 : index
    %c0_146 = arith.constant 0 : index
    %108 = vector.load %arg10[%c0_145, %c0_146] : memref<440x64xf32, #tpu.memory_space<vmem>>, vector<440x64xf32>
    tpu.vector_store %arg10[%c0_145, %c0_146], %107 {strides = array<i32>} : memref<440x64xf32, #tpu.memory_space<vmem>>, vector<440x64xf32>,
    %c45_147 = arith.constant 45 : index
    %c0_148 = arith.constant 0 : index
    %109 = vector.load %arg9[%c45_147, %c0_148] : memref<506x64xf32, #tpu.memory_space<vmem>>, vector<440x64xf32>
    %c7_149 = arith.constant 7 : index
    %c0_150 = arith.constant 0 : index
    %c0_151 = arith.constant 0 : index
    %110 = vector.load %arg2[%c7_149, %c0_150, %c0_151] : memref<9x64x64xf32, #tpu.memory_space<vmem>>, vector<1x64x64xf32>
    %111 = vector.shape_cast %110 : vector<1x64x64xf32> to vector<64x64xf32>
    %cst_152 = arith.constant dense<0.000000e+00> : vector<440x64xf32>
    %112 = tpu.matmul %109, %111, %cst_152 {dimension_numbers = #tpu.dot_dimension_numbers<[1], [0], [0], [1], [0, 0, 1, 1], [], []>} : vector<440x64xf32>, vector<64x64xf32>, vector<440x64xf32> -> vector<440x64xf32>
    %c0_153 = arith.constant 0 : index
    %c0_154 = arith.constant 0 : index
    %113 = vector.load %arg10[%c0_153, %c0_154] : memref<440x64xf32, #tpu.memory_space<vmem>>, vector<440x64xf32>
    %114 = arith.addf %113, %112 : vector<440x64xf32>
    %c0_155 = arith.constant 0 : index
    %c0_156 = arith.constant 0 : index
    %115 = vector.load %arg10[%c0_155, %c0_156] : memref<440x64xf32, #tpu.memory_space<vmem>>, vector<440x64xf32>
    tpu.vector_store %arg10[%c0_155, %c0_156], %114 {strides = array<i32>} : memref<440x64xf32, #tpu.memory_space<vmem>>, vector<440x64xf32>,
    %c46 = arith.constant 46 : index
    %c0_157 = arith.constant 0 : index
    %116 = vector.load %arg9[%c46, %c0_157] : memref<506x64xf32, #tpu.memory_space<vmem>>, vector<440x64xf32>
    %c8_158 = arith.constant 8 : index
    %c0_159 = arith.constant 0 : index
    %c0_160 = arith.constant 0 : index
    %117 = vector.load %arg2[%c8_158, %c0_159, %c0_160] : memref<9x64x64xf32, #tpu.memory_space<vmem>>, vector<1x64x64xf32>
    %118 = vector.shape_cast %117 : vector<1x64x64xf32> to vector<64x64xf32>
    %cst_161 = arith.constant dense<0.000000e+00> : vector<440x64xf32>
    %119 = tpu.matmul %116, %118, %cst_161 {dimension_numbers = #tpu.dot_dimension_numbers<[1], [0], [0], [1], [0, 0, 1, 1], [], []>} : vector<440x64xf32>, vector<64x64xf32>, vector<440x64xf32> -> vector<440x64xf32>
    %c0_162 = arith.constant 0 : index
    %c0_163 = arith.constant 0 : index
    %120 = vector.load %arg10[%c0_162, %c0_163] : memref<440x64xf32, #tpu.memory_space<vmem>>, vector<440x64xf32>
    %121 = arith.addf %120, %119 : vector<440x64xf32>
    %c0_164 = arith.constant 0 : index
    %c0_165 = arith.constant 0 : index
    %122 = vector.load %arg10[%c0_164, %c0_165] : memref<440x64xf32, #tpu.memory_space<vmem>>, vector<440x64xf32>
    tpu.vector_store %arg10[%c0_164, %c0_165], %121 {strides = array<i32>} : memref<440x64xf32, #tpu.memory_space<vmem>>, vector<440x64xf32>,
    %cst_166 = arith.constant 0.000000e+00 : f32
    %123 = vector.broadcast %cst_166 : f32 to vector<156x64xf32>
    %c0_167 = arith.constant 0 : index
    %c0_168 = arith.constant 0 : index
    %124 = vector.load %arg11[%c0_167, %c0_168] : memref<156x64xf32, #tpu.memory_space<vmem>>, vector<156x64xf32>
    tpu.vector_store %arg11[%c0_167, %c0_168], %123 {strides = array<i32>} : memref<156x64xf32, #tpu.memory_space<vmem>>, vector<156x64xf32>,
    %c0_169 = arith.constant 0 : index
    %c0_170 = arith.constant 0 : index
    %125 = vector.load %arg3[%c0_169, %c0_170] : memref<1x64xf32, #tpu.memory_space<vmem>>, vector<1x64xf32>
    %c0_171 = arith.constant 0 : index
    %c0_172 = arith.constant 0 : index
    %126 = vector.load %arg4[%c0_171, %c0_172] : memref<1x64xf32, #tpu.memory_space<vmem>>, vector<1x64xf32>
    %c0_173 = arith.constant 0 : index
    %c0_174 = arith.constant 0 : index
    %127 = vector.load %arg10[%c0_173, %c0_174] : memref<440x64xf32, #tpu.memory_space<vmem>>, vector<20x64xf32>
    %c22_175 = arith.constant 22 : index
    %c0_176 = arith.constant 0 : index
    %128 = vector.load %arg10[%c22_175, %c0_176] : memref<440x64xf32, #tpu.memory_space<vmem>>, vector<20x64xf32>
    %129 = vector.broadcast %125 : vector<1x64xf32> to vector<20x64xf32>
    %130 = arith.mulf %127, %129 : vector<20x64xf32>
    %131 = vector.broadcast %126 : vector<1x64xf32> to vector<20x64xf32>
    %132 = arith.addf %130, %131 : vector<20x64xf32>
    %133 = vector.broadcast %125 : vector<1x64xf32> to vector<20x64xf32>
    %134 = arith.mulf %128, %133 : vector<20x64xf32>
    %135 = vector.broadcast %126 : vector<1x64xf32> to vector<20x64xf32>
    %136 = arith.addf %134, %135 : vector<20x64xf32>
    %137 = arith.maximumf %132, %136 : vector<20x64xf32>
    %138 = vector.shape_cast %137 : vector<20x64xf32> to vector<10x2x64xf32>
    %cst_177 = arith.constant dense<0xFF800000> : vector<10x64xf32>
    %139 = vector.multi_reduction <maximumf>, %138, %cst_177 [1] : vector<10x2x64xf32> to vector<10x64xf32>
    %cst_178 = arith.constant 0.000000e+00 : f32
    %140 = vector.broadcast %cst_178 : f32 to vector<10x64xf32>
    %141 = arith.maximumf %139, %140 : vector<10x64xf32>
    %c13_179 = arith.constant 13 : index
    %c0_180 = arith.constant 0 : index
    %142 = vector.load %arg11[%c13_179, %c0_180] : memref<156x64xf32, #tpu.memory_space<vmem>>, vector<10x64xf32>
    tpu.vector_store %arg11[%c13_179, %c0_180], %141 {strides = array<i32>} : memref<156x64xf32, #tpu.memory_space<vmem>>, vector<10x64xf32>,
    %c44_181 = arith.constant 44 : index
    %c0_182 = arith.constant 0 : index
    %143 = vector.load %arg10[%c44_181, %c0_182] : memref<440x64xf32, #tpu.memory_space<vmem>>, vector<20x64xf32>
    %c66 = arith.constant 66 : index
    %c0_183 = arith.constant 0 : index
    %144 = vector.load %arg10[%c66, %c0_183] : memref<440x64xf32, #tpu.memory_space<vmem>>, vector<20x64xf32>
    %145 = vector.broadcast %125 : vector<1x64xf32> to vector<20x64xf32>
    %146 = arith.mulf %143, %145 : vector<20x64xf32>
    %147 = vector.broadcast %126 : vector<1x64xf32> to vector<20x64xf32>
    %148 = arith.addf %146, %147 : vector<20x64xf32>
    %149 = vector.broadcast %125 : vector<1x64xf32> to vector<20x64xf32>
    %150 = arith.mulf %144, %149 : vector<20x64xf32>
    %151 = vector.broadcast %126 : vector<1x64xf32> to vector<20x64xf32>
    %152 = arith.addf %150, %151 : vector<20x64xf32>
    %153 = arith.maximumf %148, %152 : vector<20x64xf32>
    %154 = vector.shape_cast %153 : vector<20x64xf32> to vector<10x2x64xf32>
    %cst_184 = arith.constant dense<0xFF800000> : vector<10x64xf32>
    %155 = vector.multi_reduction <maximumf>, %154, %cst_184 [1] : vector<10x2x64xf32> to vector<10x64xf32>
    %cst_185 = arith.constant 0.000000e+00 : f32
    %156 = vector.broadcast %cst_185 : f32 to vector<10x64xf32>
    %157 = arith.maximumf %155, %156 : vector<10x64xf32>
    %c25 = arith.constant 25 : index
    %c0_186 = arith.constant 0 : index
    %158 = vector.load %arg11[%c25, %c0_186] : memref<156x64xf32, #tpu.memory_space<vmem>>, vector<10x64xf32>
    tpu.vector_store %arg11[%c25, %c0_186], %157 {strides = array<i32>} : memref<156x64xf32, #tpu.memory_space<vmem>>, vector<10x64xf32>,
    %c88 = arith.constant 88 : index
    %c0_187 = arith.constant 0 : index
    %159 = vector.load %arg10[%c88, %c0_187] : memref<440x64xf32, #tpu.memory_space<vmem>>, vector<20x64xf32>
    %c110 = arith.constant 110 : index
    %c0_188 = arith.constant 0 : index
    %160 = vector.load %arg10[%c110, %c0_188] : memref<440x64xf32, #tpu.memory_space<vmem>>, vector<20x64xf32>
    %161 = vector.broadcast %125 : vector<1x64xf32> to vector<20x64xf32>
    %162 = arith.mulf %159, %161 : vector<20x64xf32>
    %163 = vector.broadcast %126 : vector<1x64xf32> to vector<20x64xf32>
    %164 = arith.addf %162, %163 : vector<20x64xf32>
    %165 = vector.broadcast %125 : vector<1x64xf32> to vector<20x64xf32>
    %166 = arith.mulf %160, %165 : vector<20x64xf32>
    %167 = vector.broadcast %126 : vector<1x64xf32> to vector<20x64xf32>
    %168 = arith.addf %166, %167 : vector<20x64xf32>
    %169 = arith.maximumf %164, %168 : vector<20x64xf32>
    %170 = vector.shape_cast %169 : vector<20x64xf32> to vector<10x2x64xf32>
    %cst_189 = arith.constant dense<0xFF800000> : vector<10x64xf32>
    %171 = vector.multi_reduction <maximumf>, %170, %cst_189 [1] : vector<10x2x64xf32> to vector<10x64xf32>
    %cst_190 = arith.constant 0.000000e+00 : f32
    %172 = vector.broadcast %cst_190 : f32 to vector<10x64xf32>
    %173 = arith.maximumf %171, %172 : vector<10x64xf32>
    %c37 = arith.constant 37 : index
    %c0_191 = arith.constant 0 : index
    %174 = vector.load %arg11[%c37, %c0_191] : memref<156x64xf32, #tpu.memory_space<vmem>>, vector<10x64xf32>
    tpu.vector_store %arg11[%c37, %c0_191], %173 {strides = array<i32>} : memref<156x64xf32, #tpu.memory_space<vmem>>, vector<10x64xf32>,
    %c132 = arith.constant 132 : index
    %c0_192 = arith.constant 0 : index
    %175 = vector.load %arg10[%c132, %c0_192] : memref<440x64xf32, #tpu.memory_space<vmem>>, vector<20x64xf32>
    %c154 = arith.constant 154 : index
    %c0_193 = arith.constant 0 : index
    %176 = vector.load %arg10[%c154, %c0_193] : memref<440x64xf32, #tpu.memory_space<vmem>>, vector<20x64xf32>
    %177 = vector.broadcast %125 : vector<1x64xf32> to vector<20x64xf32>
    %178 = arith.mulf %175, %177 : vector<20x64xf32>
    %179 = vector.broadcast %126 : vector<1x64xf32> to vector<20x64xf32>
    %180 = arith.addf %178, %179 : vector<20x64xf32>
    %181 = vector.broadcast %125 : vector<1x64xf32> to vector<20x64xf32>
    %182 = arith.mulf %176, %181 : vector<20x64xf32>
    %183 = vector.broadcast %126 : vector<1x64xf32> to vector<20x64xf32>
    %184 = arith.addf %182, %183 : vector<20x64xf32>
    %185 = arith.maximumf %180, %184 : vector<20x64xf32>
    %186 = vector.shape_cast %185 : vector<20x64xf32> to vector<10x2x64xf32>
    %cst_194 = arith.constant dense<0xFF800000> : vector<10x64xf32>
    %187 = vector.multi_reduction <maximumf>, %186, %cst_194 [1] : vector<10x2x64xf32> to vector<10x64xf32>
    %cst_195 = arith.constant 0.000000e+00 : f32
    %188 = vector.broadcast %cst_195 : f32 to vector<10x64xf32>
    %189 = arith.maximumf %187, %188 : vector<10x64xf32>
    %c49 = arith.constant 49 : index
    %c0_196 = arith.constant 0 : index
    %190 = vector.load %arg11[%c49, %c0_196] : memref<156x64xf32, #tpu.memory_space<vmem>>, vector<10x64xf32>
    tpu.vector_store %arg11[%c49, %c0_196], %189 {strides = array<i32>} : memref<156x64xf32, #tpu.memory_space<vmem>>, vector<10x64xf32>,
    %c176 = arith.constant 176 : index
    %c0_197 = arith.constant 0 : index
    %191 = vector.load %arg10[%c176, %c0_197] : memref<440x64xf32, #tpu.memory_space<vmem>>, vector<20x64xf32>
    %c198 = arith.constant 198 : index
    %c0_198 = arith.constant 0 : index
    %192 = vector.load %arg10[%c198, %c0_198] : memref<440x64xf32, #tpu.memory_space<vmem>>, vector<20x64xf32>
    %193 = vector.broadcast %125 : vector<1x64xf32> to vector<20x64xf32>
    %194 = arith.mulf %191, %193 : vector<20x64xf32>
    %195 = vector.broadcast %126 : vector<1x64xf32> to vector<20x64xf32>
    %196 = arith.addf %194, %195 : vector<20x64xf32>
    %197 = vector.broadcast %125 : vector<1x64xf32> to vector<20x64xf32>
    %198 = arith.mulf %192, %197 : vector<20x64xf32>
    %199 = vector.broadcast %126 : vector<1x64xf32> to vector<20x64xf32>
    %200 = arith.addf %198, %199 : vector<20x64xf32>
    %201 = arith.maximumf %196, %200 : vector<20x64xf32>
    %202 = vector.shape_cast %201 : vector<20x64xf32> to vector<10x2x64xf32>
    %cst_199 = arith.constant dense<0xFF800000> : vector<10x64xf32>
    %203 = vector.multi_reduction <maximumf>, %202, %cst_199 [1] : vector<10x2x64xf32> to vector<10x64xf32>
    %cst_200 = arith.constant 0.000000e+00 : f32
    %204 = vector.broadcast %cst_200 : f32 to vector<10x64xf32>
    %205 = arith.maximumf %203, %204 : vector<10x64xf32>
    %c61 = arith.constant 61 : index
    %c0_201 = arith.constant 0 : index
    %206 = vector.load %arg11[%c61, %c0_201] : memref<156x64xf32, #tpu.memory_space<vmem>>, vector<10x64xf32>
    tpu.vector_store %arg11[%c61, %c0_201], %205 {strides = array<i32>} : memref<156x64xf32, #tpu.memory_space<vmem>>, vector<10x64xf32>,
    %c220 = arith.constant 220 : index
    %c0_202 = arith.constant 0 : index
    %207 = vector.load %arg10[%c220, %c0_202] : memref<440x64xf32, #tpu.memory_space<vmem>>, vector<20x64xf32>
    %c242 = arith.constant 242 : index
    %c0_203 = arith.constant 0 : index
    %208 = vector.load %arg10[%c242, %c0_203] : memref<440x64xf32, #tpu.memory_space<vmem>>, vector<20x64xf32>
    %209 = vector.broadcast %125 : vector<1x64xf32> to vector<20x64xf32>
    %210 = arith.mulf %207, %209 : vector<20x64xf32>
    %211 = vector.broadcast %126 : vector<1x64xf32> to vector<20x64xf32>
    %212 = arith.addf %210, %211 : vector<20x64xf32>
    %213 = vector.broadcast %125 : vector<1x64xf32> to vector<20x64xf32>
    %214 = arith.mulf %208, %213 : vector<20x64xf32>
    %215 = vector.broadcast %126 : vector<1x64xf32> to vector<20x64xf32>
    %216 = arith.addf %214, %215 : vector<20x64xf32>
    %217 = arith.maximumf %212, %216 : vector<20x64xf32>
    %218 = vector.shape_cast %217 : vector<20x64xf32> to vector<10x2x64xf32>
    %cst_204 = arith.constant dense<0xFF800000> : vector<10x64xf32>
    %219 = vector.multi_reduction <maximumf>, %218, %cst_204 [1] : vector<10x2x64xf32> to vector<10x64xf32>
    %cst_205 = arith.constant 0.000000e+00 : f32
    %220 = vector.broadcast %cst_205 : f32 to vector<10x64xf32>
    %221 = arith.maximumf %219, %220 : vector<10x64xf32>
    %c73 = arith.constant 73 : index
    %c0_206 = arith.constant 0 : index
    %222 = vector.load %arg11[%c73, %c0_206] : memref<156x64xf32, #tpu.memory_space<vmem>>, vector<10x64xf32>
    tpu.vector_store %arg11[%c73, %c0_206], %221 {strides = array<i32>} : memref<156x64xf32, #tpu.memory_space<vmem>>, vector<10x64xf32>,
    %c264 = arith.constant 264 : index
    %c0_207 = arith.constant 0 : index
    %223 = vector.load %arg10[%c264, %c0_207] : memref<440x64xf32, #tpu.memory_space<vmem>>, vector<20x64xf32>
    %c286 = arith.constant 286 : index
    %c0_208 = arith.constant 0 : index
    %224 = vector.load %arg10[%c286, %c0_208] : memref<440x64xf32, #tpu.memory_space<vmem>>, vector<20x64xf32>
    %225 = vector.broadcast %125 : vector<1x64xf32> to vector<20x64xf32>
    %226 = arith.mulf %223, %225 : vector<20x64xf32>
    %227 = vector.broadcast %126 : vector<1x64xf32> to vector<20x64xf32>
    %228 = arith.addf %226, %227 : vector<20x64xf32>
    %229 = vector.broadcast %125 : vector<1x64xf32> to vector<20x64xf32>
    %230 = arith.mulf %224, %229 : vector<20x64xf32>
    %231 = vector.broadcast %126 : vector<1x64xf32> to vector<20x64xf32>
    %232 = arith.addf %230, %231 : vector<20x64xf32>
    %233 = arith.maximumf %228, %232 : vector<20x64xf32>
    %234 = vector.shape_cast %233 : vector<20x64xf32> to vector<10x2x64xf32>
    %cst_209 = arith.constant dense<0xFF800000> : vector<10x64xf32>
    %235 = vector.multi_reduction <maximumf>, %234, %cst_209 [1] : vector<10x2x64xf32> to vector<10x64xf32>
    %cst_210 = arith.constant 0.000000e+00 : f32
    %236 = vector.broadcast %cst_210 : f32 to vector<10x64xf32>
    %237 = arith.maximumf %235, %236 : vector<10x64xf32>
    %c85 = arith.constant 85 : index
    %c0_211 = arith.constant 0 : index
    %238 = vector.load %arg11[%c85, %c0_211] : memref<156x64xf32, #tpu.memory_space<vmem>>, vector<10x64xf32>
    tpu.vector_store %arg11[%c85, %c0_211], %237 {strides = array<i32>} : memref<156x64xf32, #tpu.memory_space<vmem>>, vector<10x64xf32>,
    %c308 = arith.constant 308 : index
    %c0_212 = arith.constant 0 : index
    %239 = vector.load %arg10[%c308, %c0_212] : memref<440x64xf32, #tpu.memory_space<vmem>>, vector<20x64xf32>
    %c330 = arith.constant 330 : index
    %c0_213 = arith.constant 0 : index
    %240 = vector.load %arg10[%c330, %c0_213] : memref<440x64xf32, #tpu.memory_space<vmem>>, vector<20x64xf32>
    %241 = vector.broadcast %125 : vector<1x64xf32> to vector<20x64xf32>
    %242 = arith.mulf %239, %241 : vector<20x64xf32>
    %243 = vector.broadcast %126 : vector<1x64xf32> to vector<20x64xf32>
    %244 = arith.addf %242, %243 : vector<20x64xf32>
    %245 = vector.broadcast %125 : vector<1x64xf32> to vector<20x64xf32>
    %246 = arith.mulf %240, %245 : vector<20x64xf32>
    %247 = vector.broadcast %126 : vector<1x64xf32> to vector<20x64xf32>
    %248 = arith.addf %246, %247 : vector<20x64xf32>
    %249 = arith.maximumf %244, %248 : vector<20x64xf32>
    %250 = vector.shape_cast %249 : vector<20x64xf32> to vector<10x2x64xf32>
    %cst_214 = arith.constant dense<0xFF800000> : vector<10x64xf32>
    %251 = vector.multi_reduction <maximumf>, %250, %cst_214 [1] : vector<10x2x64xf32> to vector<10x64xf32>
    %cst_215 = arith.constant 0.000000e+00 : f32
    %252 = vector.broadcast %cst_215 : f32 to vector<10x64xf32>
    %253 = arith.maximumf %251, %252 : vector<10x64xf32>
    %c97 = arith.constant 97 : index
    %c0_216 = arith.constant 0 : index
    %254 = vector.load %arg11[%c97, %c0_216] : memref<156x64xf32, #tpu.memory_space<vmem>>, vector<10x64xf32>
    tpu.vector_store %arg11[%c97, %c0_216], %253 {strides = array<i32>} : memref<156x64xf32, #tpu.memory_space<vmem>>, vector<10x64xf32>,
    %c352 = arith.constant 352 : index
    %c0_217 = arith.constant 0 : index
    %255 = vector.load %arg10[%c352, %c0_217] : memref<440x64xf32, #tpu.memory_space<vmem>>, vector<20x64xf32>
    %c374 = arith.constant 374 : index
    %c0_218 = arith.constant 0 : index
    %256 = vector.load %arg10[%c374, %c0_218] : memref<440x64xf32, #tpu.memory_space<vmem>>, vector<20x64xf32>
    %257 = vector.broadcast %125 : vector<1x64xf32> to vector<20x64xf32>
    %258 = arith.mulf %255, %257 : vector<20x64xf32>
    %259 = vector.broadcast %126 : vector<1x64xf32> to vector<20x64xf32>
    %260 = arith.addf %258, %259 : vector<20x64xf32>
    %261 = vector.broadcast %125 : vector<1x64xf32> to vector<20x64xf32>
    %262 = arith.mulf %256, %261 : vector<20x64xf32>
    %263 = vector.broadcast %126 : vector<1x64xf32> to vector<20x64xf32>
    %264 = arith.addf %262, %263 : vector<20x64xf32>
    %265 = arith.maximumf %260, %264 : vector<20x64xf32>
    %266 = vector.shape_cast %265 : vector<20x64xf32> to vector<10x2x64xf32>
    %cst_219 = arith.constant dense<0xFF800000> : vector<10x64xf32>
    %267 = vector.multi_reduction <maximumf>, %266, %cst_219 [1] : vector<10x2x64xf32> to vector<10x64xf32>
    %cst_220 = arith.constant 0.000000e+00 : f32
    %268 = vector.broadcast %cst_220 : f32 to vector<10x64xf32>
    %269 = arith.maximumf %267, %268 : vector<10x64xf32>
    %c109 = arith.constant 109 : index
    %c0_221 = arith.constant 0 : index
    %270 = vector.load %arg11[%c109, %c0_221] : memref<156x64xf32, #tpu.memory_space<vmem>>, vector<10x64xf32>
    tpu.vector_store %arg11[%c109, %c0_221], %269 {strides = array<i32>} : memref<156x64xf32, #tpu.memory_space<vmem>>, vector<10x64xf32>,
    %c396 = arith.constant 396 : index
    %c0_222 = arith.constant 0 : index
    %271 = vector.load %arg10[%c396, %c0_222] : memref<440x64xf32, #tpu.memory_space<vmem>>, vector<20x64xf32>
    %c418 = arith.constant 418 : index
    %c0_223 = arith.constant 0 : index
    %272 = vector.load %arg10[%c418, %c0_223] : memref<440x64xf32, #tpu.memory_space<vmem>>, vector<20x64xf32>
    %273 = vector.broadcast %125 : vector<1x64xf32> to vector<20x64xf32>
    %274 = arith.mulf %271, %273 : vector<20x64xf32>
    %275 = vector.broadcast %126 : vector<1x64xf32> to vector<20x64xf32>
    %276 = arith.addf %274, %275 : vector<20x64xf32>
    %277 = vector.broadcast %125 : vector<1x64xf32> to vector<20x64xf32>
    %278 = arith.mulf %272, %277 : vector<20x64xf32>
    %279 = vector.broadcast %126 : vector<1x64xf32> to vector<20x64xf32>
    %280 = arith.addf %278, %279 : vector<20x64xf32>
    %281 = arith.maximumf %276, %280 : vector<20x64xf32>
    %282 = vector.shape_cast %281 : vector<20x64xf32> to vector<10x2x64xf32>
    %cst_224 = arith.constant dense<0xFF800000> : vector<10x64xf32>
    %283 = vector.multi_reduction <maximumf>, %282, %cst_224 [1] : vector<10x2x64xf32> to vector<10x64xf32>
    %cst_225 = arith.constant 0.000000e+00 : f32
    %284 = vector.broadcast %cst_225 : f32 to vector<10x64xf32>
    %285 = arith.maximumf %283, %284 : vector<10x64xf32>
    %c121 = arith.constant 121 : index
    %c0_226 = arith.constant 0 : index
    %286 = vector.load %arg11[%c121, %c0_226] : memref<156x64xf32, #tpu.memory_space<vmem>>, vector<10x64xf32>
    tpu.vector_store %arg11[%c121, %c0_226], %285 {strides = array<i32>} : memref<156x64xf32, #tpu.memory_space<vmem>>, vector<10x64xf32>,
    %c0_227 = arith.constant 0 : index
    %c0_228 = arith.constant 0 : index
    %287 = vector.load %arg11[%c0_227, %c0_228] : memref<156x64xf32, #tpu.memory_space<vmem>>, vector<120x64xf32>
    %c0_229 = arith.constant 0 : index
    %c0_230 = arith.constant 0 : index
    %c0_231 = arith.constant 0 : index
    %288 = vector.load %arg5[%c0_229, %c0_230, %c0_231] : memref<9x64x64xf32, #tpu.memory_space<vmem>>, vector<1x64x64xf32>
    %289 = vector.shape_cast %288 : vector<1x64x64xf32> to vector<64x64xf32>
    %cst_232 = arith.constant dense<0.000000e+00> : vector<120x64xf32>
    %290 = tpu.matmul %287, %289, %cst_232 {dimension_numbers = #tpu.dot_dimension_numbers<[1], [0], [0], [1], [0, 0, 1, 1], [], []>} : vector<120x64xf32>, vector<64x64xf32>, vector<120x64xf32> -> vector<120x64xf32>
    %c0_233 = arith.constant 0 : index
    %c0_234 = arith.constant 0 : index
    %291 = vector.load %arg12[%c0_233, %c0_234] : memref<120x64xf32, #tpu.memory_space<vmem>>, vector<120x64xf32>
    tpu.vector_store %arg12[%c0_233, %c0_234], %290 {strides = array<i32>} : memref<120x64xf32, #tpu.memory_space<vmem>>, vector<120x64xf32>,
    %c1_235 = arith.constant 1 : index
    %c0_236 = arith.constant 0 : index
    %292 = vector.load %arg11[%c1_235, %c0_236] : memref<156x64xf32, #tpu.memory_space<vmem>>, vector<120x64xf32>
    %c1_237 = arith.constant 1 : index
    %c0_238 = arith.constant 0 : index
    %c0_239 = arith.constant 0 : index
    %293 = vector.load %arg5[%c1_237, %c0_238, %c0_239] : memref<9x64x64xf32, #tpu.memory_space<vmem>>, vector<1x64x64xf32>
    %294 = vector.shape_cast %293 : vector<1x64x64xf32> to vector<64x64xf32>
    %cst_240 = arith.constant dense<0.000000e+00> : vector<120x64xf32>
    %295 = tpu.matmul %292, %294, %cst_240 {dimension_numbers = #tpu.dot_dimension_numbers<[1], [0], [0], [1], [0, 0, 1, 1], [], []>} : vector<120x64xf32>, vector<64x64xf32>, vector<120x64xf32> -> vector<120x64xf32>
    %c0_241 = arith.constant 0 : index
    %c0_242 = arith.constant 0 : index
    %296 = vector.load %arg12[%c0_241, %c0_242] : memref<120x64xf32, #tpu.memory_space<vmem>>, vector<120x64xf32>
    %297 = arith.addf %296, %295 : vector<120x64xf32>
    %c0_243 = arith.constant 0 : index
    %c0_244 = arith.constant 0 : index
    %298 = vector.load %arg12[%c0_243, %c0_244] : memref<120x64xf32, #tpu.memory_space<vmem>>, vector<120x64xf32>
    tpu.vector_store %arg12[%c0_243, %c0_244], %297 {strides = array<i32>} : memref<120x64xf32, #tpu.memory_space<vmem>>, vector<120x64xf32>,
    %c2_245 = arith.constant 2 : index
    %c0_246 = arith.constant 0 : index
    %299 = vector.load %arg11[%c2_245, %c0_246] : memref<156x64xf32, #tpu.memory_space<vmem>>, vector<120x64xf32>
    %c2_247 = arith.constant 2 : index
    %c0_248 = arith.constant 0 : index
    %c0_249 = arith.constant 0 : index
    %300 = vector.load %arg5[%c2_247, %c0_248, %c0_249] : memref<9x64x64xf32, #tpu.memory_space<vmem>>, vector<1x64x64xf32>
    %301 = vector.shape_cast %300 : vector<1x64x64xf32> to vector<64x64xf32>
    %cst_250 = arith.constant dense<0.000000e+00> : vector<120x64xf32>
    %302 = tpu.matmul %299, %301, %cst_250 {dimension_numbers = #tpu.dot_dimension_numbers<[1], [0], [0], [1], [0, 0, 1, 1], [], []>} : vector<120x64xf32>, vector<64x64xf32>, vector<120x64xf32> -> vector<120x64xf32>
    %c0_251 = arith.constant 0 : index
    %c0_252 = arith.constant 0 : index
    %303 = vector.load %arg12[%c0_251, %c0_252] : memref<120x64xf32, #tpu.memory_space<vmem>>, vector<120x64xf32>
    %304 = arith.addf %303, %302 : vector<120x64xf32>
    %c0_253 = arith.constant 0 : index
    %c0_254 = arith.constant 0 : index
    %305 = vector.load %arg12[%c0_253, %c0_254] : memref<120x64xf32, #tpu.memory_space<vmem>>, vector<120x64xf32>
    tpu.vector_store %arg12[%c0_253, %c0_254], %304 {strides = array<i32>} : memref<120x64xf32, #tpu.memory_space<vmem>>, vector<120x64xf32>,
    %c12_255 = arith.constant 12 : index
    %c0_256 = arith.constant 0 : index
    %306 = vector.load %arg11[%c12_255, %c0_256] : memref<156x64xf32, #tpu.memory_space<vmem>>, vector<120x64xf32>
    %c3_257 = arith.constant 3 : index
    %c0_258 = arith.constant 0 : index
    %c0_259 = arith.constant 0 : index
    %307 = vector.load %arg5[%c3_257, %c0_258, %c0_259] : memref<9x64x64xf32, #tpu.memory_space<vmem>>, vector<1x64x64xf32>
    %308 = vector.shape_cast %307 : vector<1x64x64xf32> to vector<64x64xf32>
    %cst_260 = arith.constant dense<0.000000e+00> : vector<120x64xf32>
    %309 = tpu.matmul %306, %308, %cst_260 {dimension_numbers = #tpu.dot_dimension_numbers<[1], [0], [0], [1], [0, 0, 1, 1], [], []>} : vector<120x64xf32>, vector<64x64xf32>, vector<120x64xf32> -> vector<120x64xf32>
    %c0_261 = arith.constant 0 : index
    %c0_262 = arith.constant 0 : index
    %310 = vector.load %arg12[%c0_261, %c0_262] : memref<120x64xf32, #tpu.memory_space<vmem>>, vector<120x64xf32>
    %311 = arith.addf %310, %309 : vector<120x64xf32>
    %c0_263 = arith.constant 0 : index
    %c0_264 = arith.constant 0 : index
    %312 = vector.load %arg12[%c0_263, %c0_264] : memref<120x64xf32, #tpu.memory_space<vmem>>, vector<120x64xf32>
    tpu.vector_store %arg12[%c0_263, %c0_264], %311 {strides = array<i32>} : memref<120x64xf32, #tpu.memory_space<vmem>>, vector<120x64xf32>,
    %c13_265 = arith.constant 13 : index
    %c0_266 = arith.constant 0 : index
    %313 = vector.load %arg11[%c13_265, %c0_266] : memref<156x64xf32, #tpu.memory_space<vmem>>, vector<120x64xf32>
    %c4_267 = arith.constant 4 : index
    %c0_268 = arith.constant 0 : index
    %c0_269 = arith.constant 0 : index
    %314 = vector.load %arg5[%c4_267, %c0_268, %c0_269] : memref<9x64x64xf32, #tpu.memory_space<vmem>>, vector<1x64x64xf32>
    %315 = vector.shape_cast %314 : vector<1x64x64xf32> to vector<64x64xf32>
    %cst_270 = arith.constant dense<0.000000e+00> : vector<120x64xf32>
    %316 = tpu.matmul %313, %315, %cst_270 {dimension_numbers = #tpu.dot_dimension_numbers<[1], [0], [0], [1], [0, 0, 1, 1], [], []>} : vector<120x64xf32>, vector<64x64xf32>, vector<120x64xf32> -> vector<120x64xf32>
    %c0_271 = arith.constant 0 : index
    %c0_272 = arith.constant 0 : index
    %317 = vector.load %arg12[%c0_271, %c0_272] : memref<120x64xf32, #tpu.memory_space<vmem>>, vector<120x64xf32>
    %318 = arith.addf %317, %316 : vector<120x64xf32>
    %c0_273 = arith.constant 0 : index
    %c0_274 = arith.constant 0 : index
    %319 = vector.load %arg12[%c0_273, %c0_274] : memref<120x64xf32, #tpu.memory_space<vmem>>, vector<120x64xf32>
    tpu.vector_store %arg12[%c0_273, %c0_274], %318 {strides = array<i32>} : memref<120x64xf32, #tpu.memory_space<vmem>>, vector<120x64xf32>,
    %c14_275 = arith.constant 14 : index
    %c0_276 = arith.constant 0 : index
    %320 = vector.load %arg11[%c14_275, %c0_276] : memref<156x64xf32, #tpu.memory_space<vmem>>, vector<120x64xf32>
    %c5_277 = arith.constant 5 : index
    %c0_278 = arith.constant 0 : index
    %c0_279 = arith.constant 0 : index
    %321 = vector.load %arg5[%c5_277, %c0_278, %c0_279] : memref<9x64x64xf32, #tpu.memory_space<vmem>>, vector<1x64x64xf32>
    %322 = vector.shape_cast %321 : vector<1x64x64xf32> to vector<64x64xf32>
    %cst_280 = arith.constant dense<0.000000e+00> : vector<120x64xf32>
    %323 = tpu.matmul %320, %322, %cst_280 {dimension_numbers = #tpu.dot_dimension_numbers<[1], [0], [0], [1], [0, 0, 1, 1], [], []>} : vector<120x64xf32>, vector<64x64xf32>, vector<120x64xf32> -> vector<120x64xf32>
    %c0_281 = arith.constant 0 : index
    %c0_282 = arith.constant 0 : index
    %324 = vector.load %arg12[%c0_281, %c0_282] : memref<120x64xf32, #tpu.memory_space<vmem>>, vector<120x64xf32>
    %325 = arith.addf %324, %323 : vector<120x64xf32>
    %c0_283 = arith.constant 0 : index
    %c0_284 = arith.constant 0 : index
    %326 = vector.load %arg12[%c0_283, %c0_284] : memref<120x64xf32, #tpu.memory_space<vmem>>, vector<120x64xf32>
    tpu.vector_store %arg12[%c0_283, %c0_284], %325 {strides = array<i32>} : memref<120x64xf32, #tpu.memory_space<vmem>>, vector<120x64xf32>,
    %c24_285 = arith.constant 24 : index
    %c0_286 = arith.constant 0 : index
    %327 = vector.load %arg11[%c24_285, %c0_286] : memref<156x64xf32, #tpu.memory_space<vmem>>, vector<120x64xf32>
    %c6_287 = arith.constant 6 : index
    %c0_288 = arith.constant 0 : index
    %c0_289 = arith.constant 0 : index
    %328 = vector.load %arg5[%c6_287, %c0_288, %c0_289] : memref<9x64x64xf32, #tpu.memory_space<vmem>>, vector<1x64x64xf32>
    %329 = vector.shape_cast %328 : vector<1x64x64xf32> to vector<64x64xf32>
    %cst_290 = arith.constant dense<0.000000e+00> : vector<120x64xf32>
    %330 = tpu.matmul %327, %329, %cst_290 {dimension_numbers = #tpu.dot_dimension_numbers<[1], [0], [0], [1], [0, 0, 1, 1], [], []>} : vector<120x64xf32>, vector<64x64xf32>, vector<120x64xf32> -> vector<120x64xf32>
    %c0_291 = arith.constant 0 : index
    %c0_292 = arith.constant 0 : index
    %331 = vector.load %arg12[%c0_291, %c0_292] : memref<120x64xf32, #tpu.memory_space<vmem>>, vector<120x64xf32>
    %332 = arith.addf %331, %330 : vector<120x64xf32>
    %c0_293 = arith.constant 0 : index
    %c0_294 = arith.constant 0 : index
    %333 = vector.load %arg12[%c0_293, %c0_294] : memref<120x64xf32, #tpu.memory_space<vmem>>, vector<120x64xf32>
    tpu.vector_store %arg12[%c0_293, %c0_294], %332 {strides = array<i32>} : memref<120x64xf32, #tpu.memory_space<vmem>>, vector<120x64xf32>,
    %c25_295 = arith.constant 25 : index
    %c0_296 = arith.constant 0 : index
    %334 = vector.load %arg11[%c25_295, %c0_296] : memref<156x64xf32, #tpu.memory_space<vmem>>, vector<120x64xf32>
    %c7_297 = arith.constant 7 : index
    %c0_298 = arith.constant 0 : index
    %c0_299 = arith.constant 0 : index
    %335 = vector.load %arg5[%c7_297, %c0_298, %c0_299] : memref<9x64x64xf32, #tpu.memory_space<vmem>>, vector<1x64x64xf32>
    %336 = vector.shape_cast %335 : vector<1x64x64xf32> to vector<64x64xf32>
    %cst_300 = arith.constant dense<0.000000e+00> : vector<120x64xf32>
    %337 = tpu.matmul %334, %336, %cst_300 {dimension_numbers = #tpu.dot_dimension_numbers<[1], [0], [0], [1], [0, 0, 1, 1], [], []>} : vector<120x64xf32>, vector<64x64xf32>, vector<120x64xf32> -> vector<120x64xf32>
    %c0_301 = arith.constant 0 : index
    %c0_302 = arith.constant 0 : index
    %338 = vector.load %arg12[%c0_301, %c0_302] : memref<120x64xf32, #tpu.memory_space<vmem>>, vector<120x64xf32>
    %339 = arith.addf %338, %337 : vector<120x64xf32>
    %c0_303 = arith.constant 0 : index
    %c0_304 = arith.constant 0 : index
    %340 = vector.load %arg12[%c0_303, %c0_304] : memref<120x64xf32, #tpu.memory_space<vmem>>, vector<120x64xf32>
    tpu.vector_store %arg12[%c0_303, %c0_304], %339 {strides = array<i32>} : memref<120x64xf32, #tpu.memory_space<vmem>>, vector<120x64xf32>,
    %c26 = arith.constant 26 : index
    %c0_305 = arith.constant 0 : index
    %341 = vector.load %arg11[%c26, %c0_305] : memref<156x64xf32, #tpu.memory_space<vmem>>, vector<120x64xf32>
    %c8_306 = arith.constant 8 : index
    %c0_307 = arith.constant 0 : index
    %c0_308 = arith.constant 0 : index
    %342 = vector.load %arg5[%c8_306, %c0_307, %c0_308] : memref<9x64x64xf32, #tpu.memory_space<vmem>>, vector<1x64x64xf32>
    %343 = vector.shape_cast %342 : vector<1x64x64xf32> to vector<64x64xf32>
    %cst_309 = arith.constant dense<0.000000e+00> : vector<120x64xf32>
    %344 = tpu.matmul %341, %343, %cst_309 {dimension_numbers = #tpu.dot_dimension_numbers<[1], [0], [0], [1], [0, 0, 1, 1], [], []>} : vector<120x64xf32>, vector<64x64xf32>, vector<120x64xf32> -> vector<120x64xf32>
    %c0_310 = arith.constant 0 : index
    %c0_311 = arith.constant 0 : index
    %345 = vector.load %arg12[%c0_310, %c0_311] : memref<120x64xf32, #tpu.memory_space<vmem>>, vector<120x64xf32>
    %346 = arith.addf %345, %344 : vector<120x64xf32>
    %c0_312 = arith.constant 0 : index
    %c0_313 = arith.constant 0 : index
    %347 = vector.load %arg12[%c0_312, %c0_313] : memref<120x64xf32, #tpu.memory_space<vmem>>, vector<120x64xf32>
    tpu.vector_store %arg12[%c0_312, %c0_313], %346 {strides = array<i32>} : memref<120x64xf32, #tpu.memory_space<vmem>>, vector<120x64xf32>,
    %c0_314 = arith.constant 0 : index
    %c0_315 = arith.constant 0 : index
    %348 = vector.load %arg6[%c0_314, %c0_315] : memref<1x64xf32, #tpu.memory_space<vmem>>, vector<1x64xf32>
    %c0_316 = arith.constant 0 : index
    %c0_317 = arith.constant 0 : index
    %349 = vector.load %arg7[%c0_316, %c0_317] : memref<1x64xf32, #tpu.memory_space<vmem>>, vector<1x64xf32>
    %cst_318 = arith.constant 0xFF800000 : f32
    %350 = vector.broadcast %cst_318 : f32 to vector<10x64xf32>
    %c0_319 = arith.constant 0 : index
    %c0_320 = arith.constant 0 : index
    %351 = vector.load %arg12[%c0_319, %c0_320] : memref<120x64xf32, #tpu.memory_space<vmem>>, vector<10x64xf32>
    %352 = vector.broadcast %348 : vector<1x64xf32> to vector<10x64xf32>
    %353 = arith.mulf %351, %352 : vector<10x64xf32>
    %354 = vector.broadcast %349 : vector<1x64xf32> to vector<10x64xf32>
    %355 = arith.addf %353, %354 : vector<10x64xf32>
    %356 = arith.maximumf %350, %355 : vector<10x64xf32>
    %c12_321 = arith.constant 12 : index
    %c0_322 = arith.constant 0 : index
    %357 = vector.load %arg12[%c12_321, %c0_322] : memref<120x64xf32, #tpu.memory_space<vmem>>, vector<10x64xf32>
    %358 = vector.broadcast %348 : vector<1x64xf32> to vector<10x64xf32>
    %359 = arith.mulf %357, %358 : vector<10x64xf32>
    %360 = vector.broadcast %349 : vector<1x64xf32> to vector<10x64xf32>
    %361 = arith.addf %359, %360 : vector<10x64xf32>
    %362 = arith.maximumf %356, %361 : vector<10x64xf32>
    %c24_323 = arith.constant 24 : index
    %c0_324 = arith.constant 0 : index
    %363 = vector.load %arg12[%c24_323, %c0_324] : memref<120x64xf32, #tpu.memory_space<vmem>>, vector<10x64xf32>
    %364 = vector.broadcast %348 : vector<1x64xf32> to vector<10x64xf32>
    %365 = arith.mulf %363, %364 : vector<10x64xf32>
    %366 = vector.broadcast %349 : vector<1x64xf32> to vector<10x64xf32>
    %367 = arith.addf %365, %366 : vector<10x64xf32>
    %368 = arith.maximumf %362, %367 : vector<10x64xf32>
    %c36 = arith.constant 36 : index
    %c0_325 = arith.constant 0 : index
    %369 = vector.load %arg12[%c36, %c0_325] : memref<120x64xf32, #tpu.memory_space<vmem>>, vector<10x64xf32>
    %370 = vector.broadcast %348 : vector<1x64xf32> to vector<10x64xf32>
    %371 = arith.mulf %369, %370 : vector<10x64xf32>
    %372 = vector.broadcast %349 : vector<1x64xf32> to vector<10x64xf32>
    %373 = arith.addf %371, %372 : vector<10x64xf32>
    %374 = arith.maximumf %368, %373 : vector<10x64xf32>
    %c48 = arith.constant 48 : index
    %c0_326 = arith.constant 0 : index
    %375 = vector.load %arg12[%c48, %c0_326] : memref<120x64xf32, #tpu.memory_space<vmem>>, vector<10x64xf32>
    %376 = vector.broadcast %348 : vector<1x64xf32> to vector<10x64xf32>
    %377 = arith.mulf %375, %376 : vector<10x64xf32>
    %378 = vector.broadcast %349 : vector<1x64xf32> to vector<10x64xf32>
    %379 = arith.addf %377, %378 : vector<10x64xf32>
    %380 = arith.maximumf %374, %379 : vector<10x64xf32>
    %c60 = arith.constant 60 : index
    %c0_327 = arith.constant 0 : index
    %381 = vector.load %arg12[%c60, %c0_327] : memref<120x64xf32, #tpu.memory_space<vmem>>, vector<10x64xf32>
    %382 = vector.broadcast %348 : vector<1x64xf32> to vector<10x64xf32>
    %383 = arith.mulf %381, %382 : vector<10x64xf32>
    %384 = vector.broadcast %349 : vector<1x64xf32> to vector<10x64xf32>
    %385 = arith.addf %383, %384 : vector<10x64xf32>
    %386 = arith.maximumf %380, %385 : vector<10x64xf32>
    %c72 = arith.constant 72 : index
    %c0_328 = arith.constant 0 : index
    %387 = vector.load %arg12[%c72, %c0_328] : memref<120x64xf32, #tpu.memory_space<vmem>>, vector<10x64xf32>
    %388 = vector.broadcast %348 : vector<1x64xf32> to vector<10x64xf32>
    %389 = arith.mulf %387, %388 : vector<10x64xf32>
    %390 = vector.broadcast %349 : vector<1x64xf32> to vector<10x64xf32>
    %391 = arith.addf %389, %390 : vector<10x64xf32>
    %392 = arith.maximumf %386, %391 : vector<10x64xf32>
    %c84 = arith.constant 84 : index
    %c0_329 = arith.constant 0 : index
    %393 = vector.load %arg12[%c84, %c0_329] : memref<120x64xf32, #tpu.memory_space<vmem>>, vector<10x64xf32>
    %394 = vector.broadcast %348 : vector<1x64xf32> to vector<10x64xf32>
    %395 = arith.mulf %393, %394 : vector<10x64xf32>
    %396 = vector.broadcast %349 : vector<1x64xf32> to vector<10x64xf32>
    %397 = arith.addf %395, %396 : vector<10x64xf32>
    %398 = arith.maximumf %392, %397 : vector<10x64xf32>
    %c96 = arith.constant 96 : index
    %c0_330 = arith.constant 0 : index
    %399 = vector.load %arg12[%c96, %c0_330] : memref<120x64xf32, #tpu.memory_space<vmem>>, vector<10x64xf32>
    %400 = vector.broadcast %348 : vector<1x64xf32> to vector<10x64xf32>
    %401 = arith.mulf %399, %400 : vector<10x64xf32>
    %402 = vector.broadcast %349 : vector<1x64xf32> to vector<10x64xf32>
    %403 = arith.addf %401, %402 : vector<10x64xf32>
    %404 = arith.maximumf %398, %403 : vector<10x64xf32>
    %c108 = arith.constant 108 : index
    %c0_331 = arith.constant 0 : index
    %405 = vector.load %arg12[%c108, %c0_331] : memref<120x64xf32, #tpu.memory_space<vmem>>, vector<10x64xf32>
    %406 = vector.broadcast %348 : vector<1x64xf32> to vector<10x64xf32>
    %407 = arith.mulf %405, %406 : vector<10x64xf32>
    %408 = vector.broadcast %349 : vector<1x64xf32> to vector<10x64xf32>
    %409 = arith.addf %407, %408 : vector<10x64xf32>
    %410 = arith.maximumf %404, %409 : vector<10x64xf32>
    %cst_332 = arith.constant dense<0xFF800000> : vector<64xf32>
    %411 = vector.multi_reduction <maximumf>, %410, %cst_332 [0] : vector<10x64xf32> to vector<64xf32>
    %412 = vector.shape_cast %411 : vector<64xf32> to vector<1x64xf32>
    %cst_333 = arith.constant 0.000000e+00 : f32
    %413 = vector.broadcast %cst_333 : f32 to vector<1x64xf32>
    %414 = arith.maximumf %412, %413 : vector<1x64xf32>
    %c0_334 = arith.constant 0 : index
    %c0_335 = arith.constant 0 : index
    %c0_336 = arith.constant 0 : index
    %415 = vector.load %arg8[%c0_334, %c0_335, %c0_336] : memref<1x1x64xf32, #tpu.memory_space<vmem>>, vector<1x1x64xf32>
    %416 = vector.shape_cast %415 : vector<1x1x64xf32> to vector<1x64xf32>
    %417 = vector.shape_cast %414 : vector<1x64xf32> to vector<1x1x64xf32>
    tpu.vector_store %arg8[%c0_334, %c0_335, %c0_336], %417 {strides = array<i32>} : memref<1x1x64xf32, #tpu.memory_space<vmem>>, vector<1x1x64xf32>,
    return
  }
  func.func @transform_0(%arg0: i32) -> (i32, i32, i32, i32) {
    %c0_i32 = arith.constant 0 : i32
    %c0_i32_0 = arith.constant 0 : i32
    %c0_i32_1 = arith.constant 0 : i32
    %c0_i32_2 = arith.constant 0 : i32
    return %arg0, %c0_i32, %c0_i32_0, %c0_i32_1 : i32, i32, i32, i32
  }
  func.func @transform_1(%arg0: i32) -> (i32, i32, i32) {
    %c0_i32 = arith.constant 0 : i32
    %c0_i32_0 = arith.constant 0 : i32
    %c0_i32_1 = arith.constant 0 : i32
    %c0_i32_2 = arith.constant 0 : i32
    return %c0_i32, %c0_i32_0, %c0_i32_1 : i32, i32, i32
  }
  func.func @transform_2(%arg0: i32) -> (i32, i32) {
    %c0_i32 = arith.constant 0 : i32
    %c0_i32_0 = arith.constant 0 : i32
    %c0_i32_1 = arith.constant 0 : i32
    return %c0_i32, %c0_i32_0 : i32, i32
  }
  func.func @transform_3(%arg0: i32) -> (i32, i32) {
    %c0_i32 = arith.constant 0 : i32
    %c0_i32_0 = arith.constant 0 : i32
    %c0_i32_1 = arith.constant 0 : i32
    return %c0_i32, %c0_i32_0 : i32, i32
  }
  func.func @transform_4(%arg0: i32) -> (i32, i32, i32) {
    %c0_i32 = arith.constant 0 : i32
    %c0_i32_0 = arith.constant 0 : i32
    %c0_i32_1 = arith.constant 0 : i32
    %c0_i32_2 = arith.constant 0 : i32
    return %c0_i32, %c0_i32_0, %c0_i32_1 : i32, i32, i32
  }
  func.func @transform_5(%arg0: i32) -> (i32, i32) {
    %c0_i32 = arith.constant 0 : i32
    %c0_i32_0 = arith.constant 0 : i32
    %c0_i32_1 = arith.constant 0 : i32
    return %c0_i32, %c0_i32_0 : i32, i32
  }
  func.func @transform_6(%arg0: i32) -> (i32, i32) {
    %c0_i32 = arith.constant 0 : i32
    %c0_i32_0 = arith.constant 0 : i32
    %c0_i32_1 = arith.constant 0 : i32
    return %c0_i32, %c0_i32_0 : i32, i32
  }
  func.func @transform_7(%arg0: i32) -> (i32, i32, i32) {
    %c0_i32 = arith.constant 0 : i32
    %c0_i32_0 = arith.constant 0 : i32
    %c0_i32_1 = arith.constant 0 : i32
    return %arg0, %c0_i32, %c0_i32_0 : i32, i32, i32
  }
}

</mosaic_0001>

<llo_original>
// kernel: tpu_custom_call.1
$region0: #{tpu_custom_call.1}
  #allocation0 [shape = 'u32[]', space=smem, size = 0x4, offset = 0x4, fixed_abs, tag = 'smem constant byte address 0x4 - core index']
  #allocation1 [shape = 'u32[72,128]{1,0:T(1,128)}', space=vmem, size = 0x9000, scoped, tag = 'internal scratch']
  #allocation2 [shape = 'f32[506,64]{1,0:T(8,128)}', space=vmem, size = 0x40000, scoped, tag = 'scratch operand']
  #allocation3 [shape = 'f32[440,64]{1,0:T(8,128)}', space=vmem, size = 0x37000, scoped, tag = 'scratch operand']
  #allocation4 [shape = 'f32[156,64]{1,0:T(8,128)}', space=vmem, size = 0x14000, scoped, tag = 'scratch operand']
  #allocation5 [shape = 'f32[120,64]{1,0:T(8,128)}', space=vmem, size = 0xf000, scoped, tag = 'scratch operand']
  %s0 = inlined_call_operand.vmem [shape: f32[2,20,20,64], index: 0, kind: input, shape index: {}]
  %s1 = inlined_call_operand.vmem [shape: f32[9,64,64], index: 1, kind: input, shape index: {}]
  %s2 = inlined_call_operand.vmem [shape: f32[1,64], index: 2, kind: input, shape index: {}]
  %s3 = inlined_call_operand.vmem [shape: f32[1,64], index: 3, kind: input, shape index: {}]
  %s4 = inlined_call_operand.vmem [shape: f32[9,64,64], index: 4, kind: input, shape index: {}]
  %s5 = inlined_call_operand.vmem [shape: f32[1,64], index: 5, kind: input, shape index: {}]
  %s6 = inlined_call_operand.vmem [shape: f32[1,64], index: 6, kind: input, shape index: {}]
  %s7 = inlined_call_operand.hbm [shape: f32[2,1,64], index: 7, kind: output, shape index: {}]
  %s8 = sld [smem:[#allocation0]]
  $region61: #{tpu_custom_call.1} parent=0
    _
  %s10 = ssub.s32 1, %s8
  %s11 = scalar_select 0, %s10, %s8
  $region1: #{tpu_custom_call.1} parent=0
    #allocation6 [shape = 'u8[1024]{0}', space=vmem, size = 0x400, scoped, tag = 'output window, operand 0']
    #allocation7 [shape = 's32[2]{0}', space=sflag, size = 0x8, scoped, tag = 'scoped memory for tpu_custom_call.1']
    %12 = vsyncpa [#allocation7], 0
    %s13 = scalar_lea.sflag [#allocation7], 1
    %14 = vsyncpa %s13, 0
    loop: start=0, step=1, limit=4
    $region2: #{tpu_custom_call.1} parent=1 // loop_pre_header
      _
    $region3: #{tpu_custom_call.1} parent=1 // loop_header
      %s16 = sphi 0, %s20
      %p17 = scmp.ge.s32.totalorder %s16, 4
      %s26 = sphi 0, %s28
      %s29 = sphi 0, %s26
      %s30 = sphi 0, %s29
      %s46 = sphi 0, %s30
      %s50 = sphi 0, %s50
      %s52 = sphi 0, %s50
      %s53 = sphi 0, %s52
      %s67 = sphi 0, %s53
      %s71 = sphi 0, %s71
      %s73 = sphi 0, %s71
      %s74 = sphi 0, %s73
      %s88 = sphi 0, %s74
      %s92 = sphi 0, %s92
      %s94 = sphi 0, %s92
      %s95 = sphi 0, %s94
      %s109 = sphi 0, %s95
      %s113 = sphi 0, %s113
      %s115 = sphi 0, %s113
      %s116 = sphi 0, %s115
      %s130 = sphi 0, %s116
      %s134 = sphi 0, %s134
      %s136 = sphi 0, %s134
      %s137 = sphi 0, %s136
      %s151 = sphi 0, %s137
      %s155 = sphi 0, %s155
      %s157 = sphi 0, %s155
      %s158 = sphi 0, %s157
      %s172 = sphi 0, %s158
      %s178 = sphi 0, %s180
      %s181 = sphi 0, %s178
      %s182 = sphi 0, %s181
      %s198 = sphi 0, %s182
    $region4: #{tpu_custom_call.1} parent=1 // loop_header_branch
      %19 = sbr.rel (%p17) target = $region8
    $region5: #{tpu_custom_call.1} parent=1 // loop_body
      %s21 = ssub.s32 %s16, 1
      %s22 = ssub.s32 %s16, 2
      %s23 = sadd.s32 %s16, 1
      %s24 = ssub.s32 %s16, %s23
      %p25 = scmp.eq.s32.totalorder %s24, 0
      %s27 = sadd.s32 %s26, 1
      %s28 = scalar_select %p25, %s26, %s27
      %p31 = pneg %p25
      %p32 = scmp.eq.s32.totalorder %s16, 1
      %p33 = por %p31, %p32
      %p34 = scmp.ne.s32.totalorder %s26, %s29
      %p35 = scmp.eq.s32.totalorder %s16, 0
      %p36 = por %p34, %p35
      %p37 = scmp.ne.s32.totalorder %s26, %s29
      %p38 = scmp.eq.s32.totalorder %s21, 1
      %p39 = por %p37, %p38
      %p40 = scmp.ne.s32.totalorder %s29, %s30
      %p41 = scmp.eq.s32.totalorder %s21, 0
      %p42 = por %p40, %p41
      %p43 = scmp.ne.s32.totalorder %s29, %s30
      %p44 = scmp.eq.s32.totalorder %s22, 1
      %p45 = por %p43, %p44
      %p47 = scmp.ne.s32.totalorder %s30, %s46
      %p48 = scmp.eq.s32.totalorder %s22, 0
      %p49 = por %p47, %p48
      %s51 = sadd.s32 %s50, 1
      %p54 = scmp.eq.s32.totalorder %s16, 1
      %p55 = scmp.ne.s32.totalorder %s50, %s52
      %p56 = scmp.eq.s32.totalorder %s16, 0
      %p57 = por %p55, %p56
      %p58 = scmp.ne.s32.totalorder %s50, %s52
      %p59 = scmp.eq.s32.totalorder %s21, 1
      %p60 = por %p58, %p59
      %p61 = scmp.ne.s32.totalorder %s52, %s53
      %p62 = scmp.eq.s32.totalorder %s21, 0
      %p63 = por %p61, %p62
      %p64 = scmp.ne.s32.totalorder %s52, %s53
      %p65 = scmp.eq.s32.totalorder %s22, 1
      %p66 = por %p64, %p65
      %p68 = scmp.ne.s32.totalorder %s53, %s67
      %p69 = scmp.eq.s32.totalorder %s22, 0
      %p70 = por %p68, %p69
      %s72 = sadd.s32 %s71, 1
      %p75 = scmp.eq.s32.totalorder %s16, 1
      %p76 = scmp.ne.s32.totalorder %s71, %s73
      %p77 = scmp.eq.s32.totalorder %s16, 0
      %p78 = por %p76, %p77
      %p79 = scmp.ne.s32.totalorder %s71, %s73
      %p80 = scmp.eq.s32.totalorder %s21, 1
      %p81 = por %p79, %p80
      %p82 = scmp.ne.s32.totalorder %s73, %s74
      %p83 = scmp.eq.s32.totalorder %s21, 0
      %p84 = por %p82, %p83
      %p85 = scmp.ne.s32.totalorder %s73, %s74
      %p86 = scmp.eq.s32.totalorder %s22, 1
      %p87 = por %p85, %p86
      %p89 = scmp.ne.s32.totalorder %s74, %s88
      %p90 = scmp.eq.s32.totalorder %s22, 0
      %p91 = por %p89, %p90
      %s93 = sadd.s32 %s92, 1
      %p96 = scmp.eq.s32.totalorder %s16, 1
      %p97 = scmp.ne.s32.totalorder %s92, %s94
      %p98 = scmp.eq.s32.totalorder %s16, 0
      %p99 = por %p97, %p98
      %p100 = scmp.ne.s32.totalorder %s92, %s94
      %p101 = scmp.eq.s32.totalorder %s21, 1
      %p102 = por %p100, %p101
      %p103 = scmp.ne.s32.totalorder %s94, %s95
      %p104 = scmp.eq.s32.totalorder %s21, 0
      %p105 = por %p103, %p104
      %p106 = scmp.ne.s32.totalorder %s94, %s95
      %p107 = scmp.eq.s32.totalorder %s22, 1
      %p108 = por %p106, %p107
      %p110 = scmp.ne.s32.totalorder %s95, %s109
      %p111 = scmp.eq.s32.totalorder %s22, 0
      %p112 = por %p110, %p111
      %s114 = sadd.s32 %s113, 1
      %p117 = scmp.eq.s32.totalorder %s16, 1
      %p118 = scmp.ne.s32.totalorder %s113, %s115
      %p119 = scmp.eq.s32.totalorder %s16, 0
      %p120 = por %p118, %p119
      %p121 = scmp.ne.s32.totalorder %s113, %s115
      %p122 = scmp.eq.s32.totalorder %s21, 1
      %p123 = por %p121, %p122
      %p124 = scmp.ne.s32.totalorder %s115, %s116
      %p125 = scmp.eq.s32.totalorder %s21, 0
      %p126 = por %p124, %p125
      %p127 = scmp.ne.s32.totalorder %s115, %s116
      %p128 = scmp.eq.s32.totalorder %s22, 1
      %p129 = por %p127, %p128
      %p131 = scmp.ne.s32.totalorder %s116, %s130
      %p132 = scmp.eq.s32.totalorder %s22, 0
      %p133 = por %p131, %p132
      %s135 = sadd.s32 %s134, 1
      %p138 = scmp.eq.s32.totalorder %s16, 1
      %p139 = scmp.ne.s32.totalorder %s134, %s136
      %p140 = scmp.eq.s32.totalorder %s16, 0
      %p141 = por %p139, %p140
      %p142 = scmp.ne.s32.totalorder %s134, %s136
      %p143 = scmp.eq.s32.totalorder %s21, 1
      %p144 = por %p142, %p143
      %p145 = scmp.ne.s32.totalorder %s136, %s137
      %p146 = scmp.eq.s32.totalorder %s21, 0
      %p147 = por %p145, %p146
      %p148 = scmp.ne.s32.totalorder %s136, %s137
      %p149 = scmp.eq.s32.totalorder %s22, 1
      %p150 = por %p148, %p149
      %p152 = scmp.ne.s32.totalorder %s137, %s151
      %p153 = scmp.eq.s32.totalorder %s22, 0
      %p154 = por %p152, %p153
      %s156 = sadd.s32 %s155, 1
      %p159 = scmp.eq.s32.totalorder %s16, 1
      %p160 = scmp.ne.s32.totalorder %s155, %s157
      %p161 = scmp.eq.s32.totalorder %s16, 0
      %p162 = por %p160, %p161
      %p163 = scmp.ne.s32.totalorder %s155, %s157
      %p164 = scmp.eq.s32.totalorder %s21, 1
      %p165 = por %p163, %p164
      %p166 = scmp.ne.s32.totalorder %s157, %s158
      %p167 = scmp.eq.s32.totalorder %s21, 0
      %p168 = por %p166, %p167
      %p169 = scmp.ne.s32.totalorder %s157, %s158
      %p170 = scmp.eq.s32.totalorder %s22, 1
      %p171 = por %p169, %p170
      %p173 = scmp.ne.s32.totalorder %s158, %s172
      %p174 = scmp.eq.s32.totalorder %s22, 0
      %p175 = por %p173, %p174
      %s176 = ssub.s32 %s16, %s23
      %p177 = scmp.eq.s32.totalorder %s176, 0
      %s179 = sadd.s32 %s178, 1
      %s180 = scalar_select %p177, %s178, %s179
      %p183 = pneg %p177
      %p184 = scmp.eq.s32.totalorder %s16, 1
      %p185 = por %p183, %p184
      %p186 = scmp.ne.s32.totalorder %s178, %s181
      %p187 = scmp.eq.s32.totalorder %s16, 0
      %p188 = por %p186, %p187
      %p189 = scmp.ne.s32.totalorder %s178, %s181
      %p190 = scmp.eq.s32.totalorder %s21, 1
      %p191 = por %p189, %p190
      %p192 = scmp.ne.s32.totalorder %s181, %s182
      %p193 = scmp.eq.s32.totalorder %s21, 0
      %p194 = por %p192, %p193
      %p195 = scmp.ne.s32.totalorder %s181, %s182
      %p196 = scmp.eq.s32.totalorder %s22, 1
      %p197 = por %p195, %p196
      %p199 = scmp.ne.s32.totalorder %s182, %s198
      %p200 = scmp.eq.s32.totalorder %s22, 0
      %p201 = por %p199, %p200
      %p202 = scmp.le.s32.totalorder 1, %s16
      %p203 = scmp.lt.s32.totalorder %s16, 3
      %p204 = pnand %p202, %p203
      %p205 = pneg %p204
      // Predicated region
      $region9: #{tpu_custom_call.1} parent=5 // pred_check
        _
      $region10: #{tpu_custom_call.1} parent=5 // pred_check_branch
        %207 = sbr.rel (%p204) target = $region12
      $region11: #{tpu_custom_call.1} parent=5 // pred_region
        %s208 = ssub.s32 %s16, 1
        // Predicated region
        $region13: #{tpu_custom_call.1} parent=11 // pred_check
          %p209 = pneg %p63
        $region14: #{tpu_custom_call.1} parent=11 // pred_check_branch
          %211 = sbr.rel (%p209) target = $region16
        $region15: #{tpu_custom_call.1} parent=11 // pred_region
          _
        $region16: #{tpu_custom_call.1} parent=11 // pred_fallthru
          _
        // Predicated region
        $region17: #{tpu_custom_call.1} parent=11 // pred_check
          %p212 = pneg %p84
        $region18: #{tpu_custom_call.1} parent=11 // pred_check_branch
          %214 = sbr.rel (%p212) target = $region20
        $region19: #{tpu_custom_call.1} parent=11 // pred_region
          _
        $region20: #{tpu_custom_call.1} parent=11 // pred_fallthru
          _
        // Predicated region
        $region21: #{tpu_custom_call.1} parent=11 // pred_check
          %p215 = pneg %p105
        $region22: #{tpu_custom_call.1} parent=11 // pred_check_branch
          %217 = sbr.rel (%p215) target = $region24
        $region23: #{tpu_custom_call.1} parent=11 // pred_region
          _
        $region24: #{tpu_custom_call.1} parent=11 // pred_fallthru
          _
        // Predicated region
        $region25: #{tpu_custom_call.1} parent=11 // pred_check
          %p218 = pneg %p126
        $region26: #{tpu_custom_call.1} parent=11 // pred_check_branch
          %220 = sbr.rel (%p218) target = $region28
        $region27: #{tpu_custom_call.1} parent=11 // pred_region
          _
        $region28: #{tpu_custom_call.1} parent=11 // pred_fallthru
          _
        // Predicated region
        $region29: #{tpu_custom_call.1} parent=11 // pred_check
          %p221 = pneg %p147
        $region30: #{tpu_custom_call.1} parent=11 // pred_check_branch
          %223 = sbr.rel (%p221) target = $region32
        $region31: #{tpu_custom_call.1} parent=11 // pred_region
          _
        $region32: #{tpu_custom_call.1} parent=11 // pred_fallthru
          _
        // Predicated region
        $region33: #{tpu_custom_call.1} parent=11 // pred_check
          %p224 = pneg %p168
        $region34: #{tpu_custom_call.1} parent=11 // pred_check_branch
          %226 = sbr.rel (%p224) target = $region36
        $region35: #{tpu_custom_call.1} parent=11 // pred_region
          _
        $region36: #{tpu_custom_call.1} parent=11 // pred_fallthru
          _
      $region12: #{tpu_custom_call.1} parent=5 // pred_fallthru
        _
      %p227 = scmp.lt.s32.totalorder %s16, 2
      // Predicated region
      $region37: #{tpu_custom_call.1} parent=5 // pred_check
        %p228 = pneg %p227
      $region38: #{tpu_custom_call.1} parent=5 // pred_check_branch
        %230 = sbr.rel (%p228) target = $region40
      $region39: #{tpu_custom_call.1} parent=5 // pred_region
        // Predicated region
        $region41: #{tpu_custom_call.1} parent=39 // pred_check
          %p231 = pneg %p36
        $region42: #{tpu_custom_call.1} parent=39 // pred_check_branch
          %233 = sbr.rel (%p231) target = $region44
        $region43: #{tpu_custom_call.1} parent=39 // pred_region
          %p234 = scmp.lt.s32.totalorder %s16, 1
          %s235 = scalar_select %p234, %s16, 1
          %s236 = smul.addr %s235, 60
          %s237 = smul.addr %s236, 8
          %s238 = scalar_lea.vmem %s0, %s237
        $region44: #{tpu_custom_call.1} parent=39 // pred_fallthru
          _
      $region40: #{tpu_custom_call.1} parent=5 // pred_fallthru
        _
      %p239 = scmp.le.s32.totalorder 1, %s16
      %p240 = scmp.lt.s32.totalorder %s16, 3
      %p241 = pnand %p239, %p240
      %p242 = pneg %p241
      // Predicated region
      $region45: #{tpu_custom_call.1} parent=5 // pred_check
        _
      $region46: #{tpu_custom_call.1} parent=5 // pred_check_branch
        %244 = sbr.rel (%p241) target = $region48
      $region47: #{tpu_custom_call.1} parent=5 // pred_region
        %s245 = ssub.s32 %s16, 1
        %p246 = scmp.lt.s32.totalorder %s21, 1
        %s247 = scalar_select %p246, %s21, 1
        %s248 = smul.addr %s247, 60
        %s249 = smul.addr %s248, 8
        %s250 = scalar_lea.vmem %s0, %s249
        %p251 = pneg %p42
        %p252 = pneg %p39
        %p253 = pneg %p63
        %p254 = pneg %p60
        %p255 = pneg %p84
        %p256 = pneg %p81
        %p257 = pneg %p105
        %p258 = pneg %p102
        %p259 = pneg %p126
        %p260 = pneg %p123
        %p261 = pneg %p147
        %p262 = pneg %p144
        %p263 = pneg %p168
        %p264 = pneg %p165
        %p265 = pneg %p194
        %p266 = pneg %p191
        %s267 = sand.u32 %s181, 1
        %s268 = scalar_lea.sflag [#allocation7], %s267
        %s269 = sand.u32 %s181, 1
        %s270 = scalar_lea.vmem [#allocation6], %s269
        %p271 = scmp.lt.s32.totalorder %s21, 1
        %s272 = scalar_select %p271, %s21, 1
        %s273 = smul.addr %s272, 60
        %s274 = smul.addr %s273, 8
        %s275 = scalar_lea.vmem %s0, %s274
        %vm276 = vcmask 523264
        %277 = vst.msk [vmem:[#allocation2] sm:$0xff] %vm276, 0.0
        %278 = vst.msk [vmem:[#allocation2 + $0x8] sm:$0xff] %vm276, 0.0
        %279 = vst.msk [vmem:[#allocation2 + $0x10] sm:$0xff] %vm276, 0.0
        %280 = vst.msk [vmem:[#allocation2 + $0x18] sm:$0xff] %vm276, 0.0
        %281 = vst.msk [vmem:[#allocation2 + $0x20] sm:$0xff] %vm276, 0.0
        %282 = vst.msk [vmem:[#allocation2 + $0x28] sm:$0xff] %vm276, 0.0
        %283 = vst.msk [vmem:[#allocation2 + $0x30] sm:$0xff] %vm276, 0.0
        %284 = vst.msk [vmem:[#allocation2 + $0x38] sm:$0xff] %vm276, 0.0
        %285 = vst.msk [vmem:[#allocation2 + $0x40] sm:$0xff] %vm276, 0.0
        %286 = vst.msk [vmem:[#allocation2 + $0x48] sm:$0xff] %vm276, 0.0
        %287 = vst.msk [vmem:[#allocation2 + $0x50] sm:$0xff] %vm276, 0.0
        %288 = vst.msk [vmem:[#allocation2 + $0x58] sm:$0xff] %vm276, 0.0
        %289 = vst.msk [vmem:[#allocation2 + $0x60] sm:$0xff] %vm276, 0.0
        %290 = vst.msk [vmem:[#allocation2 + $0x68] sm:$0xff] %vm276, 0.0
        %291 = vst.msk [vmem:[#allocation2 + $0x70] sm:$0xff] %vm276, 0.0
        %292 = vst.msk [vmem:[#allocation2 + $0x78] sm:$0xff] %vm276, 0.0
        %293 = vst.msk [vmem:[#allocation2 + $0x80] sm:$0xff] %vm276, 0.0
        %294 = vst.msk [vmem:[#allocation2 + $0x88] sm:$0xff] %vm276, 0.0
        %295 = vst.msk [vmem:[#allocation2 + $0x90] sm:$0xff] %vm276, 0.0
        %296 = vst.msk [vmem:[#allocation2 + $0x98] sm:$0xff] %vm276, 0.0
        %297 = vst.msk [vmem:[#allocation2 + $0xa0] sm:$0xff] %vm276, 0.0
        %298 = vst.msk [vmem:[#allocation2 + $0xa8] sm:$0xff] %vm276, 0.0
        %299 = vst.msk [vmem:[#allocation2 + $0xb0] sm:$0xff] %vm276, 0.0
        %300 = vst.msk [vmem:[#allocation2 + $0xb8] sm:$0xff] %vm276, 0.0
        %301 = vst.msk [vmem:[#allocation2 + $0xc0] sm:$0xff] %vm276, 0.0
        %302 = vst.msk [vmem:[#allocation2 + $0xc8] sm:$0xff] %vm276, 0.0
        %303 = vst.msk [vmem:[#allocation2 + $0xd0] sm:$0xff] %vm276, 0.0
        %304 = vst.msk [vmem:[#allocation2 + $0xd8] sm:$0xff] %vm276, 0.0
        %305 = vst.msk [vmem:[#allocation2 + $0xe0] sm:$0xff] %vm276, 0.0
        %306 = vst.msk [vmem:[#allocation2 + $0xe8] sm:$0xff] %vm276, 0.0
        %307 = vst.msk [vmem:[#allocation2 + $0xf0] sm:$0xff] %vm276, 0.0
        %308 = vst.msk [vmem:[#allocation2 + $0xf8] sm:$0xff] %vm276, 0.0
        %309 = vst.msk [vmem:[#allocation2 + $0x100] sm:$0xff] %vm276, 0.0
        %310 = vst.msk [vmem:[#allocation2 + $0x108] sm:$0xff] %vm276, 0.0
        %311 = vst.msk [vmem:[#allocation2 + $0x110] sm:$0xff] %vm276, 0.0
        %312 = vst.msk [vmem:[#allocation2 + $0x118] sm:$0xff] %vm276, 0.0
        %313 = vst.msk [vmem:[#allocation2 + $0x120] sm:$0xff] %vm276, 0.0
        %314 = vst.msk [vmem:[#allocation2 + $0x128] sm:$0xff] %vm276, 0.0
        %315 = vst.msk [vmem:[#allocation2 + $0x130] sm:$0xff] %vm276, 0.0
        %316 = vst.msk [vmem:[#allocation2 + $0x138] sm:$0xff] %vm276, 0.0
        %317 = vst.msk [vmem:[#allocation2 + $0x140] sm:$0xff] %vm276, 0.0
        %318 = vst.msk [vmem:[#allocation2 + $0x148] sm:$0xff] %vm276, 0.0
        %319 = vst.msk [vmem:[#allocation2 + $0x150] sm:$0xff] %vm276, 0.0
        %320 = vst.msk [vmem:[#allocation2 + $0x158] sm:$0xff] %vm276, 0.0
        %321 = vst.msk [vmem:[#allocation2 + $0x160] sm:$0xff] %vm276, 0.0
        %322 = vst.msk [vmem:[#allocation2 + $0x168] sm:$0xff] %vm276, 0.0
        %323 = vst.msk [vmem:[#allocation2 + $0x170] sm:$0xff] %vm276, 0.0
        %324 = vst.msk [vmem:[#allocation2 + $0x178] sm:$0xff] %vm276, 0.0
        %325 = vst.msk [vmem:[#allocation2 + $0x180] sm:$0xff] %vm276, 0.0
        %326 = vst.msk [vmem:[#allocation2 + $0x188] sm:$0xff] %vm276, 0.0
        %327 = vst.msk [vmem:[#allocation2 + $0x190] sm:$0xff] %vm276, 0.0
        %328 = vst.msk [vmem:[#allocation2 + $0x198] sm:$0xff] %vm276, 0.0
        %329 = vst.msk [vmem:[#allocation2 + $0x1a0] sm:$0xff] %vm276, 0.0
        %330 = vst.msk [vmem:[#allocation2 + $0x1a8] sm:$0xff] %vm276, 0.0
        %331 = vst.msk [vmem:[#allocation2 + $0x1b0] sm:$0xff] %vm276, 0.0
        %332 = vst.msk [vmem:[#allocation2 + $0x1b8] sm:$0xff] %vm276, 0.0
        %333 = vst.msk [vmem:[#allocation2 + $0x1c0] sm:$0xff] %vm276, 0.0
        %334 = vst.msk [vmem:[#allocation2 + $0x1c8] sm:$0xff] %vm276, 0.0
        %335 = vst.msk [vmem:[#allocation2 + $0x1d0] sm:$0xff] %vm276, 0.0
        %336 = vst.msk [vmem:[#allocation2 + $0x1d8] sm:$0xff] %vm276, 0.0
        %337 = vst.msk [vmem:[#allocation2 + $0x1e0] sm:$0xff] %vm276, 0.0
        %338 = vst.msk [vmem:[#allocation2 + $0x1e8] sm:$0xff] %vm276, 0.0
        %339 = vst.msk [vmem:[#allocation2 + $0x1f0] sm:$0xff] %vm276, 0.0
        %vm340 = vcmask 517120
        %341 = vst.msk [vmem:[#allocation2 + $0x1f8] sm:$0x3] %vm340, 0.0
        %v342 = vld [vmem:[%s275] sm:$0xff]
        %v343 = vld [vmem:[%s275 + $0x8] sm:$0xff]
        %v344 = vld [vmem:[%s275 + $0x10] sm:$0xf]
        %345 = vst.msk [vmem:[#allocation2 + $0x17] sm:$0xff] %vm276, %v342
        %346 = vst.msk [vmem:[#allocation2 + $0x1f] sm:$0xff] %vm276, %v343
        %vm347 = vcmask 519168
        %348 = vst.msk [vmem:[#allocation2 + $0x27] sm:$0xf] %vm347, %v344
        %s349 = scalar_lea.vmem %s275, 24
        %v350 = vld [vmem:[%s349] sm:$0xff]
        %v351 = vld [vmem:[%s349 + $0x8] sm:$0xff]
        %v352 = vld [vmem:[%s349 + $0x10] sm:$0xf]
        %353 = vst.msk [vmem:[#allocation2 + $0x2d] sm:$0xff] %vm276, %v350
        %354 = vst.msk [vmem:[#allocation2 + $0x35] sm:$0xff] %vm276, %v351
        %355 = vst.msk [vmem:[#allocation2 + $0x3d] sm:$0xf] %vm347, %v352
        %s356 = scalar_lea.vmem %s275, 48
        %v357 = vld [vmem:[%s356] sm:$0xff]
        %v358 = vld [vmem:[%s356 + $0x8] sm:$0xff]
        %v359 = vld [vmem:[%s356 + $0x10] sm:$0xf]
        %360 = vst.msk [vmem:[#allocation2 + $0x43] sm:$0xff] %vm276, %v357
        %361 = vst.msk [vmem:[#allocation2 + $0x4b] sm:$0xff] %vm276, %v358
        %362 = vst.msk [vmem:[#allocation2 + $0x53] sm:$0xf] %vm347, %v359
        %s363 = scalar_lea.vmem %s275, 72
        %v364 = vld [vmem:[%s363] sm:$0xff]
        %v365 = vld [vmem:[%s363 + $0x8] sm:$0xff]
        %v366 = vld [vmem:[%s363 + $0x10] sm:$0xf]
        %367 = vst.msk [vmem:[#allocation2 + $0x59] sm:$0xff] %vm276, %v364
        %368 = vst.msk [vmem:[#allocation2 + $0x61] sm:$0xff] %vm276, %v365
        %369 = vst.msk [vmem:[#allocation2 + $0x69] sm:$0xf] %vm347, %v366
        %s370 = scalar_lea.vmem %s275, 96
        %v371 = vld [vmem:[%s370] sm:$0xff]
        %v372 = vld [vmem:[%s370 + $0x8] sm:$0xff]
        %v373 = vld [vmem:[%s370 + $0x10] sm:$0xf]
        %374 = vst.msk [vmem:[#allocation2 + $0x6f] sm:$0xff] %vm276, %v371
        %375 = vst.msk [vmem:[#allocation2 + $0x77] sm:$0xff] %vm276, %v372
        %376 = vst.msk [vmem:[#allocation2 + $0x7f] sm:$0xf] %vm347, %v373
        %s377 = scalar_lea.vmem %s275, 120
        %v378 = vld [vmem:[%s377] sm:$0xff]
        %v379 = vld [vmem:[%s377 + $0x8] sm:$0xff]
        %v380 = vld [vmem:[%s377 + $0x10] sm:$0xf]
        %381 = vst.msk [vmem:[#allocation2 + $0x85] sm:$0xff] %vm276, %v378
        %382 = vst.msk [vmem:[#allocation2 + $0x8d] sm:$0xff] %vm276, %v379
        %383 = vst.msk [vmem:[#allocation2 + $0x95] sm:$0xf] %vm347, %v380
        %s384 = scalar_lea.vmem %s275, 144
        %v385 = vld [vmem:[%s384] sm:$0xff]
        %v386 = vld [vmem:[%s384 + $0x8] sm:$0xff]
        %v387 = vld [vmem:[%s384 + $0x10] sm:$0xf]
        %388 = vst.msk [vmem:[#allocation2 + $0x9b] sm:$0xff] %vm276, %v385
        %389 = vst.msk [vmem:[#allocation2 + $0xa3] sm:$0xff] %vm276, %v386
        %390 = vst.msk [vmem:[#allocation2 + $0xab] sm:$0xf] %vm347, %v387
        %s391 = scalar_lea.vmem %s275, 168
        %v392 = vld [vmem:[%s391] sm:$0xff]
        %v393 = vld [vmem:[%s391 + $0x8] sm:$0xff]
        %v394 = vld [vmem:[%s391 + $0x10] sm:$0xf]
        %395 = vst.msk [vmem:[#allocation2 + $0xb1] sm:$0xff] %vm276, %v392
        %396 = vst.msk [vmem:[#allocation2 + $0xb9] sm:$0xff] %vm276, %v393
        %397 = vst.msk [vmem:[#allocation2 + $0xc1] sm:$0xf] %vm347, %v394
        %s398 = scalar_lea.vmem %s275, 192
        %v399 = vld [vmem:[%s398] sm:$0xff]
        %v400 = vld [vmem:[%s398 + $0x8] sm:$0xff]
        %v401 = vld [vmem:[%s398 + $0x10] sm:$0xf]
        %402 = vst.msk [vmem:[#allocation2 + $0xc7] sm:$0xff] %vm276, %v399
        %403 = vst.msk [vmem:[#allocation2 + $0xcf] sm:$0xff] %vm276, %v400
        %404 = vst.msk [vmem:[#allocation2 + $0xd7] sm:$0xf] %vm347, %v401
        %s405 = scalar_lea.vmem %s275, 216
        %v406 = vld [vmem:[%s405] sm:$0xff]
        %v407 = vld [vmem:[%s405 + $0x8] sm:$0xff]
        %v408 = vld [vmem:[%s405 + $0x10] sm:$0xf]
        %409 = vst.msk [vmem:[#allocation2 + $0xdd] sm:$0xff] %vm276, %v406
        %410 = vst.msk [vmem:[#allocation2 + $0xe5] sm:$0xff] %vm276, %v407
        %411 = vst.msk [vmem:[#allocation2 + $0xed] sm:$0xf] %vm347, %v408
        %s412 = scalar_lea.vmem %s275, 240
        %v413 = vld [vmem:[%s412] sm:$0xff]
        %v414 = vld [vmem:[%s412 + $0x8] sm:$0xff]
        %v415 = vld [vmem:[%s412 + $0x10] sm:$0xf]
        %416 = vst.msk [vmem:[#allocation2 + $0xf3] sm:$0xff] %vm276, %v413
        %417 = vst.msk [vmem:[#allocation2 + $0xfb] sm:$0xff] %vm276, %v414
        %418 = vst.msk [vmem:[#allocation2 + $0x103] sm:$0xf] %vm347, %v415
        %s419 = scalar_lea.vmem %s275, 264
        %v420 = vld [vmem:[%s419] sm:$0xff]
        %v421 = vld [vmem:[%s419 + $0x8] sm:$0xff]
        %v422 = vld [vmem:[%s419 + $0x10] sm:$0xf]
        %423 = vst.msk [vmem:[#allocation2 + $0x109] sm:$0xff] %vm276, %v420
        %424 = vst.msk [vmem:[#allocation2 + $0x111] sm:$0xff] %vm276, %v421
        %425 = vst.msk [vmem:[#allocation2 + $0x119] sm:$0xf] %vm347, %v422
        %s426 = scalar_lea.vmem %s275, 288
        %v427 = vld [vmem:[%s426] sm:$0xff]
        %v428 = vld [vmem:[%s426 + $0x8] sm:$0xff]
        %v429 = vld [vmem:[%s426 + $0x10] sm:$0xf]
        %430 = vst.msk [vmem:[#allocation2 + $0x11f] sm:$0xff] %vm276, %v427
        %431 = vst.msk [vmem:[#allocation2 + $0x127] sm:$0xff] %vm276, %v428
        %432 = vst.msk [vmem:[#allocation2 + $0x12f] sm:$0xf] %vm347, %v429
        %s433 = scalar_lea.vmem %s275, 312
        %v434 = vld [vmem:[%s433] sm:$0xff]
        %v435 = vld [vmem:[%s433 + $0x8] sm:$0xff]
        %v436 = vld [vmem:[%s433 + $0x10] sm:$0xf]
        %437 = vst.msk [vmem:[#allocation2 + $0x135] sm:$0xff] %vm276, %v434
        %438 = vst.msk [vmem:[#allocation2 + $0x13d] sm:$0xff] %vm276, %v435
        %439 = vst.msk [vmem:[#allocation2 + $0x145] sm:$0xf] %vm347, %v436
        %s440 = scalar_lea.vmem %s275, 336
        %v441 = vld [vmem:[%s440] sm:$0xff]
        %v442 = vld [vmem:[%s440 + $0x8] sm:$0xff]
        %v443 = vld [vmem:[%s440 + $0x10] sm:$0xf]
        %444 = vst.msk [vmem:[#allocation2 + $0x14b] sm:$0xff] %vm276, %v441
        %445 = vst.msk [vmem:[#allocation2 + $0x153] sm:$0xff] %vm276, %v442
        %446 = vst.msk [vmem:[#allocation2 + $0x15b] sm:$0xf] %vm347, %v443
        %s447 = scalar_lea.vmem %s275, 360
        %v448 = vld [vmem:[%s447] sm:$0xff]
        %v449 = vld [vmem:[%s447 + $0x8] sm:$0xff]
        %v450 = vld [vmem:[%s447 + $0x10] sm:$0xf]
        %451 = vst.msk [vmem:[#allocation2 + $0x161] sm:$0xff] %vm276, %v448
        %452 = vst.msk [vmem:[#allocation2 + $0x169] sm:$0xff] %vm276, %v449
        %453 = vst.msk [vmem:[#allocation2 + $0x171] sm:$0xf] %vm347, %v450
        %s454 = scalar_lea.vmem %s275, 384
        %v455 = vld [vmem:[%s454] sm:$0xff]
        %v456 = vld [vmem:[%s454 + $0x8] sm:$0xff]
        %v457 = vld [vmem:[%s454 + $0x10] sm:$0xf]
        %458 = vst.msk [vmem:[#allocation2 + $0x177] sm:$0xff] %vm276, %v455
        %459 = vst.msk [vmem:[#allocation2 + $0x17f] sm:$0xff] %vm276, %v456
        %460 = vst.msk [vmem:[#allocation2 + $0x187] sm:$0xf] %vm347, %v457
        %s461 = scalar_lea.vmem %s275, 408
        %v462 = vld [vmem:[%s461] sm:$0xff]
        %v463 = vld [vmem:[%s461 + $0x8] sm:$0xff]
        %v464 = vld [vmem:[%s461 + $0x10] sm:$0xf]
        %465 = vst.msk [vmem:[#allocation2 + $0x18d] sm:$0xff] %vm276, %v462
        %466 = vst.msk [vmem:[#allocation2 + $0x195] sm:$0xff] %vm276, %v463
        %467 = vst.msk [vmem:[#allocation2 + $0x19d] sm:$0xf] %vm347, %v464
        %s468 = scalar_lea.vmem %s275, 432
        %v469 = vld [vmem:[%s468] sm:$0xff]
        %v470 = vld [vmem:[%s468 + $0x8] sm:$0xff]
        %v471 = vld [vmem:[%s468 + $0x10] sm:$0xf]
        %472 = vst.msk [vmem:[#allocation2 + $0x1a3] sm:$0xff] %vm276, %v469
        %473 = vst.msk [vmem:[#allocation2 + $0x1ab] sm:$0xff] %vm276, %v470
        %474 = vst.msk [vmem:[#allocation2 + $0x1b3] sm:$0xf] %vm347, %v471
        %s475 = scalar_lea.vmem %s275, 456
        %v476 = vld [vmem:[%s475] sm:$0xff]
        %v477 = vld [vmem:[%s475 + $0x8] sm:$0xff]
        %v478 = vld [vmem:[%s475 + $0x10] sm:$0xf]
        %479 = vst.msk [vmem:[#allocation2 + $0x1b9] sm:$0xff] %vm276, %v476
        %480 = vst.msk [vmem:[#allocation2 + $0x1c1] sm:$0xff] %vm276, %v477
        %481 = vst.msk [vmem:[#allocation2 + $0x1c9] sm:$0xf] %vm347, %v478
        %v482 = vld [vmem:[#allocation2] sm:$0xff]
        %v483 = vld [vmem:[#allocation2 + $0x8] sm:$0xff]
        %v484 = vld [vmem:[#allocation2 + $0x10] sm:$0xff]
        %v485 = vld [vmem:[#allocation2 + $0x18] sm:$0xff]
        %v486 = vld [vmem:[#allocation2 + $0x20] sm:$0xff]
        %v487 = vld [vmem:[#allocation2 + $0x28] sm:$0xff]
        %v488 = vld [vmem:[#allocation2 + $0x30] sm:$0xff]
        %v489 = vld [vmem:[#allocation2 + $0x38] sm:$0xff]
        %v490 = vld [vmem:[#allocation2 + $0x40] sm:$0xff]
        %v491 = vld [vmem:[#allocation2 + $0x48] sm:$0xff]
        %v492 = vld [vmem:[#allocation2 + $0x50] sm:$0xff]
        %v493 = vld [vmem:[#allocation2 + $0x58] sm:$0xff]
        %v494 = vld [vmem:[#allocation2 + $0x60] sm:$0xff]
        %v495 = vld [vmem:[#allocation2 + $0x68] sm:$0xff]
        %v496 = vld [vmem:[#allocation2 + $0x70] sm:$0xff]
        %v497 = vld [vmem:[#allocation2 + $0x78] sm:$0xff]
        %v498 = vld [vmem:[#allocation2 + $0x80] sm:$0xff]
        %v499 = vld [vmem:[#allocation2 + $0x88] sm:$0xff]
        %v500 = vld [vmem:[#allocation2 + $0x90] sm:$0xff]
        %v501 = vld [vmem:[#allocation2 + $0x98] sm:$0xff]
        %v502 = vld [vmem:[#allocation2 + $0xa0] sm:$0xff]
        %v503 = vld [vmem:[#allocation2 + $0xa8] sm:$0xff]
        %v504 = vld [vmem:[#allocation2 + $0xb0] sm:$0xff]
        %v505 = vld [vmem:[#allocation2 + $0xb8] sm:$0xff]
        %v506 = vld [vmem:[#allocation2 + $0xc0] sm:$0xff]
        %v507 = vld [vmem:[#allocation2 + $0xc8] sm:$0xff]
        %v508 = vld [vmem:[#allocation2 + $0xd0] sm:$0xff]
        %v509 = vld [vmem:[#allocation2 + $0xd8] sm:$0xff]
        %v510 = vld [vmem:[#allocation2 + $0xe0] sm:$0xff]
        %v511 = vld [vmem:[#allocation2 + $0xe8] sm:$0xff]
        %v512 = vld [vmem:[#allocation2 + $0xf0] sm:$0xff]
        %v513 = vld [vmem:[#allocation2 + $0xf8] sm:$0xff]
        %v514 = vld [vmem:[#allocation2 + $0x100] sm:$0xff]
        %v515 = vld [vmem:[#allocation2 + $0x108] sm:$0xff]
        %v516 = vld [vmem:[#allocation2 + $0x110] sm:$0xff]
        %v517 = vld [vmem:[#allocation2 + $0x118] sm:$0xff]
        %v518 = vld [vmem:[#allocation2 + $0x120] sm:$0xff]
        %v519 = vld [vmem:[#allocation2 + $0x128] sm:$0xff]
        %v520 = vld [vmem:[#allocation2 + $0x130] sm:$0xff]
        %v521 = vld [vmem:[#allocation2 + $0x138] sm:$0xff]
        %v522 = vld [vmem:[#allocation2 + $0x140] sm:$0xff]
        %v523 = vld [vmem:[#allocation2 + $0x148] sm:$0xff]
        %v524 = vld [vmem:[#allocation2 + $0x150] sm:$0xff]
        %v525 = vld [vmem:[#allocation2 + $0x158] sm:$0xff]
        %v526 = vld [vmem:[#allocation2 + $0x160] sm:$0xff]
        %v527 = vld [vmem:[#allocation2 + $0x168] sm:$0xff]
        %v528 = vld [vmem:[#allocation2 + $0x170] sm:$0xff]
        %v529 = vld [vmem:[#allocation2 + $0x178] sm:$0xff]
        %v530 = vld [vmem:[#allocation2 + $0x180] sm:$0xff]
        %v531 = vld [vmem:[#allocation2 + $0x188] sm:$0xff]
        %v532 = vld [vmem:[#allocation2 + $0x190] sm:$0xff]
        %v533 = vld [vmem:[#allocation2 + $0x198] sm:$0xff]
        %v534 = vld [vmem:[#allocation2 + $0x1a0] sm:$0xff]
        %v535 = vld [vmem:[#allocation2 + $0x1a8] sm:$0xff]
        %v536 = vld [vmem:[#allocation2 + $0x1b0] sm:$0xff]
        %v537 = vld [vmem:[%s1] sm:$0xff]
        %v538 = vld [vmem:[%s1 + $0x8] sm:$0xff]
        %v539 = vld [vmem:[%s1 + $0x10] sm:$0xff]
        %v540 = vld [vmem:[%s1 + $0x18] sm:$0xff]
        %v541 = vld [vmem:[%s1 + $0x20] sm:$0xff]
        %v542 = vld [vmem:[%s1 + $0x28] sm:$0xff]
        %v543 = vld [vmem:[%s1 + $0x30] sm:$0xff]
        %v544 = vld [vmem:[%s1 + $0x38] sm:$0xff]
        %v546 = vsel %vm276, %v482, 0
        %v549 = vsel %vm276, %v483, 0
        %v552 = vsel %vm276, %v484, 0
        %v555 = vsel %vm276, %v485, 0
        %v558 = vsel %vm276, %v486, 0
        %v561 = vsel %vm276, %v487, 0
        %v564 = vsel %vm276, %v488, 0
        %v567 = vsel %vm276, %v489, 0
        %v570 = vsel %vm276, %v490, 0
        %v573 = vsel %vm276, %v491, 0
        %v576 = vsel %vm276, %v492, 0
        %v579 = vsel %vm276, %v493, 0
        %v582 = vsel %vm276, %v494, 0
        %v585 = vsel %vm276, %v495, 0
        %v588 = vsel %vm276, %v496, 0
        %v591 = vsel %vm276, %v497, 0
        %v594 = vsel %vm276, %v498, 0
        %v597 = vsel %vm276, %v499, 0
        %v600 = vsel %vm276, %v500, 0
        %v603 = vsel %vm276, %v501, 0
        %v606 = vsel %vm276, %v502, 0
        %v609 = vsel %vm276, %v503, 0
        %v612 = vsel %vm276, %v504, 0
        %v615 = vsel %vm276, %v505, 0
        %v618 = vsel %vm276, %v506, 0
        %v621 = vsel %vm276, %v507, 0
        %v624 = vsel %vm276, %v508, 0
        %v627 = vsel %vm276, %v509, 0
        %v630 = vsel %vm276, %v510, 0
        %v633 = vsel %vm276, %v511, 0
        %v636 = vsel %vm276, %v512, 0
        %v639 = vsel %vm276, %v513, 0
        %v642 = vsel %vm276, %v514, 0
        %v645 = vsel %vm276, %v515, 0
        %v648 = vsel %vm276, %v516, 0
        %v651 = vsel %vm276, %v517, 0
        %v654 = vsel %vm276, %v518, 0
        %v657 = vsel %vm276, %v519, 0
        %v660 = vsel %vm276, %v520, 0
        %v663 = vsel %vm276, %v521, 0
        %v666 = vsel %vm276, %v522, 0
        %v669 = vsel %vm276, %v523, 0
        %v672 = vsel %vm276, %v524, 0
        %v675 = vsel %vm276, %v525, 0
        %v678 = vsel %vm276, %v526, 0
        %v681 = vsel %vm276, %v527, 0
        %v684 = vsel %vm276, %v528, 0
        %v687 = vsel %vm276, %v529, 0
        %v690 = vsel %vm276, %v530, 0
        %v693 = vsel %vm276, %v531, 0
        %v696 = vsel %vm276, %v532, 0
        %v699 = vsel %vm276, %v533, 0
        %v702 = vsel %vm276, %v534, 0
        %v705 = vsel %vm276, %v535, 0
        %v708 = vsel %vm276, %v536, 0
        %710 = vmatpush.msra.mxu0 0.0
        %711 = vmatpush.msra.mxu0 0.0
        %712 = vmatpush.msra.mxu0 0.0
        %713 = vmatpush.msra.mxu0 0.0
        %714 = vmatpush.msra.mxu0 0.0
        %715 = vmatpush.msra.mxu0 0.0
        %716 = vmatpush.msra.mxu0 0.0
        %717 = vmatpush.msra.mxu0 0.0
        %718 = vmatpush.msra.mxu0 %v544
        %719 = vmatpush.msra.mxu0 %v543
        %720 = vmatpush.msra.mxu0 %v542
        %721 = vmatpush.msra.mxu0 %v541
        %722 = vmatpush.msra.mxu0 %v540
        %723 = vmatpush.msra.mxu0 %v539
        %724 = vmatpush.msra.mxu0 %v538
        %725 = vmatpush.msra.mxu0 %v537
        %726 = vmatmul.f32.gmra.mxu0 %v546
        %v727 = vpop.f32.mrf.mxu0
        %v728 = vadd.f32 0.0, %v727
        %729 = vmatmul.f32.gmra.mxu0 %v549
        %v730 = vpop.f32.mrf.mxu0
        %v731 = vadd.f32 0.0, %v730
        %732 = vmatmul.f32.gmra.mxu0 %v552
        %v733 = vpop.f32.mrf.mxu0
        %v734 = vadd.f32 0.0, %v733
        %735 = vmatmul.f32.gmra.mxu0 %v555
        %v736 = vpop.f32.mrf.mxu0
        %v737 = vadd.f32 0.0, %v736
        %738 = vmatmul.f32.gmra.mxu0 %v558
        %v739 = vpop.f32.mrf.mxu0
        %v740 = vadd.f32 0.0, %v739
        %741 = vmatmul.f32.gmra.mxu0 %v561
        %v742 = vpop.f32.mrf.mxu0
        %v743 = vadd.f32 0.0, %v742
        %744 = vmatmul.f32.gmra.mxu0 %v564
        %v745 = vpop.f32.mrf.mxu0
        %v746 = vadd.f32 0.0, %v745
        %747 = vmatmul.f32.gmra.mxu0 %v567
        %v748 = vpop.f32.mrf.mxu0
        %v749 = vadd.f32 0.0, %v748
        %750 = vmatmul.f32.gmra.mxu0 %v570
        %v751 = vpop.f32.mrf.mxu0
        %v752 = vadd.f32 0.0, %v751
        %753 = vmatmul.f32.gmra.mxu0 %v573
        %v754 = vpop.f32.mrf.mxu0
        %v755 = vadd.f32 0.0, %v754
        %756 = vmatmul.f32.gmra.mxu0 %v576
        %v757 = vpop.f32.mrf.mxu0
        %v758 = vadd.f32 0.0, %v757
        %759 = vmatmul.f32.gmra.mxu0 %v579
        %v760 = vpop.f32.mrf.mxu0
        %v761 = vadd.f32 0.0, %v760
        %762 = vmatmul.f32.gmra.mxu0 %v582
        %v763 = vpop.f32.mrf.mxu0
        %v764 = vadd.f32 0.0, %v763
        %765 = vmatmul.f32.gmra.mxu0 %v585
        %v766 = vpop.f32.mrf.mxu0
        %v767 = vadd.f32 0.0, %v766
        %768 = vmatmul.f32.gmra.mxu0 %v588
        %v769 = vpop.f32.mrf.mxu0
        %v770 = vadd.f32 0.0, %v769
        %771 = vmatmul.f32.gmra.mxu0 %v591
        %v772 = vpop.f32.mrf.mxu0
        %v773 = vadd.f32 0.0, %v772
        %774 = vmatmul.f32.gmra.mxu0 %v594
        %v775 = vpop.f32.mrf.mxu0
        %v776 = vadd.f32 0.0, %v775
        %777 = vmatmul.f32.gmra.mxu0 %v597
        %v778 = vpop.f32.mrf.mxu0
        %v779 = vadd.f32 0.0, %v778
        %780 = vmatmul.f32.gmra.mxu0 %v600
        %v781 = vpop.f32.mrf.mxu0
        %v782 = vadd.f32 0.0, %v781
        %783 = vmatmul.f32.gmra.mxu0 %v603
        %v784 = vpop.f32.mrf.mxu0
        %v785 = vadd.f32 0.0, %v784
        %786 = vmatmul.f32.gmra.mxu0 %v606
        %v787 = vpop.f32.mrf.mxu0
        %v788 = vadd.f32 0.0, %v787
        %789 = vmatmul.f32.gmra.mxu0 %v609
        %v790 = vpop.f32.mrf.mxu0
        %v791 = vadd.f32 0.0, %v790
        %792 = vmatmul.f32.gmra.mxu0 %v612
        %v793 = vpop.f32.mrf.mxu0
        %v794 = vadd.f32 0.0, %v793
        %795 = vmatmul.f32.gmra.mxu0 %v615
        %v796 = vpop.f32.mrf.mxu0
        %v797 = vadd.f32 0.0, %v796
        %798 = vmatmul.f32.gmra.mxu0 %v618
        %v799 = vpop.f32.mrf.mxu0
        %v800 = vadd.f32 0.0, %v799
        %801 = vmatmul.f32.gmra.mxu0 %v621
        %v802 = vpop.f32.mrf.mxu0
        %v803 = vadd.f32 0.0, %v802
        %804 = vmatmul.f32.gmra.mxu0 %v624
        %v805 = vpop.f32.mrf.mxu0
        %v806 = vadd.f32 0.0, %v805
        %807 = vmatmul.f32.gmra.mxu0 %v627
        %v808 = vpop.f32.mrf.mxu0
        %v809 = vadd.f32 0.0, %v808
        %810 = vmatmul.f32.gmra.mxu0 %v630
        %v811 = vpop.f32.mrf.mxu0
        %v812 = vadd.f32 0.0, %v811
        %813 = vmatmul.f32.gmra.mxu0 %v633
        %v814 = vpop.f32.mrf.mxu0
        %v815 = vadd.f32 0.0, %v814
        %816 = vmatmul.f32.gmra.mxu0 %v636
        %v817 = vpop.f32.mrf.mxu0
        %v818 = vadd.f32 0.0, %v817
        %819 = vmatmul.f32.gmra.mxu0 %v639
        %v820 = vpop.f32.mrf.mxu0
        %v821 = vadd.f32 0.0, %v820
        %822 = vmatmul.f32.gmra.mxu0 %v642
        %v823 = vpop.f32.mrf.mxu0
        %v824 = vadd.f32 0.0, %v823
        %825 = vmatmul.f32.gmra.mxu0 %v645
        %v826 = vpop.f32.mrf.mxu0
        %v827 = vadd.f32 0.0, %v826
        %828 = vmatmul.f32.gmra.mxu0 %v648
        %v829 = vpop.f32.mrf.mxu0
        %v830 = vadd.f32 0.0, %v829
        %831 = vmatmul.f32.gmra.mxu0 %v651
        %v832 = vpop.f32.mrf.mxu0
        %v833 = vadd.f32 0.0, %v832
        %834 = vmatmul.f32.gmra.mxu0 %v654
        %v835 = vpop.f32.mrf.mxu0
        %v836 = vadd.f32 0.0, %v835
        %837 = vmatmul.f32.gmra.mxu0 %v657
        %v838 = vpop.f32.mrf.mxu0
        %v839 = vadd.f32 0.0, %v838
        %840 = vmatmul.f32.gmra.mxu0 %v660
        %v841 = vpop.f32.mrf.mxu0
        %v842 = vadd.f32 0.0, %v841
        %843 = vmatmul.f32.gmra.mxu0 %v663
        %v844 = vpop.f32.mrf.mxu0
        %v845 = vadd.f32 0.0, %v844
        %846 = vmatmul.f32.gmra.mxu0 %v666
        %v847 = vpop.f32.mrf.mxu0
        %v848 = vadd.f32 0.0, %v847
        %849 = vmatmul.f32.gmra.mxu0 %v669
        %v850 = vpop.f32.mrf.mxu0
        %v851 = vadd.f32 0.0, %v850
        %852 = vmatmul.f32.gmra.mxu0 %v672
        %v853 = vpop.f32.mrf.mxu0
        %v854 = vadd.f32 0.0, %v853
        %855 = vmatmul.f32.gmra.mxu0 %v675
        %v856 = vpop.f32.mrf.mxu0
        %v857 = vadd.f32 0.0, %v856
        %858 = vmatmul.f32.gmra.mxu0 %v678
        %v859 = vpop.f32.mrf.mxu0
        %v860 = vadd.f32 0.0, %v859
        %861 = vmatmul.f32.gmra.mxu0 %v681
        %v862 = vpop.f32.mrf.mxu0
        %v863 = vadd.f32 0.0, %v862
        %864 = vmatmul.f32.gmra.mxu0 %v684
        %v865 = vpop.f32.mrf.mxu0
        %v866 = vadd.f32 0.0, %v865
        %867 = vmatmul.f32.gmra.mxu0 %v687
        %v868 = vpop.f32.mrf.mxu0
        %v869 = vadd.f32 0.0, %v868
        %870 = vmatmul.f32.gmra.mxu0 %v690
        %v871 = vpop.f32.mrf.mxu0
        %v872 = vadd.f32 0.0, %v871
        %873 = vmatmul.f32.gmra.mxu0 %v693
        %v874 = vpop.f32.mrf.mxu0
        %v875 = vadd.f32 0.0, %v874
        %876 = vmatmul.f32.gmra.mxu0 %v696
        %v877 = vpop.f32.mrf.mxu0
        %v878 = vadd.f32 0.0, %v877
        %879 = vmatmul.f32.gmra.mxu0 %v699
        %v880 = vpop.f32.mrf.mxu0
        %v881 = vadd.f32 0.0, %v880
        %882 = vmatmul.f32.gmra.mxu0 %v702
        %v883 = vpop.f32.mrf.mxu0
        %v884 = vadd.f32 0.0, %v883
        %885 = vmatmul.f32.gmra.mxu0 %v705
        %v886 = vpop.f32.mrf.mxu0
        %v887 = vadd.f32 0.0, %v886
        %888 = vmatmul.f32.gmra.mxu0 %v708
        %v889 = vpop.f32.mrf.mxu0
        %v890 = vadd.f32 0.0, %v889
        %891 = vdwg.mxu0
        %892 = vst.msk [vmem:[#allocation3] sm:$0xff] %vm276, %v728
        %893 = vst.msk [vmem:[#allocation3 + $0x8] sm:$0xff] %vm276, %v731
        %894 = vst.msk [vmem:[#allocation3 + $0x10] sm:$0xff] %vm276, %v734
        %895 = vst.msk [vmem:[#allocation3 + $0x18] sm:$0xff] %vm276, %v737
        %896 = vst.msk [vmem:[#allocation3 + $0x20] sm:$0xff] %vm276, %v740
        %897 = vst.msk [vmem:[#allocation3 + $0x28] sm:$0xff] %vm276, %v743
        %898 = vst.msk [vmem:[#allocation3 + $0x30] sm:$0xff] %vm276, %v746
        %899 = vst.msk [vmem:[#allocation3 + $0x38] sm:$0xff] %vm276, %v749
        %900 = vst.msk [vmem:[#allocation3 + $0x40] sm:$0xff] %vm276, %v752
        %901 = vst.msk [vmem:[#allocation3 + $0x48] sm:$0xff] %vm276, %v755
        %902 = vst.msk [vmem:[#allocation3 + $0x50] sm:$0xff] %vm276, %v758
        %903 = vst.msk [vmem:[#allocation3 + $0x58] sm:$0xff] %vm276, %v761
        %904 = vst.msk [vmem:[#allocation3 + $0x60] sm:$0xff] %vm276, %v764
        %905 = vst.msk [vmem:[#allocation3 + $0x68] sm:$0xff] %vm276, %v767
        %906 = vst.msk [vmem:[#allocation3 + $0x70] sm:$0xff] %vm276, %v770
        %907 = vst.msk [vmem:[#allocation3 + $0x78] sm:$0xff] %vm276, %v773
        %908 = vst.msk [vmem:[#allocation3 + $0x80] sm:$0xff] %vm276, %v776
        %909 = vst.msk [vmem:[#allocation3 + $0x88] sm:$0xff] %vm276, %v779
        %910 = vst.msk [vmem:[#allocation3 + $0x90] sm:$0xff] %vm276, %v782
        %911 = vst.msk [vmem:[#allocation3 + $0x98] sm:$0xff] %vm276, %v785
        %912 = vst.msk [vmem:[#allocation3 + $0xa0] sm:$0xff] %vm276, %v788
        %913 = vst.msk [vmem:[#allocation3 + $0xa8] sm:$0xff] %vm276, %v791
        %914 = vst.msk [vmem:[#allocation3 + $0xb0] sm:$0xff] %vm276, %v794
        %915 = vst.msk [vmem:[#allocation3 + $0xb8] sm:$0xff] %vm276, %v797
        %916 = vst.msk [vmem:[#allocation3 + $0xc0] sm:$0xff] %vm276, %v800
        %917 = vst.msk [vmem:[#allocation3 + $0xc8] sm:$0xff] %vm276, %v803
        %918 = vst.msk [vmem:[#allocation3 + $0xd0] sm:$0xff] %vm276, %v806
        %919 = vst.msk [vmem:[#allocation3 + $0xd8] sm:$0xff] %vm276, %v809
        %920 = vst.msk [vmem:[#allocation3 + $0xe0] sm:$0xff] %vm276, %v812
        %921 = vst.msk [vmem:[#allocation3 + $0xe8] sm:$0xff] %vm276, %v815
        %922 = vst.msk [vmem:[#allocation3 + $0xf0] sm:$0xff] %vm276, %v818
        %923 = vst.msk [vmem:[#allocation3 + $0xf8] sm:$0xff] %vm276, %v821
        %924 = vst.msk [vmem:[#allocation3 + $0x100] sm:$0xff] %vm276, %v824
        %925 = vst.msk [vmem:[#allocation3 + $0x108] sm:$0xff] %vm276, %v827
        %926 = vst.msk [vmem:[#allocation3 + $0x110] sm:$0xff] %vm276, %v830
        %927 = vst.msk [vmem:[#allocation3 + $0x118] sm:$0xff] %vm276, %v833
        %928 = vst.msk [vmem:[#allocation3 + $0x120] sm:$0xff] %vm276, %v836
        %929 = vst.msk [vmem:[#allocation3 + $0x128] sm:$0xff] %vm276, %v839
        %930 = vst.msk [vmem:[#allocation3 + $0x130] sm:$0xff] %vm276, %v842
        %931 = vst.msk [vmem:[#allocation3 + $0x138] sm:$0xff] %vm276, %v845
        %932 = vst.msk [vmem:[#allocation3 + $0x140] sm:$0xff] %vm276, %v848
        %933 = vst.msk [vmem:[#allocation3 + $0x148] sm:$0xff] %vm276, %v851
        %934 = vst.msk [vmem:[#allocation3 + $0x150] sm:$0xff] %vm276, %v854
        %935 = vst.msk [vmem:[#allocation3 + $0x158] sm:$0xff] %vm276, %v857
        %936 = vst.msk [vmem:[#allocation3 + $0x160] sm:$0xff] %vm276, %v860
        %937 = vst.msk [vmem:[#allocation3 + $0x168] sm:$0xff] %vm276, %v863
        %938 = vst.msk [vmem:[#allocation3 + $0x170] sm:$0xff] %vm276, %v866
        %939 = vst.msk [vmem:[#allocation3 + $0x178] sm:$0xff] %vm276, %v869
        %940 = vst.msk [vmem:[#allocation3 + $0x180] sm:$0xff] %vm276, %v872
        %941 = vst.msk [vmem:[#allocation3 + $0x188] sm:$0xff] %vm276, %v875
        %942 = vst.msk [vmem:[#allocation3 + $0x190] sm:$0xff] %vm276, %v878
        %943 = vst.msk [vmem:[#allocation3 + $0x198] sm:$0xff] %vm276, %v881
        %944 = vst.msk [vmem:[#allocation3 + $0x1a0] sm:$0xff] %vm276, %v884
        %945 = vst.msk [vmem:[#allocation3 + $0x1a8] sm:$0xff] %vm276, %v887
        %946 = vst.msk [vmem:[#allocation3 + $0x1b0] sm:$0xff] %vm276, %v890
        %v947 = vld [vmem:[#allocation2 + $0x1] sm:$0xff]
        %v948 = vld [vmem:[#allocation2 + $0x9] sm:$0xff]
        %v949 = vld [vmem:[#allocation2 + $0x11] sm:$0xff]
        %v950 = vld [vmem:[#allocation2 + $0x19] sm:$0xff]
        %v951 = vld [vmem:[#allocation2 + $0x21] sm:$0xff]
        %v952 = vld [vmem:[#allocation2 + $0x29] sm:$0xff]
        %v953 = vld [vmem:[#allocation2 + $0x31] sm:$0xff]
        %v954 = vld [vmem:[#allocation2 + $0x39] sm:$0xff]
        %v955 = vld [vmem:[#allocation2 + $0x41] sm:$0xff]
        %v956 = vld [vmem:[#allocation2 + $0x49] sm:$0xff]
        %v957 = vld [vmem:[#allocation2 + $0x51] sm:$0xff]
        %v958 = vld [vmem:[#allocation2 + $0x59] sm:$0xff]
        %v959 = vld [vmem:[#allocation2 + $0x61] sm:$0xff]
        %v960 = vld [vmem:[#allocation2 + $0x69] sm:$0xff]
        %v961 = vld [vmem:[#allocation2 + $0x71] sm:$0xff]
        %v962 = vld [vmem:[#allocation2 + $0x79] sm:$0xff]
        %v963 = vld [vmem:[#allocation2 + $0x81] sm:$0xff]
        %v964 = vld [vmem:[#allocation2 + $0x89] sm:$0xff]
        %v965 = vld [vmem:[#allocation2 + $0x91] sm:$0xff]
        %v966 = vld [vmem:[#allocation2 + $0x99] sm:$0xff]
        %v967 = vld [vmem:[#allocation2 + $0xa1] sm:$0xff]
        %v968 = vld [vmem:[#allocation2 + $0xa9] sm:$0xff]
        %v969 = vld [vmem:[#allocation2 + $0xb1] sm:$0xff]
        %v970 = vld [vmem:[#allocation2 + $0xb9] sm:$0xff]
        %v971 = vld [vmem:[#allocation2 + $0xc1] sm:$0xff]
        %v972 = vld [vmem:[#allocation2 + $0xc9] sm:$0xff]
        %v973 = vld [vmem:[#allocation2 + $0xd1] sm:$0xff]
        %v974 = vld [vmem:[#allocation2 + $0xd9] sm:$0xff]
        %v975 = vld [vmem:[#allocation2 + $0xe1] sm:$0xff]
        %v976 = vld [vmem:[#allocation2 + $0xe9] sm:$0xff]
        %v977 = vld [vmem:[#allocation2 + $0xf1] sm:$0xff]
        %v978 = vld [vmem:[#allocation2 + $0xf9] sm:$0xff]
        %v979 = vld [vmem:[#allocation2 + $0x101] sm:$0xff]
        %v980 = vld [vmem:[#allocation2 + $0x109] sm:$0xff]
        %v981 = vld [vmem:[#allocation2 + $0x111] sm:$0xff]
        %v982 = vld [vmem:[#allocation2 + $0x119] sm:$0xff]
        %v983 = vld [vmem:[#allocation2 + $0x121] sm:$0xff]
        %v984 = vld [vmem:[#allocation2 + $0x129] sm:$0xff]
        %v985 = vld [vmem:[#allocation2 + $0x131] sm:$0xff]
        %v986 = vld [vmem:[#allocation2 + $0x139] sm:$0xff]
        %v987 = vld [vmem:[#allocation2 + $0x141] sm:$0xff]
        %v988 = vld [vmem:[#allocation2 + $0x149] sm:$0xff]
        %v989 = vld [vmem:[#allocation2 + $0x151] sm:$0xff]
        %v990 = vld [vmem:[#allocation2 + $0x159] sm:$0xff]
        %v991 = vld [vmem:[#allocation2 + $0x161] sm:$0xff]
        %v992 = vld [vmem:[#allocation2 + $0x169] sm:$0xff]
        %v993 = vld [vmem:[#allocation2 + $0x171] sm:$0xff]
        %v994 = vld [vmem:[#allocation2 + $0x179] sm:$0xff]
        %v995 = vld [vmem:[#allocation2 + $0x181] sm:$0xff]
        %v996 = vld [vmem:[#allocation2 + $0x189] sm:$0xff]
        %v997 = vld [vmem:[#allocation2 + $0x191] sm:$0xff]
        %v998 = vld [vmem:[#allocation2 + $0x199] sm:$0xff]
        %v999 = vld [vmem:[#allocation2 + $0x1a1] sm:$0xff]
        %v1000 = vld [vmem:[#allocation2 + $0x1a9] sm:$0xff]
        %v1001 = vld [vmem:[#allocation2 + $0x1b1] sm:$0xff]
        %s1002 = scalar_lea.vmem %s1, 64
        %v1003 = vld [vmem:[%s1002] sm:$0xff]
        %v1004 = vld [vmem:[%s1002 + $0x8] sm:$0xff]
        %v1005 = vld [vmem:[%s1002 + $0x10] sm:$0xff]
        %v1006 = vld [vmem:[%s1002 + $0x18] sm:$0xff]
        %v1007 = vld [vmem:[%s1002 + $0x20] sm:$0xff]
        %v1008 = vld [vmem:[%s1002 + $0x28] sm:$0xff]
        %v1009 = vld [vmem:[%s1002 + $0x30] sm:$0xff]
        %v1010 = vld [vmem:[%s1002 + $0x38] sm:$0xff]
        %v1012 = vsel %vm276, %v947, 0
        %v1015 = vsel %vm276, %v948, 0
        %v1018 = vsel %vm276, %v949, 0
        %v1021 = vsel %vm276, %v950, 0
        %v1024 = vsel %vm276, %v951, 0
        %v1027 = vsel %vm276, %v952, 0
        %v1030 = vsel %vm276, %v953, 0
        %v1033 = vsel %vm276, %v954, 0
        %v1036 = vsel %vm276, %v955, 0
        %v1039 = vsel %vm276, %v956, 0
        %v1042 = vsel %vm276, %v957, 0
        %v1045 = vsel %vm276, %v958, 0
        %v1048 = vsel %vm276, %v959, 0
        %v1051 = vsel %vm276, %v960, 0
        %v1054 = vsel %vm276, %v961, 0
        %v1057 = vsel %vm276, %v962, 0
        %v1060 = vsel %vm276, %v963, 0
        %v1063 = vsel %vm276, %v964, 0
        %v1066 = vsel %vm276, %v965, 0
        %v1069 = vsel %vm276, %v966, 0
        %v1072 = vsel %vm276, %v967, 0
        %v1075 = vsel %vm276, %v968, 0
        %v1078 = vsel %vm276, %v969, 0
        %v1081 = vsel %vm276, %v970, 0
        %v1084 = vsel %vm276, %v971, 0
        %v1087 = vsel %vm276, %v972, 0
        %v1090 = vsel %vm276, %v973, 0
        %v1093 = vsel %vm276, %v974, 0
        %v1096 = vsel %vm276, %v975, 0
        %v1099 = vsel %vm276, %v976, 0
        %v1102 = vsel %vm276, %v977, 0
        %v1105 = vsel %vm276, %v978, 0
        %v1108 = vsel %vm276, %v979, 0
        %v1111 = vsel %vm276, %v980, 0
        %v1114 = vsel %vm276, %v981, 0
        %v1117 = vsel %vm276, %v982, 0
        %v1120 = vsel %vm276, %v983, 0
        %v1123 = vsel %vm276, %v984, 0
        %v1126 = vsel %vm276, %v985, 0
        %v1129 = vsel %vm276, %v986, 0
        %v1132 = vsel %vm276, %v987, 0
        %v1135 = vsel %vm276, %v988, 0
        %v1138 = vsel %vm276, %v989, 0
        %v1141 = vsel %vm276, %v990, 0
        %v1144 = vsel %vm276, %v991, 0
        %v1147 = vsel %vm276, %v992, 0
        %v1150 = vsel %vm276, %v993, 0
        %v1153 = vsel %vm276, %v994, 0
        %v1156 = vsel %vm276, %v995, 0
        %v1159 = vsel %vm276, %v996, 0
        %v1162 = vsel %vm276, %v997, 0
        %v1165 = vsel %vm276, %v998, 0
        %v1168 = vsel %vm276, %v999, 0
        %v1171 = vsel %vm276, %v1000, 0
        %v1174 = vsel %vm276, %v1001, 0
        %1176 = vmatpush.msra.mxu0 0.0
        %1177 = vmatpush.msra.mxu0 0.0
        %1178 = vmatpush.msra.mxu0 0.0
        %1179 = vmatpush.msra.mxu0 0.0
        %1180 = vmatpush.msra.mxu0 0.0
        %1181 = vmatpush.msra.mxu0 0.0
        %1182 = vmatpush.msra.mxu0 0.0
        %1183 = vmatpush.msra.mxu0 0.0
        %1184 = vmatpush.msra.mxu0 %v1010
        %1185 = vmatpush.msra.mxu0 %v1009
        %1186 = vmatpush.msra.mxu0 %v1008
        %1187 = vmatpush.msra.mxu0 %v1007
        %1188 = vmatpush.msra.mxu0 %v1006
        %1189 = vmatpush.msra.mxu0 %v1005
        %1190 = vmatpush.msra.mxu0 %v1004
        %1191 = vmatpush.msra.mxu0 %v1003
        %1192 = vmatmul.f32.gmra.mxu0 %v1012
        %v1193 = vpop.f32.mrf.mxu0
        %v1194 = vadd.f32 0.0, %v1193
        %1195 = vmatmul.f32.gmra.mxu0 %v1015
        %v1196 = vpop.f32.mrf.mxu0
        %v1197 = vadd.f32 0.0, %v1196
        %1198 = vmatmul.f32.gmra.mxu0 %v1018
        %v1199 = vpop.f32.mrf.mxu0
        %v1200 = vadd.f32 0.0, %v1199
        %1201 = vmatmul.f32.gmra.mxu0 %v1021
        %v1202 = vpop.f32.mrf.mxu0
        %v1203 = vadd.f32 0.0, %v1202
        %1204 = vmatmul.f32.gmra.mxu0 %v1024
        %v1205 = vpop.f32.mrf.mxu0
        %v1206 = vadd.f32 0.0, %v1205
        %1207 = vmatmul.f32.gmra.mxu0 %v1027
        %v1208 = vpop.f32.mrf.mxu0
        %v1209 = vadd.f32 0.0, %v1208
        %1210 = vmatmul.f32.gmra.mxu0 %v1030
        %v1211 = vpop.f32.mrf.mxu0
        %v1212 = vadd.f32 0.0, %v1211
        %1213 = vmatmul.f32.gmra.mxu0 %v1033
        %v1214 = vpop.f32.mrf.mxu0
        %v1215 = vadd.f32 0.0, %v1214
        %1216 = vmatmul.f32.gmra.mxu0 %v1036
        %v1217 = vpop.f32.mrf.mxu0
        %v1218 = vadd.f32 0.0, %v1217
        %1219 = vmatmul.f32.gmra.mxu0 %v1039
        %v1220 = vpop.f32.mrf.mxu0
        %v1221 = vadd.f32 0.0, %v1220
        %1222 = vmatmul.f32.gmra.mxu0 %v1042
        %v1223 = vpop.f32.mrf.mxu0
        %v1224 = vadd.f32 0.0, %v1223
        %1225 = vmatmul.f32.gmra.mxu0 %v1045
        %v1226 = vpop.f32.mrf.mxu0
        %v1227 = vadd.f32 0.0, %v1226
        %1228 = vmatmul.f32.gmra.mxu0 %v1048
        %v1229 = vpop.f32.mrf.mxu0
        %v1230 = vadd.f32 0.0, %v1229
        %1231 = vmatmul.f32.gmra.mxu0 %v1051
        %v1232 = vpop.f32.mrf.mxu0
        %v1233 = vadd.f32 0.0, %v1232
        %1234 = vmatmul.f32.gmra.mxu0 %v1054
        %v1235 = vpop.f32.mrf.mxu0
        %v1236 = vadd.f32 0.0, %v1235
        %1237 = vmatmul.f32.gmra.mxu0 %v1057
        %v1238 = vpop.f32.mrf.mxu0
        %v1239 = vadd.f32 0.0, %v1238
        %1240 = vmatmul.f32.gmra.mxu0 %v1060
        %v1241 = vpop.f32.mrf.mxu0
        %v1242 = vadd.f32 0.0, %v1241
        %1243 = vmatmul.f32.gmra.mxu0 %v1063
        %v1244 = vpop.f32.mrf.mxu0
        %v1245 = vadd.f32 0.0, %v1244
        %1246 = vmatmul.f32.gmra.mxu0 %v1066
        %v1247 = vpop.f32.mrf.mxu0
        %v1248 = vadd.f32 0.0, %v1247
        %1249 = vmatmul.f32.gmra.mxu0 %v1069
        %v1250 = vpop.f32.mrf.mxu0
        %v1251 = vadd.f32 0.0, %v1250
        %1252 = vmatmul.f32.gmra.mxu0 %v1072
        %v1253 = vpop.f32.mrf.mxu0
        %v1254 = vadd.f32 0.0, %v1253
        %1255 = vmatmul.f32.gmra.mxu0 %v1075
        %v1256 = vpop.f32.mrf.mxu0
        %v1257 = vadd.f32 0.0, %v1256
        %1258 = vmatmul.f32.gmra.mxu0 %v1078
        %v1259 = vpop.f32.mrf.mxu0
        %v1260 = vadd.f32 0.0, %v1259
        %1261 = vmatmul.f32.gmra.mxu0 %v1081
        %v1262 = vpop.f32.mrf.mxu0
        %v1263 = vadd.f32 0.0, %v1262
        %1264 = vmatmul.f32.gmra.mxu0 %v1084
        %v1265 = vpop.f32.mrf.mxu0
        %v1266 = vadd.f32 0.0, %v1265
        %1267 = vmatmul.f32.gmra.mxu0 %v1087
        %v1268 = vpop.f32.mrf.mxu0
        %v1269 = vadd.f32 0.0, %v1268
        %1270 = vmatmul.f32.gmra.mxu0 %v1090
        %v1271 = vpop.f32.mrf.mxu0
        %v1272 = vadd.f32 0.0, %v1271
        %1273 = vmatmul.f32.gmra.mxu0 %v1093
        %v1274 = vpop.f32.mrf.mxu0
        %v1275 = vadd.f32 0.0, %v1274
        %1276 = vmatmul.f32.gmra.mxu0 %v1096
        %v1277 = vpop.f32.mrf.mxu0
        %v1278 = vadd.f32 0.0, %v1277
        %1279 = vmatmul.f32.gmra.mxu0 %v1099
        %v1280 = vpop.f32.mrf.mxu0
        %v1281 = vadd.f32 0.0, %v1280
        %1282 = vmatmul.f32.gmra.mxu0 %v1102
        %v1283 = vpop.f32.mrf.mxu0
        %v1284 = vadd.f32 0.0, %v1283
        %1285 = vmatmul.f32.gmra.mxu0 %v1105
        %v1286 = vpop.f32.mrf.mxu0
        %v1287 = vadd.f32 0.0, %v1286
        %1288 = vmatmul.f32.gmra.mxu0 %v1108
        %v1289 = vpop.f32.mrf.mxu0
        %v1290 = vadd.f32 0.0, %v1289
        %1291 = vmatmul.f32.gmra.mxu0 %v1111
        %v1292 = vpop.f32.mrf.mxu0
        %v1293 = vadd.f32 0.0, %v1292
        %1294 = vmatmul.f32.gmra.mxu0 %v1114
        %v1295 = vpop.f32.mrf.mxu0
        %v1296 = vadd.f32 0.0, %v1295
        %1297 = vmatmul.f32.gmra.mxu0 %v1117
        %v1298 = vpop.f32.mrf.mxu0
        %v1299 = vadd.f32 0.0, %v1298
        %1300 = vmatmul.f32.gmra.mxu0 %v1120
        %v1301 = vpop.f32.mrf.mxu0
        %v1302 = vadd.f32 0.0, %v1301
        %1303 = vmatmul.f32.gmra.mxu0 %v1123
        %v1304 = vpop.f32.mrf.mxu0
        %v1305 = vadd.f32 0.0, %v1304
        %1306 = vmatmul.f32.gmra.mxu0 %v1126
        %v1307 = vpop.f32.mrf.mxu0
        %v1308 = vadd.f32 0.0, %v1307
        %1309 = vmatmul.f32.gmra.mxu0 %v1129
        %v1310 = vpop.f32.mrf.mxu0
        %v1311 = vadd.f32 0.0, %v1310
        %1312 = vmatmul.f32.gmra.mxu0 %v1132
        %v1313 = vpop.f32.mrf.mxu0
        %v1314 = vadd.f32 0.0, %v1313
        %1315 = vmatmul.f32.gmra.mxu0 %v1135
        %v1316 = vpop.f32.mrf.mxu0
        %v1317 = vadd.f32 0.0, %v1316
        %1318 = vmatmul.f32.gmra.mxu0 %v1138
        %v1319 = vpop.f32.mrf.mxu0
        %v1320 = vadd.f32 0.0, %v1319
        %1321 = vmatmul.f32.gmra.mxu0 %v1141
        %v1322 = vpop.f32.mrf.mxu0
        %v1323 = vadd.f32 0.0, %v1322
        %1324 = vmatmul.f32.gmra.mxu0 %v1144
        %v1325 = vpop.f32.mrf.mxu0
        %v1326 = vadd.f32 0.0, %v1325
        %1327 = vmatmul.f32.gmra.mxu0 %v1147
        %v1328 = vpop.f32.mrf.mxu0
        %v1329 = vadd.f32 0.0, %v1328
        %1330 = vmatmul.f32.gmra.mxu0 %v1150
        %v1331 = vpop.f32.mrf.mxu0
        %v1332 = vadd.f32 0.0, %v1331
        %1333 = vmatmul.f32.gmra.mxu0 %v1153
        %v1334 = vpop.f32.mrf.mxu0
        %v1335 = vadd.f32 0.0, %v1334
        %1336 = vmatmul.f32.gmra.mxu0 %v1156
        %v1337 = vpop.f32.mrf.mxu0
        %v1338 = vadd.f32 0.0, %v1337
        %1339 = vmatmul.f32.gmra.mxu0 %v1159
        %v1340 = vpop.f32.mrf.mxu0
        %v1341 = vadd.f32 0.0, %v1340
        %1342 = vmatmul.f32.gmra.mxu0 %v1162
        %v1343 = vpop.f32.mrf.mxu0
        %v1344 = vadd.f32 0.0, %v1343
        %1345 = vmatmul.f32.gmra.mxu0 %v1165
        %v1346 = vpop.f32.mrf.mxu0
        %v1347 = vadd.f32 0.0, %v1346
        %1348 = vmatmul.f32.gmra.mxu0 %v1168
        %v1349 = vpop.f32.mrf.mxu0
        %v1350 = vadd.f32 0.0, %v1349
        %1351 = vmatmul.f32.gmra.mxu0 %v1171
        %v1352 = vpop.f32.mrf.mxu0
        %v1353 = vadd.f32 0.0, %v1352
        %1354 = vmatmul.f32.gmra.mxu0 %v1174
        %v1355 = vpop.f32.mrf.mxu0
        %v1356 = vadd.f32 0.0, %v1355
        %1357 = vdwg.mxu0
        %v1358 = vld [vmem:[#allocation3] sm:$0xff]
        %v1359 = vld [vmem:[#allocation3 + $0x8] sm:$0xff]
        %v1360 = vld [vmem:[#allocation3 + $0x10] sm:$0xff]
        %v1361 = vld [vmem:[#allocation3 + $0x18] sm:$0xff]
        %v1362 = vld [vmem:[#allocation3 + $0x20] sm:$0xff]
        %v1363 = vld [vmem:[#allocation3 + $0x28] sm:$0xff]
        %v1364 = vld [vmem:[#allocation3 + $0x30] sm:$0xff]
        %v1365 = vld [vmem:[#allocation3 + $0x38] sm:$0xff]
        %v1366 = vld [vmem:[#allocation3 + $0x40] sm:$0xff]
        %v1367 = vld [vmem:[#allocation3 + $0x48] sm:$0xff]
        %v1368 = vld [vmem:[#allocation3 + $0x50] sm:$0xff]
        %v1369 = vld [vmem:[#allocation3 + $0x58] sm:$0xff]
        %v1370 = vld [vmem:[#allocation3 + $0x60] sm:$0xff]
        %v1371 = vld [vmem:[#allocation3 + $0x68] sm:$0xff]
        %v1372 = vld [vmem:[#allocation3 + $0x70] sm:$0xff]
        %v1373 = vld [vmem:[#allocation3 + $0x78] sm:$0xff]
        %v1374 = vld [vmem:[#allocation3 + $0x80] sm:$0xff]
        %v1375 = vld [vmem:[#allocation3 + $0x88] sm:$0xff]
        %v1376 = vld [vmem:[#allocation3 + $0x90] sm:$0xff]
        %v1377 = vld [vmem:[#allocation3 + $0x98] sm:$0xff]
        %v1378 = vld [vmem:[#allocation3 + $0xa0] sm:$0xff]
        %v1379 = vld [vmem:[#allocation3 + $0xa8] sm:$0xff]
        %v1380 = vld [vmem:[#allocation3 + $0xb0] sm:$0xff]
        %v1381 = vld [vmem:[#allocation3 + $0xb8] sm:$0xff]
        %v1382 = vld [vmem:[#allocation3 + $0xc0] sm:$0xff]
        %v1383 = vld [vmem:[#allocation3 + $0xc8] sm:$0xff]
        %v1384 = vld [vmem:[#allocation3 + $0xd0] sm:$0xff]
        %v1385 = vld [vmem:[#allocation3 + $0xd8] sm:$0xff]
        %v1386 = vld [vmem:[#allocation3 + $0xe0] sm:$0xff]
        %v1387 = vld [vmem:[#allocation3 + $0xe8] sm:$0xff]
        %v1388 = vld [vmem:[#allocation3 + $0xf0] sm:$0xff]
        %v1389 = vld [vmem:[#allocation3 + $0xf8] sm:$0xff]
        %v1390 = vld [vmem:[#allocation3 + $0x100] sm:$0xff]
        %v1391 = vld [vmem:[#allocation3 + $0x108] sm:$0xff]
        %v1392 = vld [vmem:[#allocation3 + $0x110] sm:$0xff]
        %v1393 = vld [vmem:[#allocation3 + $0x118] sm:$0xff]
        %v1394 = vld [vmem:[#allocation3 + $0x120] sm:$0xff]
        %v1395 = vld [vmem:[#allocation3 + $0x128] sm:$0xff]
        %v1396 = vld [vmem:[#allocation3 + $0x130] sm:$0xff]
        %v1397 = vld [vmem:[#allocation3 + $0x138] sm:$0xff]
        %v1398 = vld [vmem:[#allocation3 + $0x140] sm:$0xff]
        %v1399 = vld [vmem:[#allocation3 + $0x148] sm:$0xff]
        %v1400 = vld [vmem:[#allocation3 + $0x150] sm:$0xff]
        %v1401 = vld [vmem:[#allocation3 + $0x158] sm:$0xff]
        %v1402 = vld [vmem:[#allocation3 + $0x160] sm:$0xff]
        %v1403 = vld [vmem:[#allocation3 + $0x168] sm:$0xff]
        %v1404 = vld [vmem:[#allocation3 + $0x170] sm:$0xff]
        %v1405 = vld [vmem:[#allocation3 + $0x178] sm:$0xff]
        %v1406 = vld [vmem:[#allocation3 + $0x180] sm:$0xff]
        %v1407 = vld [vmem:[#allocation3 + $0x188] sm:$0xff]
        %v1408 = vld [vmem:[#allocation3 + $0x190] sm:$0xff]
        %v1409 = vld [vmem:[#allocation3 + $0x198] sm:$0xff]
        %v1410 = vld [vmem:[#allocation3 + $0x1a0] sm:$0xff]
        %v1411 = vld [vmem:[#allocation3 + $0x1a8] sm:$0xff]
        %v1412 = vld [vmem:[#allocation3 + $0x1b0] sm:$0xff]
        %v1413 = vadd.f32 %v1358, %v1194
        %v1414 = vadd.f32 %v1359, %v1197
        %v1415 = vadd.f32 %v1360, %v1200
        %v1416 = vadd.f32 %v1361, %v1203
        %v1417 = vadd.f32 %v1362, %v1206
        %v1418 = vadd.f32 %v1363, %v1209
        %v1419 = vadd.f32 %v1364, %v1212
        %v1420 = vadd.f32 %v1365, %v1215
        %v1421 = vadd.f32 %v1366, %v1218
        %v1422 = vadd.f32 %v1367, %v1221
        %v1423 = vadd.f32 %v1368, %v1224
        %v1424 = vadd.f32 %v1369, %v1227
        %v1425 = vadd.f32 %v1370, %v1230
        %v1426 = vadd.f32 %v1371, %v1233
        %v1427 = vadd.f32 %v1372, %v1236
        %v1428 = vadd.f32 %v1373, %v1239
        %v1429 = vadd.f32 %v1374, %v1242
        %v1430 = vadd.f32 %v1375, %v1245
        %v1431 = vadd.f32 %v1376, %v1248
        %v1432 = vadd.f32 %v1377, %v1251
        %v1433 = vadd.f32 %v1378, %v1254
        %v1434 = vadd.f32 %v1379, %v1257
        %v1435 = vadd.f32 %v1380, %v1260
        %v1436 = vadd.f32 %v1381, %v1263
        %v1437 = vadd.f32 %v1382, %v1266
        %v1438 = vadd.f32 %v1383, %v1269
        %v1439 = vadd.f32 %v1384, %v1272
        %v1440 = vadd.f32 %v1385, %v1275
        %v1441 = vadd.f32 %v1386, %v1278
        %v1442 = vadd.f32 %v1387, %v1281
        %v1443 = vadd.f32 %v1388, %v1284
        %v1444 = vadd.f32 %v1389, %v1287
        %v1445 = vadd.f32 %v1390, %v1290
        %v1446 = vadd.f32 %v1391, %v1293
        %v1447 = vadd.f32 %v1392, %v1296
        %v1448 = vadd.f32 %v1393, %v1299
        %v1449 = vadd.f32 %v1394, %v1302
        %v1450 = vadd.f32 %v1395, %v1305
        %v1451 = vadd.f32 %v1396, %v1308
        %v1452 = vadd.f32 %v1397, %v1311
        %v1453 = vadd.f32 %v1398, %v1314
        %v1454 = vadd.f32 %v1399, %v1317
        %v1455 = vadd.f32 %v1400, %v1320
        %v1456 = vadd.f32 %v1401, %v1323
        %v1457 = vadd.f32 %v1402, %v1326
        %v1458 = vadd.f32 %v1403, %v1329
        %v1459 = vadd.f32 %v1404, %v1332
        %v1460 = vadd.f32 %v1405, %v1335
        %v1461 = vadd.f32 %v1406, %v1338
        %v1462 = vadd.f32 %v1407, %v1341
        %v1463 = vadd.f32 %v1408, %v1344
        %v1464 = vadd.f32 %v1409, %v1347
        %v1465 = vadd.f32 %v1410, %v1350
        %v1466 = vadd.f32 %v1411, %v1353
        %v1467 = vadd.f32 %v1412, %v1356
        %1468 = vst.msk [vmem:[#allocation3] sm:$0xff] %vm276, %v1413
        %1469 = vst.msk [vmem:[#allocation3 + $0x8] sm:$0xff] %vm276, %v1414
        %1470 = vst.msk [vmem:[#allocation3 + $0x10] sm:$0xff] %vm276, %v1415
        %1471 = vst.msk [vmem:[#allocation3 + $0x18] sm:$0xff] %vm276, %v1416
        %1472 = vst.msk [vmem:[#allocation3 + $0x20] sm:$0xff] %vm276, %v1417
        %1473 = vst.msk [vmem:[#allocation3 + $0x28] sm:$0xff] %vm276, %v1418
        %1474 = vst.msk [vmem:[#allocation3 + $0x30] sm:$0xff] %vm276, %v1419
        %1475 = vst.msk [vmem:[#allocation3 + $0x38] sm:$0xff] %vm276, %v1420
        %1476 = vst.msk [vmem:[#allocation3 + $0x40] sm:$0xff] %vm276, %v1421
        %1477 = vst.msk [vmem:[#allocation3 + $0x48] sm:$0xff] %vm276, %v1422
        %1478 = vst.msk [vmem:[#allocation3 + $0x50] sm:$0xff] %vm276, %v1423
        %1479 = vst.msk [vmem:[#allocation3 + $0x58] sm:$0xff] %vm276, %v1424
        %1480 = vst.msk [vmem:[#allocation3 + $0x60] sm:$0xff] %vm276, %v1425
        %1481 = vst.msk [vmem:[#allocation3 + $0x68] sm:$0xff] %vm276, %v1426
        %1482 = vst.msk [vmem:[#allocation3 + $0x70] sm:$0xff] %vm276, %v1427
        %1483 = vst.msk [vmem:[#allocation3 + $0x78] sm:$0xff] %vm276, %v1428
        %1484 = vst.msk [vmem:[#allocation3 + $0x80] sm:$0xff] %vm276, %v1429
        %1485 = vst.msk [vmem:[#allocation3 + $0x88] sm:$0xff] %vm276, %v1430
        %1486 = vst.msk [vmem:[#allocation3 + $0x90] sm:$0xff] %vm276, %v1431
        %1487 = vst.msk [vmem:[#allocation3 + $0x98] sm:$0xff] %vm276, %v1432
        %1488 = vst.msk [vmem:[#allocation3 + $0xa0] sm:$0xff] %vm276, %v1433
        %1489 = vst.msk [vmem:[#allocation3 + $0xa8] sm:$0xff] %vm276, %v1434
        %1490 = vst.msk [vmem:[#allocation3 + $0xb0] sm:$0xff] %vm276, %v1435
        %1491 = vst.msk [vmem:[#allocation3 + $0xb8] sm:$0xff] %vm276, %v1436
        %1492 = vst.msk [vmem:[#allocation3 + $0xc0] sm:$0xff] %vm276, %v1437
        %1493 = vst.msk [vmem:[#allocation3 + $0xc8] sm:$0xff] %vm276, %v1438
        %1494 = vst.msk [vmem:[#allocation3 + $0xd0] sm:$0xff] %vm276, %v1439
        %1495 = vst.msk [vmem:[#allocation3 + $0xd8] sm:$0xff] %vm276, %v1440
        %1496 = vst.msk [vmem:[#allocation3 + $0xe0] sm:$0xff] %vm276, %v1441
        %1497 = vst.msk [vmem:[#allocation3 + $0xe8] sm:$0xff] %vm276, %v1442
        %1498 = vst.msk [vmem:[#allocation3 + $0xf0] sm:$0xff] %vm276, %v1443
        %1499 = vst.msk [vmem:[#allocation3 + $0xf8] sm:$0xff] %vm276, %v1444
        %1500 = vst.msk [vmem:[#allocation3 + $0x100] sm:$0xff] %vm276, %v1445
        %1501 = vst.msk [vmem:[#allocation3 + $0x108] sm:$0xff] %vm276, %v1446
        %1502 = vst.msk [vmem:[#allocation3 + $0x110] sm:$0xff] %vm276, %v1447
        %1503 = vst.msk [vmem:[#allocation3 + $0x118] sm:$0xff] %vm276, %v1448
        %1504 = vst.msk [vmem:[#allocation3 + $0x120] sm:$0xff] %vm276, %v1449
        %1505 = vst.msk [vmem:[#allocation3 + $0x128] sm:$0xff] %vm276, %v1450
        %1506 = vst.msk [vmem:[#allocation3 + $0x130] sm:$0xff] %vm276, %v1451
        %1507 = vst.msk [vmem:[#allocation3 + $0x138] sm:$0xff] %vm276, %v1452
        %1508 = vst.msk [vmem:[#allocation3 + $0x140] sm:$0xff] %vm276, %v1453
        %1509 = vst.msk [vmem:[#allocation3 + $0x148] sm:$0xff] %vm276, %v1454
        %1510 = vst.msk [vmem:[#allocation3 + $0x150] sm:$0xff] %vm276, %v1455
        %1511 = vst.msk [vmem:[#allocation3 + $0x158] sm:$0xff] %vm276, %v1456
        %1512 = vst.msk [vmem:[#allocation3 + $0x160] sm:$0xff] %vm276, %v1457
        %1513 = vst.msk [vmem:[#allocation3 + $0x168] sm:$0xff] %vm276, %v1458
        %1514 = vst.msk [vmem:[#allocation3 + $0x170] sm:$0xff] %vm276, %v1459
        %1515 = vst.msk [vmem:[#allocation3 + $0x178] sm:$0xff] %vm276, %v1460
        %1516 = vst.msk [vmem:[#allocation3 + $0x180] sm:$0xff] %vm276, %v1461
        %1517 = vst.msk [vmem:[#allocation3 + $0x188] sm:$0xff] %vm276, %v1462
        %1518 = vst.msk [vmem:[#allocation3 + $0x190] sm:$0xff] %vm276, %v1463
        %1519 = vst.msk [vmem:[#allocation3 + $0x198] sm:$0xff] %vm276, %v1464
        %1520 = vst.msk [vmem:[#allocation3 + $0x1a0] sm:$0xff] %vm276, %v1465
        %1521 = vst.msk [vmem:[#allocation3 + $0x1a8] sm:$0xff] %vm276, %v1466
        %1522 = vst.msk [vmem:[#allocation3 + $0x1b0] sm:$0xff] %vm276, %v1467
        %v1523 = vld [vmem:[#allocation2 + $0x2] sm:$0xff]
        %v1524 = vld [vmem:[#allocation2 + $0xa] sm:$0xff]
        %v1525 = vld [vmem:[#allocation2 + $0x12] sm:$0xff]
        %v1526 = vld [vmem:[#allocation2 + $0x1a] sm:$0xff]
        %v1527 = vld [vmem:[#allocation2 + $0x22] sm:$0xff]
        %v1528 = vld [vmem:[#allocation2 + $0x2a] sm:$0xff]
        %v1529 = vld [vmem:[#allocation2 + $0x32] sm:$0xff]
        %v1530 = vld [vmem:[#allocation2 + $0x3a] sm:$0xff]
        %v1531 = vld [vmem:[#allocation2 + $0x42] sm:$0xff]
        %v1532 = vld [vmem:[#allocation2 + $0x4a] sm:$0xff]
        %v1533 = vld [vmem:[#allocation2 + $0x52] sm:$0xff]
        %v1534 = vld [vmem:[#allocation2 + $0x5a] sm:$0xff]
        %v1535 = vld [vmem:[#allocation2 + $0x62] sm:$0xff]
        %v1536 = vld [vmem:[#allocation2 + $0x6a] sm:$0xff]
        %v1537 = vld [vmem:[#allocation2 + $0x72] sm:$0xff]
        %v1538 = vld [vmem:[#allocation2 + $0x7a] sm:$0xff]
        %v1539 = vld [vmem:[#allocation2 + $0x82] sm:$0xff]
        %v1540 = vld [vmem:[#allocation2 + $0x8a] sm:$0xff]
        %v1541 = vld [vmem:[#allocation2 + $0x92] sm:$0xff]
        %v1542 = vld [vmem:[#allocation2 + $0x9a] sm:$0xff]
        %v1543 = vld [vmem:[#allocation2 + $0xa2] sm:$0xff]
        %v1544 = vld [vmem:[#allocation2 + $0xaa] sm:$0xff]
        %v1545 = vld [vmem:[#allocation2 + $0xb2] sm:$0xff]
        %v1546 = vld [vmem:[#allocation2 + $0xba] sm:$0xff]
        %v1547 = vld [vmem:[#allocation2 + $0xc2] sm:$0xff]
        %v1548 = vld [vmem:[#allocation2 + $0xca] sm:$0xff]
        %v1549 = vld [vmem:[#allocation2 + $0xd2] sm:$0xff]
        %v1550 = vld [vmem:[#allocation2 + $0xda] sm:$0xff]
        %v1551 = vld [vmem:[#allocation2 + $0xe2] sm:$0xff]
        %v1552 = vld [vmem:[#allocation2 + $0xea] sm:$0xff]
        %v1553 = vld [vmem:[#allocation2 + $0xf2] sm:$0xff]
        %v1554 = vld [vmem:[#allocation2 + $0xfa] sm:$0xff]
        %v1555 = vld [vmem:[#allocation2 + $0x102] sm:$0xff]
        %v1556 = vld [vmem:[#allocation2 + $0x10a] sm:$0xff]
        %v1557 = vld [vmem:[#allocation2 + $0x112] sm:$0xff]
        %v1558 = vld [vmem:[#allocation2 + $0x11a] sm:$0xff]
        %v1559 = vld [vmem:[#allocation2 + $0x122] sm:$0xff]
        %v1560 = vld [vmem:[#allocation2 + $0x12a] sm:$0xff]
        %v1561 = vld [vmem:[#allocation2 + $0x132] sm:$0xff]
        %v1562 = vld [vmem:[#allocation2 + $0x13a] sm:$0xff]
        %v1563 = vld [vmem:[#allocation2 + $0x142] sm:$0xff]
        %v1564 = vld [vmem:[#allocation2 + $0x14a] sm:$0xff]
        %v1565 = vld [vmem:[#allocation2 + $0x152] sm:$0xff]
        %v1566 = vld [vmem:[#allocation2 + $0x15a] sm:$0xff]
        %v1567 = vld [vmem:[#allocation2 + $0x162] sm:$0xff]
        %v1568 = vld [vmem:[#allocation2 + $0x16a] sm:$0xff]
        %v1569 = vld [vmem:[#allocation2 + $0x172] sm:$0xff]
        %v1570 = vld [vmem:[#allocation2 + $0x17a] sm:$0xff]
        %v1571 = vld [vmem:[#allocation2 + $0x182] sm:$0xff]
        %v1572 = vld [vmem:[#allocation2 + $0x18a] sm:$0xff]
        %v1573 = vld [vmem:[#allocation2 + $0x192] sm:$0xff]
        %v1574 = vld [vmem:[#allocation2 + $0x19a] sm:$0xff]
        %v1575 = vld [vmem:[#allocation2 + $0x1a2] sm:$0xff]
        %v1576 = vld [vmem:[#allocation2 + $0x1aa] sm:$0xff]
        %v1577 = vld [vmem:[#allocation2 + $0x1b2] sm:$0xff]
        %s1578 = scalar_lea.vmem %s1, 128
        %v1579 = vld [vmem:[%s1578] sm:$0xff]
        %v1580 = vld [vmem:[%s1578 + $0x8] sm:$0xff]
        %v1581 = vld [vmem:[%s1578 + $0x10] sm:$0xff]
        %v1582 = vld [vmem:[%s1578 + $0x18] sm:$0xff]
        %v1583 = vld [vmem:[%s1578 + $0x20] sm:$0xff]
        %v1584 = vld [vmem:[%s1578 + $0x28] sm:$0xff]
        %v1585 = vld [vmem:[%s1578 + $0x30] sm:$0xff]
        %v1586 = vld [vmem:[%s1578 + $0x38] sm:$0xff]
        %v1588 = vsel %vm276, %v1523, 0
        %v1591 = vsel %vm276, %v1524, 0
        %v1594 = vsel %vm276, %v1525, 0
        %v1597 = vsel %vm276, %v1526, 0
        %v1600 = vsel %vm276, %v1527, 0
        %v1603 = vsel %vm276, %v1528, 0
        %v1606 = vsel %vm276, %v1529, 0
        %v1609 = vsel %vm276, %v1530, 0
        %v1612 = vsel %vm276, %v1531, 0
        %v1615 = vsel %vm276, %v1532, 0
        %v1618 = vsel %vm276, %v1533, 0
        %v1621 = vsel %vm276, %v1534, 0
        %v1624 = vsel %vm276, %v1535, 0
        %v1627 = vsel %vm276, %v1536, 0
        %v1630 = vsel %vm276, %v1537, 0
        %v1633 = vsel %vm276, %v1538, 0
        %v1636 = vsel %vm276, %v1539, 0
        %v1639 = vsel %vm276, %v1540, 0
        %v1642 = vsel %vm276, %v1541, 0
        %v1645 = vsel %vm276, %v1542, 0
        %v1648 = vsel %vm276, %v1543, 0
        %v1651 = vsel %vm276, %v1544, 0
        %v1654 = vsel %vm276, %v1545, 0
        %v1657 = vsel %vm276, %v1546, 0
        %v1660 = vsel %vm276, %v1547, 0
        %v1663 = vsel %vm276, %v1548, 0
        %v1666 = vsel %vm276, %v1549, 0
        %v1669 = vsel %vm276, %v1550, 0
        %v1672 = vsel %vm276, %v1551, 0
        %v1675 = vsel %vm276, %v1552, 0
        %v1678 = vsel %vm276, %v1553, 0
        %v1681 = vsel %vm276, %v1554, 0
        %v1684 = vsel %vm276, %v1555, 0
        %v1687 = vsel %vm276, %v1556, 0
        %v1690 = vsel %vm276, %v1557, 0
        %v1693 = vsel %vm276, %v1558, 0
        %v1696 = vsel %vm276, %v1559, 0
        %v1699 = vsel %vm276, %v1560, 0
        %v1702 = vsel %vm276, %v1561, 0
        %v1705 = vsel %vm276, %v1562, 0
        %v1708 = vsel %vm276, %v1563, 0
        %v1711 = vsel %vm276, %v1564, 0
        %v1714 = vsel %vm276, %v1565, 0
        %v1717 = vsel %vm276, %v1566, 0
        %v1720 = vsel %vm276, %v1567, 0
        %v1723 = vsel %vm276, %v1568, 0
        %v1726 = vsel %vm276, %v1569, 0
        %v1729 = vsel %vm276, %v1570, 0
        %v1732 = vsel %vm276, %v1571, 0
        %v1735 = vsel %vm276, %v1572, 0
        %v1738 = vsel %vm276, %v1573, 0
        %v1741 = vsel %vm276, %v1574, 0
        %v1744 = vsel %vm276, %v1575, 0
        %v1747 = vsel %vm276, %v1576, 0
        %v1750 = vsel %vm276, %v1577, 0
        %1752 = vmatpush.msra.mxu0 0.0
        %1753 = vmatpush.msra.mxu0 0.0
        %1754 = vmatpush.msra.mxu0 0.0
        %1755 = vmatpush.msra.mxu0 0.0
        %1756 = vmatpush.msra.mxu0 0.0
        %1757 = vmatpush.msra.mxu0 0.0
        %1758 = vmatpush.msra.mxu0 0.0
        %1759 = vmatpush.msra.mxu0 0.0
        %1760 = vmatpush.msra.mxu0 %v1586
        %1761 = vmatpush.msra.mxu0 %v1585
        %1762 = vmatpush.msra.mxu0 %v1584
        %1763 = vmatpush.msra.mxu0 %v1583
        %1764 = vmatpush.msra.mxu0 %v1582
        %1765 = vmatpush.msra.mxu0 %v1581
        %1766 = vmatpush.msra.mxu0 %v1580
        %1767 = vmatpush.msra.mxu0 %v1579
        %1768 = vmatmul.f32.gmra.mxu0 %v1588
        %v1769 = vpop.f32.mrf.mxu0
        %v1770 = vadd.f32 0.0, %v1769
        %1771 = vmatmul.f32.gmra.mxu0 %v1591
        %v1772 = vpop.f32.mrf.mxu0
        %v1773 = vadd.f32 0.0, %v1772
        %1774 = vmatmul.f32.gmra.mxu0 %v1594
        %v1775 = vpop.f32.mrf.mxu0
        %v1776 = vadd.f32 0.0, %v1775
        %1777 = vmatmul.f32.gmra.mxu0 %v1597
        %v1778 = vpop.f32.mrf.mxu0
        %v1779 = vadd.f32 0.0, %v1778
        %1780 = vmatmul.f32.gmra.mxu0 %v1600
        %v1781 = vpop.f32.mrf.mxu0
        %v1782 = vadd.f32 0.0, %v1781
        %1783 = vmatmul.f32.gmra.mxu0 %v1603
        %v1784 = vpop.f32.mrf.mxu0
        %v1785 = vadd.f32 0.0, %v1784
        %1786 = vmatmul.f32.gmra.mxu0 %v1606
        %v1787 = vpop.f32.mrf.mxu0
        %v1788 = vadd.f32 0.0, %v1787
        %1789 = vmatmul.f32.gmra.mxu0 %v1609
        %v1790 = vpop.f32.mrf.mxu0
        %v1791 = vadd.f32 0.0, %v1790
        %1792 = vmatmul.f32.gmra.mxu0 %v1612
        %v1793 = vpop.f32.mrf.mxu0
        %v1794 = vadd.f32 0.0, %v1793
        %1795 = vmatmul.f32.gmra.mxu0 %v1615
        %v1796 = vpop.f32.mrf.mxu0
        %v1797 = vadd.f32 0.0, %v1796
        %1798 = vmatmul.f32.gmra.mxu0 %v1618
        %v1799 = vpop.f32.mrf.mxu0
        %v1800 = vadd.f32 0.0, %v1799
        %1801 = vmatmul.f32.gmra.mxu0 %v1621
        %v1802 = vpop.f32.mrf.mxu0
        %v1803 = vadd.f32 0.0, %v1802
        %1804 = vmatmul.f32.gmra.mxu0 %v1624
        %v1805 = vpop.f32.mrf.mxu0
        %v1806 = vadd.f32 0.0, %v1805
        %1807 = vmatmul.f32.gmra.mxu0 %v1627
        %v1808 = vpop.f32.mrf.mxu0
        %v1809 = vadd.f32 0.0, %v1808
        %1810 = vmatmul.f32.gmra.mxu0 %v1630
        %v1811 = vpop.f32.mrf.mxu0
        %v1812 = vadd.f32 0.0, %v1811
        %1813 = vmatmul.f32.gmra.mxu0 %v1633
        %v1814 = vpop.f32.mrf.mxu0
        %v1815 = vadd.f32 0.0, %v1814
        %1816 = vmatmul.f32.gmra.mxu0 %v1636
        %v1817 = vpop.f32.mrf.mxu0
        %v1818 = vadd.f32 0.0, %v1817
        %1819 = vmatmul.f32.gmra.mxu0 %v1639
        %v1820 = vpop.f32.mrf.mxu0
        %v1821 = vadd.f32 0.0, %v1820
        %1822 = vmatmul.f32.gmra.mxu0 %v1642
        %v1823 = vpop.f32.mrf.mxu0
        %v1824 = vadd.f32 0.0, %v1823
        %1825 = vmatmul.f32.gmra.mxu0 %v1645
        %v1826 = vpop.f32.mrf.mxu0
        %v1827 = vadd.f32 0.0, %v1826
        %1828 = vmatmul.f32.gmra.mxu0 %v1648
        %v1829 = vpop.f32.mrf.mxu0
        %v1830 = vadd.f32 0.0, %v1829
        %1831 = vmatmul.f32.gmra.mxu0 %v1651
        %v1832 = vpop.f32.mrf.mxu0
        %v1833 = vadd.f32 0.0, %v1832
        %1834 = vmatmul.f32.gmra.mxu0 %v1654
        %v1835 = vpop.f32.mrf.mxu0
        %v1836 = vadd.f32 0.0, %v1835
        %1837 = vmatmul.f32.gmra.mxu0 %v1657
        %v1838 = vpop.f32.mrf.mxu0
        %v1839 = vadd.f32 0.0, %v1838
        %1840 = vmatmul.f32.gmra.mxu0 %v1660
        %v1841 = vpop.f32.mrf.mxu0
        %v1842 = vadd.f32 0.0, %v1841
        %1843 = vmatmul.f32.gmra.mxu0 %v1663
        %v1844 = vpop.f32.mrf.mxu0
        %v1845 = vadd.f32 0.0, %v1844
        %1846 = vmatmul.f32.gmra.mxu0 %v1666
        %v1847 = vpop.f32.mrf.mxu0
        %v1848 = vadd.f32 0.0, %v1847
        %1849 = vmatmul.f32.gmra.mxu0 %v1669
        %v1850 = vpop.f32.mrf.mxu0
        %v1851 = vadd.f32 0.0, %v1850
        %1852 = vmatmul.f32.gmra.mxu0 %v1672
        %v1853 = vpop.f32.mrf.mxu0
        %v1854 = vadd.f32 0.0, %v1853
        %1855 = vmatmul.f32.gmra.mxu0 %v1675
        %v1856 = vpop.f32.mrf.mxu0
        %v1857 = vadd.f32 0.0, %v1856
        %1858 = vmatmul.f32.gmra.mxu0 %v1678
        %v1859 = vpop.f32.mrf.mxu0
        %v1860 = vadd.f32 0.0, %v1859
        %1861 = vmatmul.f32.gmra.mxu0 %v1681
        %v1862 = vpop.f32.mrf.mxu0
        %v1863 = vadd.f32 0.0, %v1862
        %1864 = vmatmul.f32.gmra.mxu0 %v1684
        %v1865 = vpop.f32.mrf.mxu0
        %v1866 = vadd.f32 0.0, %v1865
        %1867 = vmatmul.f32.gmra.mxu0 %v1687
        %v1868 = vpop.f32.mrf.mxu0
        %v1869 = vadd.f32 0.0, %v1868
        %1870 = vmatmul.f32.gmra.mxu0 %v1690
        %v1871 = vpop.f32.mrf.mxu0
        %v1872 = vadd.f32 0.0, %v1871
        %1873 = vmatmul.f32.gmra.mxu0 %v1693
        %v1874 = vpop.f32.mrf.mxu0
        %v1875 = vadd.f32 0.0, %v1874
        %1876 = vmatmul.f32.gmra.mxu0 %v1696
        %v1877 = vpop.f32.mrf.mxu0
        %v1878 = vadd.f32 0.0, %v1877
        %1879 = vmatmul.f32.gmra.mxu0 %v1699
        %v1880 = vpop.f32.mrf.mxu0
        %v1881 = vadd.f32 0.0, %v1880
        %1882 = vmatmul.f32.gmra.mxu0 %v1702
        %v1883 = vpop.f32.mrf.mxu0
        %v1884 = vadd.f32 0.0, %v1883
        %1885 = vmatmul.f32.gmra.mxu0 %v1705
        %v1886 = vpop.f32.mrf.mxu0
        %v1887 = vadd.f32 0.0, %v1886
        %1888 = vmatmul.f32.gmra.mxu0 %v1708
        %v1889 = vpop.f32.mrf.mxu0
        %v1890 = vadd.f32 0.0, %v1889
        %1891 = vmatmul.f32.gmra.mxu0 %v1711
        %v1892 = vpop.f32.mrf.mxu0
        %v1893 = vadd.f32 0.0, %v1892
        %1894 = vmatmul.f32.gmra.mxu0 %v1714
        %v1895 = vpop.f32.mrf.mxu0
        %v1896 = vadd.f32 0.0, %v1895
        %1897 = vmatmul.f32.gmra.mxu0 %v1717
        %v1898 = vpop.f32.mrf.mxu0
        %v1899 = vadd.f32 0.0, %v1898
        %1900 = vmatmul.f32.gmra.mxu0 %v1720
        %v1901 = vpop.f32.mrf.mxu0
        %v1902 = vadd.f32 0.0, %v1901
        %1903 = vmatmul.f32.gmra.mxu0 %v1723
        %v1904 = vpop.f32.mrf.mxu0
        %v1905 = vadd.f32 0.0, %v1904
        %1906 = vmatmul.f32.gmra.mxu0 %v1726
        %v1907 = vpop.f32.mrf.mxu0
        %v1908 = vadd.f32 0.0, %v1907
        %1909 = vmatmul.f32.gmra.mxu0 %v1729
        %v1910 = vpop.f32.mrf.mxu0
        %v1911 = vadd.f32 0.0, %v1910
        %1912 = vmatmul.f32.gmra.mxu0 %v1732
        %v1913 = vpop.f32.mrf.mxu0
        %v1914 = vadd.f32 0.0, %v1913
        %1915 = vmatmul.f32.gmra.mxu0 %v1735
        %v1916 = vpop.f32.mrf.mxu0
        %v1917 = vadd.f32 0.0, %v1916
        %1918 = vmatmul.f32.gmra.mxu0 %v1738
        %v1919 = vpop.f32.mrf.mxu0
        %v1920 = vadd.f32 0.0, %v1919
        %1921 = vmatmul.f32.gmra.mxu0 %v1741
        %v1922 = vpop.f32.mrf.mxu0
        %v1923 = vadd.f32 0.0, %v1922
        %1924 = vmatmul.f32.gmra.mxu0 %v1744
        %v1925 = vpop.f32.mrf.mxu0
        %v1926 = vadd.f32 0.0, %v1925
        %1927 = vmatmul.f32.gmra.mxu0 %v1747
        %v1928 = vpop.f32.mrf.mxu0
        %v1929 = vadd.f32 0.0, %v1928
        %1930 = vmatmul.f32.gmra.mxu0 %v1750
        %v1931 = vpop.f32.mrf.mxu0
        %v1932 = vadd.f32 0.0, %v1931
        %1933 = vdwg.mxu0
        %v1934 = vld [vmem:[#allocation3] sm:$0xff]
        %v1935 = vld [vmem:[#allocation3 + $0x8] sm:$0xff]
        %v1936 = vld [vmem:[#allocation3 + $0x10] sm:$0xff]
        %v1937 = vld [vmem:[#allocation3 + $0x18] sm:$0xff]
        %v1938 = vld [vmem:[#allocation3 + $0x20] sm:$0xff]
        %v1939 = vld [vmem:[#allocation3 + $0x28] sm:$0xff]
        %v1940 = vld [vmem:[#allocation3 + $0x30] sm:$0xff]
        %v1941 = vld [vmem:[#allocation3 + $0x38] sm:$0xff]
        %v1942 = vld [vmem:[#allocation3 + $0x40] sm:$0xff]
        %v1943 = vld [vmem:[#allocation3 + $0x48] sm:$0xff]
        %v1944 = vld [vmem:[#allocation3 + $0x50] sm:$0xff]
        %v1945 = vld [vmem:[#allocation3 + $0x58] sm:$0xff]
        %v1946 = vld [vmem:[#allocation3 + $0x60] sm:$0xff]
        %v1947 = vld [vmem:[#allocation3 + $0x68] sm:$0xff]
        %v1948 = vld [vmem:[#allocation3 + $0x70] sm:$0xff]
        %v1949 = vld [vmem:[#allocation3 + $0x78] sm:$0xff]
        %v1950 = vld [vmem:[#allocation3 + $0x80] sm:$0xff]
        %v1951 = vld [vmem:[#allocation3 + $0x88] sm:$0xff]
        %v1952 = vld [vmem:[#allocation3 + $0x90] sm:$0xff]
        %v1953 = vld [vmem:[#allocation3 + $0x98] sm:$0xff]
        %v1954 = vld [vmem:[#allocation3 + $0xa0] sm:$0xff]
        %v1955 = vld [vmem:[#allocation3 + $0xa8] sm:$0xff]
        %v1956 = vld [vmem:[#allocation3 + $0xb0] sm:$0xff]
        %v1957 = vld [vmem:[#allocation3 + $0xb8] sm:$0xff]
        %v1958 = vld [vmem:[#allocation3 + $0xc0] sm:$0xff]
        %v1959 = vld [vmem:[#allocation3 + $0xc8] sm:$0xff]
        %v1960 = vld [vmem:[#allocation3 + $0xd0] sm:$0xff]
        %v1961 = vld [vmem:[#allocation3 + $0xd8] sm:$0xff]
        %v1962 = vld [vmem:[#allocation3 + $0xe0] sm:$0xff]
        %v1963 = vld [vmem:[#allocation3 + $0xe8] sm:$0xff]
        %v1964 = vld [vmem:[#allocation3 + $0xf0] sm:$0xff]
        %v1965 = vld [vmem:[#allocation3 + $0xf8] sm:$0xff]
        %v1966 = vld [vmem:[#allocation3 + $0x100] sm:$0xff]
        %v1967 = vld [vmem:[#allocation3 + $0x108] sm:$0xff]
        %v1968 = vld [vmem:[#allocation3 + $0x110] sm:$0xff]
        %v1969 = vld [vmem:[#allocation3 + $0x118] sm:$0xff]
        %v1970 = vld [vmem:[#allocation3 + $0x120] sm:$0xff]
        %v1971 = vld [vmem:[#allocation3 + $0x128] sm:$0xff]
        %v1972 = vld [vmem:[#allocation3 + $0x130] sm:$0xff]
        %v1973 = vld [vmem:[#allocation3 + $0x138] sm:$0xff]
        %v1974 = vld [vmem:[#allocation3 + $0x140] sm:$0xff]
        %v1975 = vld [vmem:[#allocation3 + $0x148] sm:$0xff]
        %v1976 = vld [vmem:[#allocation3 + $0x150] sm:$0xff]
        %v1977 = vld [vmem:[#allocation3 + $0x158] sm:$0xff]
        %v1978 = vld [vmem:[#allocation3 + $0x160] sm:$0xff]
        %v1979 = vld [vmem:[#allocation3 + $0x168] sm:$0xff]
        %v1980 = vld [vmem:[#allocation3 + $0x170] sm:$0xff]
        %v1981 = vld [vmem:[#allocation3 + $0x178] sm:$0xff]
        %v1982 = vld [vmem:[#allocation3 + $0x180] sm:$0xff]
        %v1983 = vld [vmem:[#allocation3 + $0x188] sm:$0xff]
        %v1984 = vld [vmem:[#allocation3 + $0x190] sm:$0xff]
        %v1985 = vld [vmem:[#allocation3 + $0x198] sm:$0xff]
        %v1986 = vld [vmem:[#allocation3 + $0x1a0] sm:$0xff]
        %v1987 = vld [vmem:[#allocation3 + $0x1a8] sm:$0xff]
        %v1988 = vld [vmem:[#allocation3 + $0x1b0] sm:$0xff]
        %v1989 = vadd.f32 %v1934, %v1770
        %v1990 = vadd.f32 %v1935, %v1773
        %v1991 = vadd.f32 %v1936, %v1776
        %v1992 = vadd.f32 %v1937, %v1779
        %v1993 = vadd.f32 %v1938, %v1782
        %v1994 = vadd.f32 %v1939, %v1785
        %v1995 = vadd.f32 %v1940, %v1788
        %v1996 = vadd.f32 %v1941, %v1791
        %v1997 = vadd.f32 %v1942, %v1794
        %v1998 = vadd.f32 %v1943, %v1797
        %v1999 = vadd.f32 %v1944, %v1800
        %v2000 = vadd.f32 %v1945, %v1803
        %v2001 = vadd.f32 %v1946, %v1806
        %v2002 = vadd.f32 %v1947, %v1809
        %v2003 = vadd.f32 %v1948, %v1812
        %v2004 = vadd.f32 %v1949, %v1815
        %v2005 = vadd.f32 %v1950, %v1818
        %v2006 = vadd.f32 %v1951, %v1821
        %v2007 = vadd.f32 %v1952, %v1824
        %v2008 = vadd.f32 %v1953, %v1827
        %v2009 = vadd.f32 %v1954, %v1830
        %v2010 = vadd.f32 %v1955, %v1833
        %v2011 = vadd.f32 %v1956, %v1836
        %v2012 = vadd.f32 %v1957, %v1839
        %v2013 = vadd.f32 %v1958, %v1842
        %v2014 = vadd.f32 %v1959, %v1845
        %v2015 = vadd.f32 %v1960, %v1848
        %v2016 = vadd.f32 %v1961, %v1851
        %v2017 = vadd.f32 %v1962, %v1854
        %v2018 = vadd.f32 %v1963, %v1857
        %v2019 = vadd.f32 %v1964, %v1860
        %v2020 = vadd.f32 %v1965, %v1863
        %v2021 = vadd.f32 %v1966, %v1866
        %v2022 = vadd.f32 %v1967, %v1869
        %v2023 = vadd.f32 %v1968, %v1872
        %v2024 = vadd.f32 %v1969, %v1875
        %v2025 = vadd.f32 %v1970, %v1878
        %v2026 = vadd.f32 %v1971, %v1881
        %v2027 = vadd.f32 %v1972, %v1884
        %v2028 = vadd.f32 %v1973, %v1887
        %v2029 = vadd.f32 %v1974, %v1890
        %v2030 = vadd.f32 %v1975, %v1893
        %v2031 = vadd.f32 %v1976, %v1896
        %v2032 = vadd.f32 %v1977, %v1899
        %v2033 = vadd.f32 %v1978, %v1902
        %v2034 = vadd.f32 %v1979, %v1905
        %v2035 = vadd.f32 %v1980, %v1908
        %v2036 = vadd.f32 %v1981, %v1911
        %v2037 = vadd.f32 %v1982, %v1914
        %v2038 = vadd.f32 %v1983, %v1917
        %v2039 = vadd.f32 %v1984, %v1920
        %v2040 = vadd.f32 %v1985, %v1923
        %v2041 = vadd.f32 %v1986, %v1926
        %v2042 = vadd.f32 %v1987, %v1929
        %v2043 = vadd.f32 %v1988, %v1932
        %2044 = vst.msk [vmem:[#allocation3] sm:$0xff] %vm276, %v1989
        %2045 = vst.msk [vmem:[#allocation3 + $0x8] sm:$0xff] %vm276, %v1990
        %2046 = vst.msk [vmem:[#allocation3 + $0x10] sm:$0xff] %vm276, %v1991
        %2047 = vst.msk [vmem:[#allocation3 + $0x18] sm:$0xff] %vm276, %v1992
        %2048 = vst.msk [vmem:[#allocation3 + $0x20] sm:$0xff] %vm276, %v1993
        %2049 = vst.msk [vmem:[#allocation3 + $0x28] sm:$0xff] %vm276, %v1994
        %2050 = vst.msk [vmem:[#allocation3 + $0x30] sm:$0xff] %vm276, %v1995
        %2051 = vst.msk [vmem:[#allocation3 + $0x38] sm:$0xff] %vm276, %v1996
        %2052 = vst.msk [vmem:[#allocation3 + $0x40] sm:$0xff] %vm276, %v1997
        %2053 = vst.msk [vmem:[#allocation3 + $0x48] sm:$0xff] %vm276, %v1998
        %2054 = vst.msk [vmem:[#allocation3 + $0x50] sm:$0xff] %vm276, %v1999
        %2055 = vst.msk [vmem:[#allocation3 + $0x58] sm:$0xff] %vm276, %v2000
        %2056 = vst.msk [vmem:[#allocation3 + $0x60] sm:$0xff] %vm276, %v2001
        %2057 = vst.msk [vmem:[#allocation3 + $0x68] sm:$0xff] %vm276, %v2002
        %2058 = vst.msk [vmem:[#allocation3 + $0x70] sm:$0xff] %vm276, %v2003
        %2059 = vst.msk [vmem:[#allocation3 + $0x78] sm:$0xff] %vm276, %v2004
        %2060 = vst.msk [vmem:[#allocation3 + $0x80] sm:$0xff] %vm276, %v2005
        %2061 = vst.msk [vmem:[#allocation3 + $0x88] sm:$0xff] %vm276, %v2006
        %2062 = vst.msk [vmem:[#allocation3 + $0x90] sm:$0xff] %vm276, %v2007
        %2063 = vst.msk [vmem:[#allocation3 + $0x98] sm:$0xff] %vm276, %v2008
        %2064 = vst.msk [vmem:[#allocation3 + $0xa0] sm:$0xff] %vm276, %v2009
        %2065 = vst.msk [vmem:[#allocation3 + $0xa8] sm:$0xff] %vm276, %v2010
        %2066 = vst.msk [vmem:[#allocation3 + $0xb0] sm:$0xff] %vm276, %v2011
        %2067 = vst.msk [vmem:[#allocation3 + $0xb8] sm:$0xff] %vm276, %v2012
        %2068 = vst.msk [vmem:[#allocation3 + $0xc0] sm:$0xff] %vm276, %v2013
        %2069 = vst.msk [vmem:[#allocation3 + $0xc8] sm:$0xff] %vm276, %v2014
        %2070 = vst.msk [vmem:[#allocation3 + $0xd0] sm:$0xff] %vm276, %v2015
        %2071 = vst.msk [vmem:[#allocation3 + $0xd8] sm:$0xff] %vm276, %v2016
        %2072 = vst.msk [vmem:[#allocation3 + $0xe0] sm:$0xff] %vm276, %v2017
        %2073 = vst.msk [vmem:[#allocation3 + $0xe8] sm:$0xff] %vm276, %v2018
        %2074 = vst.msk [vmem:[#allocation3 + $0xf0] sm:$0xff] %vm276, %v2019
        %2075 = vst.msk [vmem:[#allocation3 + $0xf8] sm:$0xff] %vm276, %v2020
        %2076 = vst.msk [vmem:[#allocation3 + $0x100] sm:$0xff] %vm276, %v2021
        %2077 = vst.msk [vmem:[#allocation3 + $0x108] sm:$0xff] %vm276, %v2022
        %2078 = vst.msk [vmem:[#allocation3 + $0x110] sm:$0xff] %vm276, %v2023
        %2079 = vst.msk [vmem:[#allocation3 + $0x118] sm:$0xff] %vm276, %v2024
        %2080 = vst.msk [vmem:[#allocation3 + $0x120] sm:$0xff] %vm276, %v2025
        %2081 = vst.msk [vmem:[#allocation3 + $0x128] sm:$0xff] %vm276, %v2026
        %2082 = vst.msk [vmem:[#allocation3 + $0x130] sm:$0xff] %vm276, %v2027
        %2083 = vst.msk [vmem:[#allocation3 + $0x138] sm:$0xff] %vm276, %v2028
        %2084 = vst.msk [vmem:[#allocation3 + $0x140] sm:$0xff] %vm276, %v2029
        %2085 = vst.msk [vmem:[#allocation3 + $0x148] sm:$0xff] %vm276, %v2030
        %2086 = vst.msk [vmem:[#allocation3 + $0x150] sm:$0xff] %vm276, %v2031
        %2087 = vst.msk [vmem:[#allocation3 + $0x158] sm:$0xff] %vm276, %v2032
        %2088 = vst.msk [vmem:[#allocation3 + $0x160] sm:$0xff] %vm276, %v2033
        %2089 = vst.msk [vmem:[#allocation3 + $0x168] sm:$0xff] %vm276, %v2034
        %2090 = vst.msk [vmem:[#allocation3 + $0x170] sm:$0xff] %vm276, %v2035
        %2091 = vst.msk [vmem:[#allocation3 + $0x178] sm:$0xff] %vm276, %v2036
        %2092 = vst.msk [vmem:[#allocation3 + $0x180] sm:$0xff] %vm276, %v2037
        %2093 = vst.msk [vmem:[#allocation3 + $0x188] sm:$0xff] %vm276, %v2038
        %2094 = vst.msk [vmem:[#allocation3 + $0x190] sm:$0xff] %vm276, %v2039
        %2095 = vst.msk [vmem:[#allocation3 + $0x198] sm:$0xff] %vm276, %v2040
        %2096 = vst.msk [vmem:[#allocation3 + $0x1a0] sm:$0xff] %vm276, %v2041
        %2097 = vst.msk [vmem:[#allocation3 + $0x1a8] sm:$0xff] %vm276, %v2042
        %2098 = vst.msk [vmem:[#allocation3 + $0x1b0] sm:$0xff] %vm276, %v2043
        %v2099 = vld [vmem:[#allocation2 + $0x16] sm:$0xff]
        %v2100 = vld [vmem:[#allocation2 + $0x1e] sm:$0xff]
        %v2101 = vld [vmem:[#allocation2 + $0x26] sm:$0xff]
        %v2102 = vld [vmem:[#allocation2 + $0x2e] sm:$0xff]
        %v2103 = vld [vmem:[#allocation2 + $0x36] sm:$0xff]
        %v2104 = vld [vmem:[#allocation2 + $0x3e] sm:$0xff]
        %v2105 = vld [vmem:[#allocation2 + $0x46] sm:$0xff]
        %v2106 = vld [vmem:[#allocation2 + $0x4e] sm:$0xff]
        %v2107 = vld [vmem:[#allocation2 + $0x56] sm:$0xff]
        %v2108 = vld [vmem:[#allocation2 + $0x5e] sm:$0xff]
        %v2109 = vld [vmem:[#allocation2 + $0x66] sm:$0xff]
        %v2110 = vld [vmem:[#allocation2 + $0x6e] sm:$0xff]
        %v2111 = vld [vmem:[#allocation2 + $0x76] sm:$0xff]
        %v2112 = vld [vmem:[#allocation2 + $0x7e] sm:$0xff]
        %v2113 = vld [vmem:[#allocation2 + $0x86] sm:$0xff]
        %v2114 = vld [vmem:[#allocation2 + $0x8e] sm:$0xff]
        %v2115 = vld [vmem:[#allocation2 + $0x96] sm:$0xff]
        %v2116 = vld [vmem:[#allocation2 + $0x9e] sm:$0xff]
        %v2117 = vld [vmem:[#allocation2 + $0xa6] sm:$0xff]
        %v2118 = vld [vmem:[#allocation2 + $0xae] sm:$0xff]
        %v2119 = vld [vmem:[#allocation2 + $0xb6] sm:$0xff]
        %v2120 = vld [vmem:[#allocation2 + $0xbe] sm:$0xff]
        %v2121 = vld [vmem:[#allocation2 + $0xc6] sm:$0xff]
        %v2122 = vld [vmem:[#allocation2 + $0xce] sm:$0xff]
        %v2123 = vld [vmem:[#allocation2 + $0xd6] sm:$0xff]
        %v2124 = vld [vmem:[#allocation2 + $0xde] sm:$0xff]
        %v2125 = vld [vmem:[#allocation2 + $0xe6] sm:$0xff]
        %v2126 = vld [vmem:[#allocation2 + $0xee] sm:$0xff]
        %v2127 = vld [vmem:[#allocation2 + $0xf6] sm:$0xff]
        %v2128 = vld [vmem:[#allocation2 + $0xfe] sm:$0xff]
        %v2129 = vld [vmem:[#allocation2 + $0x106] sm:$0xff]
        %v2130 = vld [vmem:[#allocation2 + $0x10e] sm:$0xff]
        %v2131 = vld [vmem:[#allocation2 + $0x116] sm:$0xff]
        %v2132 = vld [vmem:[#allocation2 + $0x11e] sm:$0xff]
        %v2133 = vld [vmem:[#allocation2 + $0x126] sm:$0xff]
        %v2134 = vld [vmem:[#allocation2 + $0x12e] sm:$0xff]
        %v2135 = vld [vmem:[#allocation2 + $0x136] sm:$0xff]
        %v2136 = vld [vmem:[#allocation2 + $0x13e] sm:$0xff]
        %v2137 = vld [vmem:[#allocation2 + $0x146] sm:$0xff]
        %v2138 = vld [vmem:[#allocation2 + $0x14e] sm:$0xff]
        %v2139 = vld [vmem:[#allocation2 + $0x156] sm:$0xff]
        %v2140 = vld [vmem:[#allocation2 + $0x15e] sm:$0xff]
        %v2141 = vld [vmem:[#allocation2 + $0x166] sm:$0xff]
        %v2142 = vld [vmem:[#allocation2 + $0x16e] sm:$0xff]
        %v2143 = vld [vmem:[#allocation2 + $0x176] sm:$0xff]
        %v2144 = vld [vmem:[#allocation2 + $0x17e] sm:$0xff]
        %v2145 = vld [vmem:[#allocation2 + $0x186] sm:$0xff]
        %v2146 = vld [vmem:[#allocation2 + $0x18e] sm:$0xff]
        %v2147 = vld [vmem:[#allocation2 + $0x196] sm:$0xff]
        %v2148 = vld [vmem:[#allocation2 + $0x19e] sm:$0xff]
        %v2149 = vld [vmem:[#allocation2 + $0x1a6] sm:$0xff]
        %v2150 = vld [vmem:[#allocation2 + $0x1ae] sm:$0xff]
        %v2151 = vld [vmem:[#allocation2 + $0x1b6] sm:$0xff]
        %v2152 = vld [vmem:[#allocation2 + $0x1be] sm:$0xff]
        %v2153 = vld [vmem:[#allocation2 + $0x1c6] sm:$0xff]
        %s2154 = scalar_lea.vmem %s1, 192
        %v2155 = vld [vmem:[%s2154] sm:$0xff]
        %v2156 = vld [vmem:[%s2154 + $0x8] sm:$0xff]
        %v2157 = vld [vmem:[%s2154 + $0x10] sm:$0xff]
        %v2158 = vld [vmem:[%s2154 + $0x18] sm:$0xff]
        %v2159 = vld [vmem:[%s2154 + $0x20] sm:$0xff]
        %v2160 = vld [vmem:[%s2154 + $0x28] sm:$0xff]
        %v2161 = vld [vmem:[%s2154 + $0x30] sm:$0xff]
        %v2162 = vld [vmem:[%s2154 + $0x38] sm:$0xff]
        %v2164 = vsel %vm276, %v2099, 0
        %v2167 = vsel %vm276, %v2100, 0
        %v2170 = vsel %vm276, %v2101, 0
        %v2173 = vsel %vm276, %v2102, 0
        %v2176 = vsel %vm276, %v2103, 0
        %v2179 = vsel %vm276, %v2104, 0
        %v2182 = vsel %vm276, %v2105, 0
        %v2185 = vsel %vm276, %v2106, 0
        %v2188 = vsel %vm276, %v2107, 0
        %v2191 = vsel %vm276, %v2108, 0
        %v2194 = vsel %vm276, %v2109, 0
        %v2197 = vsel %vm276, %v2110, 0
        %v2200 = vsel %vm276, %v2111, 0
        %v2203 = vsel %vm276, %v2112, 0
        %v2206 = vsel %vm276, %v2113, 0
        %v2209 = vsel %vm276, %v2114, 0
        %v2212 = vsel %vm276, %v2115, 0
        %v2215 = vsel %vm276, %v2116, 0
        %v2218 = vsel %vm276, %v2117, 0
        %v2221 = vsel %vm276, %v2118, 0
        %v2224 = vsel %vm276, %v2119, 0
        %v2227 = vsel %vm276, %v2120, 0
        %v2230 = vsel %vm276, %v2121, 0
        %v2233 = vsel %vm276, %v2122, 0
        %v2236 = vsel %vm276, %v2123, 0
        %v2239 = vsel %vm276, %v2124, 0
        %v2242 = vsel %vm276, %v2125, 0
        %v2245 = vsel %vm276, %v2126, 0
        %v2248 = vsel %vm276, %v2127, 0
        %v2251 = vsel %vm276, %v2128, 0
        %v2254 = vsel %vm276, %v2129, 0
        %v2257 = vsel %vm276, %v2130, 0
        %v2260 = vsel %vm276, %v2131, 0
        %v2263 = vsel %vm276, %v2132, 0
        %v2266 = vsel %vm276, %v2133, 0
        %v2269 = vsel %vm276, %v2134, 0
        %v2272 = vsel %vm276, %v2135, 0
        %v2275 = vsel %vm276, %v2136, 0
        %v2278 = vsel %vm276, %v2137, 0
        %v2281 = vsel %vm276, %v2138, 0
        %v2284 = vsel %vm276, %v2139, 0
        %v2287 = vsel %vm276, %v2140, 0
        %v2290 = vsel %vm276, %v2141, 0
        %v2293 = vsel %vm276, %v2142, 0
        %v2296 = vsel %vm276, %v2143, 0
        %v2299 = vsel %vm276, %v2144, 0
        %v2302 = vsel %vm276, %v2145, 0
        %v2305 = vsel %vm276, %v2146, 0
        %v2308 = vsel %vm276, %v2147, 0
        %v2311 = vsel %vm276, %v2148, 0
        %v2314 = vsel %vm276, %v2149, 0
        %v2317 = vsel %vm276, %v2150, 0
        %v2320 = vsel %vm276, %v2151, 0
        %v2323 = vsel %vm276, %v2152, 0
        %v2326 = vsel %vm276, %v2153, 0
        %2328 = vmatpush.msra.mxu0 0.0
        %2329 = vmatpush.msra.mxu0 0.0
        %2330 = vmatpush.msra.mxu0 0.0
        %2331 = vmatpush.msra.mxu0 0.0
        %2332 = vmatpush.msra.mxu0 0.0
        %2333 = vmatpush.msra.mxu0 0.0
        %2334 = vmatpush.msra.mxu0 0.0
        %2335 = vmatpush.msra.mxu0 0.0
        %2336 = vmatpush.msra.mxu0 %v2162
        %2337 = vmatpush.msra.mxu0 %v2161
        %2338 = vmatpush.msra.mxu0 %v2160
        %2339 = vmatpush.msra.mxu0 %v2159
        %2340 = vmatpush.msra.mxu0 %v2158
        %2341 = vmatpush.msra.mxu0 %v2157
        %2342 = vmatpush.msra.mxu0 %v2156
        %2343 = vmatpush.msra.mxu0 %v2155
        %2344 = vmatmul.f32.gmra.mxu0 %v2164
        %v2345 = vpop.f32.mrf.mxu0
        %v2346 = vadd.f32 0.0, %v2345
        %2347 = vmatmul.f32.gmra.mxu0 %v2167
        %v2348 = vpop.f32.mrf.mxu0
        %v2349 = vadd.f32 0.0, %v2348
        %2350 = vmatmul.f32.gmra.mxu0 %v2170
        %v2351 = vpop.f32.mrf.mxu0
        %v2352 = vadd.f32 0.0, %v2351
        %2353 = vmatmul.f32.gmra.mxu0 %v2173
        %v2354 = vpop.f32.mrf.mxu0
        %v2355 = vadd.f32 0.0, %v2354
        %2356 = vmatmul.f32.gmra.mxu0 %v2176
        %v2357 = vpop.f32.mrf.mxu0
        %v2358 = vadd.f32 0.0, %v2357
        %2359 = vmatmul.f32.gmra.mxu0 %v2179
        %v2360 = vpop.f32.mrf.mxu0
        %v2361 = vadd.f32 0.0, %v2360
        %2362 = vmatmul.f32.gmra.mxu0 %v2182
        %v2363 = vpop.f32.mrf.mxu0
        %v2364 = vadd.f32 0.0, %v2363
        %2365 = vmatmul.f32.gmra.mxu0 %v2185
        %v2366 = vpop.f32.mrf.mxu0
        %v2367 = vadd.f32 0.0, %v2366
        %2368 = vmatmul.f32.gmra.mxu0 %v2188
        %v2369 = vpop.f32.mrf.mxu0
        %v2370 = vadd.f32 0.0, %v2369
        %2371 = vmatmul.f32.gmra.mxu0 %v2191
        %v2372 = vpop.f32.mrf.mxu0
        %v2373 = vadd.f32 0.0, %v2372
        %2374 = vmatmul.f32.gmra.mxu0 %v2194
        %v2375 = vpop.f32.mrf.mxu0
        %v2376 = vadd.f32 0.0, %v2375
        %2377 = vmatmul.f32.gmra.mxu0 %v2197
        %v2378 = vpop.f32.mrf.mxu0
        %v2379 = vadd.f32 0.0, %v2378
        %2380 = vmatmul.f32.gmra.mxu0 %v2200
        %v2381 = vpop.f32.mrf.mxu0
        %v2382 = vadd.f32 0.0, %v2381
        %2383 = vmatmul.f32.gmra.mxu0 %v2203
        %v2384 = vpop.f32.mrf.mxu0
        %v2385 = vadd.f32 0.0, %v2384
        %2386 = vmatmul.f32.gmra.mxu0 %v2206
        %v2387 = vpop.f32.mrf.mxu0
        %v2388 = vadd.f32 0.0, %v2387
        %2389 = vmatmul.f32.gmra.mxu0 %v2209
        %v2390 = vpop.f32.mrf.mxu0
        %v2391 = vadd.f32 0.0, %v2390
        %2392 = vmatmul.f32.gmra.mxu0 %v2212
        %v2393 = vpop.f32.mrf.mxu0
        %v2394 = vadd.f32 0.0, %v2393
        %2395 = vmatmul.f32.gmra.mxu0 %v2215
        %v2396 = vpop.f32.mrf.mxu0
        %v2397 = vadd.f32 0.0, %v2396
        %2398 = vmatmul.f32.gmra.mxu0 %v2218
        %v2399 = vpop.f32.mrf.mxu0
        %v2400 = vadd.f32 0.0, %v2399
        %2401 = vmatmul.f32.gmra.mxu0 %v2221
        %v2402 = vpop.f32.mrf.mxu0
        %v2403 = vadd.f32 0.0, %v2402
        %2404 = vmatmul.f32.gmra.mxu0 %v2224
        %v2405 = vpop.f32.mrf.mxu0
        %v2406 = vadd.f32 0.0, %v2405
        %2407 = vmatmul.f32.gmra.mxu0 %v2227
        %v2408 = vpop.f32.mrf.mxu0
        %v2409 = vadd.f32 0.0, %v2408
        %2410 = vmatmul.f32.gmra.mxu0 %v2230
        %v2411 = vpop.f32.mrf.mxu0
        %v2412 = vadd.f32 0.0, %v2411
        %2413 = vmatmul.f32.gmra.mxu0 %v2233
        %v2414 = vpop.f32.mrf.mxu0
        %v2415 = vadd.f32 0.0, %v2414
        %2416 = vmatmul.f32.gmra.mxu0 %v2236
        %v2417 = vpop.f32.mrf.mxu0
        %v2418 = vadd.f32 0.0, %v2417
        %2419 = vmatmul.f32.gmra.mxu0 %v2239
        %v2420 = vpop.f32.mrf.mxu0
        %v2421 = vadd.f32 0.0, %v2420
        %2422 = vmatmul.f32.gmra.mxu0 %v2242
        %v2423 = vpop.f32.mrf.mxu0
        %v2424 = vadd.f32 0.0, %v2423
        %2425 = vmatmul.f32.gmra.mxu0 %v2245
        %v2426 = vpop.f32.mrf.mxu0
        %v2427 = vadd.f32 0.0, %v2426
        %2428 = vmatmul.f32.gmra.mxu0 %v2248
        %v2429 = vpop.f32.mrf.mxu0
        %v2430 = vadd.f32 0.0, %v2429
        %2431 = vmatmul.f32.gmra.mxu0 %v2251
        %v2432 = vpop.f32.mrf.mxu0
        %v2433 = vadd.f32 0.0, %v2432
        %2434 = vmatmul.f32.gmra.mxu0 %v2254
        %v2435 = vpop.f32.mrf.mxu0
        %v2436 = vadd.f32 0.0, %v2435
        %2437 = vmatmul.f32.gmra.mxu0 %v2257
        %v2438 = vpop.f32.mrf.mxu0
        %v2439 = vadd.f32 0.0, %v2438
        %2440 = vmatmul.f32.gmra.mxu0 %v2260
        %v2441 = vpop.f32.mrf.mxu0
        %v2442 = vadd.f32 0.0, %v2441
        %2443 = vmatmul.f32.gmra.mxu0 %v2263
        %v2444 = vpop.f32.mrf.mxu0
        %v2445 = vadd.f32 0.0, %v2444
        %2446 = vmatmul.f32.gmra.mxu0 %v2266
        %v2447 = vpop.f32.mrf.mxu0
        %v2448 = vadd.f32 0.0, %v2447
        %2449 = vmatmul.f32.gmra.mxu0 %v2269
        %v2450 = vpop.f32.mrf.mxu0
        %v2451 = vadd.f32 0.0, %v2450
        %2452 = vmatmul.f32.gmra.mxu0 %v2272
        %v2453 = vpop.f32.mrf.mxu0
        %v2454 = vadd.f32 0.0, %v2453
        %2455 = vmatmul.f32.gmra.mxu0 %v2275
        %v2456 = vpop.f32.mrf.mxu0
        %v2457 = vadd.f32 0.0, %v2456
        %2458 = vmatmul.f32.gmra.mxu0 %v2278
        %v2459 = vpop.f32.mrf.mxu0
        %v2460 = vadd.f32 0.0, %v2459
        %2461 = vmatmul.f32.gmra.mxu0 %v2281
        %v2462 = vpop.f32.mrf.mxu0
        %v2463 = vadd.f32 0.0, %v2462
        %2464 = vmatmul.f32.gmra.mxu0 %v2284
        %v2465 = vpop.f32.mrf.mxu0
        %v2466 = vadd.f32 0.0, %v2465
        %2467 = vmatmul.f32.gmra.mxu0 %v2287
        %v2468 = vpop.f32.mrf.mxu0
        %v2469 = vadd.f32 0.0, %v2468
        %2470 = vmatmul.f32.gmra.mxu0 %v2290
        %v2471 = vpop.f32.mrf.mxu0
        %v2472 = vadd.f32 0.0, %v2471
        %2473 = vmatmul.f32.gmra.mxu0 %v2293
        %v2474 = vpop.f32.mrf.mxu0
        %v2475 = vadd.f32 0.0, %v2474
        %2476 = vmatmul.f32.gmra.mxu0 %v2296
        %v2477 = vpop.f32.mrf.mxu0
        %v2478 = vadd.f32 0.0, %v2477
        %2479 = vmatmul.f32.gmra.mxu0 %v2299
        %v2480 = vpop.f32.mrf.mxu0
        %v2481 = vadd.f32 0.0, %v2480
        %2482 = vmatmul.f32.gmra.mxu0 %v2302
        %v2483 = vpop.f32.mrf.mxu0
        %v2484 = vadd.f32 0.0, %v2483
        %2485 = vmatmul.f32.gmra.mxu0 %v2305
        %v2486 = vpop.f32.mrf.mxu0
        %v2487 = vadd.f32 0.0, %v2486
        %2488 = vmatmul.f32.gmra.mxu0 %v2308
        %v2489 = vpop.f32.mrf.mxu0
        %v2490 = vadd.f32 0.0, %v2489
        %2491 = vmatmul.f32.gmra.mxu0 %v2311
        %v2492 = vpop.f32.mrf.mxu0
        %v2493 = vadd.f32 0.0, %v2492
        %2494 = vmatmul.f32.gmra.mxu0 %v2314
        %v2495 = vpop.f32.mrf.mxu0
        %v2496 = vadd.f32 0.0, %v2495
        %2497 = vmatmul.f32.gmra.mxu0 %v2317
        %v2498 = vpop.f32.mrf.mxu0
        %v2499 = vadd.f32 0.0, %v2498
        %2500 = vmatmul.f32.gmra.mxu0 %v2320
        %v2501 = vpop.f32.mrf.mxu0
        %v2502 = vadd.f32 0.0, %v2501
        %2503 = vmatmul.f32.gmra.mxu0 %v2323
        %v2504 = vpop.f32.mrf.mxu0
        %v2505 = vadd.f32 0.0, %v2504
        %2506 = vmatmul.f32.gmra.mxu0 %v2326
        %v2507 = vpop.f32.mrf.mxu0
        %v2508 = vadd.f32 0.0, %v2507
        %2509 = vdwg.mxu0
        %v2510 = vld [vmem:[#allocation3] sm:$0xff]
        %v2511 = vld [vmem:[#allocation3 + $0x8] sm:$0xff]
        %v2512 = vld [vmem:[#allocation3 + $0x10] sm:$0xff]
        %v2513 = vld [vmem:[#allocation3 + $0x18] sm:$0xff]
        %v2514 = vld [vmem:[#allocation3 + $0x20] sm:$0xff]
        %v2515 = vld [vmem:[#allocation3 + $0x28] sm:$0xff]
        %v2516 = vld [vmem:[#allocation3 + $0x30] sm:$0xff]
        %v2517 = vld [vmem:[#allocation3 + $0x38] sm:$0xff]
        %v2518 = vld [vmem:[#allocation3 + $0x40] sm:$0xff]
        %v2519 = vld [vmem:[#allocation3 + $0x48] sm:$0xff]
        %v2520 = vld [vmem:[#allocation3 + $0x50] sm:$0xff]
        %v2521 = vld [vmem:[#allocation3 + $0x58] sm:$0xff]
        %v2522 = vld [vmem:[#allocation3 + $0x60] sm:$0xff]
        %v2523 = vld [vmem:[#allocation3 + $0x68] sm:$0xff]
        %v2524 = vld [vmem:[#allocation3 + $0x70] sm:$0xff]
        %v2525 = vld [vmem:[#allocation3 + $0x78] sm:$0xff]
        %v2526 = vld [vmem:[#allocation3 + $0x80] sm:$0xff]
        %v2527 = vld [vmem:[#allocation3 + $0x88] sm:$0xff]
        %v2528 = vld [vmem:[#allocation3 + $0x90] sm:$0xff]
        %v2529 = vld [vmem:[#allocation3 + $0x98] sm:$0xff]
        %v2530 = vld [vmem:[#allocation3 + $0xa0] sm:$0xff]
        %v2531 = vld [vmem:[#allocation3 + $0xa8] sm:$0xff]
        %v2532 = vld [vmem:[#allocation3 + $0xb0] sm:$0xff]
        %v2533 = vld [vmem:[#allocation3 + $0xb8] sm:$0xff]
        %v2534 = vld [vmem:[#allocation3 + $0xc0] sm:$0xff]
        %v2535 = vld [vmem:[#allocation3 + $0xc8] sm:$0xff]
        %v2536 = vld [vmem:[#allocation3 + $0xd0] sm:$0xff]
        %v2537 = vld [vmem:[#allocation3 + $0xd8] sm:$0xff]
        %v2538 = vld [vmem:[#allocation3 + $0xe0] sm:$0xff]
        %v2539 = vld [vmem:[#allocation3 + $0xe8] sm:$0xff]
        %v2540 = vld [vmem:[#allocation3 + $0xf0] sm:$0xff]
        %v2541 = vld [vmem:[#allocation3 + $0xf8] sm:$0xff]
        %v2542 = vld [vmem:[#allocation3 + $0x100] sm:$0xff]
        %v2543 = vld [vmem:[#allocation3 + $0x108] sm:$0xff]
        %v2544 = vld [vmem:[#allocation3 + $0x110] sm:$0xff]
        %v2545 = vld [vmem:[#allocation3 + $0x118] sm:$0xff]
        %v2546 = vld [vmem:[#allocation3 + $0x120] sm:$0xff]
        %v2547 = vld [vmem:[#allocation3 + $0x128] sm:$0xff]
        %v2548 = vld [vmem:[#allocation3 + $0x130] sm:$0xff]
        %v2549 = vld [vmem:[#allocation3 + $0x138] sm:$0xff]
        %v2550 = vld [vmem:[#allocation3 + $0x140] sm:$0xff]
        %v2551 = vld [vmem:[#allocation3 + $0x148] sm:$0xff]
        %v2552 = vld [vmem:[#allocation3 + $0x150] sm:$0xff]
        %v2553 = vld [vmem:[#allocation3 + $0x158] sm:$0xff]
        %v2554 = vld [vmem:[#allocation3 + $0x160] sm:$0xff]
        %v2555 = vld [vmem:[#allocation3 + $0x168] sm:$0xff]
        %v2556 = vld [vmem:[#allocation3 + $0x170] sm:$0xff]
        %v2557 = vld [vmem:[#allocation3 + $0x178] sm:$0xff]
        %v2558 = vld [vmem:[#allocation3 + $0x180] sm:$0xff]
        %v2559 = vld [vmem:[#allocation3 + $0x188] sm:$0xff]
        %v2560 = vld [vmem:[#allocation3 + $0x190] sm:$0xff]
        %v2561 = vld [vmem:[#allocation3 + $0x198] sm:$0xff]
        %v2562 = vld [vmem:[#allocation3 + $0x1a0] sm:$0xff]
        %v2563 = vld [vmem:[#allocation3 + $0x1a8] sm:$0xff]
        %v2564 = vld [vmem:[#allocation3 + $0x1b0] sm:$0xff]
        %v2565 = vadd.f32 %v2510, %v2346
        %v2566 = vadd.f32 %v2511, %v2349
        %v2567 = vadd.f32 %v2512, %v2352
        %v2568 = vadd.f32 %v2513, %v2355
        %v2569 = vadd.f32 %v2514, %v2358
        %v2570 = vadd.f32 %v2515, %v2361
        %v2571 = vadd.f32 %v2516, %v2364
        %v2572 = vadd.f32 %v2517, %v2367
        %v2573 = vadd.f32 %v2518, %v2370
        %v2574 = vadd.f32 %v2519, %v2373
        %v2575 = vadd.f32 %v2520, %v2376
        %v2576 = vadd.f32 %v2521, %v2379
        %v2577 = vadd.f32 %v2522, %v2382
        %v2578 = vadd.f32 %v2523, %v2385
        %v2579 = vadd.f32 %v2524, %v2388
        %v2580 = vadd.f32 %v2525, %v2391
        %v2581 = vadd.f32 %v2526, %v2394
        %v2582 = vadd.f32 %v2527, %v2397
        %v2583 = vadd.f32 %v2528, %v2400
        %v2584 = vadd.f32 %v2529, %v2403
        %v2585 = vadd.f32 %v2530, %v2406
        %v2586 = vadd.f32 %v2531, %v2409
        %v2587 = vadd.f32 %v2532, %v2412
        %v2588 = vadd.f32 %v2533, %v2415
        %v2589 = vadd.f32 %v2534, %v2418
        %v2590 = vadd.f32 %v2535, %v2421
        %v2591 = vadd.f32 %v2536, %v2424
        %v2592 = vadd.f32 %v2537, %v2427
        %v2593 = vadd.f32 %v2538, %v2430
        %v2594 = vadd.f32 %v2539, %v2433
        %v2595 = vadd.f32 %v2540, %v2436
        %v2596 = vadd.f32 %v2541, %v2439
        %v2597 = vadd.f32 %v2542, %v2442
        %v2598 = vadd.f32 %v2543, %v2445
        %v2599 = vadd.f32 %v2544, %v2448
        %v2600 = vadd.f32 %v2545, %v2451
        %v2601 = vadd.f32 %v2546, %v2454
        %v2602 = vadd.f32 %v2547, %v2457
        %v2603 = vadd.f32 %v2548, %v2460
        %v2604 = vadd.f32 %v2549, %v2463
        %v2605 = vadd.f32 %v2550, %v2466
        %v2606 = vadd.f32 %v2551, %v2469
        %v2607 = vadd.f32 %v2552, %v2472
        %v2608 = vadd.f32 %v2553, %v2475
        %v2609 = vadd.f32 %v2554, %v2478
        %v2610 = vadd.f32 %v2555, %v2481
        %v2611 = vadd.f32 %v2556, %v2484
        %v2612 = vadd.f32 %v2557, %v2487
        %v2613 = vadd.f32 %v2558, %v2490
        %v2614 = vadd.f32 %v2559, %v2493
        %v2615 = vadd.f32 %v2560, %v2496
        %v2616 = vadd.f32 %v2561, %v2499
        %v2617 = vadd.f32 %v2562, %v2502
        %v2618 = vadd.f32 %v2563, %v2505
        %v2619 = vadd.f32 %v2564, %v2508
        %2620 = vst.msk [vmem:[#allocation3] sm:$0xff] %vm276, %v2565
        %2621 = vst.msk [vmem:[#allocation3 + $0x8] sm:$0xff] %vm276, %v2566
        %2622 = vst.msk [vmem:[#allocation3 + $0x10] sm:$0xff] %vm276, %v2567
        %2623 = vst.msk [vmem:[#allocation3 + $0x18] sm:$0xff] %vm276, %v2568
        %2624 = vst.msk [vmem:[#allocation3 + $0x20] sm:$0xff] %vm276, %v2569
        %2625 = vst.msk [vmem:[#allocation3 + $0x28] sm:$0xff] %vm276, %v2570
        %2626 = vst.msk [vmem:[#allocation3 + $0x30] sm:$0xff] %vm276, %v2571
        %2627 = vst.msk [vmem:[#allocation3 + $0x38] sm:$0xff] %vm276, %v2572
        %2628 = vst.msk [vmem:[#allocation3 + $0x40] sm:$0xff] %vm276, %v2573
        %2629 = vst.msk [vmem:[#allocation3 + $0x48] sm:$0xff] %vm276, %v2574
        %2630 = vst.msk [vmem:[#allocation3 + $0x50] sm:$0xff] %vm276, %v2575
        %2631 = vst.msk [vmem:[#allocation3 + $0x58] sm:$0xff] %vm276, %v2576
        %2632 = vst.msk [vmem:[#allocation3 + $0x60] sm:$0xff] %vm276, %v2577
        %2633 = vst.msk [vmem:[#allocation3 + $0x68] sm:$0xff] %vm276, %v2578
        %2634 = vst.msk [vmem:[#allocation3 + $0x70] sm:$0xff] %vm276, %v2579
        %2635 = vst.msk [vmem:[#allocation3 + $0x78] sm:$0xff] %vm276, %v2580
        %2636 = vst.msk [vmem:[#allocation3 + $0x80] sm:$0xff] %vm276, %v2581
        %2637 = vst.msk [vmem:[#allocation3 + $0x88] sm:$0xff] %vm276, %v2582
        %2638 = vst.msk [vmem:[#allocation3 + $0x90] sm:$0xff] %vm276, %v2583
        %2639 = vst.msk [vmem:[#allocation3 + $0x98] sm:$0xff] %vm276, %v2584
        %2640 = vst.msk [vmem:[#allocation3 + $0xa0] sm:$0xff] %vm276, %v2585
        %2641 = vst.msk [vmem:[#allocation3 + $0xa8] sm:$0xff] %vm276, %v2586
        %2642 = vst.msk [vmem:[#allocation3 + $0xb0] sm:$0xff] %vm276, %v2587
        %2643 = vst.msk [vmem:[#allocation3 + $0xb8] sm:$0xff] %vm276, %v2588
        %2644 = vst.msk [vmem:[#allocation3 + $0xc0] sm:$0xff] %vm276, %v2589
        %2645 = vst.msk [vmem:[#allocation3 + $0xc8] sm:$0xff] %vm276, %v2590
        %2646 = vst.msk [vmem:[#allocation3 + $0xd0] sm:$0xff] %vm276, %v2591
        %2647 = vst.msk [vmem:[#allocation3 + $0xd8] sm:$0xff] %vm276, %v2592
        %2648 = vst.msk [vmem:[#allocation3 + $0xe0] sm:$0xff] %vm276, %v2593
        %2649 = vst.msk [vmem:[#allocation3 + $0xe8] sm:$0xff] %vm276, %v2594
        %2650 = vst.msk [vmem:[#allocation3 + $0xf0] sm:$0xff] %vm276, %v2595
        %2651 = vst.msk [vmem:[#allocation3 + $0xf8] sm:$0xff] %vm276, %v2596
        %2652 = vst.msk [vmem:[#allocation3 + $0x100] sm:$0xff] %vm276, %v2597
        %2653 = vst.msk [vmem:[#allocation3 + $0x108] sm:$0xff] %vm276, %v2598
        %2654 = vst.msk [vmem:[#allocation3 + $0x110] sm:$0xff] %vm276, %v2599
        %2655 = vst.msk [vmem:[#allocation3 + $0x118] sm:$0xff] %vm276, %v2600
        %2656 = vst.msk [vmem:[#allocation3 + $0x120] sm:$0xff] %vm276, %v2601
        %2657 = vst.msk [vmem:[#allocation3 + $0x128] sm:$0xff] %vm276, %v2602
        %2658 = vst.msk [vmem:[#allocation3 + $0x130] sm:$0xff] %vm276, %v2603
        %2659 = vst.msk [vmem:[#allocation3 + $0x138] sm:$0xff] %vm276, %v2604
        %2660 = vst.msk [vmem:[#allocation3 + $0x140] sm:$0xff] %vm276, %v2605
        %2661 = vst.msk [vmem:[#allocation3 + $0x148] sm:$0xff] %vm276, %v2606
        %2662 = vst.msk [vmem:[#allocation3 + $0x150] sm:$0xff] %vm276, %v2607
        %2663 = vst.msk [vmem:[#allocation3 + $0x158] sm:$0xff] %vm276, %v2608
        %2664 = vst.msk [vmem:[#allocation3 + $0x160] sm:$0xff] %vm276, %v2609
        %2665 = vst.msk [vmem:[#allocation3 + $0x168] sm:$0xff] %vm276, %v2610
        %2666 = vst.msk [vmem:[#allocation3 + $0x170] sm:$0xff] %vm276, %v2611
        %2667 = vst.msk [vmem:[#allocation3 + $0x178] sm:$0xff] %vm276, %v2612
        %2668 = vst.msk [vmem:[#allocation3 + $0x180] sm:$0xff] %vm276, %v2613
        %2669 = vst.msk [vmem:[#allocation3 + $0x188] sm:$0xff] %vm276, %v2614
        %2670 = vst.msk [vmem:[#allocation3 + $0x190] sm:$0xff] %vm276, %v2615
        %2671 = vst.msk [vmem:[#allocation3 + $0x198] sm:$0xff] %vm276, %v2616
        %2672 = vst.msk [vmem:[#allocation3 + $0x1a0] sm:$0xff] %vm276, %v2617
        %2673 = vst.msk [vmem:[#allocation3 + $0x1a8] sm:$0xff] %vm276, %v2618
        %2674 = vst.msk [vmem:[#allocation3 + $0x1b0] sm:$0xff] %vm276, %v2619
        %v2675 = vld [vmem:[#allocation2 + $0x17] sm:$0xff]
        %v2676 = vld [vmem:[#allocation2 + $0x1f] sm:$0xff]
        %v2677 = vld [vmem:[#allocation2 + $0x27] sm:$0xff]
        %v2678 = vld [vmem:[#allocation2 + $0x2f] sm:$0xff]
        %v2679 = vld [vmem:[#allocation2 + $0x37] sm:$0xff]
        %v2680 = vld [vmem:[#allocation2 + $0x3f] sm:$0xff]
        %v2681 = vld [vmem:[#allocation2 + $0x47] sm:$0xff]
        %v2682 = vld [vmem:[#allocation2 + $0x4f] sm:$0xff]
        %v2683 = vld [vmem:[#allocation2 + $0x57] sm:$0xff]
        %v2684 = vld [vmem:[#allocation2 + $0x5f] sm:$0xff]
        %v2685 = vld [vmem:[#allocation2 + $0x67] sm:$0xff]
        %v2686 = vld [vmem:[#allocation2 + $0x6f] sm:$0xff]
        %v2687 = vld [vmem:[#allocation2 + $0x77] sm:$0xff]
        %v2688 = vld [vmem:[#allocation2 + $0x7f] sm:$0xff]
        %v2689 = vld [vmem:[#allocation2 + $0x87] sm:$0xff]
        %v2690 = vld [vmem:[#allocation2 + $0x8f] sm:$0xff]
        %v2691 = vld [vmem:[#allocation2 + $0x97] sm:$0xff]
        %v2692 = vld [vmem:[#allocation2 + $0x9f] sm:$0xff]
        %v2693 = vld [vmem:[#allocation2 + $0xa7] sm:$0xff]
        %v2694 = vld [vmem:[#allocation2 + $0xaf] sm:$0xff]
        %v2695 = vld [vmem:[#allocation2 + $0xb7] sm:$0xff]
        %v2696 = vld [vmem:[#allocation2 + $0xbf] sm:$0xff]
        %v2697 = vld [vmem:[#allocation2 + $0xc7] sm:$0xff]
        %v2698 = vld [vmem:[#allocation2 + $0xcf] sm:$0xff]
        %v2699 = vld [vmem:[#allocation2 + $0xd7] sm:$0xff]
        %v2700 = vld [vmem:[#allocation2 + $0xdf] sm:$0xff]
        %v2701 = vld [vmem:[#allocation2 + $0xe7] sm:$0xff]
        %v2702 = vld [vmem:[#allocation2 + $0xef] sm:$0xff]
        %v2703 = vld [vmem:[#allocation2 + $0xf7] sm:$0xff]
        %v2704 = vld [vmem:[#allocation2 + $0xff] sm:$0xff]
        %v2705 = vld [vmem:[#allocation2 + $0x107] sm:$0xff]
        %v2706 = vld [vmem:[#allocation2 + $0x10f] sm:$0xff]
        %v2707 = vld [vmem:[#allocation2 + $0x117] sm:$0xff]
        %v2708 = vld [vmem:[#allocation2 + $0x11f] sm:$0xff]
        %v2709 = vld [vmem:[#allocation2 + $0x127] sm:$0xff]
        %v2710 = vld [vmem:[#allocation2 + $0x12f] sm:$0xff]
        %v2711 = vld [vmem:[#allocation2 + $0x137] sm:$0xff]
        %v2712 = vld [vmem:[#allocation2 + $0x13f] sm:$0xff]
        %v2713 = vld [vmem:[#allocation2 + $0x147] sm:$0xff]
        %v2714 = vld [vmem:[#allocation2 + $0x14f] sm:$0xff]
        %v2715 = vld [vmem:[#allocation2 + $0x157] sm:$0xff]
        %v2716 = vld [vmem:[#allocation2 + $0x15f] sm:$0xff]
        %v2717 = vld [vmem:[#allocation2 + $0x167] sm:$0xff]
        %v2718 = vld [vmem:[#allocation2 + $0x16f] sm:$0xff]
        %v2719 = vld [vmem:[#allocation2 + $0x177] sm:$0xff]
        %v2720 = vld [vmem:[#allocation2 + $0x17f] sm:$0xff]
        %v2721 = vld [vmem:[#allocation2 + $0x187] sm:$0xff]
        %v2722 = vld [vmem:[#allocation2 + $0x18f] sm:$0xff]
        %v2723 = vld [vmem:[#allocation2 + $0x197] sm:$0xff]
        %v2724 = vld [vmem:[#allocation2 + $0x19f] sm:$0xff]
        %v2725 = vld [vmem:[#allocation2 + $0x1a7] sm:$0xff]
        %v2726 = vld [vmem:[#allocation2 + $0x1af] sm:$0xff]
        %v2727 = vld [vmem:[#allocation2 + $0x1b7] sm:$0xff]
        %v2728 = vld [vmem:[#allocation2 + $0x1bf] sm:$0xff]
        %v2729 = vld [vmem:[#allocation2 + $0x1c7] sm:$0xff]
        %s2730 = scalar_lea.vmem %s1, 256
        %v2731 = vld [vmem:[%s2730] sm:$0xff]
        %v2732 = vld [vmem:[%s2730 + $0x8] sm:$0xff]
        %v2733 = vld [vmem:[%s2730 + $0x10] sm:$0xff]
        %v2734 = vld [vmem:[%s2730 + $0x18] sm:$0xff]
        %v2735 = vld [vmem:[%s2730 + $0x20] sm:$0xff]
        %v2736 = vld [vmem:[%s2730 + $0x28] sm:$0xff]
        %v2737 = vld [vmem:[%s2730 + $0x30] sm:$0xff]
        %v2738 = vld [vmem:[%s2730 + $0x38] sm:$0xff]
        %v2740 = vsel %vm276, %v2675, 0
        %v2743 = vsel %vm276, %v2676, 0
        %v2746 = vsel %vm276, %v2677, 0
        %v2749 = vsel %vm276, %v2678, 0
        %v2752 = vsel %vm276, %v2679, 0
        %v2755 = vsel %vm276, %v2680, 0
        %v2758 = vsel %vm276, %v2681, 0
        %v2761 = vsel %vm276, %v2682, 0
        %v2764 = vsel %vm276, %v2683, 0
        %v2767 = vsel %vm276, %v2684, 0
        %v2770 = vsel %vm276, %v2685, 0
        %v2773 = vsel %vm276, %v2686, 0
        %v2776 = vsel %vm276, %v2687, 0
        %v2779 = vsel %vm276, %v2688, 0
        %v2782 = vsel %vm276, %v2689, 0
        %v2785 = vsel %vm276, %v2690, 0
        %v2788 = vsel %vm276, %v2691, 0
        %v2791 = vsel %vm276, %v2692, 0
        %v2794 = vsel %vm276, %v2693, 0
        %v2797 = vsel %vm276, %v2694, 0
        %v2800 = vsel %vm276, %v2695, 0
        %v2803 = vsel %vm276, %v2696, 0
        %v2806 = vsel %vm276, %v2697, 0
        %v2809 = vsel %vm276, %v2698, 0
        %v2812 = vsel %vm276, %v2699, 0
        %v2815 = vsel %vm276, %v2700, 0
        %v2818 = vsel %vm276, %v2701, 0
        %v2821 = vsel %vm276, %v2702, 0
        %v2824 = vsel %vm276, %v2703, 0
        %v2827 = vsel %vm276, %v2704, 0
        %v2830 = vsel %vm276, %v2705, 0
        %v2833 = vsel %vm276, %v2706, 0
        %v2836 = vsel %vm276, %v2707, 0
        %v2839 = vsel %vm276, %v2708, 0
        %v2842 = vsel %vm276, %v2709, 0
        %v2845 = vsel %vm276, %v2710, 0
        %v2848 = vsel %vm276, %v2711, 0
        %v2851 = vsel %vm276, %v2712, 0
        %v2854 = vsel %vm276, %v2713, 0
        %v2857 = vsel %vm276, %v2714, 0
        %v2860 = vsel %vm276, %v2715, 0
        %v2863 = vsel %vm276, %v2716, 0
        %v2866 = vsel %vm276, %v2717, 0
        %v2869 = vsel %vm276, %v2718, 0
        %v2872 = vsel %vm276, %v2719, 0
        %v2875 = vsel %vm276, %v2720, 0
        %v2878 = vsel %vm276, %v2721, 0
        %v2881 = vsel %vm276, %v2722, 0
        %v2884 = vsel %vm276, %v2723, 0
        %v2887 = vsel %vm276, %v2724, 0
        %v2890 = vsel %vm276, %v2725, 0
        %v2893 = vsel %vm276, %v2726, 0
        %v2896 = vsel %vm276, %v2727, 0
        %v2899 = vsel %vm276, %v2728, 0
        %v2902 = vsel %vm276, %v2729, 0
        %2904 = vmatpush.msra.mxu0 0.0
        %2905 = vmatpush.msra.mxu0 0.0
        %2906 = vmatpush.msra.mxu0 0.0
        %2907 = vmatpush.msra.mxu0 0.0
        %2908 = vmatpush.msra.mxu0 0.0
        %2909 = vmatpush.msra.mxu0 0.0
        %2910 = vmatpush.msra.mxu0 0.0
        %2911 = vmatpush.msra.mxu0 0.0
        %2912 = vmatpush.msra.mxu0 %v2738
        %2913 = vmatpush.msra.mxu0 %v2737
        %2914 = vmatpush.msra.mxu0 %v2736
        %2915 = vmatpush.msra.mxu0 %v2735
        %2916 = vmatpush.msra.mxu0 %v2734
        %2917 = vmatpush.msra.mxu0 %v2733
        %2918 = vmatpush.msra.mxu0 %v2732
        %2919 = vmatpush.msra.mxu0 %v2731
        %2920 = vmatmul.f32.gmra.mxu0 %v2740
        %v2921 = vpop.f32.mrf.mxu0
        %v2922 = vadd.f32 0.0, %v2921
        %2923 = vmatmul.f32.gmra.mxu0 %v2743
        %v2924 = vpop.f32.mrf.mxu0
        %v2925 = vadd.f32 0.0, %v2924
        %2926 = vmatmul.f32.gmra.mxu0 %v2746
        %v2927 = vpop.f32.mrf.mxu0
        %v2928 = vadd.f32 0.0, %v2927
        %2929 = vmatmul.f32.gmra.mxu0 %v2749
        %v2930 = vpop.f32.mrf.mxu0
        %v2931 = vadd.f32 0.0, %v2930
        %2932 = vmatmul.f32.gmra.mxu0 %v2752
        %v2933 = vpop.f32.mrf.mxu0
        %v2934 = vadd.f32 0.0, %v2933
        %2935 = vmatmul.f32.gmra.mxu0 %v2755
        %v2936 = vpop.f32.mrf.mxu0
        %v2937 = vadd.f32 0.0, %v2936
        %2938 = vmatmul.f32.gmra.mxu0 %v2758
        %v2939 = vpop.f32.mrf.mxu0
        %v2940 = vadd.f32 0.0, %v2939
        %2941 = vmatmul.f32.gmra.mxu0 %v2761
        %v2942 = vpop.f32.mrf.mxu0
        %v2943 = vadd.f32 0.0, %v2942
        %2944 = vmatmul.f32.gmra.mxu0 %v2764
        %v2945 = vpop.f32.mrf.mxu0
        %v2946 = vadd.f32 0.0, %v2945
        %2947 = vmatmul.f32.gmra.mxu0 %v2767
        %v2948 = vpop.f32.mrf.mxu0
        %v2949 = vadd.f32 0.0, %v2948
        %2950 = vmatmul.f32.gmra.mxu0 %v2770
        %v2951 = vpop.f32.mrf.mxu0
        %v2952 = vadd.f32 0.0, %v2951
        %2953 = vmatmul.f32.gmra.mxu0 %v2773
        %v2954 = vpop.f32.mrf.mxu0
        %v2955 = vadd.f32 0.0, %v2954
        %2956 = vmatmul.f32.gmra.mxu0 %v2776
        %v2957 = vpop.f32.mrf.mxu0
        %v2958 = vadd.f32 0.0, %v2957
        %2959 = vmatmul.f32.gmra.mxu0 %v2779
        %v2960 = vpop.f32.mrf.mxu0
        %v2961 = vadd.f32 0.0, %v2960
        %2962 = vmatmul.f32.gmra.mxu0 %v2782
        %v2963 = vpop.f32.mrf.mxu0
        %v2964 = vadd.f32 0.0, %v2963
        %2965 = vmatmul.f32.gmra.mxu0 %v2785
        %v2966 = vpop.f32.mrf.mxu0
        %v2967 = vadd.f32 0.0, %v2966
        %2968 = vmatmul.f32.gmra.mxu0 %v2788
        %v2969 = vpop.f32.mrf.mxu0
        %v2970 = vadd.f32 0.0, %v2969
        %2971 = vmatmul.f32.gmra.mxu0 %v2791
        %v2972 = vpop.f32.mrf.mxu0
        %v2973 = vadd.f32 0.0, %v2972
        %2974 = vmatmul.f32.gmra.mxu0 %v2794
        %v2975 = vpop.f32.mrf.mxu0
        %v2976 = vadd.f32 0.0, %v2975
        %2977 = vmatmul.f32.gmra.mxu0 %v2797
        %v2978 = vpop.f32.mrf.mxu0
        %v2979 = vadd.f32 0.0, %v2978
        %2980 = vmatmul.f32.gmra.mxu0 %v2800
        %v2981 = vpop.f32.mrf.mxu0
        %v2982 = vadd.f32 0.0, %v2981
        %2983 = vmatmul.f32.gmra.mxu0 %v2803
        %v2984 = vpop.f32.mrf.mxu0
        %v2985 = vadd.f32 0.0, %v2984
        %2986 = vmatmul.f32.gmra.mxu0 %v2806
        %v2987 = vpop.f32.mrf.mxu0
        %v2988 = vadd.f32 0.0, %v2987
        %2989 = vmatmul.f32.gmra.mxu0 %v2809
        %v2990 = vpop.f32.mrf.mxu0
        %v2991 = vadd.f32 0.0, %v2990
        %2992 = vmatmul.f32.gmra.mxu0 %v2812
        %v2993 = vpop.f32.mrf.mxu0
        %v2994 = vadd.f32 0.0, %v2993
        %2995 = vmatmul.f32.gmra.mxu0 %v2815
        %v2996 = vpop.f32.mrf.mxu0
        %v2997 = vadd.f32 0.0, %v2996
        %2998 = vmatmul.f32.gmra.mxu0 %v2818
        %v2999 = vpop.f32.mrf.mxu0
        %v3000 = vadd.f32 0.0, %v2999
        %3001 = vmatmul.f32.gmra.mxu0 %v2821
        %v3002 = vpop.f32.mrf.mxu0
        %v3003 = vadd.f32 0.0, %v3002
        %3004 = vmatmul.f32.gmra.mxu0 %v2824
        %v3005 = vpop.f32.mrf.mxu0
        %v3006 = vadd.f32 0.0, %v3005
        %3007 = vmatmul.f32.gmra.mxu0 %v2827
        %v3008 = vpop.f32.mrf.mxu0
        %v3009 = vadd.f32 0.0, %v3008
        %3010 = vmatmul.f32.gmra.mxu0 %v2830
        %v3011 = vpop.f32.mrf.mxu0
        %v3012 = vadd.f32 0.0, %v3011
        %3013 = vmatmul.f32.gmra.mxu0 %v2833
        %v3014 = vpop.f32.mrf.mxu0
        %v3015 = vadd.f32 0.0, %v3014
        %3016 = vmatmul.f32.gmra.mxu0 %v2836
        %v3017 = vpop.f32.mrf.mxu0
        %v3018 = vadd.f32 0.0, %v3017
        %3019 = vmatmul.f32.gmra.mxu0 %v2839
        %v3020 = vpop.f32.mrf.mxu0
        %v3021 = vadd.f32 0.0, %v3020
        %3022 = vmatmul.f32.gmra.mxu0 %v2842
        %v3023 = vpop.f32.mrf.mxu0
        %v3024 = vadd.f32 0.0, %v3023
        %3025 = vmatmul.f32.gmra.mxu0 %v2845
        %v3026 = vpop.f32.mrf.mxu0
        %v3027 = vadd.f32 0.0, %v3026
        %3028 = vmatmul.f32.gmra.mxu0 %v2848
        %v3029 = vpop.f32.mrf.mxu0
        %v3030 = vadd.f32 0.0, %v3029
        %3031 = vmatmul.f32.gmra.mxu0 %v2851
        %v3032 = vpop.f32.mrf.mxu0
        %v3033 = vadd.f32 0.0, %v3032
        %3034 = vmatmul.f32.gmra.mxu0 %v2854
        %v3035 = vpop.f32.mrf.mxu0
        %v3036 = vadd.f32 0.0, %v3035
        %3037 = vmatmul.f32.gmra.mxu0 %v2857
        %v3038 = vpop.f32.mrf.mxu0
        %v3039 = vadd.f32 0.0, %v3038
        %3040 = vmatmul.f32.gmra.mxu0 %v2860
        %v3041 = vpop.f32.mrf.mxu0
        %v3042 = vadd.f32 0.0, %v3041
        %3043 = vmatmul.f32.gmra.mxu0 %v2863
        %v3044 = vpop.f32.mrf.mxu0
        %v3045 = vadd.f32 0.0, %v3044
        %3046 = vmatmul.f32.gmra.mxu0 %v2866
        %v3047 = vpop.f32.mrf.mxu0
        %v3048 = vadd.f32 0.0, %v3047
        %3049 = vmatmul.f32.gmra.mxu0 %v2869
        %v3050 = vpop.f32.mrf.mxu0
        %v3051 = vadd.f32 0.0, %v3050
        %3052 = vmatmul.f32.gmra.mxu0 %v2872
        %v3053 = vpop.f32.mrf.mxu0
        %v3054 = vadd.f32 0.0, %v3053
        %3055 = vmatmul.f32.gmra.mxu0 %v2875
        %v3056 = vpop.f32.mrf.mxu0
        %v3057 = vadd.f32 0.0, %v3056
        %3058 = vmatmul.f32.gmra.mxu0 %v2878
        %v3059 = vpop.f32.mrf.mxu0
        %v3060 = vadd.f32 0.0, %v3059
        %3061 = vmatmul.f32.gmra.mxu0 %v2881
        %v3062 = vpop.f32.mrf.mxu0
        %v3063 = vadd.f32 0.0, %v3062
        %3064 = vmatmul.f32.gmra.mxu0 %v2884
        %v3065 = vpop.f32.mrf.mxu0
        %v3066 = vadd.f32 0.0, %v3065
        %3067 = vmatmul.f32.gmra.mxu0 %v2887
        %v3068 = vpop.f32.mrf.mxu0
        %v3069 = vadd.f32 0.0, %v3068
        %3070 = vmatmul.f32.gmra.mxu0 %v2890
        %v3071 = vpop.f32.mrf.mxu0
        %v3072 = vadd.f32 0.0, %v3071
        %3073 = vmatmul.f32.gmra.mxu0 %v2893
        %v3074 = vpop.f32.mrf.mxu0
        %v3075 = vadd.f32 0.0, %v3074
        %3076 = vmatmul.f32.gmra.mxu0 %v2896
        %v3077 = vpop.f32.mrf.mxu0
        %v3078 = vadd.f32 0.0, %v3077
        %3079 = vmatmul.f32.gmra.mxu0 %v2899
        %v3080 = vpop.f32.mrf.mxu0
        %v3081 = vadd.f32 0.0, %v3080
        %3082 = vmatmul.f32.gmra.mxu0 %v2902
        %v3083 = vpop.f32.mrf.mxu0
        %v3084 = vadd.f32 0.0, %v3083
        %3085 = vdwg.mxu0
        %v3086 = vld [vmem:[#allocation3] sm:$0xff]
        %v3087 = vld [vmem:[#allocation3 + $0x8] sm:$0xff]
        %v3088 = vld [vmem:[#allocation3 + $0x10] sm:$0xff]
        %v3089 = vld [vmem:[#allocation3 + $0x18] sm:$0xff]
        %v3090 = vld [vmem:[#allocation3 + $0x20] sm:$0xff]
        %v3091 = vld [vmem:[#allocation3 + $0x28] sm:$0xff]
        %v3092 = vld [vmem:[#allocation3 + $0x30] sm:$0xff]
        %v3093 = vld [vmem:[#allocation3 + $0x38] sm:$0xff]
        %v3094 = vld [vmem:[#allocation3 + $0x40] sm:$0xff]
        %v3095 = vld [vmem:[#allocation3 + $0x48] sm:$0xff]
        %v3096 = vld [vmem:[#allocation3 + $0x50] sm:$0xff]
        %v3097 = vld [vmem:[#allocation3 + $0x58] sm:$0xff]
        %v3098 = vld [vmem:[#allocation3 + $0x60] sm:$0xff]
        %v3099 = vld [vmem:[#allocation3 + $0x68] sm:$0xff]
        %v3100 = vld [vmem:[#allocation3 + $0x70] sm:$0xff]
        %v3101 = vld [vmem:[#allocation3 + $0x78] sm:$0xff]
        %v3102 = vld [vmem:[#allocation3 + $0x80] sm:$0xff]
        %v3103 = vld [vmem:[#allocation3 + $0x88] sm:$0xff]
        %v3104 = vld [vmem:[#allocation3 + $0x90] sm:$0xff]
        %v3105 = vld [vmem:[#allocation3 + $0x98] sm:$0xff]
        %v3106 = vld [vmem:[#allocation3 + $0xa0] sm:$0xff]
        %v3107 = vld [vmem:[#allocation3 + $0xa8] sm:$0xff]
        %v3108 = vld [vmem:[#allocation3 + $0xb0] sm:$0xff]
        %v3109 = vld [vmem:[#allocation3 + $0xb8] sm:$0xff]
        %v3110 = vld [vmem:[#allocation3 + $0xc0] sm:$0xff]
        %v3111 = vld [vmem:[#allocation3 + $0xc8] sm:$0xff]
        %v3112 = vld [vmem:[#allocation3 + $0xd0] sm:$0xff]
        %v3113 = vld [vmem:[#allocation3 + $0xd8] sm:$0xff]
        %v3114 = vld [vmem:[#allocation3 + $0xe0] sm:$0xff]
        %v3115 = vld [vmem:[#allocation3 + $0xe8] sm:$0xff]
        %v3116 = vld [vmem:[#allocation3 + $0xf0] sm:$0xff]
        %v3117 = vld [vmem:[#allocation3 + $0xf8] sm:$0xff]
        %v3118 = vld [vmem:[#allocation3 + $0x100] sm:$0xff]
        %v3119 = vld [vmem:[#allocation3 + $0x108] sm:$0xff]
        %v3120 = vld [vmem:[#allocation3 + $0x110] sm:$0xff]
        %v3121 = vld [vmem:[#allocation3 + $0x118] sm:$0xff]
        %v3122 = vld [vmem:[#allocation3 + $0x120] sm:$0xff]
        %v3123 = vld [vmem:[#allocation3 + $0x128] sm:$0xff]
        %v3124 = vld [vmem:[#allocation3 + $0x130] sm:$0xff]
        %v3125 = vld [vmem:[#allocation3 + $0x138] sm:$0xff]
        %v3126 = vld [vmem:[#allocation3 + $0x140] sm:$0xff]
        %v3127 = vld [vmem:[#allocation3 + $0x148] sm:$0xff]
        %v3128 = vld [vmem:[#allocation3 + $0x150] sm:$0xff]
        %v3129 = vld [vmem:[#allocation3 + $0x158] sm:$0xff]
        %v3130 = vld [vmem:[#allocation3 + $0x160] sm:$0xff]
        %v3131 = vld [vmem:[#allocation3 + $0x168] sm:$0xff]
        %v3132 = vld [vmem:[#allocation3 + $0x170] sm:$0xff]
        %v3133 = vld [vmem:[#allocation3 + $0x178] sm:$0xff]
        %v3134 = vld [vmem:[#allocation3 + $0x180] sm:$0xff]
        %v3135 = vld [vmem:[#allocation3 + $0x188] sm:$0xff]
        %v3136 = vld [vmem:[#allocation3 + $0x190] sm:$0xff]
        %v3137 = vld [vmem:[#allocation3 + $0x198] sm:$0xff]
        %v3138 = vld [vmem:[#allocation3 + $0x1a0] sm:$0xff]
        %v3139 = vld [vmem:[#allocation3 + $0x1a8] sm:$0xff]
        %v3140 = vld [vmem:[#allocation3 + $0x1b0] sm:$0xff]
        %v3141 = vadd.f32 %v3086, %v2922
        %v3142 = vadd.f32 %v3087, %v2925
        %v3143 = vadd.f32 %v3088, %v2928
        %v3144 = vadd.f32 %v3089, %v2931
        %v3145 = vadd.f32 %v3090, %v2934
        %v3146 = vadd.f32 %v3091, %v2937
        %v3147 = vadd.f32 %v3092, %v2940
        %v3148 = vadd.f32 %v3093, %v2943
        %v3149 = vadd.f32 %v3094, %v2946
        %v3150 = vadd.f32 %v3095, %v2949
        %v3151 = vadd.f32 %v3096, %v2952
        %v3152 = vadd.f32 %v3097, %v2955
        %v3153 = vadd.f32 %v3098, %v2958
        %v3154 = vadd.f32 %v3099, %v2961
        %v3155 = vadd.f32 %v3100, %v2964
        %v3156 = vadd.f32 %v3101, %v2967
        %v3157 = vadd.f32 %v3102, %v2970
        %v3158 = vadd.f32 %v3103, %v2973
        %v3159 = vadd.f32 %v3104, %v2976
        %v3160 = vadd.f32 %v3105, %v2979
        %v3161 = vadd.f32 %v3106, %v2982
        %v3162 = vadd.f32 %v3107, %v2985
        %v3163 = vadd.f32 %v3108, %v2988
        %v3164 = vadd.f32 %v3109, %v2991
        %v3165 = vadd.f32 %v3110, %v2994
        %v3166 = vadd.f32 %v3111, %v2997
        %v3167 = vadd.f32 %v3112, %v3000
        %v3168 = vadd.f32 %v3113, %v3003
        %v3169 = vadd.f32 %v3114, %v3006
        %v3170 = vadd.f32 %v3115, %v3009
        %v3171 = vadd.f32 %v3116, %v3012
        %v3172 = vadd.f32 %v3117, %v3015
        %v3173 = vadd.f32 %v3118, %v3018
        %v3174 = vadd.f32 %v3119, %v3021
        %v3175 = vadd.f32 %v3120, %v3024
        %v3176 = vadd.f32 %v3121, %v3027
        %v3177 = vadd.f32 %v3122, %v3030
        %v3178 = vadd.f32 %v3123, %v3033
        %v3179 = vadd.f32 %v3124, %v3036
        %v3180 = vadd.f32 %v3125, %v3039
        %v3181 = vadd.f32 %v3126, %v3042
        %v3182 = vadd.f32 %v3127, %v3045
        %v3183 = vadd.f32 %v3128, %v3048
        %v3184 = vadd.f32 %v3129, %v3051
        %v3185 = vadd.f32 %v3130, %v3054
        %v3186 = vadd.f32 %v3131, %v3057
        %v3187 = vadd.f32 %v3132, %v3060
        %v3188 = vadd.f32 %v3133, %v3063
        %v3189 = vadd.f32 %v3134, %v3066
        %v3190 = vadd.f32 %v3135, %v3069
        %v3191 = vadd.f32 %v3136, %v3072
        %v3192 = vadd.f32 %v3137, %v3075
        %v3193 = vadd.f32 %v3138, %v3078
        %v3194 = vadd.f32 %v3139, %v3081
        %v3195 = vadd.f32 %v3140, %v3084
        %3196 = vst.msk [vmem:[#allocation3] sm:$0xff] %vm276, %v3141
        %3197 = vst.msk [vmem:[#allocation3 + $0x8] sm:$0xff] %vm276, %v3142
        %3198 = vst.msk [vmem:[#allocation3 + $0x10] sm:$0xff] %vm276, %v3143
        %3199 = vst.msk [vmem:[#allocation3 + $0x18] sm:$0xff] %vm276, %v3144
        %3200 = vst.msk [vmem:[#allocation3 + $0x20] sm:$0xff] %vm276, %v3145
        %3201 = vst.msk [vmem:[#allocation3 + $0x28] sm:$0xff] %vm276, %v3146
        %3202 = vst.msk [vmem:[#allocation3 + $0x30] sm:$0xff] %vm276, %v3147
        %3203 = vst.msk [vmem:[#allocation3 + $0x38] sm:$0xff] %vm276, %v3148
        %3204 = vst.msk [vmem:[#allocation3 + $0x40] sm:$0xff] %vm276, %v3149
        %3205 = vst.msk [vmem:[#allocation3 + $0x48] sm:$0xff] %vm276, %v3150
        %3206 = vst.msk [vmem:[#allocation3 + $0x50] sm:$0xff] %vm276, %v3151
        %3207 = vst.msk [vmem:[#allocation3 + $0x58] sm:$0xff] %vm276, %v3152
        %3208 = vst.msk [vmem:[#allocation3 + $0x60] sm:$0xff] %vm276, %v3153
        %3209 = vst.msk [vmem:[#allocation3 + $0x68] sm:$0xff] %vm276, %v3154
        %3210 = vst.msk [vmem:[#allocation3 + $0x70] sm:$0xff] %vm276, %v3155
        %3211 = vst.msk [vmem:[#allocation3 + $0x78] sm:$0xff] %vm276, %v3156
        %3212 = vst.msk [vmem:[#allocation3 + $0x80] sm:$0xff] %vm276, %v3157
        %3213 = vst.msk [vmem:[#allocation3 + $0x88] sm:$0xff] %vm276, %v3158
        %3214 = vst.msk [vmem:[#allocation3 + $0x90] sm:$0xff] %vm276, %v3159
        %3215 = vst.msk [vmem:[#allocation3 + $0x98] sm:$0xff] %vm276, %v3160
        %3216 = vst.msk [vmem:[#allocation3 + $0xa0] sm:$0xff] %vm276, %v3161
        %3217 = vst.msk [vmem:[#allocation3 + $0xa8] sm:$0xff] %vm276, %v3162
        %3218 = vst.msk [vmem:[#allocation3 + $0xb0] sm:$0xff] %vm276, %v3163
        %3219 = vst.msk [vmem:[#allocation3 + $0xb8] sm:$0xff] %vm276, %v3164
        %3220 = vst.msk [vmem:[#allocation3 + $0xc0] sm:$0xff] %vm276, %v3165
        %3221 = vst.msk [vmem:[#allocation3 + $0xc8] sm:$0xff] %vm276, %v3166
        %3222 = vst.msk [vmem:[#allocation3 + $0xd0] sm:$0xff] %vm276, %v3167
        %3223 = vst.msk [vmem:[#allocation3 + $0xd8] sm:$0xff] %vm276, %v3168
        %3224 = vst.msk [vmem:[#allocation3 + $0xe0] sm:$0xff] %vm276, %v3169
        %3225 = vst.msk [vmem:[#allocation3 + $0xe8] sm:$0xff] %vm276, %v3170
        %3226 = vst.msk [vmem:[#allocation3 + $0xf0] sm:$0xff] %vm276, %v3171
        %3227 = vst.msk [vmem:[#allocation3 + $0xf8] sm:$0xff] %vm276, %v3172
        %3228 = vst.msk [vmem:[#allocation3 + $0x100] sm:$0xff] %vm276, %v3173
        %3229 = vst.msk [vmem:[#allocation3 + $0x108] sm:$0xff] %vm276, %v3174
        %3230 = vst.msk [vmem:[#allocation3 + $0x110] sm:$0xff] %vm276, %v3175
        %3231 = vst.msk [vmem:[#allocation3 + $0x118] sm:$0xff] %vm276, %v3176
        %3232 = vst.msk [vmem:[#allocation3 + $0x120] sm:$0xff] %vm276, %v3177
        %3233 = vst.msk [vmem:[#allocation3 + $0x128] sm:$0xff] %vm276, %v3178
        %3234 = vst.msk [vmem:[#allocation3 + $0x130] sm:$0xff] %vm276, %v3179
        %3235 = vst.msk [vmem:[#allocation3 + $0x138] sm:$0xff] %vm276, %v3180
        %3236 = vst.msk [vmem:[#allocation3 + $0x140] sm:$0xff] %vm276, %v3181
        %3237 = vst.msk [vmem:[#allocation3 + $0x148] sm:$0xff] %vm276, %v3182
        %3238 = vst.msk [vmem:[#allocation3 + $0x150] sm:$0xff] %vm276, %v3183
        %3239 = vst.msk [vmem:[#allocation3 + $0x158] sm:$0xff] %vm276, %v3184
        %3240 = vst.msk [vmem:[#allocation3 + $0x160] sm:$0xff] %vm276, %v3185
        %3241 = vst.msk [vmem:[#allocation3 + $0x168] sm:$0xff] %vm276, %v3186
        %3242 = vst.msk [vmem:[#allocation3 + $0x170] sm:$0xff] %vm276, %v3187
        %3243 = vst.msk [vmem:[#allocation3 + $0x178] sm:$0xff] %vm276, %v3188
        %3244 = vst.msk [vmem:[#allocation3 + $0x180] sm:$0xff] %vm276, %v3189
        %3245 = vst.msk [vmem:[#allocation3 + $0x188] sm:$0xff] %vm276, %v3190
        %3246 = vst.msk [vmem:[#allocation3 + $0x190] sm:$0xff] %vm276, %v3191
        %3247 = vst.msk [vmem:[#allocation3 + $0x198] sm:$0xff] %vm276, %v3192
        %3248 = vst.msk [vmem:[#allocation3 + $0x1a0] sm:$0xff] %vm276, %v3193
        %3249 = vst.msk [vmem:[#allocation3 + $0x1a8] sm:$0xff] %vm276, %v3194
        %3250 = vst.msk [vmem:[#allocation3 + $0x1b0] sm:$0xff] %vm276, %v3195
        %v3251 = vld [vmem:[#allocation2 + $0x18] sm:$0xff]
        %v3252 = vld [vmem:[#allocation2 + $0x20] sm:$0xff]
        %v3253 = vld [vmem:[#allocation2 + $0x28] sm:$0xff]
        %v3254 = vld [vmem:[#allocation2 + $0x30] sm:$0xff]
        %v3255 = vld [vmem:[#allocation2 + $0x38] sm:$0xff]
        %v3256 = vld [vmem:[#allocation2 + $0x40] sm:$0xff]
        %v3257 = vld [vmem:[#allocation2 + $0x48] sm:$0xff]
        %v3258 = vld [vmem:[#allocation2 + $0x50] sm:$0xff]
        %v3259 = vld [vmem:[#allocation2 + $0x58] sm:$0xff]
        %v3260 = vld [vmem:[#allocation2 + $0x60] sm:$0xff]
        %v3261 = vld [vmem:[#allocation2 + $0x68] sm:$0xff]
        %v3262 = vld [vmem:[#allocation2 + $0x70] sm:$0xff]
        %v3263 = vld [vmem:[#allocation2 + $0x78] sm:$0xff]
        %v3264 = vld [vmem:[#allocation2 + $0x80] sm:$0xff]
        %v3265 = vld [vmem:[#allocation2 + $0x88] sm:$0xff]
        %v3266 = vld [vmem:[#allocation2 + $0x90] sm:$0xff]
        %v3267 = vld [vmem:[#allocation2 + $0x98] sm:$0xff]
        %v3268 = vld [vmem:[#allocation2 + $0xa0] sm:$0xff]
        %v3269 = vld [vmem:[#allocation2 + $0xa8] sm:$0xff]
        %v3270 = vld [vmem:[#allocation2 + $0xb0] sm:$0xff]
        %v3271 = vld [vmem:[#allocation2 + $0xb8] sm:$0xff]
        %v3272 = vld [vmem:[#allocation2 + $0xc0] sm:$0xff]
        %v3273 = vld [vmem:[#allocation2 + $0xc8] sm:$0xff]
        %v3274 = vld [vmem:[#allocation2 + $0xd0] sm:$0xff]
        %v3275 = vld [vmem:[#allocation2 + $0xd8] sm:$0xff]
        %v3276 = vld [vmem:[#allocation2 + $0xe0] sm:$0xff]
        %v3277 = vld [vmem:[#allocation2 + $0xe8] sm:$0xff]
        %v3278 = vld [vmem:[#allocation2 + $0xf0] sm:$0xff]
        %v3279 = vld [vmem:[#allocation2 + $0xf8] sm:$0xff]
        %v3280 = vld [vmem:[#allocation2 + $0x100] sm:$0xff]
        %v3281 = vld [vmem:[#allocation2 + $0x108] sm:$0xff]
        %v3282 = vld [vmem:[#allocation2 + $0x110] sm:$0xff]
        %v3283 = vld [vmem:[#allocation2 + $0x118] sm:$0xff]
        %v3284 = vld [vmem:[#allocation2 + $0x120] sm:$0xff]
        %v3285 = vld [vmem:[#allocation2 + $0x128] sm:$0xff]
        %v3286 = vld [vmem:[#allocation2 + $0x130] sm:$0xff]
        %v3287 = vld [vmem:[#allocation2 + $0x138] sm:$0xff]
        %v3288 = vld [vmem:[#allocation2 + $0x140] sm:$0xff]
        %v3289 = vld [vmem:[#allocation2 + $0x148] sm:$0xff]
        %v3290 = vld [vmem:[#allocation2 + $0x150] sm:$0xff]
        %v3291 = vld [vmem:[#allocation2 + $0x158] sm:$0xff]
        %v3292 = vld [vmem:[#allocation2 + $0x160] sm:$0xff]
        %v3293 = vld [vmem:[#allocation2 + $0x168] sm:$0xff]
        %v3294 = vld [vmem:[#allocation2 + $0x170] sm:$0xff]
        %v3295 = vld [vmem:[#allocation2 + $0x178] sm:$0xff]
        %v3296 = vld [vmem:[#allocation2 + $0x180] sm:$0xff]
        %v3297 = vld [vmem:[#allocation2 + $0x188] sm:$0xff]
        %v3298 = vld [vmem:[#allocation2 + $0x190] sm:$0xff]
        %v3299 = vld [vmem:[#allocation2 + $0x198] sm:$0xff]
        %v3300 = vld [vmem:[#allocation2 + $0x1a0] sm:$0xff]
        %v3301 = vld [vmem:[#allocation2 + $0x1a8] sm:$0xff]
        %v3302 = vld [vmem:[#allocation2 + $0x1b0] sm:$0xff]
        %v3303 = vld [vmem:[#allocation2 + $0x1b8] sm:$0xff]
        %v3304 = vld [vmem:[#allocation2 + $0x1c0] sm:$0xff]
        %v3305 = vld [vmem:[#allocation2 + $0x1c8] sm:$0xff]
        %s3306 = scalar_lea.vmem %s1, 320
        %v3307 = vld [vmem:[%s3306] sm:$0xff]
        %v3308 = vld [vmem:[%s3306 + $0x8] sm:$0xff]
        %v3309 = vld [vmem:[%s3306 + $0x10] sm:$0xff]
        %v3310 = vld [vmem:[%s3306 + $0x18] sm:$0xff]
        %v3311 = vld [vmem:[%s3306 + $0x20] sm:$0xff]
        %v3312 = vld [vmem:[%s3306 + $0x28] sm:$0xff]
        %v3313 = vld [vmem:[%s3306 + $0x30] sm:$0xff]
        %v3314 = vld [vmem:[%s3306 + $0x38] sm:$0xff]
        %v3316 = vsel %vm276, %v3251, 0
        %v3319 = vsel %vm276, %v3252, 0
        %v3322 = vsel %vm276, %v3253, 0
        %v3325 = vsel %vm276, %v3254, 0
        %v3328 = vsel %vm276, %v3255, 0
        %v3331 = vsel %vm276, %v3256, 0
        %v3334 = vsel %vm276, %v3257, 0
        %v3337 = vsel %vm276, %v3258, 0
        %v3340 = vsel %vm276, %v3259, 0
        %v3343 = vsel %vm276, %v3260, 0
        %v3346 = vsel %vm276, %v3261, 0
        %v3349 = vsel %vm276, %v3262, 0
        %v3352 = vsel %vm276, %v3263, 0
        %v3355 = vsel %vm276, %v3264, 0
        %v3358 = vsel %vm276, %v3265, 0
        %v3361 = vsel %vm276, %v3266, 0
        %v3364 = vsel %vm276, %v3267, 0
        %v3367 = vsel %vm276, %v3268, 0
        %v3370 = vsel %vm276, %v3269, 0
        %v3373 = vsel %vm276, %v3270, 0
        %v3376 = vsel %vm276, %v3271, 0
        %v3379 = vsel %vm276, %v3272, 0
        %v3382 = vsel %vm276, %v3273, 0
        %v3385 = vsel %vm276, %v3274, 0
        %v3388 = vsel %vm276, %v3275, 0
        %v3391 = vsel %vm276, %v3276, 0
        %v3394 = vsel %vm276, %v3277, 0
        %v3397 = vsel %vm276, %v3278, 0
        %v3400 = vsel %vm276, %v3279, 0
        %v3403 = vsel %vm276, %v3280, 0
        %v3406 = vsel %vm276, %v3281, 0
        %v3409 = vsel %vm276, %v3282, 0
        %v3412 = vsel %vm276, %v3283, 0
        %v3415 = vsel %vm276, %v3284, 0
        %v3418 = vsel %vm276, %v3285, 0
        %v3421 = vsel %vm276, %v3286, 0
        %v3424 = vsel %vm276, %v3287, 0
        %v3427 = vsel %vm276, %v3288, 0
        %v3430 = vsel %vm276, %v3289, 0
        %v3433 = vsel %vm276, %v3290, 0
        %v3436 = vsel %vm276, %v3291, 0
        %v3439 = vsel %vm276, %v3292, 0
        %v3442 = vsel %vm276, %v3293, 0
        %v3445 = vsel %vm276, %v3294, 0
        %v3448 = vsel %vm276, %v3295, 0
        %v3451 = vsel %vm276, %v3296, 0
        %v3454 = vsel %vm276, %v3297, 0
        %v3457 = vsel %vm276, %v3298, 0
        %v3460 = vsel %vm276, %v3299, 0
        %v3463 = vsel %vm276, %v3300, 0
        %v3466 = vsel %vm276, %v3301, 0
        %v3469 = vsel %vm276, %v3302, 0
        %v3472 = vsel %vm276, %v3303, 0
        %v3475 = vsel %vm276, %v3304, 0
        %v3478 = vsel %vm276, %v3305, 0
        %3480 = vmatpush.msra.mxu0 0.0
        %3481 = vmatpush.msra.mxu0 0.0
        %3482 = vmatpush.msra.mxu0 0.0
        %3483 = vmatpush.msra.mxu0 0.0
        %3484 = vmatpush.msra.mxu0 0.0
        %3485 = vmatpush.msra.mxu0 0.0
        %3486 = vmatpush.msra.mxu0 0.0
        %3487 = vmatpush.msra.mxu0 0.0
        %3488 = vmatpush.msra.mxu0 %v3314
        %3489 = vmatpush.msra.mxu0 %v3313
        %3490 = vmatpush.msra.mxu0 %v3312
        %3491 = vmatpush.msra.mxu0 %v3311
        %3492 = vmatpush.msra.mxu0 %v3310
        %3493 = vmatpush.msra.mxu0 %v3309
        %3494 = vmatpush.msra.mxu0 %v3308
        %3495 = vmatpush.msra.mxu0 %v3307
        %3496 = vmatmul.f32.gmra.mxu0 %v3316
        %v3497 = vpop.f32.mrf.mxu0
        %v3498 = vadd.f32 0.0, %v3497
        %3499 = vmatmul.f32.gmra.mxu0 %v3319
        %v3500 = vpop.f32.mrf.mxu0
        %v3501 = vadd.f32 0.0, %v3500
        %3502 = vmatmul.f32.gmra.mxu0 %v3322
        %v3503 = vpop.f32.mrf.mxu0
        %v3504 = vadd.f32 0.0, %v3503
        %3505 = vmatmul.f32.gmra.mxu0 %v3325
        %v3506 = vpop.f32.mrf.mxu0
        %v3507 = vadd.f32 0.0, %v3506
        %3508 = vmatmul.f32.gmra.mxu0 %v3328
        %v3509 = vpop.f32.mrf.mxu0
        %v3510 = vadd.f32 0.0, %v3509
        %3511 = vmatmul.f32.gmra.mxu0 %v3331
        %v3512 = vpop.f32.mrf.mxu0
        %v3513 = vadd.f32 0.0, %v3512
        %3514 = vmatmul.f32.gmra.mxu0 %v3334
        %v3515 = vpop.f32.mrf.mxu0
        %v3516 = vadd.f32 0.0, %v3515
        %3517 = vmatmul.f32.gmra.mxu0 %v3337
        %v3518 = vpop.f32.mrf.mxu0
        %v3519 = vadd.f32 0.0, %v3518
        %3520 = vmatmul.f32.gmra.mxu0 %v3340
        %v3521 = vpop.f32.mrf.mxu0
        %v3522 = vadd.f32 0.0, %v3521
        %3523 = vmatmul.f32.gmra.mxu0 %v3343
        %v3524 = vpop.f32.mrf.mxu0
        %v3525 = vadd.f32 0.0, %v3524
        %3526 = vmatmul.f32.gmra.mxu0 %v3346
        %v3527 = vpop.f32.mrf.mxu0
        %v3528 = vadd.f32 0.0, %v3527
        %3529 = vmatmul.f32.gmra.mxu0 %v3349
        %v3530 = vpop.f32.mrf.mxu0
        %v3531 = vadd.f32 0.0, %v3530
        %3532 = vmatmul.f32.gmra.mxu0 %v3352
        %v3533 = vpop.f32.mrf.mxu0
        %v3534 = vadd.f32 0.0, %v3533
        %3535 = vmatmul.f32.gmra.mxu0 %v3355
        %v3536 = vpop.f32.mrf.mxu0
        %v3537 = vadd.f32 0.0, %v3536
        %3538 = vmatmul.f32.gmra.mxu0 %v3358
        %v3539 = vpop.f32.mrf.mxu0
        %v3540 = vadd.f32 0.0, %v3539
        %3541 = vmatmul.f32.gmra.mxu0 %v3361
        %v3542 = vpop.f32.mrf.mxu0
        %v3543 = vadd.f32 0.0, %v3542
        %3544 = vmatmul.f32.gmra.mxu0 %v3364
        %v3545 = vpop.f32.mrf.mxu0
        %v3546 = vadd.f32 0.0, %v3545
        %3547 = vmatmul.f32.gmra.mxu0 %v3367
        %v3548 = vpop.f32.mrf.mxu0
        %v3549 = vadd.f32 0.0, %v3548
        %3550 = vmatmul.f32.gmra.mxu0 %v3370
        %v3551 = vpop.f32.mrf.mxu0
        %v3552 = vadd.f32 0.0, %v3551
        %3553 = vmatmul.f32.gmra.mxu0 %v3373
        %v3554 = vpop.f32.mrf.mxu0
        %v3555 = vadd.f32 0.0, %v3554
        %3556 = vmatmul.f32.gmra.mxu0 %v3376
        %v3557 = vpop.f32.mrf.mxu0
        %v3558 = vadd.f32 0.0, %v3557
        %3559 = vmatmul.f32.gmra.mxu0 %v3379
        %v3560 = vpop.f32.mrf.mxu0
        %v3561 = vadd.f32 0.0, %v3560
        %3562 = vmatmul.f32.gmra.mxu0 %v3382
        %v3563 = vpop.f32.mrf.mxu0
        %v3564 = vadd.f32 0.0, %v3563
        %3565 = vmatmul.f32.gmra.mxu0 %v3385
        %v3566 = vpop.f32.mrf.mxu0
        %v3567 = vadd.f32 0.0, %v3566
        %3568 = vmatmul.f32.gmra.mxu0 %v3388
        %v3569 = vpop.f32.mrf.mxu0
        %v3570 = vadd.f32 0.0, %v3569
        %3571 = vmatmul.f32.gmra.mxu0 %v3391
        %v3572 = vpop.f32.mrf.mxu0
        %v3573 = vadd.f32 0.0, %v3572
        %3574 = vmatmul.f32.gmra.mxu0 %v3394
        %v3575 = vpop.f32.mrf.mxu0
        %v3576 = vadd.f32 0.0, %v3575
        %3577 = vmatmul.f32.gmra.mxu0 %v3397
        %v3578 = vpop.f32.mrf.mxu0
        %v3579 = vadd.f32 0.0, %v3578
        %3580 = vmatmul.f32.gmra.mxu0 %v3400
        %v3581 = vpop.f32.mrf.mxu0
        %v3582 = vadd.f32 0.0, %v3581
        %3583 = vmatmul.f32.gmra.mxu0 %v3403
        %v3584 = vpop.f32.mrf.mxu0
        %v3585 = vadd.f32 0.0, %v3584
        %3586 = vmatmul.f32.gmra.mxu0 %v3406
        %v3587 = vpop.f32.mrf.mxu0
        %v3588 = vadd.f32 0.0, %v3587
        %3589 = vmatmul.f32.gmra.mxu0 %v3409
        %v3590 = vpop.f32.mrf.mxu0
        %v3591 = vadd.f32 0.0, %v3590
        %3592 = vmatmul.f32.gmra.mxu0 %v3412
        %v3593 = vpop.f32.mrf.mxu0
        %v3594 = vadd.f32 0.0, %v3593
        %3595 = vmatmul.f32.gmra.mxu0 %v3415
        %v3596 = vpop.f32.mrf.mxu0
        %v3597 = vadd.f32 0.0, %v3596
        %3598 = vmatmul.f32.gmra.mxu0 %v3418
        %v3599 = vpop.f32.mrf.mxu0
        %v3600 = vadd.f32 0.0, %v3599
        %3601 = vmatmul.f32.gmra.mxu0 %v3421
        %v3602 = vpop.f32.mrf.mxu0
        %v3603 = vadd.f32 0.0, %v3602
        %3604 = vmatmul.f32.gmra.mxu0 %v3424
        %v3605 = vpop.f32.mrf.mxu0
        %v3606 = vadd.f32 0.0, %v3605
        %3607 = vmatmul.f32.gmra.mxu0 %v3427
        %v3608 = vpop.f32.mrf.mxu0
        %v3609 = vadd.f32 0.0, %v3608
        %3610 = vmatmul.f32.gmra.mxu0 %v3430
        %v3611 = vpop.f32.mrf.mxu0
        %v3612 = vadd.f32 0.0, %v3611
        %3613 = vmatmul.f32.gmra.mxu0 %v3433
        %v3614 = vpop.f32.mrf.mxu0
        %v3615 = vadd.f32 0.0, %v3614
        %3616 = vmatmul.f32.gmra.mxu0 %v3436
        %v3617 = vpop.f32.mrf.mxu0
        %v3618 = vadd.f32 0.0, %v3617
        %3619 = vmatmul.f32.gmra.mxu0 %v3439
        %v3620 = vpop.f32.mrf.mxu0
        %v3621 = vadd.f32 0.0, %v3620
        %3622 = vmatmul.f32.gmra.mxu0 %v3442
        %v3623 = vpop.f32.mrf.mxu0
        %v3624 = vadd.f32 0.0, %v3623
        %3625 = vmatmul.f32.gmra.mxu0 %v3445
        %v3626 = vpop.f32.mrf.mxu0
        %v3627 = vadd.f32 0.0, %v3626
        %3628 = vmatmul.f32.gmra.mxu0 %v3448
        %v3629 = vpop.f32.mrf.mxu0
        %v3630 = vadd.f32 0.0, %v3629
        %3631 = vmatmul.f32.gmra.mxu0 %v3451
        %v3632 = vpop.f32.mrf.mxu0
        %v3633 = vadd.f32 0.0, %v3632
        %3634 = vmatmul.f32.gmra.mxu0 %v3454
        %v3635 = vpop.f32.mrf.mxu0
        %v3636 = vadd.f32 0.0, %v3635
        %3637 = vmatmul.f32.gmra.mxu0 %v3457
        %v3638 = vpop.f32.mrf.mxu0
        %v3639 = vadd.f32 0.0, %v3638
        %3640 = vmatmul.f32.gmra.mxu0 %v3460
        %v3641 = vpop.f32.mrf.mxu0
        %v3642 = vadd.f32 0.0, %v3641
        %3643 = vmatmul.f32.gmra.mxu0 %v3463
        %v3644 = vpop.f32.mrf.mxu0
        %v3645 = vadd.f32 0.0, %v3644
        %3646 = vmatmul.f32.gmra.mxu0 %v3466
        %v3647 = vpop.f32.mrf.mxu0
        %v3648 = vadd.f32 0.0, %v3647
        %3649 = vmatmul.f32.gmra.mxu0 %v3469
        %v3650 = vpop.f32.mrf.mxu0
        %v3651 = vadd.f32 0.0, %v3650
        %3652 = vmatmul.f32.gmra.mxu0 %v3472
        %v3653 = vpop.f32.mrf.mxu0
        %v3654 = vadd.f32 0.0, %v3653
        %3655 = vmatmul.f32.gmra.mxu0 %v3475
        %v3656 = vpop.f32.mrf.mxu0
        %v3657 = vadd.f32 0.0, %v3656
        %3658 = vmatmul.f32.gmra.mxu0 %v3478
        %v3659 = vpop.f32.mrf.mxu0
        %v3660 = vadd.f32 0.0, %v3659
        %3661 = vdwg.mxu0
        %v3662 = vld [vmem:[#allocation3] sm:$0xff]
        %v3663 = vld [vmem:[#allocation3 + $0x8] sm:$0xff]
        %v3664 = vld [vmem:[#allocation3 + $0x10] sm:$0xff]
        %v3665 = vld [vmem:[#allocation3 + $0x18] sm:$0xff]
        %v3666 = vld [vmem:[#allocation3 + $0x20] sm:$0xff]
        %v3667 = vld [vmem:[#allocation3 + $0x28] sm:$0xff]
        %v3668 = vld [vmem:[#allocation3 + $0x30] sm:$0xff]
        %v3669 = vld [vmem:[#allocation3 + $0x38] sm:$0xff]
        %v3670 = vld [vmem:[#allocation3 + $0x40] sm:$0xff]
        %v3671 = vld [vmem:[#allocation3 + $0x48] sm:$0xff]
        %v3672 = vld [vmem:[#allocation3 + $0x50] sm:$0xff]
        %v3673 = vld [vmem:[#allocation3 + $0x58] sm:$0xff]
        %v3674 = vld [vmem:[#allocation3 + $0x60] sm:$0xff]
        %v3675 = vld [vmem:[#allocation3 + $0x68] sm:$0xff]
        %v3676 = vld [vmem:[#allocation3 + $0x70] sm:$0xff]
        %v3677 = vld [vmem:[#allocation3 + $0x78] sm:$0xff]
        %v3678 = vld [vmem:[#allocation3 + $0x80] sm:$0xff]
        %v3679 = vld [vmem:[#allocation3 + $0x88] sm:$0xff]
        %v3680 = vld [vmem:[#allocation3 + $0x90] sm:$0xff]
        %v3681 = vld [vmem:[#allocation3 + $0x98] sm:$0xff]
        %v3682 = vld [vmem:[#allocation3 + $0xa0] sm:$0xff]
        %v3683 = vld [vmem:[#allocation3 + $0xa8] sm:$0xff]
        %v3684 = vld [vmem:[#allocation3 + $0xb0] sm:$0xff]
        %v3685 = vld [vmem:[#allocation3 + $0xb8] sm:$0xff]
        %v3686 = vld [vmem:[#allocation3 + $0xc0] sm:$0xff]
        %v3687 = vld [vmem:[#allocation3 + $0xc8] sm:$0xff]
        %v3688 = vld [vmem:[#allocation3 + $0xd0] sm:$0xff]
        %v3689 = vld [vmem:[#allocation3 + $0xd8] sm:$0xff]
        %v3690 = vld [vmem:[#allocation3 + $0xe0] sm:$0xff]
        %v3691 = vld [vmem:[#allocation3 + $0xe8] sm:$0xff]
        %v3692 = vld [vmem:[#allocation3 + $0xf0] sm:$0xff]
        %v3693 = vld [vmem:[#allocation3 + $0xf8] sm:$0xff]
        %v3694 = vld [vmem:[#allocation3 + $0x100] sm:$0xff]
        %v3695 = vld [vmem:[#allocation3 + $0x108] sm:$0xff]
        %v3696 = vld [vmem:[#allocation3 + $0x110] sm:$0xff]
        %v3697 = vld [vmem:[#allocation3 + $0x118] sm:$0xff]
        %v3698 = vld [vmem:[#allocation3 + $0x120] sm:$0xff]
        %v3699 = vld [vmem:[#allocation3 + $0x128] sm:$0xff]
        %v3700 = vld [vmem:[#allocation3 + $0x130] sm:$0xff]
        %v3701 = vld [vmem:[#allocation3 + $0x138] sm:$0xff]
        %v3702 = vld [vmem:[#allocation3 + $0x140] sm:$0xff]
        %v3703 = vld [vmem:[#allocation3 + $0x148] sm:$0xff]
        %v3704 = vld [vmem:[#allocation3 + $0x150] sm:$0xff]
        %v3705 = vld [vmem:[#allocation3 + $0x158] sm:$0xff]
        %v3706 = vld [vmem:[#allocation3 + $0x160] sm:$0xff]
        %v3707 = vld [vmem:[#allocation3 + $0x168] sm:$0xff]
        %v3708 = vld [vmem:[#allocation3 + $0x170] sm:$0xff]
        %v3709 = vld [vmem:[#allocation3 + $0x178] sm:$0xff]
        %v3710 = vld [vmem:[#allocation3 + $0x180] sm:$0xff]
        %v3711 = vld [vmem:[#allocation3 + $0x188] sm:$0xff]
        %v3712 = vld [vmem:[#allocation3 + $0x190] sm:$0xff]
        %v3713 = vld [vmem:[#allocation3 + $0x198] sm:$0xff]
        %v3714 = vld [vmem:[#allocation3 + $0x1a0] sm:$0xff]
        %v3715 = vld [vmem:[#allocation3 + $0x1a8] sm:$0xff]
        %v3716 = vld [vmem:[#allocation3 + $0x1b0] sm:$0xff]
        %v3717 = vadd.f32 %v3662, %v3498
        %v3718 = vadd.f32 %v3663, %v3501
        %v3719 = vadd.f32 %v3664, %v3504
        %v3720 = vadd.f32 %v3665, %v3507
        %v3721 = vadd.f32 %v3666, %v3510
        %v3722 = vadd.f32 %v3667, %v3513
        %v3723 = vadd.f32 %v3668, %v3516
        %v3724 = vadd.f32 %v3669, %v3519
        %v3725 = vadd.f32 %v3670, %v3522
        %v3726 = vadd.f32 %v3671, %v3525
        %v3727 = vadd.f32 %v3672, %v3528
        %v3728 = vadd.f32 %v3673, %v3531
        %v3729 = vadd.f32 %v3674, %v3534
        %v3730 = vadd.f32 %v3675, %v3537
        %v3731 = vadd.f32 %v3676, %v3540
        %v3732 = vadd.f32 %v3677, %v3543
        %v3733 = vadd.f32 %v3678, %v3546
        %v3734 = vadd.f32 %v3679, %v3549
        %v3735 = vadd.f32 %v3680, %v3552
        %v3736 = vadd.f32 %v3681, %v3555
        %v3737 = vadd.f32 %v3682, %v3558
        %v3738 = vadd.f32 %v3683, %v3561
        %v3739 = vadd.f32 %v3684, %v3564
        %v3740 = vadd.f32 %v3685, %v3567
        %v3741 = vadd.f32 %v3686, %v3570
        %v3742 = vadd.f32 %v3687, %v3573
        %v3743 = vadd.f32 %v3688, %v3576
        %v3744 = vadd.f32 %v3689, %v3579
        %v3745 = vadd.f32 %v3690, %v3582
        %v3746 = vadd.f32 %v3691, %v3585
        %v3747 = vadd.f32 %v3692, %v3588
        %v3748 = vadd.f32 %v3693, %v3591
        %v3749 = vadd.f32 %v3694, %v3594
        %v3750 = vadd.f32 %v3695, %v3597
        %v3751 = vadd.f32 %v3696, %v3600
        %v3752 = vadd.f32 %v3697, %v3603
        %v3753 = vadd.f32 %v3698, %v3606
        %v3754 = vadd.f32 %v3699, %v3609
        %v3755 = vadd.f32 %v3700, %v3612
        %v3756 = vadd.f32 %v3701, %v3615
        %v3757 = vadd.f32 %v3702, %v3618
        %v3758 = vadd.f32 %v3703, %v3621
        %v3759 = vadd.f32 %v3704, %v3624
        %v3760 = vadd.f32 %v3705, %v3627
        %v3761 = vadd.f32 %v3706, %v3630
        %v3762 = vadd.f32 %v3707, %v3633
        %v3763 = vadd.f32 %v3708, %v3636
        %v3764 = vadd.f32 %v3709, %v3639
        %v3765 = vadd.f32 %v3710, %v3642
        %v3766 = vadd.f32 %v3711, %v3645
        %v3767 = vadd.f32 %v3712, %v3648
        %v3768 = vadd.f32 %v3713, %v3651
        %v3769 = vadd.f32 %v3714, %v3654
        %v3770 = vadd.f32 %v3715, %v3657
        %v3771 = vadd.f32 %v3716, %v3660
        %3772 = vst.msk [vmem:[#allocation3] sm:$0xff] %vm276, %v3717
        %3773 = vst.msk [vmem:[#allocation3 + $0x8] sm:$0xff] %vm276, %v3718
        %3774 = vst.msk [vmem:[#allocation3 + $0x10] sm:$0xff] %vm276, %v3719
        %3775 = vst.msk [vmem:[#allocation3 + $0x18] sm:$0xff] %vm276, %v3720
        %3776 = vst.msk [vmem:[#allocation3 + $0x20] sm:$0xff] %vm276, %v3721
        %3777 = vst.msk [vmem:[#allocation3 + $0x28] sm:$0xff] %vm276, %v3722
        %3778 = vst.msk [vmem:[#allocation3 + $0x30] sm:$0xff] %vm276, %v3723
        %3779 = vst.msk [vmem:[#allocation3 + $0x38] sm:$0xff] %vm276, %v3724
        %3780 = vst.msk [vmem:[#allocation3 + $0x40] sm:$0xff] %vm276, %v3725
        %3781 = vst.msk [vmem:[#allocation3 + $0x48] sm:$0xff] %vm276, %v3726
        %3782 = vst.msk [vmem:[#allocation3 + $0x50] sm:$0xff] %vm276, %v3727
        %3783 = vst.msk [vmem:[#allocation3 + $0x58] sm:$0xff] %vm276, %v3728
        %3784 = vst.msk [vmem:[#allocation3 + $0x60] sm:$0xff] %vm276, %v3729
        %3785 = vst.msk [vmem:[#allocation3 + $0x68] sm:$0xff] %vm276, %v3730
        %3786 = vst.msk [vmem:[#allocation3 + $0x70] sm:$0xff] %vm276, %v3731
        %3787 = vst.msk [vmem:[#allocation3 + $0x78] sm:$0xff] %vm276, %v3732
        %3788 = vst.msk [vmem:[#allocation3 + $0x80] sm:$0xff] %vm276, %v3733
        %3789 = vst.msk [vmem:[#allocation3 + $0x88] sm:$0xff] %vm276, %v3734
        %3790 = vst.msk [vmem:[#allocation3 + $0x90] sm:$0xff] %vm276, %v3735
        %3791 = vst.msk [vmem:[#allocation3 + $0x98] sm:$0xff] %vm276, %v3736
        %3792 = vst.msk [vmem:[#allocation3 + $0xa0] sm:$0xff] %vm276, %v3737
        %3793 = vst.msk [vmem:[#allocation3 + $0xa8] sm:$0xff] %vm276, %v3738
        %3794 = vst.msk [vmem:[#allocation3 + $0xb0] sm:$0xff] %vm276, %v3739
        %3795 = vst.msk [vmem:[#allocation3 + $0xb8] sm:$0xff] %vm276, %v3740
        %3796 = vst.msk [vmem:[#allocation3 + $0xc0] sm:$0xff] %vm276, %v3741
        %3797 = vst.msk [vmem:[#allocation3 + $0xc8] sm:$0xff] %vm276, %v3742
        %3798 = vst.msk [vmem:[#allocation3 + $0xd0] sm:$0xff] %vm276, %v3743
        %3799 = vst.msk [vmem:[#allocation3 + $0xd8] sm:$0xff] %vm276, %v3744
        %3800 = vst.msk [vmem:[#allocation3 + $0xe0] sm:$0xff] %vm276, %v3745
        %3801 = vst.msk [vmem:[#allocation3 + $0xe8] sm:$0xff] %vm276, %v3746
        %3802 = vst.msk [vmem:[#allocation3 + $0xf0] sm:$0xff] %vm276, %v3747
        %3803 = vst.msk [vmem:[#allocation3 + $0xf8] sm:$0xff] %vm276, %v3748
        %3804 = vst.msk [vmem:[#allocation3 + $0x100] sm:$0xff] %vm276, %v3749
        %3805 = vst.msk [vmem:[#allocation3 + $0x108] sm:$0xff] %vm276, %v3750
        %3806 = vst.msk [vmem:[#allocation3 + $0x110] sm:$0xff] %vm276, %v3751
        %3807 = vst.msk [vmem:[#allocation3 + $0x118] sm:$0xff] %vm276, %v3752
        %3808 = vst.msk [vmem:[#allocation3 + $0x120] sm:$0xff] %vm276, %v3753
        %3809 = vst.msk [vmem:[#allocation3 + $0x128] sm:$0xff] %vm276, %v3754
        %3810 = vst.msk [vmem:[#allocation3 + $0x130] sm:$0xff] %vm276, %v3755
        %3811 = vst.msk [vmem:[#allocation3 + $0x138] sm:$0xff] %vm276, %v3756
        %3812 = vst.msk [vmem:[#allocation3 + $0x140] sm:$0xff] %vm276, %v3757
        %3813 = vst.msk [vmem:[#allocation3 + $0x148] sm:$0xff] %vm276, %v3758
        %3814 = vst.msk [vmem:[#allocation3 + $0x150] sm:$0xff] %vm276, %v3759
        %3815 = vst.msk [vmem:[#allocation3 + $0x158] sm:$0xff] %vm276, %v3760
        %3816 = vst.msk [vmem:[#allocation3 + $0x160] sm:$0xff] %vm276, %v3761
        %3817 = vst.msk [vmem:[#allocation3 + $0x168] sm:$0xff] %vm276, %v3762
        %3818 = vst.msk [vmem:[#allocation3 + $0x170] sm:$0xff] %vm276, %v3763
        %3819 = vst.msk [vmem:[#allocation3 + $0x178] sm:$0xff] %vm276, %v3764
        %3820 = vst.msk [vmem:[#allocation3 + $0x180] sm:$0xff] %vm276, %v3765
        %3821 = vst.msk [vmem:[#allocation3 + $0x188] sm:$0xff] %vm276, %v3766
        %3822 = vst.msk [vmem:[#allocation3 + $0x190] sm:$0xff] %vm276, %v3767
        %3823 = vst.msk [vmem:[#allocation3 + $0x198] sm:$0xff] %vm276, %v3768
        %3824 = vst.msk [vmem:[#allocation3 + $0x1a0] sm:$0xff] %vm276, %v3769
        %3825 = vst.msk [vmem:[#allocation3 + $0x1a8] sm:$0xff] %vm276, %v3770
        %3826 = vst.msk [vmem:[#allocation3 + $0x1b0] sm:$0xff] %vm276, %v3771
        %v3827 = vld [vmem:[#allocation2 + $0x2c] sm:$0xff]
        %v3828 = vld [vmem:[#allocation2 + $0x34] sm:$0xff]
        %v3829 = vld [vmem:[#allocation2 + $0x3c] sm:$0xff]
        %v3830 = vld [vmem:[#allocation2 + $0x44] sm:$0xff]
        %v3831 = vld [vmem:[#allocation2 + $0x4c] sm:$0xff]
        %v3832 = vld [vmem:[#allocation2 + $0x54] sm:$0xff]
        %v3833 = vld [vmem:[#allocation2 + $0x5c] sm:$0xff]
        %v3834 = vld [vmem:[#allocation2 + $0x64] sm:$0xff]
        %v3835 = vld [vmem:[#allocation2 + $0x6c] sm:$0xff]
        %v3836 = vld [vmem:[#allocation2 + $0x74] sm:$0xff]
        %v3837 = vld [vmem:[#allocation2 + $0x7c] sm:$0xff]
        %v3838 = vld [vmem:[#allocation2 + $0x84] sm:$0xff]
        %v3839 = vld [vmem:[#allocation2 + $0x8c] sm:$0xff]
        %v3840 = vld [vmem:[#allocation2 + $0x94] sm:$0xff]
        %v3841 = vld [vmem:[#allocation2 + $0x9c] sm:$0xff]
        %v3842 = vld [vmem:[#allocation2 + $0xa4] sm:$0xff]
        %v3843 = vld [vmem:[#allocation2 + $0xac] sm:$0xff]
        %v3844 = vld [vmem:[#allocation2 + $0xb4] sm:$0xff]
        %v3845 = vld [vmem:[#allocation2 + $0xbc] sm:$0xff]
        %v3846 = vld [vmem:[#allocation2 + $0xc4] sm:$0xff]
        %v3847 = vld [vmem:[#allocation2 + $0xcc] sm:$0xff]
        %v3848 = vld [vmem:[#allocation2 + $0xd4] sm:$0xff]
        %v3849 = vld [vmem:[#allocation2 + $0xdc] sm:$0xff]
        %v3850 = vld [vmem:[#allocation2 + $0xe4] sm:$0xff]
        %v3851 = vld [vmem:[#allocation2 + $0xec] sm:$0xff]
        %v3852 = vld [vmem:[#allocation2 + $0xf4] sm:$0xff]
        %v3853 = vld [vmem:[#allocation2 + $0xfc] sm:$0xff]
        %v3854 = vld [vmem:[#allocation2 + $0x104] sm:$0xff]
        %v3855 = vld [vmem:[#allocation2 + $0x10c] sm:$0xff]
        %v3856 = vld [vmem:[#allocation2 + $0x114] sm:$0xff]
        %v3857 = vld [vmem:[#allocation2 + $0x11c] sm:$0xff]
        %v3858 = vld [vmem:[#allocation2 + $0x124] sm:$0xff]
        %v3859 = vld [vmem:[#allocation2 + $0x12c] sm:$0xff]
        %v3860 = vld [vmem:[#allocation2 + $0x134] sm:$0xff]
        %v3861 = vld [vmem:[#allocation2 + $0x13c] sm:$0xff]
        %v3862 = vld [vmem:[#allocation2 + $0x144] sm:$0xff]
        %v3863 = vld [vmem:[#allocation2 + $0x14c] sm:$0xff]
        %v3864 = vld [vmem:[#allocation2 + $0x154] sm:$0xff]
        %v3865 = vld [vmem:[#allocation2 + $0x15c] sm:$0xff]
        %v3866 = vld [vmem:[#allocation2 + $0x164] sm:$0xff]
        %v3867 = vld [vmem:[#allocation2 + $0x16c] sm:$0xff]
        %v3868 = vld [vmem:[#allocation2 + $0x174] sm:$0xff]
        %v3869 = vld [vmem:[#allocation2 + $0x17c] sm:$0xff]
        %v3870 = vld [vmem:[#allocation2 + $0x184] sm:$0xff]
        %v3871 = vld [vmem:[#allocation2 + $0x18c] sm:$0xff]
        %v3872 = vld [vmem:[#allocation2 + $0x194] sm:$0xff]
        %v3873 = vld [vmem:[#allocation2 + $0x19c] sm:$0xff]
        %v3874 = vld [vmem:[#allocation2 + $0x1a4] sm:$0xff]
        %v3875 = vld [vmem:[#allocation2 + $0x1ac] sm:$0xff]
        %v3876 = vld [vmem:[#allocation2 + $0x1b4] sm:$0xff]
        %v3877 = vld [vmem:[#allocation2 + $0x1bc] sm:$0xff]
        %v3878 = vld [vmem:[#allocation2 + $0x1c4] sm:$0xff]
        %v3879 = vld [vmem:[#allocation2 + $0x1cc] sm:$0xff]
        %v3880 = vld [vmem:[#allocation2 + $0x1d4] sm:$0xff]
        %v3881 = vld [vmem:[#allocation2 + $0x1dc] sm:$0xff]
        %s3882 = scalar_lea.vmem %s1, 384
        %v3883 = vld [vmem:[%s3882] sm:$0xff]
        %v3884 = vld [vmem:[%s3882 + $0x8] sm:$0xff]
        %v3885 = vld [vmem:[%s3882 + $0x10] sm:$0xff]
        %v3886 = vld [vmem:[%s3882 + $0x18] sm:$0xff]
        %v3887 = vld [vmem:[%s3882 + $0x20] sm:$0xff]
        %v3888 = vld [vmem:[%s3882 + $0x28] sm:$0xff]
        %v3889 = vld [vmem:[%s3882 + $0x30] sm:$0xff]
        %v3890 = vld [vmem:[%s3882 + $0x38] sm:$0xff]
        %v3892 = vsel %vm276, %v3827, 0
        %v3895 = vsel %vm276, %v3828, 0
        %v3898 = vsel %vm276, %v3829, 0
        %v3901 = vsel %vm276, %v3830, 0
        %v3904 = vsel %vm276, %v3831, 0
        %v3907 = vsel %vm276, %v3832, 0
        %v3910 = vsel %vm276, %v3833, 0
        %v3913 = vsel %vm276, %v3834, 0
        %v3916 = vsel %vm276, %v3835, 0
        %v3919 = vsel %vm276, %v3836, 0
        %v3922 = vsel %vm276, %v3837, 0
        %v3925 = vsel %vm276, %v3838, 0
        %v3928 = vsel %vm276, %v3839, 0
        %v3931 = vsel %vm276, %v3840, 0
        %v3934 = vsel %vm276, %v3841, 0
        %v3937 = vsel %vm276, %v3842, 0
        %v3940 = vsel %vm276, %v3843, 0
        %v3943 = vsel %vm276, %v3844, 0
        %v3946 = vsel %vm276, %v3845, 0
        %v3949 = vsel %vm276, %v3846, 0
        %v3952 = vsel %vm276, %v3847, 0
        %v3955 = vsel %vm276, %v3848, 0
        %v3958 = vsel %vm276, %v3849, 0
        %v3961 = vsel %vm276, %v3850, 0
        %v3964 = vsel %vm276, %v3851, 0
        %v3967 = vsel %vm276, %v3852, 0
        %v3970 = vsel %vm276, %v3853, 0
        %v3973 = vsel %vm276, %v3854, 0
        %v3976 = vsel %vm276, %v3855, 0
        %v3979 = vsel %vm276, %v3856, 0
        %v3982 = vsel %vm276, %v3857, 0
        %v3985 = vsel %vm276, %v3858, 0
        %v3988 = vsel %vm276, %v3859, 0
        %v3991 = vsel %vm276, %v3860, 0
        %v3994 = vsel %vm276, %v3861, 0
        %v3997 = vsel %vm276, %v3862, 0
        %v4000 = vsel %vm276, %v3863, 0
        %v4003 = vsel %vm276, %v3864, 0
        %v4006 = vsel %vm276, %v3865, 0
        %v4009 = vsel %vm276, %v3866, 0
        %v4012 = vsel %vm276, %v3867, 0
        %v4015 = vsel %vm276, %v3868, 0
        %v4018 = vsel %vm276, %v3869, 0
        %v4021 = vsel %vm276, %v3870, 0
        %v4024 = vsel %vm276, %v3871, 0
        %v4027 = vsel %vm276, %v3872, 0
        %v4030 = vsel %vm276, %v3873, 0
        %v4033 = vsel %vm276, %v3874, 0
        %v4036 = vsel %vm276, %v3875, 0
        %v4039 = vsel %vm276, %v3876, 0
        %v4042 = vsel %vm276, %v3877, 0
        %v4045 = vsel %vm276, %v3878, 0
        %v4048 = vsel %vm276, %v3879, 0
        %v4051 = vsel %vm276, %v3880, 0
        %v4054 = vsel %vm276, %v3881, 0
        %4056 = vmatpush.msra.mxu0 0.0
        %4057 = vmatpush.msra.mxu0 0.0
        %4058 = vmatpush.msra.mxu0 0.0
        %4059 = vmatpush.msra.mxu0 0.0
        %4060 = vmatpush.msra.mxu0 0.0
        %4061 = vmatpush.msra.mxu0 0.0
        %4062 = vmatpush.msra.mxu0 0.0
        %4063 = vmatpush.msra.mxu0 0.0
        %4064 = vmatpush.msra.mxu0 %v3890
        %4065 = vmatpush.msra.mxu0 %v3889
        %4066 = vmatpush.msra.mxu0 %v3888
        %4067 = vmatpush.msra.mxu0 %v3887
        %4068 = vmatpush.msra.mxu0 %v3886
        %4069 = vmatpush.msra.mxu0 %v3885
        %4070 = vmatpush.msra.mxu0 %v3884
        %4071 = vmatpush.msra.mxu0 %v3883
        %4072 = vmatmul.f32.gmra.mxu0 %v3892
        %v4073 = vpop.f32.mrf.mxu0
        %v4074 = vadd.f32 0.0, %v4073
        %4075 = vmatmul.f32.gmra.mxu0 %v3895
        %v4076 = vpop.f32.mrf.mxu0
        %v4077 = vadd.f32 0.0, %v4076
        %4078 = vmatmul.f32.gmra.mxu0 %v3898
        %v4079 = vpop.f32.mrf.mxu0
        %v4080 = vadd.f32 0.0, %v4079
        %4081 = vmatmul.f32.gmra.mxu0 %v3901
        %v4082 = vpop.f32.mrf.mxu0
        %v4083 = vadd.f32 0.0, %v4082
        %4084 = vmatmul.f32.gmra.mxu0 %v3904
        %v4085 = vpop.f32.mrf.mxu0
        %v4086 = vadd.f32 0.0, %v4085
        %4087 = vmatmul.f32.gmra.mxu0 %v3907
        %v4088 = vpop.f32.mrf.mxu0
        %v4089 = vadd.f32 0.0, %v4088
        %4090 = vmatmul.f32.gmra.mxu0 %v3910
        %v4091 = vpop.f32.mrf.mxu0
        %v4092 = vadd.f32 0.0, %v4091
        %4093 = vmatmul.f32.gmra.mxu0 %v3913
        %v4094 = vpop.f32.mrf.mxu0
        %v4095 = vadd.f32 0.0, %v4094
        %4096 = vmatmul.f32.gmra.mxu0 %v3916
        %v4097 = vpop.f32.mrf.mxu0
        %v4098 = vadd.f32 0.0, %v4097
        %4099 = vmatmul.f32.gmra.mxu0 %v3919
        %v4100 = vpop.f32.mrf.mxu0
        %v4101 = vadd.f32 0.0, %v4100
        %4102 = vmatmul.f32.gmra.mxu0 %v3922
        %v4103 = vpop.f32.mrf.mxu0
        %v4104 = vadd.f32 0.0, %v4103
        %4105 = vmatmul.f32.gmra.mxu0 %v3925
        %v4106 = vpop.f32.mrf.mxu0
        %v4107 = vadd.f32 0.0, %v4106
        %4108 = vmatmul.f32.gmra.mxu0 %v3928
        %v4109 = vpop.f32.mrf.mxu0
        %v4110 = vadd.f32 0.0, %v4109
        %4111 = vmatmul.f32.gmra.mxu0 %v3931
        %v4112 = vpop.f32.mrf.mxu0
        %v4113 = vadd.f32 0.0, %v4112
        %4114 = vmatmul.f32.gmra.mxu0 %v3934
        %v4115 = vpop.f32.mrf.mxu0
        %v4116 = vadd.f32 0.0, %v4115
        %4117 = vmatmul.f32.gmra.mxu0 %v3937
        %v4118 = vpop.f32.mrf.mxu0
        %v4119 = vadd.f32 0.0, %v4118
        %4120 = vmatmul.f32.gmra.mxu0 %v3940
        %v4121 = vpop.f32.mrf.mxu0
        %v4122 = vadd.f32 0.0, %v4121
        %4123 = vmatmul.f32.gmra.mxu0 %v3943
        %v4124 = vpop.f32.mrf.mxu0
        %v4125 = vadd.f32 0.0, %v4124
        %4126 = vmatmul.f32.gmra.mxu0 %v3946
        %v4127 = vpop.f32.mrf.mxu0
        %v4128 = vadd.f32 0.0, %v4127
        %4129 = vmatmul.f32.gmra.mxu0 %v3949
        %v4130 = vpop.f32.mrf.mxu0
        %v4131 = vadd.f32 0.0, %v4130
        %4132 = vmatmul.f32.gmra.mxu0 %v3952
        %v4133 = vpop.f32.mrf.mxu0
        %v4134 = vadd.f32 0.0, %v4133
        %4135 = vmatmul.f32.gmra.mxu0 %v3955
        %v4136 = vpop.f32.mrf.mxu0
        %v4137 = vadd.f32 0.0, %v4136
        %4138 = vmatmul.f32.gmra.mxu0 %v3958
        %v4139 = vpop.f32.mrf.mxu0
        %v4140 = vadd.f32 0.0, %v4139
        %4141 = vmatmul.f32.gmra.mxu0 %v3961
        %v4142 = vpop.f32.mrf.mxu0
        %v4143 = vadd.f32 0.0, %v4142
        %4144 = vmatmul.f32.gmra.mxu0 %v3964
        %v4145 = vpop.f32.mrf.mxu0
        %v4146 = vadd.f32 0.0, %v4145
        %4147 = vmatmul.f32.gmra.mxu0 %v3967
        %v4148 = vpop.f32.mrf.mxu0
        %v4149 = vadd.f32 0.0, %v4148
        %4150 = vmatmul.f32.gmra.mxu0 %v3970
        %v4151 = vpop.f32.mrf.mxu0
        %v4152 = vadd.f32 0.0, %v4151
        %4153 = vmatmul.f32.gmra.mxu0 %v3973
        %v4154 = vpop.f32.mrf.mxu0
        %v4155 = vadd.f32 0.0, %v4154
        %4156 = vmatmul.f32.gmra.mxu0 %v3976
        %v4157 = vpop.f32.mrf.mxu0
        %v4158 = vadd.f32 0.0, %v4157
        %4159 = vmatmul.f32.gmra.mxu0 %v3979
        %v4160 = vpop.f32.mrf.mxu0
        %v4161 = vadd.f32 0.0, %v4160
        %4162 = vmatmul.f32.gmra.mxu0 %v3982
        %v4163 = vpop.f32.mrf.mxu0
        %v4164 = vadd.f32 0.0, %v4163
        %4165 = vmatmul.f32.gmra.mxu0 %v3985
        %v4166 = vpop.f32.mrf.mxu0
        %v4167 = vadd.f32 0.0, %v4166
        %4168 = vmatmul.f32.gmra.mxu0 %v3988
        %v4169 = vpop.f32.mrf.mxu0
        %v4170 = vadd.f32 0.0, %v4169
        %4171 = vmatmul.f32.gmra.mxu0 %v3991
        %v4172 = vpop.f32.mrf.mxu0
        %v4173 = vadd.f32 0.0, %v4172
        %4174 = vmatmul.f32.gmra.mxu0 %v3994
        %v4175 = vpop.f32.mrf.mxu0
        %v4176 = vadd.f32 0.0, %v4175
        %4177 = vmatmul.f32.gmra.mxu0 %v3997
        %v4178 = vpop.f32.mrf.mxu0
        %v4179 = vadd.f32 0.0, %v4178
        %4180 = vmatmul.f32.gmra.mxu0 %v4000
        %v4181 = vpop.f32.mrf.mxu0
        %v4182 = vadd.f32 0.0, %v4181
        %4183 = vmatmul.f32.gmra.mxu0 %v4003
        %v4184 = vpop.f32.mrf.mxu0
        %v4185 = vadd.f32 0.0, %v4184
        %4186 = vmatmul.f32.gmra.mxu0 %v4006
        %v4187 = vpop.f32.mrf.mxu0
        %v4188 = vadd.f32 0.0, %v4187
        %4189 = vmatmul.f32.gmra.mxu0 %v4009
        %v4190 = vpop.f32.mrf.mxu0
        %v4191 = vadd.f32 0.0, %v4190
        %4192 = vmatmul.f32.gmra.mxu0 %v4012
        %v4193 = vpop.f32.mrf.mxu0
        %v4194 = vadd.f32 0.0, %v4193
        %4195 = vmatmul.f32.gmra.mxu0 %v4015
        %v4196 = vpop.f32.mrf.mxu0
        %v4197 = vadd.f32 0.0, %v4196
        %4198 = vmatmul.f32.gmra.mxu0 %v4018
        %v4199 = vpop.f32.mrf.mxu0
        %v4200 = vadd.f32 0.0, %v4199
        %4201 = vmatmul.f32.gmra.mxu0 %v4021
        %v4202 = vpop.f32.mrf.mxu0
        %v4203 = vadd.f32 0.0, %v4202
        %4204 = vmatmul.f32.gmra.mxu0 %v4024
        %v4205 = vpop.f32.mrf.mxu0
        %v4206 = vadd.f32 0.0, %v4205
        %4207 = vmatmul.f32.gmra.mxu0 %v4027
        %v4208 = vpop.f32.mrf.mxu0
        %v4209 = vadd.f32 0.0, %v4208
        %4210 = vmatmul.f32.gmra.mxu0 %v4030
        %v4211 = vpop.f32.mrf.mxu0
        %v4212 = vadd.f32 0.0, %v4211
        %4213 = vmatmul.f32.gmra.mxu0 %v4033
        %v4214 = vpop.f32.mrf.mxu0
        %v4215 = vadd.f32 0.0, %v4214
        %4216 = vmatmul.f32.gmra.mxu0 %v4036
        %v4217 = vpop.f32.mrf.mxu0
        %v4218 = vadd.f32 0.0, %v4217
        %4219 = vmatmul.f32.gmra.mxu0 %v4039
        %v4220 = vpop.f32.mrf.mxu0
        %v4221 = vadd.f32 0.0, %v4220
        %4222 = vmatmul.f32.gmra.mxu0 %v4042
        %v4223 = vpop.f32.mrf.mxu0
        %v4224 = vadd.f32 0.0, %v4223
        %4225 = vmatmul.f32.gmra.mxu0 %v4045
        %v4226 = vpop.f32.mrf.mxu0
        %v4227 = vadd.f32 0.0, %v4226
        %4228 = vmatmul.f32.gmra.mxu0 %v4048
        %v4229 = vpop.f32.mrf.mxu0
        %v4230 = vadd.f32 0.0, %v4229
        %4231 = vmatmul.f32.gmra.mxu0 %v4051
        %v4232 = vpop.f32.mrf.mxu0
        %v4233 = vadd.f32 0.0, %v4232
        %4234 = vmatmul.f32.gmra.mxu0 %v4054
        %v4235 = vpop.f32.mrf.mxu0
        %v4236 = vadd.f32 0.0, %v4235
        %4237 = vdwg.mxu0
        %v4238 = vld [vmem:[#allocation3] sm:$0xff]
        %v4239 = vld [vmem:[#allocation3 + $0x8] sm:$0xff]
        %v4240 = vld [vmem:[#allocation3 + $0x10] sm:$0xff]
        %v4241 = vld [vmem:[#allocation3 + $0x18] sm:$0xff]
        %v4242 = vld [vmem:[#allocation3 + $0x20] sm:$0xff]
        %v4243 = vld [vmem:[#allocation3 + $0x28] sm:$0xff]
        %v4244 = vld [vmem:[#allocation3 + $0x30] sm:$0xff]
        %v4245 = vld [vmem:[#allocation3 + $0x38] sm:$0xff]
        %v4246 = vld [vmem:[#allocation3 + $0x40] sm:$0xff]
        %v4247 = vld [vmem:[#allocation3 + $0x48] sm:$0xff]
        %v4248 = vld [vmem:[#allocation3 + $0x50] sm:$0xff]
        %v4249 = vld [vmem:[#allocation3 + $0x58] sm:$0xff]
        %v4250 = vld [vmem:[#allocation3 + $0x60] sm:$0xff]
        %v4251 = vld [vmem:[#allocation3 + $0x68] sm:$0xff]
        %v4252 = vld [vmem:[#allocation3 + $0x70] sm:$0xff]
        %v4253 = vld [vmem:[#allocation3 + $0x78] sm:$0xff]
        %v4254 = vld [vmem:[#allocation3 + $0x80] sm:$0xff]
        %v4255 = vld [vmem:[#allocation3 + $0x88] sm:$0xff]
        %v4256 = vld [vmem:[#allocation3 + $0x90] sm:$0xff]
        %v4257 = vld [vmem:[#allocation3 + $0x98] sm:$0xff]
        %v4258 = vld [vmem:[#allocation3 + $0xa0] sm:$0xff]
        %v4259 = vld [vmem:[#allocation3 + $0xa8] sm:$0xff]
        %v4260 = vld [vmem:[#allocation3 + $0xb0] sm:$0xff]
        %v4261 = vld [vmem:[#allocation3 + $0xb8] sm:$0xff]
        %v4262 = vld [vmem:[#allocation3 + $0xc0] sm:$0xff]
        %v4263 = vld [vmem:[#allocation3 + $0xc8] sm:$0xff]
        %v4264 = vld [vmem:[#allocation3 + $0xd0] sm:$0xff]
        %v4265 = vld [vmem:[#allocation3 + $0xd8] sm:$0xff]
        %v4266 = vld [vmem:[#allocation3 + $0xe0] sm:$0xff]
        %v4267 = vld [vmem:[#allocation3 + $0xe8] sm:$0xff]
        %v4268 = vld [vmem:[#allocation3 + $0xf0] sm:$0xff]
        %v4269 = vld [vmem:[#allocation3 + $0xf8] sm:$0xff]
        %v4270 = vld [vmem:[#allocation3 + $0x100] sm:$0xff]
        %v4271 = vld [vmem:[#allocation3 + $0x108] sm:$0xff]
        %v4272 = vld [vmem:[#allocation3 + $0x110] sm:$0xff]
        %v4273 = vld [vmem:[#allocation3 + $0x118] sm:$0xff]
        %v4274 = vld [vmem:[#allocation3 + $0x120] sm:$0xff]
        %v4275 = vld [vmem:[#allocation3 + $0x128] sm:$0xff]
        %v4276 = vld [vmem:[#allocation3 + $0x130] sm:$0xff]
        %v4277 = vld [vmem:[#allocation3 + $0x138] sm:$0xff]
        %v4278 = vld [vmem:[#allocation3 + $0x140] sm:$0xff]
        %v4279 = vld [vmem:[#allocation3 + $0x148] sm:$0xff]
        %v4280 = vld [vmem:[#allocation3 + $0x150] sm:$0xff]
        %v4281 = vld [vmem:[#allocation3 + $0x158] sm:$0xff]
        %v4282 = vld [vmem:[#allocation3 + $0x160] sm:$0xff]
        %v4283 = vld [vmem:[#allocation3 + $0x168] sm:$0xff]
        %v4284 = vld [vmem:[#allocation3 + $0x170] sm:$0xff]
        %v4285 = vld [vmem:[#allocation3 + $0x178] sm:$0xff]
        %v4286 = vld [vmem:[#allocation3 + $0x180] sm:$0xff]
        %v4287 = vld [vmem:[#allocation3 + $0x188] sm:$0xff]
        %v4288 = vld [vmem:[#allocation3 + $0x190] sm:$0xff]
        %v4289 = vld [vmem:[#allocation3 + $0x198] sm:$0xff]
        %v4290 = vld [vmem:[#allocation3 + $0x1a0] sm:$0xff]
        %v4291 = vld [vmem:[#allocation3 + $0x1a8] sm:$0xff]
        %v4292 = vld [vmem:[#allocation3 + $0x1b0] sm:$0xff]
        %v4293 = vadd.f32 %v4238, %v4074
        %v4294 = vadd.f32 %v4239, %v4077
        %v4295 = vadd.f32 %v4240, %v4080
        %v4296 = vadd.f32 %v4241, %v4083
        %v4297 = vadd.f32 %v4242, %v4086
        %v4298 = vadd.f32 %v4243, %v4089
        %v4299 = vadd.f32 %v4244, %v4092
        %v4300 = vadd.f32 %v4245, %v4095
        %v4301 = vadd.f32 %v4246, %v4098
        %v4302 = vadd.f32 %v4247, %v4101
        %v4303 = vadd.f32 %v4248, %v4104
        %v4304 = vadd.f32 %v4249, %v4107
        %v4305 = vadd.f32 %v4250, %v4110
        %v4306 = vadd.f32 %v4251, %v4113
        %v4307 = vadd.f32 %v4252, %v4116
        %v4308 = vadd.f32 %v4253, %v4119
        %v4309 = vadd.f32 %v4254, %v4122
        %v4310 = vadd.f32 %v4255, %v4125
        %v4311 = vadd.f32 %v4256, %v4128
        %v4312 = vadd.f32 %v4257, %v4131
        %v4313 = vadd.f32 %v4258, %v4134
        %v4314 = vadd.f32 %v4259, %v4137
        %v4315 = vadd.f32 %v4260, %v4140
        %v4316 = vadd.f32 %v4261, %v4143
        %v4317 = vadd.f32 %v4262, %v4146
        %v4318 = vadd.f32 %v4263, %v4149
        %v4319 = vadd.f32 %v4264, %v4152
        %v4320 = vadd.f32 %v4265, %v4155
        %v4321 = vadd.f32 %v4266, %v4158
        %v4322 = vadd.f32 %v4267, %v4161
        %v4323 = vadd.f32 %v4268, %v4164
        %v4324 = vadd.f32 %v4269, %v4167
        %v4325 = vadd.f32 %v4270, %v4170
        %v4326 = vadd.f32 %v4271, %v4173
        %v4327 = vadd.f32 %v4272, %v4176
        %v4328 = vadd.f32 %v4273, %v4179
        %v4329 = vadd.f32 %v4274, %v4182
        %v4330 = vadd.f32 %v4275, %v4185
        %v4331 = vadd.f32 %v4276, %v4188
        %v4332 = vadd.f32 %v4277, %v4191
        %v4333 = vadd.f32 %v4278, %v4194
        %v4334 = vadd.f32 %v4279, %v4197
        %v4335 = vadd.f32 %v4280, %v4200
        %v4336 = vadd.f32 %v4281, %v4203
        %v4337 = vadd.f32 %v4282, %v4206
        %v4338 = vadd.f32 %v4283, %v4209
        %v4339 = vadd.f32 %v4284, %v4212
        %v4340 = vadd.f32 %v4285, %v4215
        %v4341 = vadd.f32 %v4286, %v4218
        %v4342 = vadd.f32 %v4287, %v4221
        %v4343 = vadd.f32 %v4288, %v4224
        %v4344 = vadd.f32 %v4289, %v4227
        %v4345 = vadd.f32 %v4290, %v4230
        %v4346 = vadd.f32 %v4291, %v4233
        %v4347 = vadd.f32 %v4292, %v4236
        %4348 = vst.msk [vmem:[#allocation3] sm:$0xff] %vm276, %v4293
        %4349 = vst.msk [vmem:[#allocation3 + $0x8] sm:$0xff] %vm276, %v4294
        %4350 = vst.msk [vmem:[#allocation3 + $0x10] sm:$0xff] %vm276, %v4295
        %4351 = vst.msk [vmem:[#allocation3 + $0x18] sm:$0xff] %vm276, %v4296
        %4352 = vst.msk [vmem:[#allocation3 + $0x20] sm:$0xff] %vm276, %v4297
        %4353 = vst.msk [vmem:[#allocation3 + $0x28] sm:$0xff] %vm276, %v4298
        %4354 = vst.msk [vmem:[#allocation3 + $0x30] sm:$0xff] %vm276, %v4299
        %4355 = vst.msk [vmem:[#allocation3 + $0x38] sm:$0xff] %vm276, %v4300
        %4356 = vst.msk [vmem:[#allocation3 + $0x40] sm:$0xff] %vm276, %v4301
        %4357 = vst.msk [vmem:[#allocation3 + $0x48] sm:$0xff] %vm276, %v4302
        %4358 = vst.msk [vmem:[#allocation3 + $0x50] sm:$0xff] %vm276, %v4303
        %4359 = vst.msk [vmem:[#allocation3 + $0x58] sm:$0xff] %vm276, %v4304
        %4360 = vst.msk [vmem:[#allocation3 + $0x60] sm:$0xff] %vm276, %v4305
        %4361 = vst.msk [vmem:[#allocation3 + $0x68] sm:$0xff] %vm276, %v4306
        %4362 = vst.msk [vmem:[#allocation3 + $0x70] sm:$0xff] %vm276, %v4307
        %4363 = vst.msk [vmem:[#allocation3 + $0x78] sm:$0xff] %vm276, %v4308
        %4364 = vst.msk [vmem:[#allocation3 + $0x80] sm:$0xff] %vm276, %v4309
        %4365 = vst.msk [vmem:[#allocation3 + $0x88] sm:$0xff] %vm276, %v4310
        %4366 = vst.msk [vmem:[#allocation3 + $0x90] sm:$0xff] %vm276, %v4311
        %4367 = vst.msk [vmem:[#allocation3 + $0x98] sm:$0xff] %vm276, %v4312
        %4368 = vst.msk [vmem:[#allocation3 + $0xa0] sm:$0xff] %vm276, %v4313
        %4369 = vst.msk [vmem:[#allocation3 + $0xa8] sm:$0xff] %vm276, %v4314
        %4370 = vst.msk [vmem:[#allocation3 + $0xb0] sm:$0xff] %vm276, %v4315
        %4371 = vst.msk [vmem:[#allocation3 + $0xb8] sm:$0xff] %vm276, %v4316
        %4372 = vst.msk [vmem:[#allocation3 + $0xc0] sm:$0xff] %vm276, %v4317
        %4373 = vst.msk [vmem:[#allocation3 + $0xc8] sm:$0xff] %vm276, %v4318
        %4374 = vst.msk [vmem:[#allocation3 + $0xd0] sm:$0xff] %vm276, %v4319
        %4375 = vst.msk [vmem:[#allocation3 + $0xd8] sm:$0xff] %vm276, %v4320
        %4376 = vst.msk [vmem:[#allocation3 + $0xe0] sm:$0xff] %vm276, %v4321
        %4377 = vst.msk [vmem:[#allocation3 + $0xe8] sm:$0xff] %vm276, %v4322
        %4378 = vst.msk [vmem:[#allocation3 + $0xf0] sm:$0xff] %vm276, %v4323
        %4379 = vst.msk [vmem:[#allocation3 + $0xf8] sm:$0xff] %vm276, %v4324
        %4380 = vst.msk [vmem:[#allocation3 + $0x100] sm:$0xff] %vm276, %v4325
        %4381 = vst.msk [vmem:[#allocation3 + $0x108] sm:$0xff] %vm276, %v4326
        %4382 = vst.msk [vmem:[#allocation3 + $0x110] sm:$0xff] %vm276, %v4327
        %4383 = vst.msk [vmem:[#allocation3 + $0x118] sm:$0xff] %vm276, %v4328
        %4384 = vst.msk [vmem:[#allocation3 + $0x120] sm:$0xff] %vm276, %v4329
        %4385 = vst.msk [vmem:[#allocation3 + $0x128] sm:$0xff] %vm276, %v4330
        %4386 = vst.msk [vmem:[#allocation3 + $0x130] sm:$0xff] %vm276, %v4331
        %4387 = vst.msk [vmem:[#allocation3 + $0x138] sm:$0xff] %vm276, %v4332
        %4388 = vst.msk [vmem:[#allocation3 + $0x140] sm:$0xff] %vm276, %v4333
        %4389 = vst.msk [vmem:[#allocation3 + $0x148] sm:$0xff] %vm276, %v4334
        %4390 = vst.msk [vmem:[#allocation3 + $0x150] sm:$0xff] %vm276, %v4335
        %4391 = vst.msk [vmem:[#allocation3 + $0x158] sm:$0xff] %vm276, %v4336
        %4392 = vst.msk [vmem:[#allocation3 + $0x160] sm:$0xff] %vm276, %v4337
        %4393 = vst.msk [vmem:[#allocation3 + $0x168] sm:$0xff] %vm276, %v4338
        %4394 = vst.msk [vmem:[#allocation3 + $0x170] sm:$0xff] %vm276, %v4339
        %4395 = vst.msk [vmem:[#allocation3 + $0x178] sm:$0xff] %vm276, %v4340
        %4396 = vst.msk [vmem:[#allocation3 + $0x180] sm:$0xff] %vm276, %v4341
        %4397 = vst.msk [vmem:[#allocation3 + $0x188] sm:$0xff] %vm276, %v4342
        %4398 = vst.msk [vmem:[#allocation3 + $0x190] sm:$0xff] %vm276, %v4343
        %4399 = vst.msk [vmem:[#allocation3 + $0x198] sm:$0xff] %vm276, %v4344
        %4400 = vst.msk [vmem:[#allocation3 + $0x1a0] sm:$0xff] %vm276, %v4345
        %4401 = vst.msk [vmem:[#allocation3 + $0x1a8] sm:$0xff] %vm276, %v4346
        %4402 = vst.msk [vmem:[#allocation3 + $0x1b0] sm:$0xff] %vm276, %v4347
        %v4403 = vld [vmem:[#allocation2 + $0x2d] sm:$0xff]
        %v4404 = vld [vmem:[#allocation2 + $0x35] sm:$0xff]
        %v4405 = vld [vmem:[#allocation2 + $0x3d] sm:$0xff]
        %v4406 = vld [vmem:[#allocation2 + $0x45] sm:$0xff]
        %v4407 = vld [vmem:[#allocation2 + $0x4d] sm:$0xff]
        %v4408 = vld [vmem:[#allocation2 + $0x55] sm:$0xff]
        %v4409 = vld [vmem:[#allocation2 + $0x5d] sm:$0xff]
        %v4410 = vld [vmem:[#allocation2 + $0x65] sm:$0xff]
        %v4411 = vld [vmem:[#allocation2 + $0x6d] sm:$0xff]
        %v4412 = vld [vmem:[#allocation2 + $0x75] sm:$0xff]
        %v4413 = vld [vmem:[#allocation2 + $0x7d] sm:$0xff]
        %v4414 = vld [vmem:[#allocation2 + $0x85] sm:$0xff]
        %v4415 = vld [vmem:[#allocation2 + $0x8d] sm:$0xff]
        %v4416 = vld [vmem:[#allocation2 + $0x95] sm:$0xff]
        %v4417 = vld [vmem:[#allocation2 + $0x9d] sm:$0xff]
        %v4418 = vld [vmem:[#allocation2 + $0xa5] sm:$0xff]
        %v4419 = vld [vmem:[#allocation2 + $0xad] sm:$0xff]
        %v4420 = vld [vmem:[#allocation2 + $0xb5] sm:$0xff]
        %v4421 = vld [vmem:[#allocation2 + $0xbd] sm:$0xff]
        %v4422 = vld [vmem:[#allocation2 + $0xc5] sm:$0xff]
        %v4423 = vld [vmem:[#allocation2 + $0xcd] sm:$0xff]
        %v4424 = vld [vmem:[#allocation2 + $0xd5] sm:$0xff]
        %v4425 = vld [vmem:[#allocation2 + $0xdd] sm:$0xff]
        %v4426 = vld [vmem:[#allocation2 + $0xe5] sm:$0xff]
        %v4427 = vld [vmem:[#allocation2 + $0xed] sm:$0xff]
        %v4428 = vld [vmem:[#allocation2 + $0xf5] sm:$0xff]
        %v4429 = vld [vmem:[#allocation2 + $0xfd] sm:$0xff]
        %v4430 = vld [vmem:[#allocation2 + $0x105] sm:$0xff]
        %v4431 = vld [vmem:[#allocation2 + $0x10d] sm:$0xff]
        %v4432 = vld [vmem:[#allocation2 + $0x115] sm:$0xff]
        %v4433 = vld [vmem:[#allocation2 + $0x11d] sm:$0xff]
        %v4434 = vld [vmem:[#allocation2 + $0x125] sm:$0xff]
        %v4435 = vld [vmem:[#allocation2 + $0x12d] sm:$0xff]
        %v4436 = vld [vmem:[#allocation2 + $0x135] sm:$0xff]
        %v4437 = vld [vmem:[#allocation2 + $0x13d] sm:$0xff]
        %v4438 = vld [vmem:[#allocation2 + $0x145] sm:$0xff]
        %v4439 = vld [vmem:[#allocation2 + $0x14d] sm:$0xff]
        %v4440 = vld [vmem:[#allocation2 + $0x155] sm:$0xff]
        %v4441 = vld [vmem:[#allocation2 + $0x15d] sm:$0xff]
        %v4442 = vld [vmem:[#allocation2 + $0x165] sm:$0xff]
        %v4443 = vld [vmem:[#allocation2 + $0x16d] sm:$0xff]
        %v4444 = vld [vmem:[#allocation2 + $0x175] sm:$0xff]
        %v4445 = vld [vmem:[#allocation2 + $0x17d] sm:$0xff]
        %v4446 = vld [vmem:[#allocation2 + $0x185] sm:$0xff]
        %v4447 = vld [vmem:[#allocation2 + $0x18d] sm:$0xff]
        %v4448 = vld [vmem:[#allocation2 + $0x195] sm:$0xff]
        %v4449 = vld [vmem:[#allocation2 + $0x19d] sm:$0xff]
        %v4450 = vld [vmem:[#allocation2 + $0x1a5] sm:$0xff]
        %v4451 = vld [vmem:[#allocation2 + $0x1ad] sm:$0xff]
        %v4452 = vld [vmem:[#allocation2 + $0x1b5] sm:$0xff]
        %v4453 = vld [vmem:[#allocation2 + $0x1bd] sm:$0xff]
        %v4454 = vld [vmem:[#allocation2 + $0x1c5] sm:$0xff]
        %v4455 = vld [vmem:[#allocation2 + $0x1cd] sm:$0xff]
        %v4456 = vld [vmem:[#allocation2 + $0x1d5] sm:$0xff]
        %v4457 = vld [vmem:[#allocation2 + $0x1dd] sm:$0xff]
        %s4458 = scalar_lea.vmem %s1, 448
        %v4459 = vld [vmem:[%s4458] sm:$0xff]
        %v4460 = vld [vmem:[%s4458 + $0x8] sm:$0xff]
        %v4461 = vld [vmem:[%s4458 + $0x10] sm:$0xff]
        %v4462 = vld [vmem:[%s4458 + $0x18] sm:$0xff]
        %v4463 = vld [vmem:[%s4458 + $0x20] sm:$0xff]
        %v4464 = vld [vmem:[%s4458 + $0x28] sm:$0xff]
        %v4465 = vld [vmem:[%s4458 + $0x30] sm:$0xff]
        %v4466 = vld [vmem:[%s4458 + $0x38] sm:$0xff]
        %v4468 = vsel %vm276, %v4403, 0
        %v4471 = vsel %vm276, %v4404, 0
        %v4474 = vsel %vm276, %v4405, 0
        %v4477 = vsel %vm276, %v4406, 0
        %v4480 = vsel %vm276, %v4407, 0
        %v4483 = vsel %vm276, %v4408, 0
        %v4486 = vsel %vm276, %v4409, 0
        %v4489 = vsel %vm276, %v4410, 0
        %v4492 = vsel %vm276, %v4411, 0
        %v4495 = vsel %vm276, %v4412, 0
        %v4498 = vsel %vm276, %v4413, 0
        %v4501 = vsel %vm276, %v4414, 0
        %v4504 = vsel %vm276, %v4415, 0
        %v4507 = vsel %vm276, %v4416, 0
        %v4510 = vsel %vm276, %v4417, 0
        %v4513 = vsel %vm276, %v4418, 0
        %v4516 = vsel %vm276, %v4419, 0
        %v4519 = vsel %vm276, %v4420, 0
        %v4522 = vsel %vm276, %v4421, 0
        %v4525 = vsel %vm276, %v4422, 0
        %v4528 = vsel %vm276, %v4423, 0
        %v4531 = vsel %vm276, %v4424, 0
        %v4534 = vsel %vm276, %v4425, 0
        %v4537 = vsel %vm276, %v4426, 0
        %v4540 = vsel %vm276, %v4427, 0
        %v4543 = vsel %vm276, %v4428, 0
        %v4546 = vsel %vm276, %v4429, 0
        %v4549 = vsel %vm276, %v4430, 0
        %v4552 = vsel %vm276, %v4431, 0
        %v4555 = vsel %vm276, %v4432, 0
        %v4558 = vsel %vm276, %v4433, 0
        %v4561 = vsel %vm276, %v4434, 0
        %v4564 = vsel %vm276, %v4435, 0
        %v4567 = vsel %vm276, %v4436, 0
        %v4570 = vsel %vm276, %v4437, 0
        %v4573 = vsel %vm276, %v4438, 0
        %v4576 = vsel %vm276, %v4439, 0
        %v4579 = vsel %vm276, %v4440, 0
        %v4582 = vsel %vm276, %v4441, 0
        %v4585 = vsel %vm276, %v4442, 0
        %v4588 = vsel %vm276, %v4443, 0
        %v4591 = vsel %vm276, %v4444, 0
        %v4594 = vsel %vm276, %v4445, 0
        %v4597 = vsel %vm276, %v4446, 0
        %v4600 = vsel %vm276, %v4447, 0
        %v4603 = vsel %vm276, %v4448, 0
        %v4606 = vsel %vm276, %v4449, 0
        %v4609 = vsel %vm276, %v4450, 0
        %v4612 = vsel %vm276, %v4451, 0
        %v4615 = vsel %vm276, %v4452, 0
        %v4618 = vsel %vm276, %v4453, 0
        %v4621 = vsel %vm276, %v4454, 0
        %v4624 = vsel %vm276, %v4455, 0
        %v4627 = vsel %vm276, %v4456, 0
        %v4630 = vsel %vm276, %v4457, 0
        %4632 = vmatpush.msra.mxu0 0.0
        %4633 = vmatpush.msra.mxu0 0.0
        %4634 = vmatpush.msra.mxu0 0.0
        %4635 = vmatpush.msra.mxu0 0.0
        %4636 = vmatpush.msra.mxu0 0.0
        %4637 = vmatpush.msra.mxu0 0.0
        %4638 = vmatpush.msra.mxu0 0.0
        %4639 = vmatpush.msra.mxu0 0.0
        %4640 = vmatpush.msra.mxu0 %v4466
        %4641 = vmatpush.msra.mxu0 %v4465
        %4642 = vmatpush.msra.mxu0 %v4464
        %4643 = vmatpush.msra.mxu0 %v4463
        %4644 = vmatpush.msra.mxu0 %v4462
        %4645 = vmatpush.msra.mxu0 %v4461
        %4646 = vmatpush.msra.mxu0 %v4460
        %4647 = vmatpush.msra.mxu0 %v4459
        %4648 = vmatmul.f32.gmra.mxu0 %v4468
        %v4649 = vpop.f32.mrf.mxu0
        %v4650 = vadd.f32 0.0, %v4649
        %4651 = vmatmul.f32.gmra.mxu0 %v4471
        %v4652 = vpop.f32.mrf.mxu0
        %v4653 = vadd.f32 0.0, %v4652
        %4654 = vmatmul.f32.gmra.mxu0 %v4474
        %v4655 = vpop.f32.mrf.mxu0
        %v4656 = vadd.f32 0.0, %v4655
        %4657 = vmatmul.f32.gmra.mxu0 %v4477
        %v4658 = vpop.f32.mrf.mxu0
        %v4659 = vadd.f32 0.0, %v4658
        %4660 = vmatmul.f32.gmra.mxu0 %v4480
        %v4661 = vpop.f32.mrf.mxu0
        %v4662 = vadd.f32 0.0, %v4661
        %4663 = vmatmul.f32.gmra.mxu0 %v4483
        %v4664 = vpop.f32.mrf.mxu0
        %v4665 = vadd.f32 0.0, %v4664
        %4666 = vmatmul.f32.gmra.mxu0 %v4486
        %v4667 = vpop.f32.mrf.mxu0
        %v4668 = vadd.f32 0.0, %v4667
        %4669 = vmatmul.f32.gmra.mxu0 %v4489
        %v4670 = vpop.f32.mrf.mxu0
        %v4671 = vadd.f32 0.0, %v4670
        %4672 = vmatmul.f32.gmra.mxu0 %v4492
        %v4673 = vpop.f32.mrf.mxu0
        %v4674 = vadd.f32 0.0, %v4673
        %4675 = vmatmul.f32.gmra.mxu0 %v4495
        %v4676 = vpop.f32.mrf.mxu0
        %v4677 = vadd.f32 0.0, %v4676
        %4678 = vmatmul.f32.gmra.mxu0 %v4498
        %v4679 = vpop.f32.mrf.mxu0
        %v4680 = vadd.f32 0.0, %v4679
        %4681 = vmatmul.f32.gmra.mxu0 %v4501
        %v4682 = vpop.f32.mrf.mxu0
        %v4683 = vadd.f32 0.0, %v4682
        %4684 = vmatmul.f32.gmra.mxu0 %v4504
        %v4685 = vpop.f32.mrf.mxu0
        %v4686 = vadd.f32 0.0, %v4685
        %4687 = vmatmul.f32.gmra.mxu0 %v4507
        %v4688 = vpop.f32.mrf.mxu0
        %v4689 = vadd.f32 0.0, %v4688
        %4690 = vmatmul.f32.gmra.mxu0 %v4510
        %v4691 = vpop.f32.mrf.mxu0
        %v4692 = vadd.f32 0.0, %v4691
        %4693 = vmatmul.f32.gmra.mxu0 %v4513
        %v4694 = vpop.f32.mrf.mxu0
        %v4695 = vadd.f32 0.0, %v4694
        %4696 = vmatmul.f32.gmra.mxu0 %v4516
        %v4697 = vpop.f32.mrf.mxu0
        %v4698 = vadd.f32 0.0, %v4697
        %4699 = vmatmul.f32.gmra.mxu0 %v4519
        %v4700 = vpop.f32.mrf.mxu0
        %v4701 = vadd.f32 0.0, %v4700
        %4702 = vmatmul.f32.gmra.mxu0 %v4522
        %v4703 = vpop.f32.mrf.mxu0
        %v4704 = vadd.f32 0.0, %v4703
        %4705 = vmatmul.f32.gmra.mxu0 %v4525
        %v4706 = vpop.f32.mrf.mxu0
        %v4707 = vadd.f32 0.0, %v4706
        %4708 = vmatmul.f32.gmra.mxu0 %v4528
        %v4709 = vpop.f32.mrf.mxu0
        %v4710 = vadd.f32 0.0, %v4709
        %4711 = vmatmul.f32.gmra.mxu0 %v4531
        %v4712 = vpop.f32.mrf.mxu0
        %v4713 = vadd.f32 0.0, %v4712
        %4714 = vmatmul.f32.gmra.mxu0 %v4534
        %v4715 = vpop.f32.mrf.mxu0
        %v4716 = vadd.f32 0.0, %v4715
        %4717 = vmatmul.f32.gmra.mxu0 %v4537
        %v4718 = vpop.f32.mrf.mxu0
        %v4719 = vadd.f32 0.0, %v4718
        %4720 = vmatmul.f32.gmra.mxu0 %v4540
        %v4721 = vpop.f32.mrf.mxu0
        %v4722 = vadd.f32 0.0, %v4721
        %4723 = vmatmul.f32.gmra.mxu0 %v4543
        %v4724 = vpop.f32.mrf.mxu0
        %v4725 = vadd.f32 0.0, %v4724
        %4726 = vmatmul.f32.gmra.mxu0 %v4546
        %v4727 = vpop.f32.mrf.mxu0
        %v4728 = vadd.f32 0.0, %v4727
        %4729 = vmatmul.f32.gmra.mxu0 %v4549
        %v4730 = vpop.f32.mrf.mxu0
        %v4731 = vadd.f32 0.0, %v4730
        %4732 = vmatmul.f32.gmra.mxu0 %v4552
        %v4733 = vpop.f32.mrf.mxu0
        %v4734 = vadd.f32 0.0, %v4733
        %4735 = vmatmul.f32.gmra.mxu0 %v4555
        %v4736 = vpop.f32.mrf.mxu0
        %v4737 = vadd.f32 0.0, %v4736
        %4738 = vmatmul.f32.gmra.mxu0 %v4558
        %v4739 = vpop.f32.mrf.mxu0
        %v4740 = vadd.f32 0.0, %v4739
        %4741 = vmatmul.f32.gmra.mxu0 %v4561
        %v4742 = vpop.f32.mrf.mxu0
        %v4743 = vadd.f32 0.0, %v4742
        %4744 = vmatmul.f32.gmra.mxu0 %v4564
        %v4745 = vpop.f32.mrf.mxu0
        %v4746 = vadd.f32 0.0, %v4745
        %4747 = vmatmul.f32.gmra.mxu0 %v4567
        %v4748 = vpop.f32.mrf.mxu0
        %v4749 = vadd.f32 0.0, %v4748
        %4750 = vmatmul.f32.gmra.mxu0 %v4570
        %v4751 = vpop.f32.mrf.mxu0
        %v4752 = vadd.f32 0.0, %v4751
        %4753 = vmatmul.f32.gmra.mxu0 %v4573
        %v4754 = vpop.f32.mrf.mxu0
        %v4755 = vadd.f32 0.0, %v4754
        %4756 = vmatmul.f32.gmra.mxu0 %v4576
        %v4757 = vpop.f32.mrf.mxu0
        %v4758 = vadd.f32 0.0, %v4757
        %4759 = vmatmul.f32.gmra.mxu0 %v4579
        %v4760 = vpop.f32.mrf.mxu0
        %v4761 = vadd.f32 0.0, %v4760
        %4762 = vmatmul.f32.gmra.mxu0 %v4582
        %v4763 = vpop.f32.mrf.mxu0
        %v4764 = vadd.f32 0.0, %v4763
        %4765 = vmatmul.f32.gmra.mxu0 %v4585
        %v4766 = vpop.f32.mrf.mxu0
        %v4767 = vadd.f32 0.0, %v4766
        %4768 = vmatmul.f32.gmra.mxu0 %v4588
        %v4769 = vpop.f32.mrf.mxu0
        %v4770 = vadd.f32 0.0, %v4769
        %4771 = vmatmul.f32.gmra.mxu0 %v4591
        %v4772 = vpop.f32.mrf.mxu0
        %v4773 = vadd.f32 0.0, %v4772
        %4774 = vmatmul.f32.gmra.mxu0 %v4594
        %v4775 = vpop.f32.mrf.mxu0
        %v4776 = vadd.f32 0.0, %v4775
        %4777 = vmatmul.f32.gmra.mxu0 %v4597
        %v4778 = vpop.f32.mrf.mxu0
        %v4779 = vadd.f32 0.0, %v4778
        %4780 = vmatmul.f32.gmra.mxu0 %v4600
        %v4781 = vpop.f32.mrf.mxu0
        %v4782 = vadd.f32 0.0, %v4781
        %4783 = vmatmul.f32.gmra.mxu0 %v4603
        %v4784 = vpop.f32.mrf.mxu0
        %v4785 = vadd.f32 0.0, %v4784
        %4786 = vmatmul.f32.gmra.mxu0 %v4606
        %v4787 = vpop.f32.mrf.mxu0
        %v4788 = vadd.f32 0.0, %v4787
        %4789 = vmatmul.f32.gmra.mxu0 %v4609
        %v4790 = vpop.f32.mrf.mxu0
        %v4791 = vadd.f32 0.0, %v4790
        %4792 = vmatmul.f32.gmra.mxu0 %v4612
        %v4793 = vpop.f32.mrf.mxu0
        %v4794 = vadd.f32 0.0, %v4793
        %4795 = vmatmul.f32.gmra.mxu0 %v4615
        %v4796 = vpop.f32.mrf.mxu0
        %v4797 = vadd.f32 0.0, %v4796
        %4798 = vmatmul.f32.gmra.mxu0 %v4618
        %v4799 = vpop.f32.mrf.mxu0
        %v4800 = vadd.f32 0.0, %v4799
        %4801 = vmatmul.f32.gmra.mxu0 %v4621
        %v4802 = vpop.f32.mrf.mxu0
        %v4803 = vadd.f32 0.0, %v4802
        %4804 = vmatmul.f32.gmra.mxu0 %v4624
        %v4805 = vpop.f32.mrf.mxu0
        %v4806 = vadd.f32 0.0, %v4805
        %4807 = vmatmul.f32.gmra.mxu0 %v4627
        %v4808 = vpop.f32.mrf.mxu0
        %v4809 = vadd.f32 0.0, %v4808
        %4810 = vmatmul.f32.gmra.mxu0 %v4630
        %v4811 = vpop.f32.mrf.mxu0
        %v4812 = vadd.f32 0.0, %v4811
        %4813 = vdwg.mxu0
        %v4814 = vld [vmem:[#allocation3] sm:$0xff]
        %v4815 = vld [vmem:[#allocation3 + $0x8] sm:$0xff]
        %v4816 = vld [vmem:[#allocation3 + $0x10] sm:$0xff]
        %v4817 = vld [vmem:[#allocation3 + $0x18] sm:$0xff]
        %v4818 = vld [vmem:[#allocation3 + $0x20] sm:$0xff]
        %v4819 = vld [vmem:[#allocation3 + $0x28] sm:$0xff]
        %v4820 = vld [vmem:[#allocation3 + $0x30] sm:$0xff]
        %v4821 = vld [vmem:[#allocation3 + $0x38] sm:$0xff]
        %v4822 = vld [vmem:[#allocation3 + $0x40] sm:$0xff]
        %v4823 = vld [vmem:[#allocation3 + $0x48] sm:$0xff]
        %v4824 = vld [vmem:[#allocation3 + $0x50] sm:$0xff]
        %v4825 = vld [vmem:[#allocation3 + $0x58] sm:$0xff]
        %v4826 = vld [vmem:[#allocation3 + $0x60] sm:$0xff]
        %v4827 = vld [vmem:[#allocation3 + $0x68] sm:$0xff]
        %v4828 = vld [vmem:[#allocation3 + $0x70] sm:$0xff]
        %v4829 = vld [vmem:[#allocation3 + $0x78] sm:$0xff]
        %v4830 = vld [vmem:[#allocation3 + $0x80] sm:$0xff]
        %v4831 = vld [vmem:[#allocation3 + $0x88] sm:$0xff]
        %v4832 = vld [vmem:[#allocation3 + $0x90] sm:$0xff]
        %v4833 = vld [vmem:[#allocation3 + $0x98] sm:$0xff]
        %v4834 = vld [vmem:[#allocation3 + $0xa0] sm:$0xff]
        %v4835 = vld [vmem:[#allocation3 + $0xa8] sm:$0xff]
        %v4836 = vld [vmem:[#allocation3 + $0xb0] sm:$0xff]
        %v4837 = vld [vmem:[#allocation3 + $0xb8] sm:$0xff]
        %v4838 = vld [vmem:[#allocation3 + $0xc0] sm:$0xff]
        %v4839 = vld [vmem:[#allocation3 + $0xc8] sm:$0xff]
        %v4840 = vld [vmem:[#allocation3 + $0xd0] sm:$0xff]
        %v4841 = vld [vmem:[#allocation3 + $0xd8] sm:$0xff]
        %v4842 = vld [vmem:[#allocation3 + $0xe0] sm:$0xff]
        %v4843 = vld [vmem:[#allocation3 + $0xe8] sm:$0xff]
        %v4844 = vld [vmem:[#allocation3 + $0xf0] sm:$0xff]
        %v4845 = vld [vmem:[#allocation3 + $0xf8] sm:$0xff]
        %v4846 = vld [vmem:[#allocation3 + $0x100] sm:$0xff]
        %v4847 = vld [vmem:[#allocation3 + $0x108] sm:$0xff]
        %v4848 = vld [vmem:[#allocation3 + $0x110] sm:$0xff]
        %v4849 = vld [vmem:[#allocation3 + $0x118] sm:$0xff]
        %v4850 = vld [vmem:[#allocation3 + $0x120] sm:$0xff]
        %v4851 = vld [vmem:[#allocation3 + $0x128] sm:$0xff]
        %v4852 = vld [vmem:[#allocation3 + $0x130] sm:$0xff]
        %v4853 = vld [vmem:[#allocation3 + $0x138] sm:$0xff]
        %v4854 = vld [vmem:[#allocation3 + $0x140] sm:$0xff]
        %v4855 = vld [vmem:[#allocation3 + $0x148] sm:$0xff]
        %v4856 = vld [vmem:[#allocation3 + $0x150] sm:$0xff]
        %v4857 = vld [vmem:[#allocation3 + $0x158] sm:$0xff]
        %v4858 = vld [vmem:[#allocation3 + $0x160] sm:$0xff]
        %v4859 = vld [vmem:[#allocation3 + $0x168] sm:$0xff]
        %v4860 = vld [vmem:[#allocation3 + $0x170] sm:$0xff]
        %v4861 = vld [vmem:[#allocation3 + $0x178] sm:$0xff]
        %v4862 = vld [vmem:[#allocation3 + $0x180] sm:$0xff]
        %v4863 = vld [vmem:[#allocation3 + $0x188] sm:$0xff]
        %v4864 = vld [vmem:[#allocation3 + $0x190] sm:$0xff]
        %v4865 = vld [vmem:[#allocation3 + $0x198] sm:$0xff]
        %v4866 = vld [vmem:[#allocation3 + $0x1a0] sm:$0xff]
        %v4867 = vld [vmem:[#allocation3 + $0x1a8] sm:$0xff]
        %v4868 = vld [vmem:[#allocation3 + $0x1b0] sm:$0xff]
        %v4869 = vadd.f32 %v4814, %v4650
        %v4870 = vadd.f32 %v4815, %v4653
        %v4871 = vadd.f32 %v4816, %v4656
        %v4872 = vadd.f32 %v4817, %v4659
        %v4873 = vadd.f32 %v4818, %v4662
        %v4874 = vadd.f32 %v4819, %v4665
        %v4875 = vadd.f32 %v4820, %v4668
        %v4876 = vadd.f32 %v4821, %v4671
        %v4877 = vadd.f32 %v4822, %v4674
        %v4878 = vadd.f32 %v4823, %v4677
        %v4879 = vadd.f32 %v4824, %v4680
        %v4880 = vadd.f32 %v4825, %v4683
        %v4881 = vadd.f32 %v4826, %v4686
        %v4882 = vadd.f32 %v4827, %v4689
        %v4883 = vadd.f32 %v4828, %v4692
        %v4884 = vadd.f32 %v4829, %v4695
        %v4885 = vadd.f32 %v4830, %v4698
        %v4886 = vadd.f32 %v4831, %v4701
        %v4887 = vadd.f32 %v4832, %v4704
        %v4888 = vadd.f32 %v4833, %v4707
        %v4889 = vadd.f32 %v4834, %v4710
        %v4890 = vadd.f32 %v4835, %v4713
        %v4891 = vadd.f32 %v4836, %v4716
        %v4892 = vadd.f32 %v4837, %v4719
        %v4893 = vadd.f32 %v4838, %v4722
        %v4894 = vadd.f32 %v4839, %v4725
        %v4895 = vadd.f32 %v4840, %v4728
        %v4896 = vadd.f32 %v4841, %v4731
        %v4897 = vadd.f32 %v4842, %v4734
        %v4898 = vadd.f32 %v4843, %v4737
        %v4899 = vadd.f32 %v4844, %v4740
        %v4900 = vadd.f32 %v4845, %v4743
        %v4901 = vadd.f32 %v4846, %v4746
        %v4902 = vadd.f32 %v4847, %v4749
        %v4903 = vadd.f32 %v4848, %v4752
        %v4904 = vadd.f32 %v4849, %v4755
        %v4905 = vadd.f32 %v4850, %v4758
        %v4906 = vadd.f32 %v4851, %v4761
        %v4907 = vadd.f32 %v4852, %v4764
        %v4908 = vadd.f32 %v4853, %v4767
        %v4909 = vadd.f32 %v4854, %v4770
        %v4910 = vadd.f32 %v4855, %v4773
        %v4911 = vadd.f32 %v4856, %v4776
        %v4912 = vadd.f32 %v4857, %v4779
        %v4913 = vadd.f32 %v4858, %v4782
        %v4914 = vadd.f32 %v4859, %v4785
        %v4915 = vadd.f32 %v4860, %v4788
        %v4916 = vadd.f32 %v4861, %v4791
        %v4917 = vadd.f32 %v4862, %v4794
        %v4918 = vadd.f32 %v4863, %v4797
        %v4919 = vadd.f32 %v4864, %v4800
        %v4920 = vadd.f32 %v4865, %v4803
        %v4921 = vadd.f32 %v4866, %v4806
        %v4922 = vadd.f32 %v4867, %v4809
        %v4923 = vadd.f32 %v4868, %v4812
        %4924 = vst.msk [vmem:[#allocation3] sm:$0xff] %vm276, %v4869
        %4925 = vst.msk [vmem:[#allocation3 + $0x8] sm:$0xff] %vm276, %v4870
        %4926 = vst.msk [vmem:[#allocation3 + $0x10] sm:$0xff] %vm276, %v4871
        %4927 = vst.msk [vmem:[#allocation3 + $0x18] sm:$0xff] %vm276, %v4872
        %4928 = vst.msk [vmem:[#allocation3 + $0x20] sm:$0xff] %vm276, %v4873
        %4929 = vst.msk [vmem:[#allocation3 + $0x28] sm:$0xff] %vm276, %v4874
        %4930 = vst.msk [vmem:[#allocation3 + $0x30] sm:$0xff] %vm276, %v4875
        %4931 = vst.msk [vmem:[#allocation3 + $0x38] sm:$0xff] %vm276, %v4876
        %4932 = vst.msk [vmem:[#allocation3 + $0x40] sm:$0xff] %vm276, %v4877
        %4933 = vst.msk [vmem:[#allocation3 + $0x48] sm:$0xff] %vm276, %v4878
        %4934 = vst.msk [vmem:[#allocation3 + $0x50] sm:$0xff] %vm276, %v4879
        %4935 = vst.msk [vmem:[#allocation3 + $0x58] sm:$0xff] %vm276, %v4880
        %4936 = vst.msk [vmem:[#allocation3 + $0x60] sm:$0xff] %vm276, %v4881
        %4937 = vst.msk [vmem:[#allocation3 + $0x68] sm:$0xff] %vm276, %v4882
        %4938 = vst.msk [vmem:[#allocation3 + $0x70] sm:$0xff] %vm276, %v4883
        %4939 = vst.msk [vmem:[#allocation3 + $0x78] sm:$0xff] %vm276, %v4884
        %4940 = vst.msk [vmem:[#allocation3 + $0x80] sm:$0xff] %vm276, %v4885
        %4941 = vst.msk [vmem:[#allocation3 + $0x88] sm:$0xff] %vm276, %v4886
        %4942 = vst.msk [vmem:[#allocation3 + $0x90] sm:$0xff] %vm276, %v4887
        %4943 = vst.msk [vmem:[#allocation3 + $0x98] sm:$0xff] %vm276, %v4888
        %4944 = vst.msk [vmem:[#allocation3 + $0xa0] sm:$0xff] %vm276, %v4889
        %4945 = vst.msk [vmem:[#allocation3 + $0xa8] sm:$0xff] %vm276, %v4890
        %4946 = vst.msk [vmem:[#allocation3 + $0xb0] sm:$0xff] %vm276, %v4891
        %4947 = vst.msk [vmem:[#allocation3 + $0xb8] sm:$0xff] %vm276, %v4892
        %4948 = vst.msk [vmem:[#allocation3 + $0xc0] sm:$0xff] %vm276, %v4893
        %4949 = vst.msk [vmem:[#allocation3 + $0xc8] sm:$0xff] %vm276, %v4894
        %4950 = vst.msk [vmem:[#allocation3 + $0xd0] sm:$0xff] %vm276, %v4895
        %4951 = vst.msk [vmem:[#allocation3 + $0xd8] sm:$0xff] %vm276, %v4896
        %4952 = vst.msk [vmem:[#allocation3 + $0xe0] sm:$0xff] %vm276, %v4897
        %4953 = vst.msk [vmem:[#allocation3 + $0xe8] sm:$0xff] %vm276, %v4898
        %4954 = vst.msk [vmem:[#allocation3 + $0xf0] sm:$0xff] %vm276, %v4899
        %4955 = vst.msk [vmem:[#allocation3 + $0xf8] sm:$0xff] %vm276, %v4900
        %4956 = vst.msk [vmem:[#allocation3 + $0x100] sm:$0xff] %vm276, %v4901
        %4957 = vst.msk [vmem:[#allocation3 + $0x108] sm:$0xff] %vm276, %v4902
        %4958 = vst.msk [vmem:[#allocation3 + $0x110] sm:$0xff] %vm276, %v4903
        %4959 = vst.msk [vmem:[#allocation3 + $0x118] sm:$0xff] %vm276, %v4904
        %4960 = vst.msk [vmem:[#allocation3 + $0x120] sm:$0xff] %vm276, %v4905
        %4961 = vst.msk [vmem:[#allocation3 + $0x128] sm:$0xff] %vm276, %v4906
        %4962 = vst.msk [vmem:[#allocation3 + $0x130] sm:$0xff] %vm276, %v4907
        %4963 = vst.msk [vmem:[#allocation3 + $0x138] sm:$0xff] %vm276, %v4908
        %4964 = vst.msk [vmem:[#allocation3 + $0x140] sm:$0xff] %vm276, %v4909
        %4965 = vst.msk [vmem:[#allocation3 + $0x148] sm:$0xff] %vm276, %v4910
        %4966 = vst.msk [vmem:[#allocation3 + $0x150] sm:$0xff] %vm276, %v4911
        %4967 = vst.msk [vmem:[#allocation3 + $0x158] sm:$0xff] %vm276, %v4912
        %4968 = vst.msk [vmem:[#allocation3 + $0x160] sm:$0xff] %vm276, %v4913
        %4969 = vst.msk [vmem:[#allocation3 + $0x168] sm:$0xff] %vm276, %v4914
        %4970 = vst.msk [vmem:[#allocation3 + $0x170] sm:$0xff] %vm276, %v4915
        %4971 = vst.msk [vmem:[#allocation3 + $0x178] sm:$0xff] %vm276, %v4916
        %4972 = vst.msk [vmem:[#allocation3 + $0x180] sm:$0xff] %vm276, %v4917
        %4973 = vst.msk [vmem:[#allocation3 + $0x188] sm:$0xff] %vm276, %v4918
        %4974 = vst.msk [vmem:[#allocation3 + $0x190] sm:$0xff] %vm276, %v4919
        %4975 = vst.msk [vmem:[#allocation3 + $0x198] sm:$0xff] %vm276, %v4920
        %4976 = vst.msk [vmem:[#allocation3 + $0x1a0] sm:$0xff] %vm276, %v4921
        %4977 = vst.msk [vmem:[#allocation3 + $0x1a8] sm:$0xff] %vm276, %v4922
        %4978 = vst.msk [vmem:[#allocation3 + $0x1b0] sm:$0xff] %vm276, %v4923
        %v4979 = vld [vmem:[#allocation2 + $0x2e] sm:$0xff]
        %v4980 = vld [vmem:[#allocation2 + $0x36] sm:$0xff]
        %v4981 = vld [vmem:[#allocation2 + $0x3e] sm:$0xff]
        %v4982 = vld [vmem:[#allocation2 + $0x46] sm:$0xff]
        %v4983 = vld [vmem:[#allocation2 + $0x4e] sm:$0xff]
        %v4984 = vld [vmem:[#allocation2 + $0x56] sm:$0xff]
        %v4985 = vld [vmem:[#allocation2 + $0x5e] sm:$0xff]
        %v4986 = vld [vmem:[#allocation2 + $0x66] sm:$0xff]
        %v4987 = vld [vmem:[#allocation2 + $0x6e] sm:$0xff]
        %v4988 = vld [vmem:[#allocation2 + $0x76] sm:$0xff]
        %v4989 = vld [vmem:[#allocation2 + $0x7e] sm:$0xff]
        %v4990 = vld [vmem:[#allocation2 + $0x86] sm:$0xff]
        %v4991 = vld [vmem:[#allocation2 + $0x8e] sm:$0xff]
        %v4992 = vld [vmem:[#allocation2 + $0x96] sm:$0xff]
        %v4993 = vld [vmem:[#allocation2 + $0x9e] sm:$0xff]
        %v4994 = vld [vmem:[#allocation2 + $0xa6] sm:$0xff]
        %v4995 = vld [vmem:[#allocation2 + $0xae] sm:$0xff]
        %v4996 = vld [vmem:[#allocation2 + $0xb6] sm:$0xff]
        %v4997 = vld [vmem:[#allocation2 + $0xbe] sm:$0xff]
        %v4998 = vld [vmem:[#allocation2 + $0xc6] sm:$0xff]
        %v4999 = vld [vmem:[#allocation2 + $0xce] sm:$0xff]
        %v5000 = vld [vmem:[#allocation2 + $0xd6] sm:$0xff]
        %v5001 = vld [vmem:[#allocation2 + $0xde] sm:$0xff]
        %v5002 = vld [vmem:[#allocation2 + $0xe6] sm:$0xff]
        %v5003 = vld [vmem:[#allocation2 + $0xee] sm:$0xff]
        %v5004 = vld [vmem:[#allocation2 + $0xf6] sm:$0xff]
        %v5005 = vld [vmem:[#allocation2 + $0xfe] sm:$0xff]
        %v5006 = vld [vmem:[#allocation2 + $0x106] sm:$0xff]
        %v5007 = vld [vmem:[#allocation2 + $0x10e] sm:$0xff]
        %v5008 = vld [vmem:[#allocation2 + $0x116] sm:$0xff]
        %v5009 = vld [vmem:[#allocation2 + $0x11e] sm:$0xff]
        %v5010 = vld [vmem:[#allocation2 + $0x126] sm:$0xff]
        %v5011 = vld [vmem:[#allocation2 + $0x12e] sm:$0xff]
        %v5012 = vld [vmem:[#allocation2 + $0x136] sm:$0xff]
        %v5013 = vld [vmem:[#allocation2 + $0x13e] sm:$0xff]
        %v5014 = vld [vmem:[#allocation2 + $0x146] sm:$0xff]
        %v5015 = vld [vmem:[#allocation2 + $0x14e] sm:$0xff]
        %v5016 = vld [vmem:[#allocation2 + $0x156] sm:$0xff]
        %v5017 = vld [vmem:[#allocation2 + $0x15e] sm:$0xff]
        %v5018 = vld [vmem:[#allocation2 + $0x166] sm:$0xff]
        %v5019 = vld [vmem:[#allocation2 + $0x16e] sm:$0xff]
        %v5020 = vld [vmem:[#allocation2 + $0x176] sm:$0xff]
        %v5021 = vld [vmem:[#allocation2 + $0x17e] sm:$0xff]
        %v5022 = vld [vmem:[#allocation2 + $0x186] sm:$0xff]
        %v5023 = vld [vmem:[#allocation2 + $0x18e] sm:$0xff]
        %v5024 = vld [vmem:[#allocation2 + $0x196] sm:$0xff]
        %v5025 = vld [vmem:[#allocation2 + $0x19e] sm:$0xff]
        %v5026 = vld [vmem:[#allocation2 + $0x1a6] sm:$0xff]
        %v5027 = vld [vmem:[#allocation2 + $0x1ae] sm:$0xff]
        %v5028 = vld [vmem:[#allocation2 + $0x1b6] sm:$0xff]
        %v5029 = vld [vmem:[#allocation2 + $0x1be] sm:$0xff]
        %v5030 = vld [vmem:[#allocation2 + $0x1c6] sm:$0xff]
        %v5031 = vld [vmem:[#allocation2 + $0x1ce] sm:$0xff]
        %v5032 = vld [vmem:[#allocation2 + $0x1d6] sm:$0xff]
        %v5033 = vld [vmem:[#allocation2 + $0x1de] sm:$0xff]
        %s5034 = scalar_lea.vmem %s1, 512
        %v5035 = vld [vmem:[%s5034] sm:$0xff]
        %v5036 = vld [vmem:[%s5034 + $0x8] sm:$0xff]
        %v5037 = vld [vmem:[%s5034 + $0x10] sm:$0xff]
        %v5038 = vld [vmem:[%s5034 + $0x18] sm:$0xff]
        %v5039 = vld [vmem:[%s5034 + $0x20] sm:$0xff]
        %v5040 = vld [vmem:[%s5034 + $0x28] sm:$0xff]
        %v5041 = vld [vmem:[%s5034 + $0x30] sm:$0xff]
        %v5042 = vld [vmem:[%s5034 + $0x38] sm:$0xff]
        %v5044 = vsel %vm276, %v4979, 0
        %v5047 = vsel %vm276, %v4980, 0
        %v5050 = vsel %vm276, %v4981, 0
        %v5053 = vsel %vm276, %v4982, 0
        %v5056 = vsel %vm276, %v4983, 0
        %v5059 = vsel %vm276, %v4984, 0
        %v5062 = vsel %vm276, %v4985, 0
        %v5065 = vsel %vm276, %v4986, 0
        %v5068 = vsel %vm276, %v4987, 0
        %v5071 = vsel %vm276, %v4988, 0
        %v5074 = vsel %vm276, %v4989, 0
        %v5077 = vsel %vm276, %v4990, 0
        %v5080 = vsel %vm276, %v4991, 0
        %v5083 = vsel %vm276, %v4992, 0
        %v5086 = vsel %vm276, %v4993, 0
        %v5089 = vsel %vm276, %v4994, 0
        %v5092 = vsel %vm276, %v4995, 0
        %v5095 = vsel %vm276, %v4996, 0
        %v5098 = vsel %vm276, %v4997, 0
        %v5101 = vsel %vm276, %v4998, 0
        %v5104 = vsel %vm276, %v4999, 0
        %v5107 = vsel %vm276, %v5000, 0
        %v5110 = vsel %vm276, %v5001, 0
        %v5113 = vsel %vm276, %v5002, 0
        %v5116 = vsel %vm276, %v5003, 0
        %v5119 = vsel %vm276, %v5004, 0
        %v5122 = vsel %vm276, %v5005, 0
        %v5125 = vsel %vm276, %v5006, 0
        %v5128 = vsel %vm276, %v5007, 0
        %v5131 = vsel %vm276, %v5008, 0
        %v5134 = vsel %vm276, %v5009, 0
        %v5137 = vsel %vm276, %v5010, 0
        %v5140 = vsel %vm276, %v5011, 0
        %v5143 = vsel %vm276, %v5012, 0
        %v5146 = vsel %vm276, %v5013, 0
        %v5149 = vsel %vm276, %v5014, 0
        %v5152 = vsel %vm276, %v5015, 0
        %v5155 = vsel %vm276, %v5016, 0
        %v5158 = vsel %vm276, %v5017, 0
        %v5161 = vsel %vm276, %v5018, 0
        %v5164 = vsel %vm276, %v5019, 0
        %v5167 = vsel %vm276, %v5020, 0
        %v5170 = vsel %vm276, %v5021, 0
        %v5173 = vsel %vm276, %v5022, 0
        %v5176 = vsel %vm276, %v5023, 0
        %v5179 = vsel %vm276, %v5024, 0
        %v5182 = vsel %vm276, %v5025, 0
        %v5185 = vsel %vm276, %v5026, 0
        %v5188 = vsel %vm276, %v5027, 0
        %v5191 = vsel %vm276, %v5028, 0
        %v5194 = vsel %vm276, %v5029, 0
        %v5197 = vsel %vm276, %v5030, 0
        %v5200 = vsel %vm276, %v5031, 0
        %v5203 = vsel %vm276, %v5032, 0
        %v5206 = vsel %vm276, %v5033, 0
        %5208 = vmatpush.msra.mxu0 0.0
        %5209 = vmatpush.msra.mxu0 0.0
        %5210 = vmatpush.msra.mxu0 0.0
        %5211 = vmatpush.msra.mxu0 0.0
        %5212 = vmatpush.msra.mxu0 0.0
        %5213 = vmatpush.msra.mxu0 0.0
        %5214 = vmatpush.msra.mxu0 0.0
        %5215 = vmatpush.msra.mxu0 0.0
        %5216 = vmatpush.msra.mxu0 %v5042
        %5217 = vmatpush.msra.mxu0 %v5041
        %5218 = vmatpush.msra.mxu0 %v5040
        %5219 = vmatpush.msra.mxu0 %v5039
        %5220 = vmatpush.msra.mxu0 %v5038
        %5221 = vmatpush.msra.mxu0 %v5037
        %5222 = vmatpush.msra.mxu0 %v5036
        %5223 = vmatpush.msra.mxu0 %v5035
        %5224 = vmatmul.f32.gmra.mxu0 %v5044
        %v5225 = vpop.f32.mrf.mxu0
        %v5226 = vadd.f32 0.0, %v5225
        %5227 = vmatmul.f32.gmra.mxu0 %v5047
        %v5228 = vpop.f32.mrf.mxu0
        %v5229 = vadd.f32 0.0, %v5228
        %5230 = vmatmul.f32.gmra.mxu0 %v5050
        %v5231 = vpop.f32.mrf.mxu0
        %v5232 = vadd.f32 0.0, %v5231
        %5233 = vmatmul.f32.gmra.mxu0 %v5053
        %v5234 = vpop.f32.mrf.mxu0
        %v5235 = vadd.f32 0.0, %v5234
        %5236 = vmatmul.f32.gmra.mxu0 %v5056
        %v5237 = vpop.f32.mrf.mxu0
        %v5238 = vadd.f32 0.0, %v5237
        %5239 = vmatmul.f32.gmra.mxu0 %v5059
        %v5240 = vpop.f32.mrf.mxu0
        %v5241 = vadd.f32 0.0, %v5240
        %5242 = vmatmul.f32.gmra.mxu0 %v5062
        %v5243 = vpop.f32.mrf.mxu0
        %v5244 = vadd.f32 0.0, %v5243
        %5245 = vmatmul.f32.gmra.mxu0 %v5065
        %v5246 = vpop.f32.mrf.mxu0
        %v5247 = vadd.f32 0.0, %v5246
        %5248 = vmatmul.f32.gmra.mxu0 %v5068
        %v5249 = vpop.f32.mrf.mxu0
        %v5250 = vadd.f32 0.0, %v5249
        %5251 = vmatmul.f32.gmra.mxu0 %v5071
        %v5252 = vpop.f32.mrf.mxu0
        %v5253 = vadd.f32 0.0, %v5252
        %5254 = vmatmul.f32.gmra.mxu0 %v5074
        %v5255 = vpop.f32.mrf.mxu0
        %v5256 = vadd.f32 0.0, %v5255
        %5257 = vmatmul.f32.gmra.mxu0 %v5077
        %v5258 = vpop.f32.mrf.mxu0
        %v5259 = vadd.f32 0.0, %v5258
        %5260 = vmatmul.f32.gmra.mxu0 %v5080
        %v5261 = vpop.f32.mrf.mxu0
        %v5262 = vadd.f32 0.0, %v5261
        %5263 = vmatmul.f32.gmra.mxu0 %v5083
        %v5264 = vpop.f32.mrf.mxu0
        %v5265 = vadd.f32 0.0, %v5264
        %5266 = vmatmul.f32.gmra.mxu0 %v5086
        %v5267 = vpop.f32.mrf.mxu0
        %v5268 = vadd.f32 0.0, %v5267
        %5269 = vmatmul.f32.gmra.mxu0 %v5089
        %v5270 = vpop.f32.mrf.mxu0
        %v5271 = vadd.f32 0.0, %v5270
        %5272 = vmatmul.f32.gmra.mxu0 %v5092
        %v5273 = vpop.f32.mrf.mxu0
        %v5274 = vadd.f32 0.0, %v5273
        %5275 = vmatmul.f32.gmra.mxu0 %v5095
        %v5276 = vpop.f32.mrf.mxu0
        %v5277 = vadd.f32 0.0, %v5276
        %5278 = vmatmul.f32.gmra.mxu0 %v5098
        %v5279 = vpop.f32.mrf.mxu0
        %v5280 = vadd.f32 0.0, %v5279
        %5281 = vmatmul.f32.gmra.mxu0 %v5101
        %v5282 = vpop.f32.mrf.mxu0
        %v5283 = vadd.f32 0.0, %v5282
        %5284 = vmatmul.f32.gmra.mxu0 %v5104
        %v5285 = vpop.f32.mrf.mxu0
        %v5286 = vadd.f32 0.0, %v5285
        %5287 = vmatmul.f32.gmra.mxu0 %v5107
        %v5288 = vpop.f32.mrf.mxu0
        %v5289 = vadd.f32 0.0, %v5288
        %5290 = vmatmul.f32.gmra.mxu0 %v5110
        %v5291 = vpop.f32.mrf.mxu0
        %v5292 = vadd.f32 0.0, %v5291
        %5293 = vmatmul.f32.gmra.mxu0 %v5113
        %v5294 = vpop.f32.mrf.mxu0
        %v5295 = vadd.f32 0.0, %v5294
        %5296 = vmatmul.f32.gmra.mxu0 %v5116
        %v5297 = vpop.f32.mrf.mxu0
        %v5298 = vadd.f32 0.0, %v5297
        %5299 = vmatmul.f32.gmra.mxu0 %v5119
        %v5300 = vpop.f32.mrf.mxu0
        %v5301 = vadd.f32 0.0, %v5300
        %5302 = vmatmul.f32.gmra.mxu0 %v5122
        %v5303 = vpop.f32.mrf.mxu0
        %v5304 = vadd.f32 0.0, %v5303
        %5305 = vmatmul.f32.gmra.mxu0 %v5125
        %v5306 = vpop.f32.mrf.mxu0
        %v5307 = vadd.f32 0.0, %v5306
        %5308 = vmatmul.f32.gmra.mxu0 %v5128
        %v5309 = vpop.f32.mrf.mxu0
        %v5310 = vadd.f32 0.0, %v5309
        %5311 = vmatmul.f32.gmra.mxu0 %v5131
        %v5312 = vpop.f32.mrf.mxu0
        %v5313 = vadd.f32 0.0, %v5312
        %5314 = vmatmul.f32.gmra.mxu0 %v5134
        %v5315 = vpop.f32.mrf.mxu0
        %v5316 = vadd.f32 0.0, %v5315
        %5317 = vmatmul.f32.gmra.mxu0 %v5137
        %v5318 = vpop.f32.mrf.mxu0
        %v5319 = vadd.f32 0.0, %v5318
        %5320 = vmatmul.f32.gmra.mxu0 %v5140
        %v5321 = vpop.f32.mrf.mxu0
        %v5322 = vadd.f32 0.0, %v5321
        %5323 = vmatmul.f32.gmra.mxu0 %v5143
        %v5324 = vpop.f32.mrf.mxu0
        %v5325 = vadd.f32 0.0, %v5324
        %5326 = vmatmul.f32.gmra.mxu0 %v5146
        %v5327 = vpop.f32.mrf.mxu0
        %v5328 = vadd.f32 0.0, %v5327
        %5329 = vmatmul.f32.gmra.mxu0 %v5149
        %v5330 = vpop.f32.mrf.mxu0
        %v5331 = vadd.f32 0.0, %v5330
        %5332 = vmatmul.f32.gmra.mxu0 %v5152
        %v5333 = vpop.f32.mrf.mxu0
        %v5334 = vadd.f32 0.0, %v5333
        %5335 = vmatmul.f32.gmra.mxu0 %v5155
        %v5336 = vpop.f32.mrf.mxu0
        %v5337 = vadd.f32 0.0, %v5336
        %5338 = vmatmul.f32.gmra.mxu0 %v5158
        %v5339 = vpop.f32.mrf.mxu0
        %v5340 = vadd.f32 0.0, %v5339
        %5341 = vmatmul.f32.gmra.mxu0 %v5161
        %v5342 = vpop.f32.mrf.mxu0
        %v5343 = vadd.f32 0.0, %v5342
        %5344 = vmatmul.f32.gmra.mxu0 %v5164
        %v5345 = vpop.f32.mrf.mxu0
        %v5346 = vadd.f32 0.0, %v5345
        %5347 = vmatmul.f32.gmra.mxu0 %v5167
        %v5348 = vpop.f32.mrf.mxu0
        %v5349 = vadd.f32 0.0, %v5348
        %5350 = vmatmul.f32.gmra.mxu0 %v5170
        %v5351 = vpop.f32.mrf.mxu0
        %v5352 = vadd.f32 0.0, %v5351
        %5353 = vmatmul.f32.gmra.mxu0 %v5173
        %v5354 = vpop.f32.mrf.mxu0
        %v5355 = vadd.f32 0.0, %v5354
        %5356 = vmatmul.f32.gmra.mxu0 %v5176
        %v5357 = vpop.f32.mrf.mxu0
        %v5358 = vadd.f32 0.0, %v5357
        %5359 = vmatmul.f32.gmra.mxu0 %v5179
        %v5360 = vpop.f32.mrf.mxu0
        %v5361 = vadd.f32 0.0, %v5360
        %5362 = vmatmul.f32.gmra.mxu0 %v5182
        %v5363 = vpop.f32.mrf.mxu0
        %v5364 = vadd.f32 0.0, %v5363
        %5365 = vmatmul.f32.gmra.mxu0 %v5185
        %v5366 = vpop.f32.mrf.mxu0
        %v5367 = vadd.f32 0.0, %v5366
        %5368 = vmatmul.f32.gmra.mxu0 %v5188
        %v5369 = vpop.f32.mrf.mxu0
        %v5370 = vadd.f32 0.0, %v5369
        %5371 = vmatmul.f32.gmra.mxu0 %v5191
        %v5372 = vpop.f32.mrf.mxu0
        %v5373 = vadd.f32 0.0, %v5372
        %5374 = vmatmul.f32.gmra.mxu0 %v5194
        %v5375 = vpop.f32.mrf.mxu0
        %v5376 = vadd.f32 0.0, %v5375
        %5377 = vmatmul.f32.gmra.mxu0 %v5197
        %v5378 = vpop.f32.mrf.mxu0
        %v5379 = vadd.f32 0.0, %v5378
        %5380 = vmatmul.f32.gmra.mxu0 %v5200
        %v5381 = vpop.f32.mrf.mxu0
        %v5382 = vadd.f32 0.0, %v5381
        %5383 = vmatmul.f32.gmra.mxu0 %v5203
        %v5384 = vpop.f32.mrf.mxu0
        %v5385 = vadd.f32 0.0, %v5384
        %5386 = vmatmul.f32.gmra.mxu0 %v5206
        %v5387 = vpop.f32.mrf.mxu0
        %v5388 = vadd.f32 0.0, %v5387
        %5389 = vdwg.mxu0
        %v5390 = vld [vmem:[#allocation3] sm:$0xff]
        %v5391 = vld [vmem:[#allocation3 + $0x8] sm:$0xff]
        %v5392 = vld [vmem:[#allocation3 + $0x10] sm:$0xff]
        %v5393 = vld [vmem:[#allocation3 + $0x18] sm:$0xff]
        %v5394 = vld [vmem:[#allocation3 + $0x20] sm:$0xff]
        %v5395 = vld [vmem:[#allocation3 + $0x28] sm:$0xff]
        %v5396 = vld [vmem:[#allocation3 + $0x30] sm:$0xff]
        %v5397 = vld [vmem:[#allocation3 + $0x38] sm:$0xff]
        %v5398 = vld [vmem:[#allocation3 + $0x40] sm:$0xff]
        %v5399 = vld [vmem:[#allocation3 + $0x48] sm:$0xff]
        %v5400 = vld [vmem:[#allocation3 + $0x50] sm:$0xff]
        %v5401 = vld [vmem:[#allocation3 + $0x58] sm:$0xff]
        %v5402 = vld [vmem:[#allocation3 + $0x60] sm:$0xff]
        %v5403 = vld [vmem:[#allocation3 + $0x68] sm:$0xff]
        %v5404 = vld [vmem:[#allocation3 + $0x70] sm:$0xff]
        %v5405 = vld [vmem:[#allocation3 + $0x78] sm:$0xff]
        %v5406 = vld [vmem:[#allocation3 + $0x80] sm:$0xff]
        %v5407 = vld [vmem:[#allocation3 + $0x88] sm:$0xff]
        %v5408 = vld [vmem:[#allocation3 + $0x90] sm:$0xff]
        %v5409 = vld [vmem:[#allocation3 + $0x98] sm:$0xff]
        %v5410 = vld [vmem:[#allocation3 + $0xa0] sm:$0xff]
        %v5411 = vld [vmem:[#allocation3 + $0xa8] sm:$0xff]
        %v5412 = vld [vmem:[#allocation3 + $0xb0] sm:$0xff]
        %v5413 = vld [vmem:[#allocation3 + $0xb8] sm:$0xff]
        %v5414 = vld [vmem:[#allocation3 + $0xc0] sm:$0xff]
        %v5415 = vld [vmem:[#allocation3 + $0xc8] sm:$0xff]
        %v5416 = vld [vmem:[#allocation3 + $0xd0] sm:$0xff]
        %v5417 = vld [vmem:[#allocation3 + $0xd8] sm:$0xff]
        %v5418 = vld [vmem:[#allocation3 + $0xe0] sm:$0xff]
        %v5419 = vld [vmem:[#allocation3 + $0xe8] sm:$0xff]
        %v5420 = vld [vmem:[#allocation3 + $0xf0] sm:$0xff]
        %v5421 = vld [vmem:[#allocation3 + $0xf8] sm:$0xff]
        %v5422 = vld [vmem:[#allocation3 + $0x100] sm:$0xff]
        %v5423 = vld [vmem:[#allocation3 + $0x108] sm:$0xff]
        %v5424 = vld [vmem:[#allocation3 + $0x110] sm:$0xff]
        %v5425 = vld [vmem:[#allocation3 + $0x118] sm:$0xff]
        %v5426 = vld [vmem:[#allocation3 + $0x120] sm:$0xff]
        %v5427 = vld [vmem:[#allocation3 + $0x128] sm:$0xff]
        %v5428 = vld [vmem:[#allocation3 + $0x130] sm:$0xff]
        %v5429 = vld [vmem:[#allocation3 + $0x138] sm:$0xff]
        %v5430 = vld [vmem:[#allocation3 + $0x140] sm:$0xff]
        %v5431 = vld [vmem:[#allocation3 + $0x148] sm:$0xff]
        %v5432 = vld [vmem:[#allocation3 + $0x150] sm:$0xff]
        %v5433 = vld [vmem:[#allocation3 + $0x158] sm:$0xff]
        %v5434 = vld [vmem:[#allocation3 + $0x160] sm:$0xff]
        %v5435 = vld [vmem:[#allocation3 + $0x168] sm:$0xff]
        %v5436 = vld [vmem:[#allocation3 + $0x170] sm:$0xff]
        %v5437 = vld [vmem:[#allocation3 + $0x178] sm:$0xff]
        %v5438 = vld [vmem:[#allocation3 + $0x180] sm:$0xff]
        %v5439 = vld [vmem:[#allocation3 + $0x188] sm:$0xff]
        %v5440 = vld [vmem:[#allocation3 + $0x190] sm:$0xff]
        %v5441 = vld [vmem:[#allocation3 + $0x198] sm:$0xff]
        %v5442 = vld [vmem:[#allocation3 + $0x1a0] sm:$0xff]
        %v5443 = vld [vmem:[#allocation3 + $0x1a8] sm:$0xff]
        %v5444 = vld [vmem:[#allocation3 + $0x1b0] sm:$0xff]
        %v5445 = vadd.f32 %v5390, %v5226
        %v5446 = vadd.f32 %v5391, %v5229
        %v5447 = vadd.f32 %v5392, %v5232
        %v5448 = vadd.f32 %v5393, %v5235
        %v5449 = vadd.f32 %v5394, %v5238
        %v5450 = vadd.f32 %v5395, %v5241
        %v5451 = vadd.f32 %v5396, %v5244
        %v5452 = vadd.f32 %v5397, %v5247
        %v5453 = vadd.f32 %v5398, %v5250
        %v5454 = vadd.f32 %v5399, %v5253
        %v5455 = vadd.f32 %v5400, %v5256
        %v5456 = vadd.f32 %v5401, %v5259
        %v5457 = vadd.f32 %v5402, %v5262
        %v5458 = vadd.f32 %v5403, %v5265
        %v5459 = vadd.f32 %v5404, %v5268
        %v5460 = vadd.f32 %v5405, %v5271
        %v5461 = vadd.f32 %v5406, %v5274
        %v5462 = vadd.f32 %v5407, %v5277
        %v5463 = vadd.f32 %v5408, %v5280
        %v5464 = vadd.f32 %v5409, %v5283
        %v5465 = vadd.f32 %v5410, %v5286
        %v5466 = vadd.f32 %v5411, %v5289
        %v5467 = vadd.f32 %v5412, %v5292
        %v5468 = vadd.f32 %v5413, %v5295
        %v5469 = vadd.f32 %v5414, %v5298
        %v5470 = vadd.f32 %v5415, %v5301
        %v5471 = vadd.f32 %v5416, %v5304
        %v5472 = vadd.f32 %v5417, %v5307
        %v5473 = vadd.f32 %v5418, %v5310
        %v5474 = vadd.f32 %v5419, %v5313
        %v5475 = vadd.f32 %v5420, %v5316
        %v5476 = vadd.f32 %v5421, %v5319
        %v5477 = vadd.f32 %v5422, %v5322
        %v5478 = vadd.f32 %v5423, %v5325
        %v5479 = vadd.f32 %v5424, %v5328
        %v5480 = vadd.f32 %v5425, %v5331
        %v5481 = vadd.f32 %v5426, %v5334
        %v5482 = vadd.f32 %v5427, %v5337
        %v5483 = vadd.f32 %v5428, %v5340
        %v5484 = vadd.f32 %v5429, %v5343
        %v5485 = vadd.f32 %v5430, %v5346
        %v5486 = vadd.f32 %v5431, %v5349
        %v5487 = vadd.f32 %v5432, %v5352
        %v5488 = vadd.f32 %v5433, %v5355
        %v5489 = vadd.f32 %v5434, %v5358
        %v5490 = vadd.f32 %v5435, %v5361
        %v5491 = vadd.f32 %v5436, %v5364
        %v5492 = vadd.f32 %v5437, %v5367
        %v5493 = vadd.f32 %v5438, %v5370
        %v5494 = vadd.f32 %v5439, %v5373
        %v5495 = vadd.f32 %v5440, %v5376
        %v5496 = vadd.f32 %v5441, %v5379
        %v5497 = vadd.f32 %v5442, %v5382
        %v5498 = vadd.f32 %v5443, %v5385
        %v5499 = vadd.f32 %v5444, %v5388
        %5500 = vst.msk [vmem:[#allocation3] sm:$0xff] %vm276, %v5445
        %5501 = vst.msk [vmem:[#allocation3 + $0x8] sm:$0xff] %vm276, %v5446
        %5502 = vst.msk [vmem:[#allocation3 + $0x10] sm:$0xff] %vm276, %v5447
        %5503 = vst.msk [vmem:[#allocation3 + $0x18] sm:$0xff] %vm276, %v5448
        %5504 = vst.msk [vmem:[#allocation3 + $0x20] sm:$0xff] %vm276, %v5449
        %5505 = vst.msk [vmem:[#allocation3 + $0x28] sm:$0xff] %vm276, %v5450
        %5506 = vst.msk [vmem:[#allocation3 + $0x30] sm:$0xff] %vm276, %v5451
        %5507 = vst.msk [vmem:[#allocation3 + $0x38] sm:$0xff] %vm276, %v5452
        %5508 = vst.msk [vmem:[#allocation3 + $0x40] sm:$0xff] %vm276, %v5453
        %5509 = vst.msk [vmem:[#allocation3 + $0x48] sm:$0xff] %vm276, %v5454
        %5510 = vst.msk [vmem:[#allocation3 + $0x50] sm:$0xff] %vm276, %v5455
        %5511 = vst.msk [vmem:[#allocation3 + $0x58] sm:$0xff] %vm276, %v5456
        %5512 = vst.msk [vmem:[#allocation3 + $0x60] sm:$0xff] %vm276, %v5457
        %5513 = vst.msk [vmem:[#allocation3 + $0x68] sm:$0xff] %vm276, %v5458
        %5514 = vst.msk [vmem:[#allocation3 + $0x70] sm:$0xff] %vm276, %v5459
        %5515 = vst.msk [vmem:[#allocation3 + $0x78] sm:$0xff] %vm276, %v5460
        %5516 = vst.msk [vmem:[#allocation3 + $0x80] sm:$0xff] %vm276, %v5461
        %5517 = vst.msk [vmem:[#allocation3 + $0x88] sm:$0xff] %vm276, %v5462
        %5518 = vst.msk [vmem:[#allocation3 + $0x90] sm:$0xff] %vm276, %v5463
        %5519 = vst.msk [vmem:[#allocation3 + $0x98] sm:$0xff] %vm276, %v5464
        %5520 = vst.msk [vmem:[#allocation3 + $0xa0] sm:$0xff] %vm276, %v5465
        %5521 = vst.msk [vmem:[#allocation3 + $0xa8] sm:$0xff] %vm276, %v5466
        %5522 = vst.msk [vmem:[#allocation3 + $0xb0] sm:$0xff] %vm276, %v5467
        %5523 = vst.msk [vmem:[#allocation3 + $0xb8] sm:$0xff] %vm276, %v5468
        %5524 = vst.msk [vmem:[#allocation3 + $0xc0] sm:$0xff] %vm276, %v5469
        %5525 = vst.msk [vmem:[#allocation3 + $0xc8] sm:$0xff] %vm276, %v5470
        %5526 = vst.msk [vmem:[#allocation3 + $0xd0] sm:$0xff] %vm276, %v5471
        %5527 = vst.msk [vmem:[#allocation3 + $0xd8] sm:$0xff] %vm276, %v5472
        %5528 = vst.msk [vmem:[#allocation3 + $0xe0] sm:$0xff] %vm276, %v5473
        %5529 = vst.msk [vmem:[#allocation3 + $0xe8] sm:$0xff] %vm276, %v5474
        %5530 = vst.msk [vmem:[#allocation3 + $0xf0] sm:$0xff] %vm276, %v5475
        %5531 = vst.msk [vmem:[#allocation3 + $0xf8] sm:$0xff] %vm276, %v5476
        %5532 = vst.msk [vmem:[#allocation3 + $0x100] sm:$0xff] %vm276, %v5477
        %5533 = vst.msk [vmem:[#allocation3 + $0x108] sm:$0xff] %vm276, %v5478
        %5534 = vst.msk [vmem:[#allocation3 + $0x110] sm:$0xff] %vm276, %v5479
        %5535 = vst.msk [vmem:[#allocation3 + $0x118] sm:$0xff] %vm276, %v5480
        %5536 = vst.msk [vmem:[#allocation3 + $0x120] sm:$0xff] %vm276, %v5481
        %5537 = vst.msk [vmem:[#allocation3 + $0x128] sm:$0xff] %vm276, %v5482
        %5538 = vst.msk [vmem:[#allocation3 + $0x130] sm:$0xff] %vm276, %v5483
        %5539 = vst.msk [vmem:[#allocation3 + $0x138] sm:$0xff] %vm276, %v5484
        %5540 = vst.msk [vmem:[#allocation3 + $0x140] sm:$0xff] %vm276, %v5485
        %5541 = vst.msk [vmem:[#allocation3 + $0x148] sm:$0xff] %vm276, %v5486
        %5542 = vst.msk [vmem:[#allocation3 + $0x150] sm:$0xff] %vm276, %v5487
        %5543 = vst.msk [vmem:[#allocation3 + $0x158] sm:$0xff] %vm276, %v5488
        %5544 = vst.msk [vmem:[#allocation3 + $0x160] sm:$0xff] %vm276, %v5489
        %5545 = vst.msk [vmem:[#allocation3 + $0x168] sm:$0xff] %vm276, %v5490
        %5546 = vst.msk [vmem:[#allocation3 + $0x170] sm:$0xff] %vm276, %v5491
        %5547 = vst.msk [vmem:[#allocation3 + $0x178] sm:$0xff] %vm276, %v5492
        %5548 = vst.msk [vmem:[#allocation3 + $0x180] sm:$0xff] %vm276, %v5493
        %5549 = vst.msk [vmem:[#allocation3 + $0x188] sm:$0xff] %vm276, %v5494
        %5550 = vst.msk [vmem:[#allocation3 + $0x190] sm:$0xff] %vm276, %v5495
        %5551 = vst.msk [vmem:[#allocation3 + $0x198] sm:$0xff] %vm276, %v5496
        %5552 = vst.msk [vmem:[#allocation3 + $0x1a0] sm:$0xff] %vm276, %v5497
        %5553 = vst.msk [vmem:[#allocation3 + $0x1a8] sm:$0xff] %vm276, %v5498
        %5554 = vst.msk [vmem:[#allocation3 + $0x1b0] sm:$0xff] %vm276, %v5499
        %5555 = vst.msk [vmem:[#allocation4] sm:$0xff] %vm276, 0.0
        %5556 = vst.msk [vmem:[#allocation4 + $0x8] sm:$0xff] %vm276, 0.0
        %5557 = vst.msk [vmem:[#allocation4 + $0x10] sm:$0xff] %vm276, 0.0
        %5558 = vst.msk [vmem:[#allocation4 + $0x18] sm:$0xff] %vm276, 0.0
        %5559 = vst.msk [vmem:[#allocation4 + $0x20] sm:$0xff] %vm276, 0.0
        %5560 = vst.msk [vmem:[#allocation4 + $0x28] sm:$0xff] %vm276, 0.0
        %5561 = vst.msk [vmem:[#allocation4 + $0x30] sm:$0xff] %vm276, 0.0
        %5562 = vst.msk [vmem:[#allocation4 + $0x38] sm:$0xff] %vm276, 0.0
        %5563 = vst.msk [vmem:[#allocation4 + $0x40] sm:$0xff] %vm276, 0.0
        %5564 = vst.msk [vmem:[#allocation4 + $0x48] sm:$0xff] %vm276, 0.0
        %5565 = vst.msk [vmem:[#allocation4 + $0x50] sm:$0xff] %vm276, 0.0
        %5566 = vst.msk [vmem:[#allocation4 + $0x58] sm:$0xff] %vm276, 0.0
        %5567 = vst.msk [vmem:[#allocation4 + $0x60] sm:$0xff] %vm276, 0.0
        %5568 = vst.msk [vmem:[#allocation4 + $0x68] sm:$0xff] %vm276, 0.0
        %5569 = vst.msk [vmem:[#allocation4 + $0x70] sm:$0xff] %vm276, 0.0
        %5570 = vst.msk [vmem:[#allocation4 + $0x78] sm:$0xff] %vm276, 0.0
        %5571 = vst.msk [vmem:[#allocation4 + $0x80] sm:$0xff] %vm276, 0.0
        %5572 = vst.msk [vmem:[#allocation4 + $0x88] sm:$0xff] %vm276, 0.0
        %5573 = vst.msk [vmem:[#allocation4 + $0x90] sm:$0xff] %vm276, 0.0
        %5574 = vst.msk [vmem:[#allocation4 + $0x98] sm:$0xf] %vm347, 0.0
        %v5575 = vld [vmem:[%s2] sm:$0x1]
        %v5576 = vld [vmem:[%s3] sm:$0x1]
        %v5577 = vld [vmem:[#allocation3] sm:$0xff]
        %v5578 = vld [vmem:[#allocation3 + $0x8] sm:$0xff]
        %v5579 = vld [vmem:[#allocation3 + $0x10] sm:$0xf]
        %v5580 = vld [vmem:[#allocation3 + $0x16] sm:$0xff]
        %v5581 = vld [vmem:[#allocation3 + $0x1e] sm:$0xff]
        %v5582 = vld [vmem:[#allocation3 + $0x26] sm:$0xf]
        %v5584 = vperm.slane %v5575, 0
        %v5586 = vmul.f32 %v5577, %v5584
        %v5587 = vmul.f32 %v5578, %v5584
        %v5588 = vmul.f32 %v5579, %v5584
        %v5590 = vperm.slane %v5576, 0
        %v5592 = vadd.f32 %v5586, %v5590
        %v5593 = vadd.f32 %v5587, %v5590
        %v5594 = vadd.f32 %v5588, %v5590
        %v5595 = vmul.f32 %v5580, %v5584
        %v5596 = vmul.f32 %v5581, %v5584
        %v5597 = vmul.f32 %v5582, %v5584
        %v5598 = vadd.f32 %v5595, %v5590
        %v5599 = vadd.f32 %v5596, %v5590
        %v5600 = vadd.f32 %v5597, %v5590
        %v5601 = vmax.f32 %v5592, %v5598
        %v5602 = vmax.f32 %v5593, %v5599
        %v5603 = vmax.f32 %v5594, %v5600
        %v5607 = vrot.slane %v5601, 2
        %v5608 = vrot.slane %v5601, 4
        %v5609 = vrot.slane %v5601, 6
        %v5610 = vrot.slane %v5602, 2
        %v5611 = vrot.slane %v5602, 4
        %v5612 = vrot.slane %v5602, 6
        %v5613 = vrot.slane %v5603, 2
        %v5621 = vsel %vm340, %v5601, -inf
        %v5622 = vrot.slane %v5621, 4
        %v5623 = vmax.f32 %v5621, %v5622
        %v5624 = vrot.slane %v5623, 2
        %v5625 = vmax.f32 %v5623, %v5624
        %v5626 = vrot.slane %v5625, 1
        %v5627 = vmax.f32 %v5625, %v5626
        %v5628 = vsel %vm340, %v5607, -inf
        %v5629 = vrot.slane %v5628, 4
        %v5630 = vmax.f32 %v5628, %v5629
        %v5631 = vrot.slane %v5630, 2
        %v5632 = vmax.f32 %v5630, %v5631
        %v5633 = vrot.slane %v5632, 1
        %v5634 = vmax.f32 %v5632, %v5633
        %v5635 = vsel %vm340, %v5608, -inf
        %v5636 = vrot.slane %v5635, 4
        %v5637 = vmax.f32 %v5635, %v5636
        %v5638 = vrot.slane %v5637, 2
        %v5639 = vmax.f32 %v5637, %v5638
        %v5640 = vrot.slane %v5639, 1
        %v5641 = vmax.f32 %v5639, %v5640
        %v5642 = vsel %vm340, %v5609, -inf
        %v5643 = vrot.slane %v5642, 4
        %v5644 = vmax.f32 %v5642, %v5643
        %v5645 = vrot.slane %v5644, 2
        %v5646 = vmax.f32 %v5644, %v5645
        %v5647 = vrot.slane %v5646, 1
        %v5648 = vmax.f32 %v5646, %v5647
        %v5649 = vsel %vm340, %v5602, -inf
        %v5650 = vrot.slane %v5649, 4
        %v5651 = vmax.f32 %v5649, %v5650
        %v5652 = vrot.slane %v5651, 2
        %v5653 = vmax.f32 %v5651, %v5652
        %v5654 = vrot.slane %v5653, 1
        %v5655 = vmax.f32 %v5653, %v5654
        %v5656 = vsel %vm340, %v5610, -inf
        %v5657 = vrot.slane %v5656, 4
        %v5658 = vmax.f32 %v5656, %v5657
        %v5659 = vrot.slane %v5658, 2
        %v5660 = vmax.f32 %v5658, %v5659
        %v5661 = vrot.slane %v5660, 1
        %v5662 = vmax.f32 %v5660, %v5661
        %v5663 = vsel %vm340, %v5611, -inf
        %v5664 = vrot.slane %v5663, 4
        %v5665 = vmax.f32 %v5663, %v5664
        %v5666 = vrot.slane %v5665, 2
        %v5667 = vmax.f32 %v5665, %v5666
        %v5668 = vrot.slane %v5667, 1
        %v5669 = vmax.f32 %v5667, %v5668
        %v5670 = vsel %vm340, %v5612, -inf
        %v5671 = vrot.slane %v5670, 4
        %v5672 = vmax.f32 %v5670, %v5671
        %v5673 = vrot.slane %v5672, 2
        %v5674 = vmax.f32 %v5672, %v5673
        %v5675 = vrot.slane %v5674, 1
        %v5676 = vmax.f32 %v5674, %v5675
        %v5677 = vsel %vm340, %v5603, -inf
        %v5678 = vrot.slane %v5677, 4
        %v5679 = vmax.f32 %v5677, %v5678
        %v5680 = vrot.slane %v5679, 2
        %v5681 = vmax.f32 %v5679, %v5680
        %v5682 = vrot.slane %v5681, 1
        %v5683 = vmax.f32 %v5681, %v5682
        %v5684 = vsel %vm340, %v5613, -inf
        %v5685 = vrot.slane %v5684, 4
        %v5686 = vmax.f32 %v5684, %v5685
        %v5687 = vrot.slane %v5686, 2
        %v5688 = vmax.f32 %v5686, %v5687
        %v5689 = vrot.slane %v5688, 1
        %v5690 = vmax.f32 %v5688, %v5689
        %v5691 = vmax.f32 %v5627, 0.0
        %v5692 = vmax.f32 %v5634, 0.0
        %v5693 = vmax.f32 %v5641, 0.0
        %v5694 = vmax.f32 %v5648, 0.0
        %v5695 = vmax.f32 %v5655, 0.0
        %v5696 = vmax.f32 %v5662, 0.0
        %v5697 = vmax.f32 %v5669, 0.0
        %v5698 = vmax.f32 %v5676, 0.0
        %v5699 = vmax.f32 %v5683, 0.0
        %v5700 = vmax.f32 %v5690, 0.0
        %vm5711 = vcmask 1041409
        %v5712 = vsel %vm5711, %v5692, %v5691
        %vm5713 = vcmask 1042434
        %v5714 = vsel %vm5713, %v5693, %v5712
        %vm5715 = vcmask 1043459
        %v5716 = vsel %vm5715, %v5694, %v5714
        %vm5717 = vcmask 1044484
        %v5718 = vsel %vm5717, %v5695, %v5716
        %vm5719 = vcmask 1045509
        %v5720 = vsel %vm5719, %v5696, %v5718
        %vm5721 = vcmask 1046534
        %v5722 = vsel %vm5721, %v5697, %v5720
        %vm5723 = vcmask 1047559
        %v5724 = vsel %vm5723, %v5698, %v5722
        %v5725 = vsel %vm5711, %v5700, %v5699
        %5728 = vst.msk [vmem:[#allocation4 + $0xd] sm:$0xff] %vm276, %v5724
        %5729 = vst.msk [vmem:[#allocation4 + $0x15] sm:$0x3] %vm340, %v5725
        %v5730 = vld [vmem:[#allocation3 + $0x2c] sm:$0xff]
        %v5731 = vld [vmem:[#allocation3 + $0x34] sm:$0xff]
        %v5732 = vld [vmem:[#allocation3 + $0x3c] sm:$0xf]
        %v5733 = vld [vmem:[#allocation3 + $0x42] sm:$0xff]
        %v5734 = vld [vmem:[#allocation3 + $0x4a] sm:$0xff]
        %v5735 = vld [vmem:[#allocation3 + $0x52] sm:$0xf]
        %v5736 = vmul.f32 %v5730, %v5584
        %v5737 = vmul.f32 %v5731, %v5584
        %v5738 = vmul.f32 %v5732, %v5584
        %v5739 = vadd.f32 %v5736, %v5590
        %v5740 = vadd.f32 %v5737, %v5590
        %v5741 = vadd.f32 %v5738, %v5590
        %v5742 = vmul.f32 %v5733, %v5584
        %v5743 = vmul.f32 %v5734, %v5584
        %v5744 = vmul.f32 %v5735, %v5584
        %v5745 = vadd.f32 %v5742, %v5590
        %v5746 = vadd.f32 %v5743, %v5590
        %v5747 = vadd.f32 %v5744, %v5590
        %v5748 = vmax.f32 %v5739, %v5745
        %v5749 = vmax.f32 %v5740, %v5746
        %v5750 = vmax.f32 %v5741, %v5747
        %v5754 = vrot.slane %v5748, 2
        %v5755 = vrot.slane %v5748, 4
        %v5756 = vrot.slane %v5748, 6
        %v5757 = vrot.slane %v5749, 2
        %v5758 = vrot.slane %v5749, 4
        %v5759 = vrot.slane %v5749, 6
        %v5760 = vrot.slane %v5750, 2
        %v5768 = vsel %vm340, %v5748, -inf
        %v5769 = vrot.slane %v5768, 4
        %v5770 = vmax.f32 %v5768, %v5769
        %v5771 = vrot.slane %v5770, 2
        %v5772 = vmax.f32 %v5770, %v5771
        %v5773 = vrot.slane %v5772, 1
        %v5774 = vmax.f32 %v5772, %v5773
        %v5775 = vsel %vm340, %v5754, -inf
        %v5776 = vrot.slane %v5775, 4
        %v5777 = vmax.f32 %v5775, %v5776
        %v5778 = vrot.slane %v5777, 2
        %v5779 = vmax.f32 %v5777, %v5778
        %v5780 = vrot.slane %v5779, 1
        %v5781 = vmax.f32 %v5779, %v5780
        %v5782 = vsel %vm340, %v5755, -inf
        %v5783 = vrot.slane %v5782, 4
        %v5784 = vmax.f32 %v5782, %v5783
        %v5785 = vrot.slane %v5784, 2
        %v5786 = vmax.f32 %v5784, %v5785
        %v5787 = vrot.slane %v5786, 1
        %v5788 = vmax.f32 %v5786, %v5787
        %v5789 = vsel %vm340, %v5756, -inf
        %v5790 = vrot.slane %v5789, 4
        %v5791 = vmax.f32 %v5789, %v5790
        %v5792 = vrot.slane %v5791, 2
        %v5793 = vmax.f32 %v5791, %v5792
        %v5794 = vrot.slane %v5793, 1
        %v5795 = vmax.f32 %v5793, %v5794
        %v5796 = vsel %vm340, %v5749, -inf
        %v5797 = vrot.slane %v5796, 4
        %v5798 = vmax.f32 %v5796, %v5797
        %v5799 = vrot.slane %v5798, 2
        %v5800 = vmax.f32 %v5798, %v5799
        %v5801 = vrot.slane %v5800, 1
        %v5802 = vmax.f32 %v5800, %v5801
        %v5803 = vsel %vm340, %v5757, -inf
        %v5804 = vrot.slane %v5803, 4
        %v5805 = vmax.f32 %v5803, %v5804
        %v5806 = vrot.slane %v5805, 2
        %v5807 = vmax.f32 %v5805, %v5806
        %v5808 = vrot.slane %v5807, 1
        %v5809 = vmax.f32 %v5807, %v5808
        %v5810 = vsel %vm340, %v5758, -inf
        %v5811 = vrot.slane %v5810, 4
        %v5812 = vmax.f32 %v5810, %v5811
        %v5813 = vrot.slane %v5812, 2
        %v5814 = vmax.f32 %v5812, %v5813
        %v5815 = vrot.slane %v5814, 1
        %v5816 = vmax.f32 %v5814, %v5815
        %v5817 = vsel %vm340, %v5759, -inf
        %v5818 = vrot.slane %v5817, 4
        %v5819 = vmax.f32 %v5817, %v5818
        %v5820 = vrot.slane %v5819, 2
        %v5821 = vmax.f32 %v5819, %v5820
        %v5822 = vrot.slane %v5821, 1
        %v5823 = vmax.f32 %v5821, %v5822
        %v5824 = vsel %vm340, %v5750, -inf
        %v5825 = vrot.slane %v5824, 4
        %v5826 = vmax.f32 %v5824, %v5825
        %v5827 = vrot.slane %v5826, 2
        %v5828 = vmax.f32 %v5826, %v5827
        %v5829 = vrot.slane %v5828, 1
        %v5830 = vmax.f32 %v5828, %v5829
        %v5831 = vsel %vm340, %v5760, -inf
        %v5832 = vrot.slane %v5831, 4
        %v5833 = vmax.f32 %v5831, %v5832
        %v5834 = vrot.slane %v5833, 2
        %v5835 = vmax.f32 %v5833, %v5834
        %v5836 = vrot.slane %v5835, 1
        %v5837 = vmax.f32 %v5835, %v5836
        %v5838 = vmax.f32 %v5774, 0.0
        %v5839 = vmax.f32 %v5781, 0.0
        %v5840 = vmax.f32 %v5788, 0.0
        %v5841 = vmax.f32 %v5795, 0.0
        %v5842 = vmax.f32 %v5802, 0.0
        %v5843 = vmax.f32 %v5809, 0.0
        %v5844 = vmax.f32 %v5816, 0.0
        %v5845 = vmax.f32 %v5823, 0.0
        %v5846 = vmax.f32 %v5830, 0.0
        %v5847 = vmax.f32 %v5837, 0.0
        %v5858 = vsel %vm5711, %v5839, %v5838
        %v5859 = vsel %vm5713, %v5840, %v5858
        %v5860 = vsel %vm5715, %v5841, %v5859
        %v5861 = vsel %vm5717, %v5842, %v5860
        %v5862 = vsel %vm5719, %v5843, %v5861
        %v5863 = vsel %vm5721, %v5844, %v5862
        %v5864 = vsel %vm5723, %v5845, %v5863
        %v5865 = vsel %vm5711, %v5847, %v5846
        %5868 = vst.msk [vmem:[#allocation4 + $0x19] sm:$0xff] %vm276, %v5864
        %5869 = vst.msk [vmem:[#allocation4 + $0x21] sm:$0x3] %vm340, %v5865
        %v5870 = vld [vmem:[#allocation3 + $0x58] sm:$0xff]
        %v5871 = vld [vmem:[#allocation3 + $0x60] sm:$0xff]
        %v5872 = vld [vmem:[#allocation3 + $0x68] sm:$0xf]
        %v5873 = vld [vmem:[#allocation3 + $0x6e] sm:$0xff]
        %v5874 = vld [vmem:[#allocation3 + $0x76] sm:$0xff]
        %v5875 = vld [vmem:[#allocation3 + $0x7e] sm:$0xf]
        %v5876 = vmul.f32 %v5870, %v5584
        %v5877 = vmul.f32 %v5871, %v5584
        %v5878 = vmul.f32 %v5872, %v5584
        %v5879 = vadd.f32 %v5876, %v5590
        %v5880 = vadd.f32 %v5877, %v5590
        %v5881 = vadd.f32 %v5878, %v5590
        %v5882 = vmul.f32 %v5873, %v5584
        %v5883 = vmul.f32 %v5874, %v5584
        %v5884 = vmul.f32 %v5875, %v5584
        %v5885 = vadd.f32 %v5882, %v5590
        %v5886 = vadd.f32 %v5883, %v5590
        %v5887 = vadd.f32 %v5884, %v5590
        %v5888 = vmax.f32 %v5879, %v5885
        %v5889 = vmax.f32 %v5880, %v5886
        %v5890 = vmax.f32 %v5881, %v5887
        %v5894 = vrot.slane %v5888, 2
        %v5895 = vrot.slane %v5888, 4
        %v5896 = vrot.slane %v5888, 6
        %v5897 = vrot.slane %v5889, 2
        %v5898 = vrot.slane %v5889, 4
        %v5899 = vrot.slane %v5889, 6
        %v5900 = vrot.slane %v5890, 2
        %v5908 = vsel %vm340, %v5888, -inf
        %v5909 = vrot.slane %v5908, 4
        %v5910 = vmax.f32 %v5908, %v5909
        %v5911 = vrot.slane %v5910, 2
        %v5912 = vmax.f32 %v5910, %v5911
        %v5913 = vrot.slane %v5912, 1
        %v5914 = vmax.f32 %v5912, %v5913
        %v5915 = vsel %vm340, %v5894, -inf
        %v5916 = vrot.slane %v5915, 4
        %v5917 = vmax.f32 %v5915, %v5916
        %v5918 = vrot.slane %v5917, 2
        %v5919 = vmax.f32 %v5917, %v5918
        %v5920 = vrot.slane %v5919, 1
        %v5921 = vmax.f32 %v5919, %v5920
        %v5922 = vsel %vm340, %v5895, -inf
        %v5923 = vrot.slane %v5922, 4
        %v5924 = vmax.f32 %v5922, %v5923
        %v5925 = vrot.slane %v5924, 2
        %v5926 = vmax.f32 %v5924, %v5925
        %v5927 = vrot.slane %v5926, 1
        %v5928 = vmax.f32 %v5926, %v5927
        %v5929 = vsel %vm340, %v5896, -inf
        %v5930 = vrot.slane %v5929, 4
        %v5931 = vmax.f32 %v5929, %v5930
        %v5932 = vrot.slane %v5931, 2
        %v5933 = vmax.f32 %v5931, %v5932
        %v5934 = vrot.slane %v5933, 1
        %v5935 = vmax.f32 %v5933, %v5934
        %v5936 = vsel %vm340, %v5889, -inf
        %v5937 = vrot.slane %v5936, 4
        %v5938 = vmax.f32 %v5936, %v5937
        %v5939 = vrot.slane %v5938, 2
        %v5940 = vmax.f32 %v5938, %v5939
        %v5941 = vrot.slane %v5940, 1
        %v5942 = vmax.f32 %v5940, %v5941
        %v5943 = vsel %vm340, %v5897, -inf
        %v5944 = vrot.slane %v5943, 4
        %v5945 = vmax.f32 %v5943, %v5944
        %v5946 = vrot.slane %v5945, 2
        %v5947 = vmax.f32 %v5945, %v5946
        %v5948 = vrot.slane %v5947, 1
        %v5949 = vmax.f32 %v5947, %v5948
        %v5950 = vsel %vm340, %v5898, -inf
        %v5951 = vrot.slane %v5950, 4
        %v5952 = vmax.f32 %v5950, %v5951
        %v5953 = vrot.slane %v5952, 2
        %v5954 = vmax.f32 %v5952, %v5953
        %v5955 = vrot.slane %v5954, 1
        %v5956 = vmax.f32 %v5954, %v5955
        %v5957 = vsel %vm340, %v5899, -inf
        %v5958 = vrot.slane %v5957, 4
        %v5959 = vmax.f32 %v5957, %v5958
        %v5960 = vrot.slane %v5959, 2
        %v5961 = vmax.f32 %v5959, %v5960
        %v5962 = vrot.slane %v5961, 1
        %v5963 = vmax.f32 %v5961, %v5962
        %v5964 = vsel %vm340, %v5890, -inf
        %v5965 = vrot.slane %v5964, 4
        %v5966 = vmax.f32 %v5964, %v5965
        %v5967 = vrot.slane %v5966, 2
        %v5968 = vmax.f32 %v5966, %v5967
        %v5969 = vrot.slane %v5968, 1
        %v5970 = vmax.f32 %v5968, %v5969
        %v5971 = vsel %vm340, %v5900, -inf
        %v5972 = vrot.slane %v5971, 4
        %v5973 = vmax.f32 %v5971, %v5972
        %v5974 = vrot.slane %v5973, 2
        %v5975 = vmax.f32 %v5973, %v5974
        %v5976 = vrot.slane %v5975, 1
        %v5977 = vmax.f32 %v5975, %v5976
        %v5978 = vmax.f32 %v5914, 0.0
        %v5979 = vmax.f32 %v5921, 0.0
        %v5980 = vmax.f32 %v5928, 0.0
        %v5981 = vmax.f32 %v5935, 0.0
        %v5982 = vmax.f32 %v5942, 0.0
        %v5983 = vmax.f32 %v5949, 0.0
        %v5984 = vmax.f32 %v5956, 0.0
        %v5985 = vmax.f32 %v5963, 0.0
        %v5986 = vmax.f32 %v5970, 0.0
        %v5987 = vmax.f32 %v5977, 0.0
        %v5998 = vsel %vm5711, %v5979, %v5978
        %v5999 = vsel %vm5713, %v5980, %v5998
        %v6000 = vsel %vm5715, %v5981, %v5999
        %v6001 = vsel %vm5717, %v5982, %v6000
        %v6002 = vsel %vm5719, %v5983, %v6001
        %v6003 = vsel %vm5721, %v5984, %v6002
        %v6004 = vsel %vm5723, %v5985, %v6003
        %v6005 = vsel %vm5711, %v5987, %v5986
        %6008 = vst.msk [vmem:[#allocation4 + $0x25] sm:$0xff] %vm276, %v6004
        %6009 = vst.msk [vmem:[#allocation4 + $0x2d] sm:$0x3] %vm340, %v6005
        %v6010 = vld [vmem:[#allocation3 + $0x84] sm:$0xff]
        %v6011 = vld [vmem:[#allocation3 + $0x8c] sm:$0xff]
        %v6012 = vld [vmem:[#allocation3 + $0x94] sm:$0xf]
        %v6013 = vld [vmem:[#allocation3 + $0x9a] sm:$0xff]
        %v6014 = vld [vmem:[#allocation3 + $0xa2] sm:$0xff]
        %v6015 = vld [vmem:[#allocation3 + $0xaa] sm:$0xf]
        %v6016 = vmul.f32 %v6010, %v5584
        %v6017 = vmul.f32 %v6011, %v5584
        %v6018 = vmul.f32 %v6012, %v5584
        %v6019 = vadd.f32 %v6016, %v5590
        %v6020 = vadd.f32 %v6017, %v5590
        %v6021 = vadd.f32 %v6018, %v5590
        %v6022 = vmul.f32 %v6013, %v5584
        %v6023 = vmul.f32 %v6014, %v5584
        %v6024 = vmul.f32 %v6015, %v5584
        %v6025 = vadd.f32 %v6022, %v5590
        %v6026 = vadd.f32 %v6023, %v5590
        %v6027 = vadd.f32 %v6024, %v5590
        %v6028 = vmax.f32 %v6019, %v6025
        %v6029 = vmax.f32 %v6020, %v6026
        %v6030 = vmax.f32 %v6021, %v6027
        %v6034 = vrot.slane %v6028, 2
        %v6035 = vrot.slane %v6028, 4
        %v6036 = vrot.slane %v6028, 6
        %v6037 = vrot.slane %v6029, 2
        %v6038 = vrot.slane %v6029, 4
        %v6039 = vrot.slane %v6029, 6
        %v6040 = vrot.slane %v6030, 2
        %v6048 = vsel %vm340, %v6028, -inf
        %v6049 = vrot.slane %v6048, 4
        %v6050 = vmax.f32 %v6048, %v6049
        %v6051 = vrot.slane %v6050, 2
        %v6052 = vmax.f32 %v6050, %v6051
        %v6053 = vrot.slane %v6052, 1
        %v6054 = vmax.f32 %v6052, %v6053
        %v6055 = vsel %vm340, %v6034, -inf
        %v6056 = vrot.slane %v6055, 4
        %v6057 = vmax.f32 %v6055, %v6056
        %v6058 = vrot.slane %v6057, 2
        %v6059 = vmax.f32 %v6057, %v6058
        %v6060 = vrot.slane %v6059, 1
        %v6061 = vmax.f32 %v6059, %v6060
        %v6062 = vsel %vm340, %v6035, -inf
        %v6063 = vrot.slane %v6062, 4
        %v6064 = vmax.f32 %v6062, %v6063
        %v6065 = vrot.slane %v6064, 2
        %v6066 = vmax.f32 %v6064, %v6065
        %v6067 = vrot.slane %v6066, 1
        %v6068 = vmax.f32 %v6066, %v6067
        %v6069 = vsel %vm340, %v6036, -inf
        %v6070 = vrot.slane %v6069, 4
        %v6071 = vmax.f32 %v6069, %v6070
        %v6072 = vrot.slane %v6071, 2
        %v6073 = vmax.f32 %v6071, %v6072
        %v6074 = vrot.slane %v6073, 1
        %v6075 = vmax.f32 %v6073, %v6074
        %v6076 = vsel %vm340, %v6029, -inf
        %v6077 = vrot.slane %v6076, 4
        %v6078 = vmax.f32 %v6076, %v6077
        %v6079 = vrot.slane %v6078, 2
        %v6080 = vmax.f32 %v6078, %v6079
        %v6081 = vrot.slane %v6080, 1
        %v6082 = vmax.f32 %v6080, %v6081
        %v6083 = vsel %vm340, %v6037, -inf
        %v6084 = vrot.slane %v6083, 4
        %v6085 = vmax.f32 %v6083, %v6084
        %v6086 = vrot.slane %v6085, 2
        %v6087 = vmax.f32 %v6085, %v6086
        %v6088 = vrot.slane %v6087, 1
        %v6089 = vmax.f32 %v6087, %v6088
        %v6090 = vsel %vm340, %v6038, -inf
        %v6091 = vrot.slane %v6090, 4
        %v6092 = vmax.f32 %v6090, %v6091
        %v6093 = vrot.slane %v6092, 2
        %v6094 = vmax.f32 %v6092, %v6093
        %v6095 = vrot.slane %v6094, 1
        %v6096 = vmax.f32 %v6094, %v6095
        %v6097 = vsel %vm340, %v6039, -inf
        %v6098 = vrot.slane %v6097, 4
        %v6099 = vmax.f32 %v6097, %v6098
        %v6100 = vrot.slane %v6099, 2
        %v6101 = vmax.f32 %v6099, %v6100
        %v6102 = vrot.slane %v6101, 1
        %v6103 = vmax.f32 %v6101, %v6102
        %v6104 = vsel %vm340, %v6030, -inf
        %v6105 = vrot.slane %v6104, 4
        %v6106 = vmax.f32 %v6104, %v6105
        %v6107 = vrot.slane %v6106, 2
        %v6108 = vmax.f32 %v6106, %v6107
        %v6109 = vrot.slane %v6108, 1
        %v6110 = vmax.f32 %v6108, %v6109
        %v6111 = vsel %vm340, %v6040, -inf
        %v6112 = vrot.slane %v6111, 4
        %v6113 = vmax.f32 %v6111, %v6112
        %v6114 = vrot.slane %v6113, 2
        %v6115 = vmax.f32 %v6113, %v6114
        %v6116 = vrot.slane %v6115, 1
        %v6117 = vmax.f32 %v6115, %v6116
        %v6118 = vmax.f32 %v6054, 0.0
        %v6119 = vmax.f32 %v6061, 0.0
        %v6120 = vmax.f32 %v6068, 0.0
        %v6121 = vmax.f32 %v6075, 0.0
        %v6122 = vmax.f32 %v6082, 0.0
        %v6123 = vmax.f32 %v6089, 0.0
        %v6124 = vmax.f32 %v6096, 0.0
        %v6125 = vmax.f32 %v6103, 0.0
        %v6126 = vmax.f32 %v6110, 0.0
        %v6127 = vmax.f32 %v6117, 0.0
        %v6138 = vsel %vm5711, %v6119, %v6118
        %v6139 = vsel %vm5713, %v6120, %v6138
        %v6140 = vsel %vm5715, %v6121, %v6139
        %v6141 = vsel %vm5717, %v6122, %v6140
        %v6142 = vsel %vm5719, %v6123, %v6141
        %v6143 = vsel %vm5721, %v6124, %v6142
        %v6144 = vsel %vm5723, %v6125, %v6143
        %v6145 = vsel %vm5711, %v6127, %v6126
        %6148 = vst.msk [vmem:[#allocation4 + $0x31] sm:$0xff] %vm276, %v6144
        %6149 = vst.msk [vmem:[#allocation4 + $0x39] sm:$0x3] %vm340, %v6145
        %v6150 = vld [vmem:[#allocation3 + $0xb0] sm:$0xff]
        %v6151 = vld [vmem:[#allocation3 + $0xb8] sm:$0xff]
        %v6152 = vld [vmem:[#allocation3 + $0xc0] sm:$0xf]
        %v6153 = vld [vmem:[#allocation3 + $0xc6] sm:$0xff]
        %v6154 = vld [vmem:[#allocation3 + $0xce] sm:$0xff]
        %v6155 = vld [vmem:[#allocation3 + $0xd6] sm:$0xf]
        %v6156 = vmul.f32 %v6150, %v5584
        %v6157 = vmul.f32 %v6151, %v5584
        %v6158 = vmul.f32 %v6152, %v5584
        %v6159 = vadd.f32 %v6156, %v5590
        %v6160 = vadd.f32 %v6157, %v5590
        %v6161 = vadd.f32 %v6158, %v5590
        %v6162 = vmul.f32 %v6153, %v5584
        %v6163 = vmul.f32 %v6154, %v5584
        %v6164 = vmul.f32 %v6155, %v5584
        %v6165 = vadd.f32 %v6162, %v5590
        %v6166 = vadd.f32 %v6163, %v5590
        %v6167 = vadd.f32 %v6164, %v5590
        %v6168 = vmax.f32 %v6159, %v6165
        %v6169 = vmax.f32 %v6160, %v6166
        %v6170 = vmax.f32 %v6161, %v6167
        %v6174 = vrot.slane %v6168, 2
        %v6175 = vrot.slane %v6168, 4
        %v6176 = vrot.slane %v6168, 6
        %v6177 = vrot.slane %v6169, 2
        %v6178 = vrot.slane %v6169, 4
        %v6179 = vrot.slane %v6169, 6
        %v6180 = vrot.slane %v6170, 2
        %v6188 = vsel %vm340, %v6168, -inf
        %v6189 = vrot.slane %v6188, 4
        %v6190 = vmax.f32 %v6188, %v6189
        %v6191 = vrot.slane %v6190, 2
        %v6192 = vmax.f32 %v6190, %v6191
        %v6193 = vrot.slane %v6192, 1
        %v6194 = vmax.f32 %v6192, %v6193
        %v6195 = vsel %vm340, %v6174, -inf
        %v6196 = vrot.slane %v6195, 4
        %v6197 = vmax.f32 %v6195, %v6196
        %v6198 = vrot.slane %v6197, 2
        %v6199 = vmax.f32 %v6197, %v6198
        %v6200 = vrot.slane %v6199, 1
        %v6201 = vmax.f32 %v6199, %v6200
        %v6202 = vsel %vm340, %v6175, -inf
        %v6203 = vrot.slane %v6202, 4
        %v6204 = vmax.f32 %v6202, %v6203
        %v6205 = vrot.slane %v6204, 2
        %v6206 = vmax.f32 %v6204, %v6205
        %v6207 = vrot.slane %v6206, 1
        %v6208 = vmax.f32 %v6206, %v6207
        %v6209 = vsel %vm340, %v6176, -inf
        %v6210 = vrot.slane %v6209, 4
        %v6211 = vmax.f32 %v6209, %v6210
        %v6212 = vrot.slane %v6211, 2
        %v6213 = vmax.f32 %v6211, %v6212
        %v6214 = vrot.slane %v6213, 1
        %v6215 = vmax.f32 %v6213, %v6214
        %v6216 = vsel %vm340, %v6169, -inf
        %v6217 = vrot.slane %v6216, 4
        %v6218 = vmax.f32 %v6216, %v6217
        %v6219 = vrot.slane %v6218, 2
        %v6220 = vmax.f32 %v6218, %v6219
        %v6221 = vrot.slane %v6220, 1
        %v6222 = vmax.f32 %v6220, %v6221
        %v6223 = vsel %vm340, %v6177, -inf
        %v6224 = vrot.slane %v6223, 4
        %v6225 = vmax.f32 %v6223, %v6224
        %v6226 = vrot.slane %v6225, 2
        %v6227 = vmax.f32 %v6225, %v6226
        %v6228 = vrot.slane %v6227, 1
        %v6229 = vmax.f32 %v6227, %v6228
        %v6230 = vsel %vm340, %v6178, -inf
        %v6231 = vrot.slane %v6230, 4
        %v6232 = vmax.f32 %v6230, %v6231
        %v6233 = vrot.slane %v6232, 2
        %v6234 = vmax.f32 %v6232, %v6233
        %v6235 = vrot.slane %v6234, 1
        %v6236 = vmax.f32 %v6234, %v6235
        %v6237 = vsel %vm340, %v6179, -inf
        %v6238 = vrot.slane %v6237, 4
        %v6239 = vmax.f32 %v6237, %v6238
        %v6240 = vrot.slane %v6239, 2
        %v6241 = vmax.f32 %v6239, %v6240
        %v6242 = vrot.slane %v6241, 1
        %v6243 = vmax.f32 %v6241, %v6242
        %v6244 = vsel %vm340, %v6170, -inf
        %v6245 = vrot.slane %v6244, 4
        %v6246 = vmax.f32 %v6244, %v6245
        %v6247 = vrot.slane %v6246, 2
        %v6248 = vmax.f32 %v6246, %v6247
        %v6249 = vrot.slane %v6248, 1
        %v6250 = vmax.f32 %v6248, %v6249
        %v6251 = vsel %vm340, %v6180, -inf
        %v6252 = vrot.slane %v6251, 4
        %v6253 = vmax.f32 %v6251, %v6252
        %v6254 = vrot.slane %v6253, 2
        %v6255 = vmax.f32 %v6253, %v6254
        %v6256 = vrot.slane %v6255, 1
        %v6257 = vmax.f32 %v6255, %v6256
        %v6258 = vmax.f32 %v6194, 0.0
        %v6259 = vmax.f32 %v6201, 0.0
        %v6260 = vmax.f32 %v6208, 0.0
        %v6261 = vmax.f32 %v6215, 0.0
        %v6262 = vmax.f32 %v6222, 0.0
        %v6263 = vmax.f32 %v6229, 0.0
        %v6264 = vmax.f32 %v6236, 0.0
        %v6265 = vmax.f32 %v6243, 0.0
        %v6266 = vmax.f32 %v6250, 0.0
        %v6267 = vmax.f32 %v6257, 0.0
        %v6278 = vsel %vm5711, %v6259, %v6258
        %v6279 = vsel %vm5713, %v6260, %v6278
        %v6280 = vsel %vm5715, %v6261, %v6279
        %v6281 = vsel %vm5717, %v6262, %v6280
        %v6282 = vsel %vm5719, %v6263, %v6281
        %v6283 = vsel %vm5721, %v6264, %v6282
        %v6284 = vsel %vm5723, %v6265, %v6283
        %v6285 = vsel %vm5711, %v6267, %v6266
        %6288 = vst.msk [vmem:[#allocation4 + $0x3d] sm:$0xff] %vm276, %v6284
        %6289 = vst.msk [vmem:[#allocation4 + $0x45] sm:$0x3] %vm340, %v6285
        %v6290 = vld [vmem:[#allocation3 + $0xdc] sm:$0xff]
        %v6291 = vld [vmem:[#allocation3 + $0xe4] sm:$0xff]
        %v6292 = vld [vmem:[#allocation3 + $0xec] sm:$0xf]
        %v6293 = vld [vmem:[#allocation3 + $0xf2] sm:$0xff]
        %v6294 = vld [vmem:[#allocation3 + $0xfa] sm:$0xff]
        %v6295 = vld [vmem:[#allocation3 + $0x102] sm:$0xf]
        %v6296 = vmul.f32 %v6290, %v5584
        %v6297 = vmul.f32 %v6291, %v5584
        %v6298 = vmul.f32 %v6292, %v5584
        %v6299 = vadd.f32 %v6296, %v5590
        %v6300 = vadd.f32 %v6297, %v5590
        %v6301 = vadd.f32 %v6298, %v5590
        %v6302 = vmul.f32 %v6293, %v5584
        %v6303 = vmul.f32 %v6294, %v5584
        %v6304 = vmul.f32 %v6295, %v5584
        %v6305 = vadd.f32 %v6302, %v5590
        %v6306 = vadd.f32 %v6303, %v5590
        %v6307 = vadd.f32 %v6304, %v5590
        %v6308 = vmax.f32 %v6299, %v6305
        %v6309 = vmax.f32 %v6300, %v6306
        %v6310 = vmax.f32 %v6301, %v6307
        %v6314 = vrot.slane %v6308, 2
        %v6315 = vrot.slane %v6308, 4
        %v6316 = vrot.slane %v6308, 6
        %v6317 = vrot.slane %v6309, 2
        %v6318 = vrot.slane %v6309, 4
        %v6319 = vrot.slane %v6309, 6
        %v6320 = vrot.slane %v6310, 2
        %v6328 = vsel %vm340, %v6308, -inf
        %v6329 = vrot.slane %v6328, 4
        %v6330 = vmax.f32 %v6328, %v6329
        %v6331 = vrot.slane %v6330, 2
        %v6332 = vmax.f32 %v6330, %v6331
        %v6333 = vrot.slane %v6332, 1
        %v6334 = vmax.f32 %v6332, %v6333
        %v6335 = vsel %vm340, %v6314, -inf
        %v6336 = vrot.slane %v6335, 4
        %v6337 = vmax.f32 %v6335, %v6336
        %v6338 = vrot.slane %v6337, 2
        %v6339 = vmax.f32 %v6337, %v6338
        %v6340 = vrot.slane %v6339, 1
        %v6341 = vmax.f32 %v6339, %v6340
        %v6342 = vsel %vm340, %v6315, -inf
        %v6343 = vrot.slane %v6342, 4
        %v6344 = vmax.f32 %v6342, %v6343
        %v6345 = vrot.slane %v6344, 2
        %v6346 = vmax.f32 %v6344, %v6345
        %v6347 = vrot.slane %v6346, 1
        %v6348 = vmax.f32 %v6346, %v6347
        %v6349 = vsel %vm340, %v6316, -inf
        %v6350 = vrot.slane %v6349, 4
        %v6351 = vmax.f32 %v6349, %v6350
        %v6352 = vrot.slane %v6351, 2
        %v6353 = vmax.f32 %v6351, %v6352
        %v6354 = vrot.slane %v6353, 1
        %v6355 = vmax.f32 %v6353, %v6354
        %v6356 = vsel %vm340, %v6309, -inf
        %v6357 = vrot.slane %v6356, 4
        %v6358 = vmax.f32 %v6356, %v6357
        %v6359 = vrot.slane %v6358, 2
        %v6360 = vmax.f32 %v6358, %v6359
        %v6361 = vrot.slane %v6360, 1
        %v6362 = vmax.f32 %v6360, %v6361
        %v6363 = vsel %vm340, %v6317, -inf
        %v6364 = vrot.slane %v6363, 4
        %v6365 = vmax.f32 %v6363, %v6364
        %v6366 = vrot.slane %v6365, 2
        %v6367 = vmax.f32 %v6365, %v6366
        %v6368 = vrot.slane %v6367, 1
        %v6369 = vmax.f32 %v6367, %v6368
        %v6370 = vsel %vm340, %v6318, -inf
        %v6371 = vrot.slane %v6370, 4
        %v6372 = vmax.f32 %v6370, %v6371
        %v6373 = vrot.slane %v6372, 2
        %v6374 = vmax.f32 %v6372, %v6373
        %v6375 = vrot.slane %v6374, 1
        %v6376 = vmax.f32 %v6374, %v6375
        %v6377 = vsel %vm340, %v6319, -inf
        %v6378 = vrot.slane %v6377, 4
        %v6379 = vmax.f32 %v6377, %v6378
        %v6380 = vrot.slane %v6379, 2
        %v6381 = vmax.f32 %v6379, %v6380
        %v6382 = vrot.slane %v6381, 1
        %v6383 = vmax.f32 %v6381, %v6382
        %v6384 = vsel %vm340, %v6310, -inf
        %v6385 = vrot.slane %v6384, 4
        %v6386 = vmax.f32 %v6384, %v6385
        %v6387 = vrot.slane %v6386, 2
        %v6388 = vmax.f32 %v6386, %v6387
        %v6389 = vrot.slane %v6388, 1
        %v6390 = vmax.f32 %v6388, %v6389
        %v6391 = vsel %vm340, %v6320, -inf
        %v6392 = vrot.slane %v6391, 4
        %v6393 = vmax.f32 %v6391, %v6392
        %v6394 = vrot.slane %v6393, 2
        %v6395 = vmax.f32 %v6393, %v6394
        %v6396 = vrot.slane %v6395, 1
        %v6397 = vmax.f32 %v6395, %v6396
        %v6398 = vmax.f32 %v6334, 0.0
        %v6399 = vmax.f32 %v6341, 0.0
        %v6400 = vmax.f32 %v6348, 0.0
        %v6401 = vmax.f32 %v6355, 0.0
        %v6402 = vmax.f32 %v6362, 0.0
        %v6403 = vmax.f32 %v6369, 0.0
        %v6404 = vmax.f32 %v6376, 0.0
        %v6405 = vmax.f32 %v6383, 0.0
        %v6406 = vmax.f32 %v6390, 0.0
        %v6407 = vmax.f32 %v6397, 0.0
        %v6418 = vsel %vm5711, %v6399, %v6398
        %v6419 = vsel %vm5713, %v6400, %v6418
        %v6420 = vsel %vm5715, %v6401, %v6419
        %v6421 = vsel %vm5717, %v6402, %v6420
        %v6422 = vsel %vm5719, %v6403, %v6421
        %v6423 = vsel %vm5721, %v6404, %v6422
        %v6424 = vsel %vm5723, %v6405, %v6423
        %v6425 = vsel %vm5711, %v6407, %v6406
        %6428 = vst.msk [vmem:[#allocation4 + $0x49] sm:$0xff] %vm276, %v6424
        %6429 = vst.msk [vmem:[#allocation4 + $0x51] sm:$0x3] %vm340, %v6425
        %v6430 = vld [vmem:[#allocation3 + $0x108] sm:$0xff]
        %v6431 = vld [vmem:[#allocation3 + $0x110] sm:$0xff]
        %v6432 = vld [vmem:[#allocation3 + $0x118] sm:$0xf]
        %v6433 = vld [vmem:[#allocation3 + $0x11e] sm:$0xff]
        %v6434 = vld [vmem:[#allocation3 + $0x126] sm:$0xff]
        %v6435 = vld [vmem:[#allocation3 + $0x12e] sm:$0xf]
        %v6436 = vmul.f32 %v6430, %v5584
        %v6437 = vmul.f32 %v6431, %v5584
        %v6438 = vmul.f32 %v6432, %v5584
        %v6439 = vadd.f32 %v6436, %v5590
        %v6440 = vadd.f32 %v6437, %v5590
        %v6441 = vadd.f32 %v6438, %v5590
        %v6442 = vmul.f32 %v6433, %v5584
        %v6443 = vmul.f32 %v6434, %v5584
        %v6444 = vmul.f32 %v6435, %v5584
        %v6445 = vadd.f32 %v6442, %v5590
        %v6446 = vadd.f32 %v6443, %v5590
        %v6447 = vadd.f32 %v6444, %v5590
        %v6448 = vmax.f32 %v6439, %v6445
        %v6449 = vmax.f32 %v6440, %v6446
        %v6450 = vmax.f32 %v6441, %v6447
        %v6454 = vrot.slane %v6448, 2
        %v6455 = vrot.slane %v6448, 4
        %v6456 = vrot.slane %v6448, 6
        %v6457 = vrot.slane %v6449, 2
        %v6458 = vrot.slane %v6449, 4
        %v6459 = vrot.slane %v6449, 6
        %v6460 = vrot.slane %v6450, 2
        %v6468 = vsel %vm340, %v6448, -inf
        %v6469 = vrot.slane %v6468, 4
        %v6470 = vmax.f32 %v6468, %v6469
        %v6471 = vrot.slane %v6470, 2
        %v6472 = vmax.f32 %v6470, %v6471
        %v6473 = vrot.slane %v6472, 1
        %v6474 = vmax.f32 %v6472, %v6473
        %v6475 = vsel %vm340, %v6454, -inf
        %v6476 = vrot.slane %v6475, 4
        %v6477 = vmax.f32 %v6475, %v6476
        %v6478 = vrot.slane %v6477, 2
        %v6479 = vmax.f32 %v6477, %v6478
        %v6480 = vrot.slane %v6479, 1
        %v6481 = vmax.f32 %v6479, %v6480
        %v6482 = vsel %vm340, %v6455, -inf
        %v6483 = vrot.slane %v6482, 4
        %v6484 = vmax.f32 %v6482, %v6483
        %v6485 = vrot.slane %v6484, 2
        %v6486 = vmax.f32 %v6484, %v6485
        %v6487 = vrot.slane %v6486, 1
        %v6488 = vmax.f32 %v6486, %v6487
        %v6489 = vsel %vm340, %v6456, -inf
        %v6490 = vrot.slane %v6489, 4
        %v6491 = vmax.f32 %v6489, %v6490
        %v6492 = vrot.slane %v6491, 2
        %v6493 = vmax.f32 %v6491, %v6492
        %v6494 = vrot.slane %v6493, 1
        %v6495 = vmax.f32 %v6493, %v6494
        %v6496 = vsel %vm340, %v6449, -inf
        %v6497 = vrot.slane %v6496, 4
        %v6498 = vmax.f32 %v6496, %v6497
        %v6499 = vrot.slane %v6498, 2
        %v6500 = vmax.f32 %v6498, %v6499
        %v6501 = vrot.slane %v6500, 1
        %v6502 = vmax.f32 %v6500, %v6501
        %v6503 = vsel %vm340, %v6457, -inf
        %v6504 = vrot.slane %v6503, 4
        %v6505 = vmax.f32 %v6503, %v6504
        %v6506 = vrot.slane %v6505, 2
        %v6507 = vmax.f32 %v6505, %v6506
        %v6508 = vrot.slane %v6507, 1
        %v6509 = vmax.f32 %v6507, %v6508
        %v6510 = vsel %vm340, %v6458, -inf
        %v6511 = vrot.slane %v6510, 4
        %v6512 = vmax.f32 %v6510, %v6511
        %v6513 = vrot.slane %v6512, 2
        %v6514 = vmax.f32 %v6512, %v6513
        %v6515 = vrot.slane %v6514, 1
        %v6516 = vmax.f32 %v6514, %v6515
        %v6517 = vsel %vm340, %v6459, -inf
        %v6518 = vrot.slane %v6517, 4
        %v6519 = vmax.f32 %v6517, %v6518
        %v6520 = vrot.slane %v6519, 2
        %v6521 = vmax.f32 %v6519, %v6520
        %v6522 = vrot.slane %v6521, 1
        %v6523 = vmax.f32 %v6521, %v6522
        %v6524 = vsel %vm340, %v6450, -inf
        %v6525 = vrot.slane %v6524, 4
        %v6526 = vmax.f32 %v6524, %v6525
        %v6527 = vrot.slane %v6526, 2
        %v6528 = vmax.f32 %v6526, %v6527
        %v6529 = vrot.slane %v6528, 1
        %v6530 = vmax.f32 %v6528, %v6529
        %v6531 = vsel %vm340, %v6460, -inf
        %v6532 = vrot.slane %v6531, 4
        %v6533 = vmax.f32 %v6531, %v6532
        %v6534 = vrot.slane %v6533, 2
        %v6535 = vmax.f32 %v6533, %v6534
        %v6536 = vrot.slane %v6535, 1
        %v6537 = vmax.f32 %v6535, %v6536
        %v6538 = vmax.f32 %v6474, 0.0
        %v6539 = vmax.f32 %v6481, 0.0
        %v6540 = vmax.f32 %v6488, 0.0
        %v6541 = vmax.f32 %v6495, 0.0
        %v6542 = vmax.f32 %v6502, 0.0
        %v6543 = vmax.f32 %v6509, 0.0
        %v6544 = vmax.f32 %v6516, 0.0
        %v6545 = vmax.f32 %v6523, 0.0
        %v6546 = vmax.f32 %v6530, 0.0
        %v6547 = vmax.f32 %v6537, 0.0
        %v6558 = vsel %vm5711, %v6539, %v6538
        %v6559 = vsel %vm5713, %v6540, %v6558
        %v6560 = vsel %vm5715, %v6541, %v6559
        %v6561 = vsel %vm5717, %v6542, %v6560
        %v6562 = vsel %vm5719, %v6543, %v6561
        %v6563 = vsel %vm5721, %v6544, %v6562
        %v6564 = vsel %vm5723, %v6545, %v6563
        %v6565 = vsel %vm5711, %v6547, %v6546
        %6568 = vst.msk [vmem:[#allocation4 + $0x55] sm:$0xff] %vm276, %v6564
        %6569 = vst.msk [vmem:[#allocation4 + $0x5d] sm:$0x3] %vm340, %v6565
        %v6570 = vld [vmem:[#allocation3 + $0x134] sm:$0xff]
        %v6571 = vld [vmem:[#allocation3 + $0x13c] sm:$0xff]
        %v6572 = vld [vmem:[#allocation3 + $0x144] sm:$0xf]
        %v6573 = vld [vmem:[#allocation3 + $0x14a] sm:$0xff]
        %v6574 = vld [vmem:[#allocation3 + $0x152] sm:$0xff]
        %v6575 = vld [vmem:[#allocation3 + $0x15a] sm:$0xf]
        %v6576 = vmul.f32 %v6570, %v5584
        %v6577 = vmul.f32 %v6571, %v5584
        %v6578 = vmul.f32 %v6572, %v5584
        %v6579 = vadd.f32 %v6576, %v5590
        %v6580 = vadd.f32 %v6577, %v5590
        %v6581 = vadd.f32 %v6578, %v5590
        %v6582 = vmul.f32 %v6573, %v5584
        %v6583 = vmul.f32 %v6574, %v5584
        %v6584 = vmul.f32 %v6575, %v5584
        %v6585 = vadd.f32 %v6582, %v5590
        %v6586 = vadd.f32 %v6583, %v5590
        %v6587 = vadd.f32 %v6584, %v5590
        %v6588 = vmax.f32 %v6579, %v6585
        %v6589 = vmax.f32 %v6580, %v6586
        %v6590 = vmax.f32 %v6581, %v6587
        %v6594 = vrot.slane %v6588, 2
        %v6595 = vrot.slane %v6588, 4
        %v6596 = vrot.slane %v6588, 6
        %v6597 = vrot.slane %v6589, 2
        %v6598 = vrot.slane %v6589, 4
        %v6599 = vrot.slane %v6589, 6
        %v6600 = vrot.slane %v6590, 2
        %v6608 = vsel %vm340, %v6588, -inf
        %v6609 = vrot.slane %v6608, 4
        %v6610 = vmax.f32 %v6608, %v6609
        %v6611 = vrot.slane %v6610, 2
        %v6612 = vmax.f32 %v6610, %v6611
        %v6613 = vrot.slane %v6612, 1
        %v6614 = vmax.f32 %v6612, %v6613
        %v6615 = vsel %vm340, %v6594, -inf
        %v6616 = vrot.slane %v6615, 4
        %v6617 = vmax.f32 %v6615, %v6616
        %v6618 = vrot.slane %v6617, 2
        %v6619 = vmax.f32 %v6617, %v6618
        %v6620 = vrot.slane %v6619, 1
        %v6621 = vmax.f32 %v6619, %v6620
        %v6622 = vsel %vm340, %v6595, -inf
        %v6623 = vrot.slane %v6622, 4
        %v6624 = vmax.f32 %v6622, %v6623
        %v6625 = vrot.slane %v6624, 2
        %v6626 = vmax.f32 %v6624, %v6625
        %v6627 = vrot.slane %v6626, 1
        %v6628 = vmax.f32 %v6626, %v6627
        %v6629 = vsel %vm340, %v6596, -inf
        %v6630 = vrot.slane %v6629, 4
        %v6631 = vmax.f32 %v6629, %v6630
        %v6632 = vrot.slane %v6631, 2
        %v6633 = vmax.f32 %v6631, %v6632
        %v6634 = vrot.slane %v6633, 1
        %v6635 = vmax.f32 %v6633, %v6634
        %v6636 = vsel %vm340, %v6589, -inf
        %v6637 = vrot.slane %v6636, 4
        %v6638 = vmax.f32 %v6636, %v6637
        %v6639 = vrot.slane %v6638, 2
        %v6640 = vmax.f32 %v6638, %v6639
        %v6641 = vrot.slane %v6640, 1
        %v6642 = vmax.f32 %v6640, %v6641
        %v6643 = vsel %vm340, %v6597, -inf
        %v6644 = vrot.slane %v6643, 4
        %v6645 = vmax.f32 %v6643, %v6644
        %v6646 = vrot.slane %v6645, 2
        %v6647 = vmax.f32 %v6645, %v6646
        %v6648 = vrot.slane %v6647, 1
        %v6649 = vmax.f32 %v6647, %v6648
        %v6650 = vsel %vm340, %v6598, -inf
        %v6651 = vrot.slane %v6650, 4
        %v6652 = vmax.f32 %v6650, %v6651
        %v6653 = vrot.slane %v6652, 2
        %v6654 = vmax.f32 %v6652, %v6653
        %v6655 = vrot.slane %v6654, 1
        %v6656 = vmax.f32 %v6654, %v6655
        %v6657 = vsel %vm340, %v6599, -inf
        %v6658 = vrot.slane %v6657, 4
        %v6659 = vmax.f32 %v6657, %v6658
        %v6660 = vrot.slane %v6659, 2
        %v6661 = vmax.f32 %v6659, %v6660
        %v6662 = vrot.slane %v6661, 1
        %v6663 = vmax.f32 %v6661, %v6662
        %v6664 = vsel %vm340, %v6590, -inf
        %v6665 = vrot.slane %v6664, 4
        %v6666 = vmax.f32 %v6664, %v6665
        %v6667 = vrot.slane %v6666, 2
        %v6668 = vmax.f32 %v6666, %v6667
        %v6669 = vrot.slane %v6668, 1
        %v6670 = vmax.f32 %v6668, %v6669
        %v6671 = vsel %vm340, %v6600, -inf
        %v6672 = vrot.slane %v6671, 4
        %v6673 = vmax.f32 %v6671, %v6672
        %v6674 = vrot.slane %v6673, 2
        %v6675 = vmax.f32 %v6673, %v6674
        %v6676 = vrot.slane %v6675, 1
        %v6677 = vmax.f32 %v6675, %v6676
        %v6678 = vmax.f32 %v6614, 0.0
        %v6679 = vmax.f32 %v6621, 0.0
        %v6680 = vmax.f32 %v6628, 0.0
        %v6681 = vmax.f32 %v6635, 0.0
        %v6682 = vmax.f32 %v6642, 0.0
        %v6683 = vmax.f32 %v6649, 0.0
        %v6684 = vmax.f32 %v6656, 0.0
        %v6685 = vmax.f32 %v6663, 0.0
        %v6686 = vmax.f32 %v6670, 0.0
        %v6687 = vmax.f32 %v6677, 0.0
        %v6698 = vsel %vm5711, %v6679, %v6678
        %v6699 = vsel %vm5713, %v6680, %v6698
        %v6700 = vsel %vm5715, %v6681, %v6699
        %v6701 = vsel %vm5717, %v6682, %v6700
        %v6702 = vsel %vm5719, %v6683, %v6701
        %v6703 = vsel %vm5721, %v6684, %v6702
        %v6704 = vsel %vm5723, %v6685, %v6703
        %v6705 = vsel %vm5711, %v6687, %v6686
        %6708 = vst.msk [vmem:[#allocation4 + $0x61] sm:$0xff] %vm276, %v6704
        %6709 = vst.msk [vmem:[#allocation4 + $0x69] sm:$0x3] %vm340, %v6705
        %v6710 = vld [vmem:[#allocation3 + $0x160] sm:$0xff]
        %v6711 = vld [vmem:[#allocation3 + $0x168] sm:$0xff]
        %v6712 = vld [vmem:[#allocation3 + $0x170] sm:$0xf]
        %v6713 = vld [vmem:[#allocation3 + $0x176] sm:$0xff]
        %v6714 = vld [vmem:[#allocation3 + $0x17e] sm:$0xff]
        %v6715 = vld [vmem:[#allocation3 + $0x186] sm:$0xf]
        %v6716 = vmul.f32 %v6710, %v5584
        %v6717 = vmul.f32 %v6711, %v5584
        %v6718 = vmul.f32 %v6712, %v5584
        %v6719 = vadd.f32 %v6716, %v5590
        %v6720 = vadd.f32 %v6717, %v5590
        %v6721 = vadd.f32 %v6718, %v5590
        %v6722 = vmul.f32 %v6713, %v5584
        %v6723 = vmul.f32 %v6714, %v5584
        %v6724 = vmul.f32 %v6715, %v5584
        %v6725 = vadd.f32 %v6722, %v5590
        %v6726 = vadd.f32 %v6723, %v5590
        %v6727 = vadd.f32 %v6724, %v5590
        %v6728 = vmax.f32 %v6719, %v6725
        %v6729 = vmax.f32 %v6720, %v6726
        %v6730 = vmax.f32 %v6721, %v6727
        %v6734 = vrot.slane %v6728, 2
        %v6735 = vrot.slane %v6728, 4
        %v6736 = vrot.slane %v6728, 6
        %v6737 = vrot.slane %v6729, 2
        %v6738 = vrot.slane %v6729, 4
        %v6739 = vrot.slane %v6729, 6
        %v6740 = vrot.slane %v6730, 2
        %v6748 = vsel %vm340, %v6728, -inf
        %v6749 = vrot.slane %v6748, 4
        %v6750 = vmax.f32 %v6748, %v6749
        %v6751 = vrot.slane %v6750, 2
        %v6752 = vmax.f32 %v6750, %v6751
        %v6753 = vrot.slane %v6752, 1
        %v6754 = vmax.f32 %v6752, %v6753
        %v6755 = vsel %vm340, %v6734, -inf
        %v6756 = vrot.slane %v6755, 4
        %v6757 = vmax.f32 %v6755, %v6756
        %v6758 = vrot.slane %v6757, 2
        %v6759 = vmax.f32 %v6757, %v6758
        %v6760 = vrot.slane %v6759, 1
        %v6761 = vmax.f32 %v6759, %v6760
        %v6762 = vsel %vm340, %v6735, -inf
        %v6763 = vrot.slane %v6762, 4
        %v6764 = vmax.f32 %v6762, %v6763
        %v6765 = vrot.slane %v6764, 2
        %v6766 = vmax.f32 %v6764, %v6765
        %v6767 = vrot.slane %v6766, 1
        %v6768 = vmax.f32 %v6766, %v6767
        %v6769 = vsel %vm340, %v6736, -inf
        %v6770 = vrot.slane %v6769, 4
        %v6771 = vmax.f32 %v6769, %v6770
        %v6772 = vrot.slane %v6771, 2
        %v6773 = vmax.f32 %v6771, %v6772
        %v6774 = vrot.slane %v6773, 1
        %v6775 = vmax.f32 %v6773, %v6774
        %v6776 = vsel %vm340, %v6729, -inf
        %v6777 = vrot.slane %v6776, 4
        %v6778 = vmax.f32 %v6776, %v6777
        %v6779 = vrot.slane %v6778, 2
        %v6780 = vmax.f32 %v6778, %v6779
        %v6781 = vrot.slane %v6780, 1
        %v6782 = vmax.f32 %v6780, %v6781
        %v6783 = vsel %vm340, %v6737, -inf
        %v6784 = vrot.slane %v6783, 4
        %v6785 = vmax.f32 %v6783, %v6784
        %v6786 = vrot.slane %v6785, 2
        %v6787 = vmax.f32 %v6785, %v6786
        %v6788 = vrot.slane %v6787, 1
        %v6789 = vmax.f32 %v6787, %v6788
        %v6790 = vsel %vm340, %v6738, -inf
        %v6791 = vrot.slane %v6790, 4
        %v6792 = vmax.f32 %v6790, %v6791
        %v6793 = vrot.slane %v6792, 2
        %v6794 = vmax.f32 %v6792, %v6793
        %v6795 = vrot.slane %v6794, 1
        %v6796 = vmax.f32 %v6794, %v6795
        %v6797 = vsel %vm340, %v6739, -inf
        %v6798 = vrot.slane %v6797, 4
        %v6799 = vmax.f32 %v6797, %v6798
        %v6800 = vrot.slane %v6799, 2
        %v6801 = vmax.f32 %v6799, %v6800
        %v6802 = vrot.slane %v6801, 1
        %v6803 = vmax.f32 %v6801, %v6802
        %v6804 = vsel %vm340, %v6730, -inf
        %v6805 = vrot.slane %v6804, 4
        %v6806 = vmax.f32 %v6804, %v6805
        %v6807 = vrot.slane %v6806, 2
        %v6808 = vmax.f32 %v6806, %v6807
        %v6809 = vrot.slane %v6808, 1
        %v6810 = vmax.f32 %v6808, %v6809
        %v6811 = vsel %vm340, %v6740, -inf
        %v6812 = vrot.slane %v6811, 4
        %v6813 = vmax.f32 %v6811, %v6812
        %v6814 = vrot.slane %v6813, 2
        %v6815 = vmax.f32 %v6813, %v6814
        %v6816 = vrot.slane %v6815, 1
        %v6817 = vmax.f32 %v6815, %v6816
        %v6818 = vmax.f32 %v6754, 0.0
        %v6819 = vmax.f32 %v6761, 0.0
        %v6820 = vmax.f32 %v6768, 0.0
        %v6821 = vmax.f32 %v6775, 0.0
        %v6822 = vmax.f32 %v6782, 0.0
        %v6823 = vmax.f32 %v6789, 0.0
        %v6824 = vmax.f32 %v6796, 0.0
        %v6825 = vmax.f32 %v6803, 0.0
        %v6826 = vmax.f32 %v6810, 0.0
        %v6827 = vmax.f32 %v6817, 0.0
        %v6838 = vsel %vm5711, %v6819, %v6818
        %v6839 = vsel %vm5713, %v6820, %v6838
        %v6840 = vsel %vm5715, %v6821, %v6839
        %v6841 = vsel %vm5717, %v6822, %v6840
        %v6842 = vsel %vm5719, %v6823, %v6841
        %v6843 = vsel %vm5721, %v6824, %v6842
        %v6844 = vsel %vm5723, %v6825, %v6843
        %v6845 = vsel %vm5711, %v6827, %v6826
        %6848 = vst.msk [vmem:[#allocation4 + $0x6d] sm:$0xff] %vm276, %v6844
        %6849 = vst.msk [vmem:[#allocation4 + $0x75] sm:$0x3] %vm340, %v6845
        %v6850 = vld [vmem:[#allocation3 + $0x18c] sm:$0xff]
        %v6851 = vld [vmem:[#allocation3 + $0x194] sm:$0xff]
        %v6852 = vld [vmem:[#allocation3 + $0x19c] sm:$0xf]
        %v6853 = vld [vmem:[#allocation3 + $0x1a2] sm:$0xff]
        %v6854 = vld [vmem:[#allocation3 + $0x1aa] sm:$0xff]
        %v6855 = vld [vmem:[#allocation3 + $0x1b2] sm:$0xf]
        %v6856 = vmul.f32 %v6850, %v5584
        %v6857 = vmul.f32 %v6851, %v5584
        %v6858 = vmul.f32 %v6852, %v5584
        %v6859 = vadd.f32 %v6856, %v5590
        %v6860 = vadd.f32 %v6857, %v5590
        %v6861 = vadd.f32 %v6858, %v5590
        %v6862 = vmul.f32 %v6853, %v5584
        %v6863 = vmul.f32 %v6854, %v5584
        %v6864 = vmul.f32 %v6855, %v5584
        %v6865 = vadd.f32 %v6862, %v5590
        %v6866 = vadd.f32 %v6863, %v5590
        %v6867 = vadd.f32 %v6864, %v5590
        %v6868 = vmax.f32 %v6859, %v6865
        %v6869 = vmax.f32 %v6860, %v6866
        %v6870 = vmax.f32 %v6861, %v6867
        %v6874 = vrot.slane %v6868, 2
        %v6875 = vrot.slane %v6868, 4
        %v6876 = vrot.slane %v6868, 6
        %v6877 = vrot.slane %v6869, 2
        %v6878 = vrot.slane %v6869, 4
        %v6879 = vrot.slane %v6869, 6
        %v6880 = vrot.slane %v6870, 2
        %v6888 = vsel %vm340, %v6868, -inf
        %v6889 = vrot.slane %v6888, 4
        %v6890 = vmax.f32 %v6888, %v6889
        %v6891 = vrot.slane %v6890, 2
        %v6892 = vmax.f32 %v6890, %v6891
        %v6893 = vrot.slane %v6892, 1
        %v6894 = vmax.f32 %v6892, %v6893
        %v6895 = vsel %vm340, %v6874, -inf
        %v6896 = vrot.slane %v6895, 4
        %v6897 = vmax.f32 %v6895, %v6896
        %v6898 = vrot.slane %v6897, 2
        %v6899 = vmax.f32 %v6897, %v6898
        %v6900 = vrot.slane %v6899, 1
        %v6901 = vmax.f32 %v6899, %v6900
        %v6902 = vsel %vm340, %v6875, -inf
        %v6903 = vrot.slane %v6902, 4
        %v6904 = vmax.f32 %v6902, %v6903
        %v6905 = vrot.slane %v6904, 2
        %v6906 = vmax.f32 %v6904, %v6905
        %v6907 = vrot.slane %v6906, 1
        %v6908 = vmax.f32 %v6906, %v6907
        %v6909 = vsel %vm340, %v6876, -inf
        %v6910 = vrot.slane %v6909, 4
        %v6911 = vmax.f32 %v6909, %v6910
        %v6912 = vrot.slane %v6911, 2
        %v6913 = vmax.f32 %v6911, %v6912
        %v6914 = vrot.slane %v6913, 1
        %v6915 = vmax.f32 %v6913, %v6914
        %v6916 = vsel %vm340, %v6869, -inf
        %v6917 = vrot.slane %v6916, 4
        %v6918 = vmax.f32 %v6916, %v6917
        %v6919 = vrot.slane %v6918, 2
        %v6920 = vmax.f32 %v6918, %v6919
        %v6921 = vrot.slane %v6920, 1
        %v6922 = vmax.f32 %v6920, %v6921
        %v6923 = vsel %vm340, %v6877, -inf
        %v6924 = vrot.slane %v6923, 4
        %v6925 = vmax.f32 %v6923, %v6924
        %v6926 = vrot.slane %v6925, 2
        %v6927 = vmax.f32 %v6925, %v6926
        %v6928 = vrot.slane %v6927, 1
        %v6929 = vmax.f32 %v6927, %v6928
        %v6930 = vsel %vm340, %v6878, -inf
        %v6931 = vrot.slane %v6930, 4
        %v6932 = vmax.f32 %v6930, %v6931
        %v6933 = vrot.slane %v6932, 2
        %v6934 = vmax.f32 %v6932, %v6933
        %v6935 = vrot.slane %v6934, 1
        %v6936 = vmax.f32 %v6934, %v6935
        %v6937 = vsel %vm340, %v6879, -inf
        %v6938 = vrot.slane %v6937, 4
        %v6939 = vmax.f32 %v6937, %v6938
        %v6940 = vrot.slane %v6939, 2
        %v6941 = vmax.f32 %v6939, %v6940
        %v6942 = vrot.slane %v6941, 1
        %v6943 = vmax.f32 %v6941, %v6942
        %v6944 = vsel %vm340, %v6870, -inf
        %v6945 = vrot.slane %v6944, 4
        %v6946 = vmax.f32 %v6944, %v6945
        %v6947 = vrot.slane %v6946, 2
        %v6948 = vmax.f32 %v6946, %v6947
        %v6949 = vrot.slane %v6948, 1
        %v6950 = vmax.f32 %v6948, %v6949
        %v6951 = vsel %vm340, %v6880, -inf
        %v6952 = vrot.slane %v6951, 4
        %v6953 = vmax.f32 %v6951, %v6952
        %v6954 = vrot.slane %v6953, 2
        %v6955 = vmax.f32 %v6953, %v6954
        %v6956 = vrot.slane %v6955, 1
        %v6957 = vmax.f32 %v6955, %v6956
        %v6958 = vmax.f32 %v6894, 0.0
        %v6959 = vmax.f32 %v6901, 0.0
        %v6960 = vmax.f32 %v6908, 0.0
        %v6961 = vmax.f32 %v6915, 0.0
        %v6962 = vmax.f32 %v6922, 0.0
        %v6963 = vmax.f32 %v6929, 0.0
        %v6964 = vmax.f32 %v6936, 0.0
        %v6965 = vmax.f32 %v6943, 0.0
        %v6966 = vmax.f32 %v6950, 0.0
        %v6967 = vmax.f32 %v6957, 0.0
        %v6978 = vsel %vm5711, %v6959, %v6958
        %v6979 = vsel %vm5713, %v6960, %v6978
        %v6980 = vsel %vm5715, %v6961, %v6979
        %v6981 = vsel %vm5717, %v6962, %v6980
        %v6982 = vsel %vm5719, %v6963, %v6981
        %v6983 = vsel %vm5721, %v6964, %v6982
        %v6984 = vsel %vm5723, %v6965, %v6983
        %v6985 = vsel %vm5711, %v6967, %v6966
        %6988 = vst.msk [vmem:[#allocation4 + $0x79] sm:$0xff] %vm276, %v6984
        %6989 = vst.msk [vmem:[#allocation4 + $0x81] sm:$0x3] %vm340, %v6985
        %v6990 = vld [vmem:[#allocation4] sm:$0xff]
        %v6991 = vld [vmem:[#allocation4 + $0x8] sm:$0xff]
        %v6992 = vld [vmem:[#allocation4 + $0x10] sm:$0xff]
        %v6993 = vld [vmem:[#allocation4 + $0x18] sm:$0xff]
        %v6994 = vld [vmem:[#allocation4 + $0x20] sm:$0xff]
        %v6995 = vld [vmem:[#allocation4 + $0x28] sm:$0xff]
        %v6996 = vld [vmem:[#allocation4 + $0x30] sm:$0xff]
        %v6997 = vld [vmem:[#allocation4 + $0x38] sm:$0xff]
        %v6998 = vld [vmem:[#allocation4 + $0x40] sm:$0xff]
        %v6999 = vld [vmem:[#allocation4 + $0x48] sm:$0xff]
        %v7000 = vld [vmem:[#allocation4 + $0x50] sm:$0xff]
        %v7001 = vld [vmem:[#allocation4 + $0x58] sm:$0xff]
        %v7002 = vld [vmem:[#allocation4 + $0x60] sm:$0xff]
        %v7003 = vld [vmem:[#allocation4 + $0x68] sm:$0xff]
        %v7004 = vld [vmem:[#allocation4 + $0x70] sm:$0xff]
        %v7005 = vld [vmem:[%s4] sm:$0xff]
        %v7006 = vld [vmem:[%s4 + $0x8] sm:$0xff]
        %v7007 = vld [vmem:[%s4 + $0x10] sm:$0xff]
        %v7008 = vld [vmem:[%s4 + $0x18] sm:$0xff]
        %v7009 = vld [vmem:[%s4 + $0x20] sm:$0xff]
        %v7010 = vld [vmem:[%s4 + $0x28] sm:$0xff]
        %v7011 = vld [vmem:[%s4 + $0x30] sm:$0xff]
        %v7012 = vld [vmem:[%s4 + $0x38] sm:$0xff]
        %v7014 = vsel %vm276, %v6990, 0
        %v7017 = vsel %vm276, %v6991, 0
        %v7020 = vsel %vm276, %v6992, 0
        %v7023 = vsel %vm276, %v6993, 0
        %v7026 = vsel %vm276, %v6994, 0
        %v7029 = vsel %vm276, %v6995, 0
        %v7032 = vsel %vm276, %v6996, 0
        %v7035 = vsel %vm276, %v6997, 0
        %v7038 = vsel %vm276, %v6998, 0
        %v7041 = vsel %vm276, %v6999, 0
        %v7044 = vsel %vm276, %v7000, 0
        %v7047 = vsel %vm276, %v7001, 0
        %v7050 = vsel %vm276, %v7002, 0
        %v7053 = vsel %vm276, %v7003, 0
        %v7056 = vsel %vm276, %v7004, 0
        %7058 = vmatpush.msra.mxu0 0.0
        %7059 = vmatpush.msra.mxu0 0.0
        %7060 = vmatpush.msra.mxu0 0.0
        %7061 = vmatpush.msra.mxu0 0.0
        %7062 = vmatpush.msra.mxu0 0.0
        %7063 = vmatpush.msra.mxu0 0.0
        %7064 = vmatpush.msra.mxu0 0.0
        %7065 = vmatpush.msra.mxu0 0.0
        %7066 = vmatpush.msra.mxu0 %v7012
        %7067 = vmatpush.msra.mxu0 %v7011
        %7068 = vmatpush.msra.mxu0 %v7010
        %7069 = vmatpush.msra.mxu0 %v7009
        %7070 = vmatpush.msra.mxu0 %v7008
        %7071 = vmatpush.msra.mxu0 %v7007
        %7072 = vmatpush.msra.mxu0 %v7006
        %7073 = vmatpush.msra.mxu0 %v7005
        %7074 = vmatmul.f32.gmra.mxu0 %v7014
        %v7075 = vpop.f32.mrf.mxu0
        %v7076 = vadd.f32 0.0, %v7075
        %7077 = vmatmul.f32.gmra.mxu0 %v7017
        %v7078 = vpop.f32.mrf.mxu0
        %v7079 = vadd.f32 0.0, %v7078
        %7080 = vmatmul.f32.gmra.mxu0 %v7020
        %v7081 = vpop.f32.mrf.mxu0
        %v7082 = vadd.f32 0.0, %v7081
        %7083 = vmatmul.f32.gmra.mxu0 %v7023
        %v7084 = vpop.f32.mrf.mxu0
        %v7085 = vadd.f32 0.0, %v7084
        %7086 = vmatmul.f32.gmra.mxu0 %v7026
        %v7087 = vpop.f32.mrf.mxu0
        %v7088 = vadd.f32 0.0, %v7087
        %7089 = vmatmul.f32.gmra.mxu0 %v7029
        %v7090 = vpop.f32.mrf.mxu0
        %v7091 = vadd.f32 0.0, %v7090
        %7092 = vmatmul.f32.gmra.mxu0 %v7032
        %v7093 = vpop.f32.mrf.mxu0
        %v7094 = vadd.f32 0.0, %v7093
        %7095 = vmatmul.f32.gmra.mxu0 %v7035
        %v7096 = vpop.f32.mrf.mxu0
        %v7097 = vadd.f32 0.0, %v7096
        %7098 = vmatmul.f32.gmra.mxu0 %v7038
        %v7099 = vpop.f32.mrf.mxu0
        %v7100 = vadd.f32 0.0, %v7099
        %7101 = vmatmul.f32.gmra.mxu0 %v7041
        %v7102 = vpop.f32.mrf.mxu0
        %v7103 = vadd.f32 0.0, %v7102
        %7104 = vmatmul.f32.gmra.mxu0 %v7044
        %v7105 = vpop.f32.mrf.mxu0
        %v7106 = vadd.f32 0.0, %v7105
        %7107 = vmatmul.f32.gmra.mxu0 %v7047
        %v7108 = vpop.f32.mrf.mxu0
        %v7109 = vadd.f32 0.0, %v7108
        %7110 = vmatmul.f32.gmra.mxu0 %v7050
        %v7111 = vpop.f32.mrf.mxu0
        %v7112 = vadd.f32 0.0, %v7111
        %7113 = vmatmul.f32.gmra.mxu0 %v7053
        %v7114 = vpop.f32.mrf.mxu0
        %v7115 = vadd.f32 0.0, %v7114
        %7116 = vmatmul.f32.gmra.mxu0 %v7056
        %v7117 = vpop.f32.mrf.mxu0
        %v7118 = vadd.f32 0.0, %v7117
        %7119 = vdwg.mxu0
        %7120 = vst.msk [vmem:[#allocation5] sm:$0xff] %vm276, %v7076
        %7121 = vst.msk [vmem:[#allocation5 + $0x8] sm:$0xff] %vm276, %v7079
        %7122 = vst.msk [vmem:[#allocation5 + $0x10] sm:$0xff] %vm276, %v7082
        %7123 = vst.msk [vmem:[#allocation5 + $0x18] sm:$0xff] %vm276, %v7085
        %7124 = vst.msk [vmem:[#allocation5 + $0x20] sm:$0xff] %vm276, %v7088
        %7125 = vst.msk [vmem:[#allocation5 + $0x28] sm:$0xff] %vm276, %v7091
        %7126 = vst.msk [vmem:[#allocation5 + $0x30] sm:$0xff] %vm276, %v7094
        %7127 = vst.msk [vmem:[#allocation5 + $0x38] sm:$0xff] %vm276, %v7097
        %7128 = vst.msk [vmem:[#allocation5 + $0x40] sm:$0xff] %vm276, %v7100
        %7129 = vst.msk [vmem:[#allocation5 + $0x48] sm:$0xff] %vm276, %v7103
        %7130 = vst.msk [vmem:[#allocation5 + $0x50] sm:$0xff] %vm276, %v7106
        %7131 = vst.msk [vmem:[#allocation5 + $0x58] sm:$0xff] %vm276, %v7109
        %7132 = vst.msk [vmem:[#allocation5 + $0x60] sm:$0xff] %vm276, %v7112
        %7133 = vst.msk [vmem:[#allocation5 + $0x68] sm:$0xff] %vm276, %v7115
        %7134 = vst.msk [vmem:[#allocation5 + $0x70] sm:$0xff] %vm276, %v7118
        %v7135 = vld [vmem:[#allocation4 + $0x1] sm:$0xff]
        %v7136 = vld [vmem:[#allocation4 + $0x9] sm:$0xff]
        %v7137 = vld [vmem:[#allocation4 + $0x11] sm:$0xff]
        %v7138 = vld [vmem:[#allocation4 + $0x19] sm:$0xff]
        %v7139 = vld [vmem:[#allocation4 + $0x21] sm:$0xff]
        %v7140 = vld [vmem:[#allocation4 + $0x29] sm:$0xff]
        %v7141 = vld [vmem:[#allocation4 + $0x31] sm:$0xff]
        %v7142 = vld [vmem:[#allocation4 + $0x39] sm:$0xff]
        %v7143 = vld [vmem:[#allocation4 + $0x41] sm:$0xff]
        %v7144 = vld [vmem:[#allocation4 + $0x49] sm:$0xff]
        %v7145 = vld [vmem:[#allocation4 + $0x51] sm:$0xff]
        %v7146 = vld [vmem:[#allocation4 + $0x59] sm:$0xff]
        %v7147 = vld [vmem:[#allocation4 + $0x61] sm:$0xff]
        %v7148 = vld [vmem:[#allocation4 + $0x69] sm:$0xff]
        %v7149 = vld [vmem:[#allocation4 + $0x71] sm:$0xff]
        %s7150 = scalar_lea.vmem %s4, 64
        %v7151 = vld [vmem:[%s7150] sm:$0xff]
        %v7152 = vld [vmem:[%s7150 + $0x8] sm:$0xff]
        %v7153 = vld [vmem:[%s7150 + $0x10] sm:$0xff]
        %v7154 = vld [vmem:[%s7150 + $0x18] sm:$0xff]
        %v7155 = vld [vmem:[%s7150 + $0x20] sm:$0xff]
        %v7156 = vld [vmem:[%s7150 + $0x28] sm:$0xff]
        %v7157 = vld [vmem:[%s7150 + $0x30] sm:$0xff]
        %v7158 = vld [vmem:[%s7150 + $0x38] sm:$0xff]
        %v7160 = vsel %vm276, %v7135, 0
        %v7163 = vsel %vm276, %v7136, 0
        %v7166 = vsel %vm276, %v7137, 0
        %v7169 = vsel %vm276, %v7138, 0
        %v7172 = vsel %vm276, %v7139, 0
        %v7175 = vsel %vm276, %v7140, 0
        %v7178 = vsel %vm276, %v7141, 0
        %v7181 = vsel %vm276, %v7142, 0
        %v7184 = vsel %vm276, %v7143, 0
        %v7187 = vsel %vm276, %v7144, 0
        %v7190 = vsel %vm276, %v7145, 0
        %v7193 = vsel %vm276, %v7146, 0
        %v7196 = vsel %vm276, %v7147, 0
        %v7199 = vsel %vm276, %v7148, 0
        %v7202 = vsel %vm276, %v7149, 0
        %7204 = vmatpush.msra.mxu0 0.0
        %7205 = vmatpush.msra.mxu0 0.0
        %7206 = vmatpush.msra.mxu0 0.0
        %7207 = vmatpush.msra.mxu0 0.0
        %7208 = vmatpush.msra.mxu0 0.0
        %7209 = vmatpush.msra.mxu0 0.0
        %7210 = vmatpush.msra.mxu0 0.0
        %7211 = vmatpush.msra.mxu0 0.0
        %7212 = vmatpush.msra.mxu0 %v7158
        %7213 = vmatpush.msra.mxu0 %v7157
        %7214 = vmatpush.msra.mxu0 %v7156
        %7215 = vmatpush.msra.mxu0 %v7155
        %7216 = vmatpush.msra.mxu0 %v7154
        %7217 = vmatpush.msra.mxu0 %v7153
        %7218 = vmatpush.msra.mxu0 %v7152
        %7219 = vmatpush.msra.mxu0 %v7151
        %7220 = vmatmul.f32.gmra.mxu0 %v7160
        %v7221 = vpop.f32.mrf.mxu0
        %v7222 = vadd.f32 0.0, %v7221
        %7223 = vmatmul.f32.gmra.mxu0 %v7163
        %v7224 = vpop.f32.mrf.mxu0
        %v7225 = vadd.f32 0.0, %v7224
        %7226 = vmatmul.f32.gmra.mxu0 %v7166
        %v7227 = vpop.f32.mrf.mxu0
        %v7228 = vadd.f32 0.0, %v7227
        %7229 = vmatmul.f32.gmra.mxu0 %v7169
        %v7230 = vpop.f32.mrf.mxu0
        %v7231 = vadd.f32 0.0, %v7230
        %7232 = vmatmul.f32.gmra.mxu0 %v7172
        %v7233 = vpop.f32.mrf.mxu0
        %v7234 = vadd.f32 0.0, %v7233
        %7235 = vmatmul.f32.gmra.mxu0 %v7175
        %v7236 = vpop.f32.mrf.mxu0
        %v7237 = vadd.f32 0.0, %v7236
        %7238 = vmatmul.f32.gmra.mxu0 %v7178
        %v7239 = vpop.f32.mrf.mxu0
        %v7240 = vadd.f32 0.0, %v7239
        %7241 = vmatmul.f32.gmra.mxu0 %v7181
        %v7242 = vpop.f32.mrf.mxu0
        %v7243 = vadd.f32 0.0, %v7242
        %7244 = vmatmul.f32.gmra.mxu0 %v7184
        %v7245 = vpop.f32.mrf.mxu0
        %v7246 = vadd.f32 0.0, %v7245
        %7247 = vmatmul.f32.gmra.mxu0 %v7187
        %v7248 = vpop.f32.mrf.mxu0
        %v7249 = vadd.f32 0.0, %v7248
        %7250 = vmatmul.f32.gmra.mxu0 %v7190
        %v7251 = vpop.f32.mrf.mxu0
        %v7252 = vadd.f32 0.0, %v7251
        %7253 = vmatmul.f32.gmra.mxu0 %v7193
        %v7254 = vpop.f32.mrf.mxu0
        %v7255 = vadd.f32 0.0, %v7254
        %7256 = vmatmul.f32.gmra.mxu0 %v7196
        %v7257 = vpop.f32.mrf.mxu0
        %v7258 = vadd.f32 0.0, %v7257
        %7259 = vmatmul.f32.gmra.mxu0 %v7199
        %v7260 = vpop.f32.mrf.mxu0
        %v7261 = vadd.f32 0.0, %v7260
        %7262 = vmatmul.f32.gmra.mxu0 %v7202
        %v7263 = vpop.f32.mrf.mxu0
        %v7264 = vadd.f32 0.0, %v7263
        %7265 = vdwg.mxu0
        %v7266 = vld [vmem:[#allocation5] sm:$0xff]
        %v7267 = vld [vmem:[#allocation5 + $0x8] sm:$0xff]
        %v7268 = vld [vmem:[#allocation5 + $0x10] sm:$0xff]
        %v7269 = vld [vmem:[#allocation5 + $0x18] sm:$0xff]
        %v7270 = vld [vmem:[#allocation5 + $0x20] sm:$0xff]
        %v7271 = vld [vmem:[#allocation5 + $0x28] sm:$0xff]
        %v7272 = vld [vmem:[#allocation5 + $0x30] sm:$0xff]
        %v7273 = vld [vmem:[#allocation5 + $0x38] sm:$0xff]
        %v7274 = vld [vmem:[#allocation5 + $0x40] sm:$0xff]
        %v7275 = vld [vmem:[#allocation5 + $0x48] sm:$0xff]
        %v7276 = vld [vmem:[#allocation5 + $0x50] sm:$0xff]
        %v7277 = vld [vmem:[#allocation5 + $0x58] sm:$0xff]
        %v7278 = vld [vmem:[#allocation5 + $0x60] sm:$0xff]
        %v7279 = vld [vmem:[#allocation5 + $0x68] sm:$0xff]
        %v7280 = vld [vmem:[#allocation5 + $0x70] sm:$0xff]
        %v7281 = vadd.f32 %v7266, %v7222
        %v7282 = vadd.f32 %v7267, %v7225
        %v7283 = vadd.f32 %v7268, %v7228
        %v7284 = vadd.f32 %v7269, %v7231
        %v7285 = vadd.f32 %v7270, %v7234
        %v7286 = vadd.f32 %v7271, %v7237
        %v7287 = vadd.f32 %v7272, %v7240
        %v7288 = vadd.f32 %v7273, %v7243
        %v7289 = vadd.f32 %v7274, %v7246
        %v7290 = vadd.f32 %v7275, %v7249
        %v7291 = vadd.f32 %v7276, %v7252
        %v7292 = vadd.f32 %v7277, %v7255
        %v7293 = vadd.f32 %v7278, %v7258
        %v7294 = vadd.f32 %v7279, %v7261
        %v7295 = vadd.f32 %v7280, %v7264
        %7296 = vst.msk [vmem:[#allocation5] sm:$0xff] %vm276, %v7281
        %7297 = vst.msk [vmem:[#allocation5 + $0x8] sm:$0xff] %vm276, %v7282
        %7298 = vst.msk [vmem:[#allocation5 + $0x10] sm:$0xff] %vm276, %v7283
        %7299 = vst.msk [vmem:[#allocation5 + $0x18] sm:$0xff] %vm276, %v7284
        %7300 = vst.msk [vmem:[#allocation5 + $0x20] sm:$0xff] %vm276, %v7285
        %7301 = vst.msk [vmem:[#allocation5 + $0x28] sm:$0xff] %vm276, %v7286
        %7302 = vst.msk [vmem:[#allocation5 + $0x30] sm:$0xff] %vm276, %v7287
        %7303 = vst.msk [vmem:[#allocation5 + $0x38] sm:$0xff] %vm276, %v7288
        %7304 = vst.msk [vmem:[#allocation5 + $0x40] sm:$0xff] %vm276, %v7289
        %7305 = vst.msk [vmem:[#allocation5 + $0x48] sm:$0xff] %vm276, %v7290
        %7306 = vst.msk [vmem:[#allocation5 + $0x50] sm:$0xff] %vm276, %v7291
        %7307 = vst.msk [vmem:[#allocation5 + $0x58] sm:$0xff] %vm276, %v7292
        %7308 = vst.msk [vmem:[#allocation5 + $0x60] sm:$0xff] %vm276, %v7293
        %7309 = vst.msk [vmem:[#allocation5 + $0x68] sm:$0xff] %vm276, %v7294
        %7310 = vst.msk [vmem:[#allocation5 + $0x70] sm:$0xff] %vm276, %v7295
        %v7311 = vld [vmem:[#allocation4 + $0x2] sm:$0xff]
        %v7312 = vld [vmem:[#allocation4 + $0xa] sm:$0xff]
        %v7313 = vld [vmem:[#allocation4 + $0x12] sm:$0xff]
        %v7314 = vld [vmem:[#allocation4 + $0x1a] sm:$0xff]
        %v7315 = vld [vmem:[#allocation4 + $0x22] sm:$0xff]
        %v7316 = vld [vmem:[#allocation4 + $0x2a] sm:$0xff]
        %v7317 = vld [vmem:[#allocation4 + $0x32] sm:$0xff]
        %v7318 = vld [vmem:[#allocation4 + $0x3a] sm:$0xff]
        %v7319 = vld [vmem:[#allocation4 + $0x42] sm:$0xff]
        %v7320 = vld [vmem:[#allocation4 + $0x4a] sm:$0xff]
        %v7321 = vld [vmem:[#allocation4 + $0x52] sm:$0xff]
        %v7322 = vld [vmem:[#allocation4 + $0x5a] sm:$0xff]
        %v7323 = vld [vmem:[#allocation4 + $0x62] sm:$0xff]
        %v7324 = vld [vmem:[#allocation4 + $0x6a] sm:$0xff]
        %v7325 = vld [vmem:[#allocation4 + $0x72] sm:$0xff]
        %s7326 = scalar_lea.vmem %s4, 128
        %v7327 = vld [vmem:[%s7326] sm:$0xff]
        %v7328 = vld [vmem:[%s7326 + $0x8] sm:$0xff]
        %v7329 = vld [vmem:[%s7326 + $0x10] sm:$0xff]
        %v7330 = vld [vmem:[%s7326 + $0x18] sm:$0xff]
        %v7331 = vld [vmem:[%s7326 + $0x20] sm:$0xff]
        %v7332 = vld [vmem:[%s7326 + $0x28] sm:$0xff]
        %v7333 = vld [vmem:[%s7326 + $0x30] sm:$0xff]
        %v7334 = vld [vmem:[%s7326 + $0x38] sm:$0xff]
        %v7336 = vsel %vm276, %v7311, 0
        %v7339 = vsel %vm276, %v7312, 0
        %v7342 = vsel %vm276, %v7313, 0
        %v7345 = vsel %vm276, %v7314, 0
        %v7348 = vsel %vm276, %v7315, 0
        %v7351 = vsel %vm276, %v7316, 0
        %v7354 = vsel %vm276, %v7317, 0
        %v7357 = vsel %vm276, %v7318, 0
        %v7360 = vsel %vm276, %v7319, 0
        %v7363 = vsel %vm276, %v7320, 0
        %v7366 = vsel %vm276, %v7321, 0
        %v7369 = vsel %vm276, %v7322, 0
        %v7372 = vsel %vm276, %v7323, 0
        %v7375 = vsel %vm276, %v7324, 0
        %v7378 = vsel %vm276, %v7325, 0
        %7380 = vmatpush.msra.mxu0 0.0
        %7381 = vmatpush.msra.mxu0 0.0
        %7382 = vmatpush.msra.mxu0 0.0
        %7383 = vmatpush.msra.mxu0 0.0
        %7384 = vmatpush.msra.mxu0 0.0
        %7385 = vmatpush.msra.mxu0 0.0
        %7386 = vmatpush.msra.mxu0 0.0
        %7387 = vmatpush.msra.mxu0 0.0
        %7388 = vmatpush.msra.mxu0 %v7334
        %7389 = vmatpush.msra.mxu0 %v7333
        %7390 = vmatpush.msra.mxu0 %v7332
        %7391 = vmatpush.msra.mxu0 %v7331
        %7392 = vmatpush.msra.mxu0 %v7330
        %7393 = vmatpush.msra.mxu0 %v7329
        %7394 = vmatpush.msra.mxu0 %v7328
        %7395 = vmatpush.msra.mxu0 %v7327
        %7396 = vmatmul.f32.gmra.mxu0 %v7336
        %v7397 = vpop.f32.mrf.mxu0
        %v7398 = vadd.f32 0.0, %v7397
        %7399 = vmatmul.f32.gmra.mxu0 %v7339
        %v7400 = vpop.f32.mrf.mxu0
        %v7401 = vadd.f32 0.0, %v7400
        %7402 = vmatmul.f32.gmra.mxu0 %v7342
        %v7403 = vpop.f32.mrf.mxu0
        %v7404 = vadd.f32 0.0, %v7403
        %7405 = vmatmul.f32.gmra.mxu0 %v7345
        %v7406 = vpop.f32.mrf.mxu0
        %v7407 = vadd.f32 0.0, %v7406
        %7408 = vmatmul.f32.gmra.mxu0 %v7348
        %v7409 = vpop.f32.mrf.mxu0
        %v7410 = vadd.f32 0.0, %v7409
        %7411 = vmatmul.f32.gmra.mxu0 %v7351
        %v7412 = vpop.f32.mrf.mxu0
        %v7413 = vadd.f32 0.0, %v7412
        %7414 = vmatmul.f32.gmra.mxu0 %v7354
        %v7415 = vpop.f32.mrf.mxu0
        %v7416 = vadd.f32 0.0, %v7415
        %7417 = vmatmul.f32.gmra.mxu0 %v7357
        %v7418 = vpop.f32.mrf.mxu0
        %v7419 = vadd.f32 0.0, %v7418
        %7420 = vmatmul.f32.gmra.mxu0 %v7360
        %v7421 = vpop.f32.mrf.mxu0
        %v7422 = vadd.f32 0.0, %v7421
        %7423 = vmatmul.f32.gmra.mxu0 %v7363
        %v7424 = vpop.f32.mrf.mxu0
        %v7425 = vadd.f32 0.0, %v7424
        %7426 = vmatmul.f32.gmra.mxu0 %v7366
        %v7427 = vpop.f32.mrf.mxu0
        %v7428 = vadd.f32 0.0, %v7427
        %7429 = vmatmul.f32.gmra.mxu0 %v7369
        %v7430 = vpop.f32.mrf.mxu0
        %v7431 = vadd.f32 0.0, %v7430
        %7432 = vmatmul.f32.gmra.mxu0 %v7372
        %v7433 = vpop.f32.mrf.mxu0
        %v7434 = vadd.f32 0.0, %v7433
        %7435 = vmatmul.f32.gmra.mxu0 %v7375
        %v7436 = vpop.f32.mrf.mxu0
        %v7437 = vadd.f32 0.0, %v7436
        %7438 = vmatmul.f32.gmra.mxu0 %v7378
        %v7439 = vpop.f32.mrf.mxu0
        %v7440 = vadd.f32 0.0, %v7439
        %7441 = vdwg.mxu0
        %v7442 = vld [vmem:[#allocation5] sm:$0xff]
        %v7443 = vld [vmem:[#allocation5 + $0x8] sm:$0xff]
        %v7444 = vld [vmem:[#allocation5 + $0x10] sm:$0xff]
        %v7445 = vld [vmem:[#allocation5 + $0x18] sm:$0xff]
        %v7446 = vld [vmem:[#allocation5 + $0x20] sm:$0xff]
        %v7447 = vld [vmem:[#allocation5 + $0x28] sm:$0xff]
        %v7448 = vld [vmem:[#allocation5 + $0x30] sm:$0xff]
        %v7449 = vld [vmem:[#allocation5 + $0x38] sm:$0xff]
        %v7450 = vld [vmem:[#allocation5 + $0x40] sm:$0xff]
        %v7451 = vld [vmem:[#allocation5 + $0x48] sm:$0xff]
        %v7452 = vld [vmem:[#allocation5 + $0x50] sm:$0xff]
        %v7453 = vld [vmem:[#allocation5 + $0x58] sm:$0xff]
        %v7454 = vld [vmem:[#allocation5 + $0x60] sm:$0xff]
        %v7455 = vld [vmem:[#allocation5 + $0x68] sm:$0xff]
        %v7456 = vld [vmem:[#allocation5 + $0x70] sm:$0xff]
        %v7457 = vadd.f32 %v7442, %v7398
        %v7458 = vadd.f32 %v7443, %v7401
        %v7459 = vadd.f32 %v7444, %v7404
        %v7460 = vadd.f32 %v7445, %v7407
        %v7461 = vadd.f32 %v7446, %v7410
        %v7462 = vadd.f32 %v7447, %v7413
        %v7463 = vadd.f32 %v7448, %v7416
        %v7464 = vadd.f32 %v7449, %v7419
        %v7465 = vadd.f32 %v7450, %v7422
        %v7466 = vadd.f32 %v7451, %v7425
        %v7467 = vadd.f32 %v7452, %v7428
        %v7468 = vadd.f32 %v7453, %v7431
        %v7469 = vadd.f32 %v7454, %v7434
        %v7470 = vadd.f32 %v7455, %v7437
        %v7471 = vadd.f32 %v7456, %v7440
        %7472 = vst.msk [vmem:[#allocation5] sm:$0xff] %vm276, %v7457
        %7473 = vst.msk [vmem:[#allocation5 + $0x8] sm:$0xff] %vm276, %v7458
        %7474 = vst.msk [vmem:[#allocation5 + $0x10] sm:$0xff] %vm276, %v7459
        %7475 = vst.msk [vmem:[#allocation5 + $0x18] sm:$0xff] %vm276, %v7460
        %7476 = vst.msk [vmem:[#allocation5 + $0x20] sm:$0xff] %vm276, %v7461
        %7477 = vst.msk [vmem:[#allocation5 + $0x28] sm:$0xff] %vm276, %v7462
        %7478 = vst.msk [vmem:[#allocation5 + $0x30] sm:$0xff] %vm276, %v7463
        %7479 = vst.msk [vmem:[#allocation5 + $0x38] sm:$0xff] %vm276, %v7464
        %7480 = vst.msk [vmem:[#allocation5 + $0x40] sm:$0xff] %vm276, %v7465
        %7481 = vst.msk [vmem:[#allocation5 + $0x48] sm:$0xff] %vm276, %v7466
        %7482 = vst.msk [vmem:[#allocation5 + $0x50] sm:$0xff] %vm276, %v7467
        %7483 = vst.msk [vmem:[#allocation5 + $0x58] sm:$0xff] %vm276, %v7468
        %7484 = vst.msk [vmem:[#allocation5 + $0x60] sm:$0xff] %vm276, %v7469
        %7485 = vst.msk [vmem:[#allocation5 + $0x68] sm:$0xff] %vm276, %v7470
        %7486 = vst.msk [vmem:[#allocation5 + $0x70] sm:$0xff] %vm276, %v7471
        %v7487 = vld [vmem:[#allocation4 + $0xc] sm:$0xff]
        %v7488 = vld [vmem:[#allocation4 + $0x14] sm:$0xff]
        %v7489 = vld [vmem:[#allocation4 + $0x1c] sm:$0xff]
        %v7490 = vld [vmem:[#allocation4 + $0x24] sm:$0xff]
        %v7491 = vld [vmem:[#allocation4 + $0x2c] sm:$0xff]
        %v7492 = vld [vmem:[#allocation4 + $0x34] sm:$0xff]
        %v7493 = vld [vmem:[#allocation4 + $0x3c] sm:$0xff]
        %v7494 = vld [vmem:[#allocation4 + $0x44] sm:$0xff]
        %v7495 = vld [vmem:[#allocation4 + $0x4c] sm:$0xff]
        %v7496 = vld [vmem:[#allocation4 + $0x54] sm:$0xff]
        %v7497 = vld [vmem:[#allocation4 + $0x5c] sm:$0xff]
        %v7498 = vld [vmem:[#allocation4 + $0x64] sm:$0xff]
        %v7499 = vld [vmem:[#allocation4 + $0x6c] sm:$0xff]
        %v7500 = vld [vmem:[#allocation4 + $0x74] sm:$0xff]
        %v7501 = vld [vmem:[#allocation4 + $0x7c] sm:$0xff]
        %s7502 = scalar_lea.vmem %s4, 192
        %v7503 = vld [vmem:[%s7502] sm:$0xff]
        %v7504 = vld [vmem:[%s7502 + $0x8] sm:$0xff]
        %v7505 = vld [vmem:[%s7502 + $0x10] sm:$0xff]
        %v7506 = vld [vmem:[%s7502 + $0x18] sm:$0xff]
        %v7507 = vld [vmem:[%s7502 + $0x20] sm:$0xff]
        %v7508 = vld [vmem:[%s7502 + $0x28] sm:$0xff]
        %v7509 = vld [vmem:[%s7502 + $0x30] sm:$0xff]
        %v7510 = vld [vmem:[%s7502 + $0x38] sm:$0xff]
        %v7512 = vsel %vm276, %v7487, 0
        %v7515 = vsel %vm276, %v7488, 0
        %v7518 = vsel %vm276, %v7489, 0
        %v7521 = vsel %vm276, %v7490, 0
        %v7524 = vsel %vm276, %v7491, 0
        %v7527 = vsel %vm276, %v7492, 0
        %v7530 = vsel %vm276, %v7493, 0
        %v7533 = vsel %vm276, %v7494, 0
        %v7536 = vsel %vm276, %v7495, 0
        %v7539 = vsel %vm276, %v7496, 0
        %v7542 = vsel %vm276, %v7497, 0
        %v7545 = vsel %vm276, %v7498, 0
        %v7548 = vsel %vm276, %v7499, 0
        %v7551 = vsel %vm276, %v7500, 0
        %v7554 = vsel %vm276, %v7501, 0
        %7556 = vmatpush.msra.mxu0 0.0
        %7557 = vmatpush.msra.mxu0 0.0
        %7558 = vmatpush.msra.mxu0 0.0
        %7559 = vmatpush.msra.mxu0 0.0
        %7560 = vmatpush.msra.mxu0 0.0
        %7561 = vmatpush.msra.mxu0 0.0
        %7562 = vmatpush.msra.mxu0 0.0
        %7563 = vmatpush.msra.mxu0 0.0
        %7564 = vmatpush.msra.mxu0 %v7510
        %7565 = vmatpush.msra.mxu0 %v7509
        %7566 = vmatpush.msra.mxu0 %v7508
        %7567 = vmatpush.msra.mxu0 %v7507
        %7568 = vmatpush.msra.mxu0 %v7506
        %7569 = vmatpush.msra.mxu0 %v7505
        %7570 = vmatpush.msra.mxu0 %v7504
        %7571 = vmatpush.msra.mxu0 %v7503
        %7572 = vmatmul.f32.gmra.mxu0 %v7512
        %v7573 = vpop.f32.mrf.mxu0
        %v7574 = vadd.f32 0.0, %v7573
        %7575 = vmatmul.f32.gmra.mxu0 %v7515
        %v7576 = vpop.f32.mrf.mxu0
        %v7577 = vadd.f32 0.0, %v7576
        %7578 = vmatmul.f32.gmra.mxu0 %v7518
        %v7579 = vpop.f32.mrf.mxu0
        %v7580 = vadd.f32 0.0, %v7579
        %7581 = vmatmul.f32.gmra.mxu0 %v7521
        %v7582 = vpop.f32.mrf.mxu0
        %v7583 = vadd.f32 0.0, %v7582
        %7584 = vmatmul.f32.gmra.mxu0 %v7524
        %v7585 = vpop.f32.mrf.mxu0
        %v7586 = vadd.f32 0.0, %v7585
        %7587 = vmatmul.f32.gmra.mxu0 %v7527
        %v7588 = vpop.f32.mrf.mxu0
        %v7589 = vadd.f32 0.0, %v7588
        %7590 = vmatmul.f32.gmra.mxu0 %v7530
        %v7591 = vpop.f32.mrf.mxu0
        %v7592 = vadd.f32 0.0, %v7591
        %7593 = vmatmul.f32.gmra.mxu0 %v7533
        %v7594 = vpop.f32.mrf.mxu0
        %v7595 = vadd.f32 0.0, %v7594
        %7596 = vmatmul.f32.gmra.mxu0 %v7536
        %v7597 = vpop.f32.mrf.mxu0
        %v7598 = vadd.f32 0.0, %v7597
        %7599 = vmatmul.f32.gmra.mxu0 %v7539
        %v7600 = vpop.f32.mrf.mxu0
        %v7601 = vadd.f32 0.0, %v7600
        %7602 = vmatmul.f32.gmra.mxu0 %v7542
        %v7603 = vpop.f32.mrf.mxu0
        %v7604 = vadd.f32 0.0, %v7603
        %7605 = vmatmul.f32.gmra.mxu0 %v7545
        %v7606 = vpop.f32.mrf.mxu0
        %v7607 = vadd.f32 0.0, %v7606
        %7608 = vmatmul.f32.gmra.mxu0 %v7548
        %v7609 = vpop.f32.mrf.mxu0
        %v7610 = vadd.f32 0.0, %v7609
        %7611 = vmatmul.f32.gmra.mxu0 %v7551
        %v7612 = vpop.f32.mrf.mxu0
        %v7613 = vadd.f32 0.0, %v7612
        %7614 = vmatmul.f32.gmra.mxu0 %v7554
        %v7615 = vpop.f32.mrf.mxu0
        %v7616 = vadd.f32 0.0, %v7615
        %7617 = vdwg.mxu0
        %v7618 = vld [vmem:[#allocation5] sm:$0xff]
        %v7619 = vld [vmem:[#allocation5 + $0x8] sm:$0xff]
        %v7620 = vld [vmem:[#allocation5 + $0x10] sm:$0xff]
        %v7621 = vld [vmem:[#allocation5 + $0x18] sm:$0xff]
        %v7622 = vld [vmem:[#allocation5 + $0x20] sm:$0xff]
        %v7623 = vld [vmem:[#allocation5 + $0x28] sm:$0xff]
        %v7624 = vld [vmem:[#allocation5 + $0x30] sm:$0xff]
        %v7625 = vld [vmem:[#allocation5 + $0x38] sm:$0xff]
        %v7626 = vld [vmem:[#allocation5 + $0x40] sm:$0xff]
        %v7627 = vld [vmem:[#allocation5 + $0x48] sm:$0xff]
        %v7628 = vld [vmem:[#allocation5 + $0x50] sm:$0xff]
        %v7629 = vld [vmem:[#allocation5 + $0x58] sm:$0xff]
        %v7630 = vld [vmem:[#allocation5 + $0x60] sm:$0xff]
        %v7631 = vld [vmem:[#allocation5 + $0x68] sm:$0xff]
        %v7632 = vld [vmem:[#allocation5 + $0x70] sm:$0xff]
        %v7633 = vadd.f32 %v7618, %v7574
        %v7634 = vadd.f32 %v7619, %v7577
        %v7635 = vadd.f32 %v7620, %v7580
        %v7636 = vadd.f32 %v7621, %v7583
        %v7637 = vadd.f32 %v7622, %v7586
        %v7638 = vadd.f32 %v7623, %v7589
        %v7639 = vadd.f32 %v7624, %v7592
        %v7640 = vadd.f32 %v7625, %v7595
        %v7641 = vadd.f32 %v7626, %v7598
        %v7642 = vadd.f32 %v7627, %v7601
        %v7643 = vadd.f32 %v7628, %v7604
        %v7644 = vadd.f32 %v7629, %v7607
        %v7645 = vadd.f32 %v7630, %v7610
        %v7646 = vadd.f32 %v7631, %v7613
        %v7647 = vadd.f32 %v7632, %v7616
        %7648 = vst.msk [vmem:[#allocation5] sm:$0xff] %vm276, %v7633
        %7649 = vst.msk [vmem:[#allocation5 + $0x8] sm:$0xff] %vm276, %v7634
        %7650 = vst.msk [vmem:[#allocation5 + $0x10] sm:$0xff] %vm276, %v7635
        %7651 = vst.msk [vmem:[#allocation5 + $0x18] sm:$0xff] %vm276, %v7636
        %7652 = vst.msk [vmem:[#allocation5 + $0x20] sm:$0xff] %vm276, %v7637
        %7653 = vst.msk [vmem:[#allocation5 + $0x28] sm:$0xff] %vm276, %v7638
        %7654 = vst.msk [vmem:[#allocation5 + $0x30] sm:$0xff] %vm276, %v7639
        %7655 = vst.msk [vmem:[#allocation5 + $0x38] sm:$0xff] %vm276, %v7640
        %7656 = vst.msk [vmem:[#allocation5 + $0x40] sm:$0xff] %vm276, %v7641
        %7657 = vst.msk [vmem:[#allocation5 + $0x48] sm:$0xff] %vm276, %v7642
        %7658 = vst.msk [vmem:[#allocation5 + $0x50] sm:$0xff] %vm276, %v7643
        %7659 = vst.msk [vmem:[#allocation5 + $0x58] sm:$0xff] %vm276, %v7644
        %7660 = vst.msk [vmem:[#allocation5 + $0x60] sm:$0xff] %vm276, %v7645
        %7661 = vst.msk [vmem:[#allocation5 + $0x68] sm:$0xff] %vm276, %v7646
        %7662 = vst.msk [vmem:[#allocation5 + $0x70] sm:$0xff] %vm276, %v7647
        %v7663 = vld [vmem:[#allocation4 + $0xd] sm:$0xff]
        %v7664 = vld [vmem:[#allocation4 + $0x15] sm:$0xff]
        %v7665 = vld [vmem:[#allocation4 + $0x1d] sm:$0xff]
        %v7666 = vld [vmem:[#allocation4 + $0x25] sm:$0xff]
        %v7667 = vld [vmem:[#allocation4 + $0x2d] sm:$0xff]
        %v7668 = vld [vmem:[#allocation4 + $0x35] sm:$0xff]
        %v7669 = vld [vmem:[#allocation4 + $0x3d] sm:$0xff]
        %v7670 = vld [vmem:[#allocation4 + $0x45] sm:$0xff]
        %v7671 = vld [vmem:[#allocation4 + $0x4d] sm:$0xff]
        %v7672 = vld [vmem:[#allocation4 + $0x55] sm:$0xff]
        %v7673 = vld [vmem:[#allocation4 + $0x5d] sm:$0xff]
        %v7674 = vld [vmem:[#allocation4 + $0x65] sm:$0xff]
        %v7675 = vld [vmem:[#allocation4 + $0x6d] sm:$0xff]
        %v7676 = vld [vmem:[#allocation4 + $0x75] sm:$0xff]
        %v7677 = vld [vmem:[#allocation4 + $0x7d] sm:$0xff]
        %s7678 = scalar_lea.vmem %s4, 256
        %v7679 = vld [vmem:[%s7678] sm:$0xff]
        %v7680 = vld [vmem:[%s7678 + $0x8] sm:$0xff]
        %v7681 = vld [vmem:[%s7678 + $0x10] sm:$0xff]
        %v7682 = vld [vmem:[%s7678 + $0x18] sm:$0xff]
        %v7683 = vld [vmem:[%s7678 + $0x20] sm:$0xff]
        %v7684 = vld [vmem:[%s7678 + $0x28] sm:$0xff]
        %v7685 = vld [vmem:[%s7678 + $0x30] sm:$0xff]
        %v7686 = vld [vmem:[%s7678 + $0x38] sm:$0xff]
        %v7688 = vsel %vm276, %v7663, 0
        %v7691 = vsel %vm276, %v7664, 0
        %v7694 = vsel %vm276, %v7665, 0
        %v7697 = vsel %vm276, %v7666, 0
        %v7700 = vsel %vm276, %v7667, 0
        %v7703 = vsel %vm276, %v7668, 0
        %v7706 = vsel %vm276, %v7669, 0
        %v7709 = vsel %vm276, %v7670, 0
        %v7712 = vsel %vm276, %v7671, 0
        %v7715 = vsel %vm276, %v7672, 0
        %v7718 = vsel %vm276, %v7673, 0
        %v7721 = vsel %vm276, %v7674, 0
        %v7724 = vsel %vm276, %v7675, 0
        %v7727 = vsel %vm276, %v7676, 0
        %v7730 = vsel %vm276, %v7677, 0
        %7732 = vmatpush.msra.mxu0 0.0
        %7733 = vmatpush.msra.mxu0 0.0
        %7734 = vmatpush.msra.mxu0 0.0
        %7735 = vmatpush.msra.mxu0 0.0
        %7736 = vmatpush.msra.mxu0 0.0
        %7737 = vmatpush.msra.mxu0 0.0
        %7738 = vmatpush.msra.mxu0 0.0
        %7739 = vmatpush.msra.mxu0 0.0
        %7740 = vmatpush.msra.mxu0 %v7686
        %7741 = vmatpush.msra.mxu0 %v7685
        %7742 = vmatpush.msra.mxu0 %v7684
        %7743 = vmatpush.msra.mxu0 %v7683
        %7744 = vmatpush.msra.mxu0 %v7682
        %7745 = vmatpush.msra.mxu0 %v7681
        %7746 = vmatpush.msra.mxu0 %v7680
        %7747 = vmatpush.msra.mxu0 %v7679
        %7748 = vmatmul.f32.gmra.mxu0 %v7688
        %v7749 = vpop.f32.mrf.mxu0
        %v7750 = vadd.f32 0.0, %v7749
        %7751 = vmatmul.f32.gmra.mxu0 %v7691
        %v7752 = vpop.f32.mrf.mxu0
        %v7753 = vadd.f32 0.0, %v7752
        %7754 = vmatmul.f32.gmra.mxu0 %v7694
        %v7755 = vpop.f32.mrf.mxu0
        %v7756 = vadd.f32 0.0, %v7755
        %7757 = vmatmul.f32.gmra.mxu0 %v7697
        %v7758 = vpop.f32.mrf.mxu0
        %v7759 = vadd.f32 0.0, %v7758
        %7760 = vmatmul.f32.gmra.mxu0 %v7700
        %v7761 = vpop.f32.mrf.mxu0
        %v7762 = vadd.f32 0.0, %v7761
        %7763 = vmatmul.f32.gmra.mxu0 %v7703
        %v7764 = vpop.f32.mrf.mxu0
        %v7765 = vadd.f32 0.0, %v7764
        %7766 = vmatmul.f32.gmra.mxu0 %v7706
        %v7767 = vpop.f32.mrf.mxu0
        %v7768 = vadd.f32 0.0, %v7767
        %7769 = vmatmul.f32.gmra.mxu0 %v7709
        %v7770 = vpop.f32.mrf.mxu0
        %v7771 = vadd.f32 0.0, %v7770
        %7772 = vmatmul.f32.gmra.mxu0 %v7712
        %v7773 = vpop.f32.mrf.mxu0
        %v7774 = vadd.f32 0.0, %v7773
        %7775 = vmatmul.f32.gmra.mxu0 %v7715
        %v7776 = vpop.f32.mrf.mxu0
        %v7777 = vadd.f32 0.0, %v7776
        %7778 = vmatmul.f32.gmra.mxu0 %v7718
        %v7779 = vpop.f32.mrf.mxu0
        %v7780 = vadd.f32 0.0, %v7779
        %7781 = vmatmul.f32.gmra.mxu0 %v7721
        %v7782 = vpop.f32.mrf.mxu0
        %v7783 = vadd.f32 0.0, %v7782
        %7784 = vmatmul.f32.gmra.mxu0 %v7724
        %v7785 = vpop.f32.mrf.mxu0
        %v7786 = vadd.f32 0.0, %v7785
        %7787 = vmatmul.f32.gmra.mxu0 %v7727
        %v7788 = vpop.f32.mrf.mxu0
        %v7789 = vadd.f32 0.0, %v7788
        %7790 = vmatmul.f32.gmra.mxu0 %v7730
        %v7791 = vpop.f32.mrf.mxu0
        %v7792 = vadd.f32 0.0, %v7791
        %7793 = vdwg.mxu0
        %v7794 = vld [vmem:[#allocation5] sm:$0xff]
        %v7795 = vld [vmem:[#allocation5 + $0x8] sm:$0xff]
        %v7796 = vld [vmem:[#allocation5 + $0x10] sm:$0xff]
        %v7797 = vld [vmem:[#allocation5 + $0x18] sm:$0xff]
        %v7798 = vld [vmem:[#allocation5 + $0x20] sm:$0xff]
        %v7799 = vld [vmem:[#allocation5 + $0x28] sm:$0xff]
        %v7800 = vld [vmem:[#allocation5 + $0x30] sm:$0xff]
        %v7801 = vld [vmem:[#allocation5 + $0x38] sm:$0xff]
        %v7802 = vld [vmem:[#allocation5 + $0x40] sm:$0xff]
        %v7803 = vld [vmem:[#allocation5 + $0x48] sm:$0xff]
        %v7804 = vld [vmem:[#allocation5 + $0x50] sm:$0xff]
        %v7805 = vld [vmem:[#allocation5 + $0x58] sm:$0xff]
        %v7806 = vld [vmem:[#allocation5 + $0x60] sm:$0xff]
        %v7807 = vld [vmem:[#allocation5 + $0x68] sm:$0xff]
        %v7808 = vld [vmem:[#allocation5 + $0x70] sm:$0xff]
        %v7809 = vadd.f32 %v7794, %v7750
        %v7810 = vadd.f32 %v7795, %v7753
        %v7811 = vadd.f32 %v7796, %v7756
        %v7812 = vadd.f32 %v7797, %v7759
        %v7813 = vadd.f32 %v7798, %v7762
        %v7814 = vadd.f32 %v7799, %v7765
        %v7815 = vadd.f32 %v7800, %v7768
        %v7816 = vadd.f32 %v7801, %v7771
        %v7817 = vadd.f32 %v7802, %v7774
        %v7818 = vadd.f32 %v7803, %v7777
        %v7819 = vadd.f32 %v7804, %v7780
        %v7820 = vadd.f32 %v7805, %v7783
        %v7821 = vadd.f32 %v7806, %v7786
        %v7822 = vadd.f32 %v7807, %v7789
        %v7823 = vadd.f32 %v7808, %v7792
        %7824 = vst.msk [vmem:[#allocation5] sm:$0xff] %vm276, %v7809
        %7825 = vst.msk [vmem:[#allocation5 + $0x8] sm:$0xff] %vm276, %v7810
        %7826 = vst.msk [vmem:[#allocation5 + $0x10] sm:$0xff] %vm276, %v7811
        %7827 = vst.msk [vmem:[#allocation5 + $0x18] sm:$0xff] %vm276, %v7812
        %7828 = vst.msk [vmem:[#allocation5 + $0x20] sm:$0xff] %vm276, %v7813
        %7829 = vst.msk [vmem:[#allocation5 + $0x28] sm:$0xff] %vm276, %v7814
        %7830 = vst.msk [vmem:[#allocation5 + $0x30] sm:$0xff] %vm276, %v7815
        %7831 = vst.msk [vmem:[#allocation5 + $0x38] sm:$0xff] %vm276, %v7816
        %7832 = vst.msk [vmem:[#allocation5 + $0x40] sm:$0xff] %vm276, %v7817
        %7833 = vst.msk [vmem:[#allocation5 + $0x48] sm:$0xff] %vm276, %v7818
        %7834 = vst.msk [vmem:[#allocation5 + $0x50] sm:$0xff] %vm276, %v7819
        %7835 = vst.msk [vmem:[#allocation5 + $0x58] sm:$0xff] %vm276, %v7820
        %7836 = vst.msk [vmem:[#allocation5 + $0x60] sm:$0xff] %vm276, %v7821
        %7837 = vst.msk [vmem:[#allocation5 + $0x68] sm:$0xff] %vm276, %v7822
        %7838 = vst.msk [vmem:[#allocation5 + $0x70] sm:$0xff] %vm276, %v7823
        %v7839 = vld [vmem:[#allocation4 + $0xe] sm:$0xff]
        %v7840 = vld [vmem:[#allocation4 + $0x16] sm:$0xff]
        %v7841 = vld [vmem:[#allocation4 + $0x1e] sm:$0xff]
        %v7842 = vld [vmem:[#allocation4 + $0x26] sm:$0xff]
        %v7843 = vld [vmem:[#allocation4 + $0x2e] sm:$0xff]
        %v7844 = vld [vmem:[#allocation4 + $0x36] sm:$0xff]
        %v7845 = vld [vmem:[#allocation4 + $0x3e] sm:$0xff]
        %v7846 = vld [vmem:[#allocation4 + $0x46] sm:$0xff]
        %v7847 = vld [vmem:[#allocation4 + $0x4e] sm:$0xff]
        %v7848 = vld [vmem:[#allocation4 + $0x56] sm:$0xff]
        %v7849 = vld [vmem:[#allocation4 + $0x5e] sm:$0xff]
        %v7850 = vld [vmem:[#allocation4 + $0x66] sm:$0xff]
        %v7851 = vld [vmem:[#allocation4 + $0x6e] sm:$0xff]
        %v7852 = vld [vmem:[#allocation4 + $0x76] sm:$0xff]
        %v7853 = vld [vmem:[#allocation4 + $0x7e] sm:$0xff]
        %s7854 = scalar_lea.vmem %s4, 320
        %v7855 = vld [vmem:[%s7854] sm:$0xff]
        %v7856 = vld [vmem:[%s7854 + $0x8] sm:$0xff]
        %v7857 = vld [vmem:[%s7854 + $0x10] sm:$0xff]
        %v7858 = vld [vmem:[%s7854 + $0x18] sm:$0xff]
        %v7859 = vld [vmem:[%s7854 + $0x20] sm:$0xff]
        %v7860 = vld [vmem:[%s7854 + $0x28] sm:$0xff]
        %v7861 = vld [vmem:[%s7854 + $0x30] sm:$0xff]
        %v7862 = vld [vmem:[%s7854 + $0x38] sm:$0xff]
        %v7864 = vsel %vm276, %v7839, 0
        %v7867 = vsel %vm276, %v7840, 0
        %v7870 = vsel %vm276, %v7841, 0
        %v7873 = vsel %vm276, %v7842, 0
        %v7876 = vsel %vm276, %v7843, 0
        %v7879 = vsel %vm276, %v7844, 0
        %v7882 = vsel %vm276, %v7845, 0
        %v7885 = vsel %vm276, %v7846, 0
        %v7888 = vsel %vm276, %v7847, 0
        %v7891 = vsel %vm276, %v7848, 0
        %v7894 = vsel %vm276, %v7849, 0
        %v7897 = vsel %vm276, %v7850, 0
        %v7900 = vsel %vm276, %v7851, 0
        %v7903 = vsel %vm276, %v7852, 0
        %v7906 = vsel %vm276, %v7853, 0
        %7908 = vmatpush.msra.mxu0 0.0
        %7909 = vmatpush.msra.mxu0 0.0
        %7910 = vmatpush.msra.mxu0 0.0
        %7911 = vmatpush.msra.mxu0 0.0
        %7912 = vmatpush.msra.mxu0 0.0
        %7913 = vmatpush.msra.mxu0 0.0
        %7914 = vmatpush.msra.mxu0 0.0
        %7915 = vmatpush.msra.mxu0 0.0
        %7916 = vmatpush.msra.mxu0 %v7862
        %7917 = vmatpush.msra.mxu0 %v7861
        %7918 = vmatpush.msra.mxu0 %v7860
        %7919 = vmatpush.msra.mxu0 %v7859
        %7920 = vmatpush.msra.mxu0 %v7858
        %7921 = vmatpush.msra.mxu0 %v7857
        %7922 = vmatpush.msra.mxu0 %v7856
        %7923 = vmatpush.msra.mxu0 %v7855
        %7924 = vmatmul.f32.gmra.mxu0 %v7864
        %v7925 = vpop.f32.mrf.mxu0
        %v7926 = vadd.f32 0.0, %v7925
        %7927 = vmatmul.f32.gmra.mxu0 %v7867
        %v7928 = vpop.f32.mrf.mxu0
        %v7929 = vadd.f32 0.0, %v7928
        %7930 = vmatmul.f32.gmra.mxu0 %v7870
        %v7931 = vpop.f32.mrf.mxu0
        %v7932 = vadd.f32 0.0, %v7931
        %7933 = vmatmul.f32.gmra.mxu0 %v7873
        %v7934 = vpop.f32.mrf.mxu0
        %v7935 = vadd.f32 0.0, %v7934
        %7936 = vmatmul.f32.gmra.mxu0 %v7876
        %v7937 = vpop.f32.mrf.mxu0
        %v7938 = vadd.f32 0.0, %v7937
        %7939 = vmatmul.f32.gmra.mxu0 %v7879
        %v7940 = vpop.f32.mrf.mxu0
        %v7941 = vadd.f32 0.0, %v7940
        %7942 = vmatmul.f32.gmra.mxu0 %v7882
        %v7943 = vpop.f32.mrf.mxu0
        %v7944 = vadd.f32 0.0, %v7943
        %7945 = vmatmul.f32.gmra.mxu0 %v7885
        %v7946 = vpop.f32.mrf.mxu0
        %v7947 = vadd.f32 0.0, %v7946
        %7948 = vmatmul.f32.gmra.mxu0 %v7888
        %v7949 = vpop.f32.mrf.mxu0
        %v7950 = vadd.f32 0.0, %v7949
        %7951 = vmatmul.f32.gmra.mxu0 %v7891
        %v7952 = vpop.f32.mrf.mxu0
        %v7953 = vadd.f32 0.0, %v7952
        %7954 = vmatmul.f32.gmra.mxu0 %v7894
        %v7955 = vpop.f32.mrf.mxu0
        %v7956 = vadd.f32 0.0, %v7955
        %7957 = vmatmul.f32.gmra.mxu0 %v7897
        %v7958 = vpop.f32.mrf.mxu0
        %v7959 = vadd.f32 0.0, %v7958
        %7960 = vmatmul.f32.gmra.mxu0 %v7900
        %v7961 = vpop.f32.mrf.mxu0
        %v7962 = vadd.f32 0.0, %v7961
        %7963 = vmatmul.f32.gmra.mxu0 %v7903
        %v7964 = vpop.f32.mrf.mxu0
        %v7965 = vadd.f32 0.0, %v7964
        %7966 = vmatmul.f32.gmra.mxu0 %v7906
        %v7967 = vpop.f32.mrf.mxu0
        %v7968 = vadd.f32 0.0, %v7967
        %7969 = vdwg.mxu0
        %v7970 = vld [vmem:[#allocation5] sm:$0xff]
        %v7971 = vld [vmem:[#allocation5 + $0x8] sm:$0xff]
        %v7972 = vld [vmem:[#allocation5 + $0x10] sm:$0xff]
        %v7973 = vld [vmem:[#allocation5 + $0x18] sm:$0xff]
        %v7974 = vld [vmem:[#allocation5 + $0x20] sm:$0xff]
        %v7975 = vld [vmem:[#allocation5 + $0x28] sm:$0xff]
        %v7976 = vld [vmem:[#allocation5 + $0x30] sm:$0xff]
        %v7977 = vld [vmem:[#allocation5 + $0x38] sm:$0xff]
        %v7978 = vld [vmem:[#allocation5 + $0x40] sm:$0xff]
        %v7979 = vld [vmem:[#allocation5 + $0x48] sm:$0xff]
        %v7980 = vld [vmem:[#allocation5 + $0x50] sm:$0xff]
        %v7981 = vld [vmem:[#allocation5 + $0x58] sm:$0xff]
        %v7982 = vld [vmem:[#allocation5 + $0x60] sm:$0xff]
        %v7983 = vld [vmem:[#allocation5 + $0x68] sm:$0xff]
        %v7984 = vld [vmem:[#allocation5 + $0x70] sm:$0xff]
        %v7985 = vadd.f32 %v7970, %v7926
        %v7986 = vadd.f32 %v7971, %v7929
        %v7987 = vadd.f32 %v7972, %v7932
        %v7988 = vadd.f32 %v7973, %v7935
        %v7989 = vadd.f32 %v7974, %v7938
        %v7990 = vadd.f32 %v7975, %v7941
        %v7991 = vadd.f32 %v7976, %v7944
        %v7992 = vadd.f32 %v7977, %v7947
        %v7993 = vadd.f32 %v7978, %v7950
        %v7994 = vadd.f32 %v7979, %v7953
        %v7995 = vadd.f32 %v7980, %v7956
        %v7996 = vadd.f32 %v7981, %v7959
        %v7997 = vadd.f32 %v7982, %v7962
        %v7998 = vadd.f32 %v7983, %v7965
        %v7999 = vadd.f32 %v7984, %v7968
        %8000 = vst.msk [vmem:[#allocation5] sm:$0xff] %vm276, %v7985
        %8001 = vst.msk [vmem:[#allocation5 + $0x8] sm:$0xff] %vm276, %v7986
        %8002 = vst.msk [vmem:[#allocation5 + $0x10] sm:$0xff] %vm276, %v7987
        %8003 = vst.msk [vmem:[#allocation5 + $0x18] sm:$0xff] %vm276, %v7988
        %8004 = vst.msk [vmem:[#allocation5 + $0x20] sm:$0xff] %vm276, %v7989
        %8005 = vst.msk [vmem:[#allocation5 + $0x28] sm:$0xff] %vm276, %v7990
        %8006 = vst.msk [vmem:[#allocation5 + $0x30] sm:$0xff] %vm276, %v7991
        %8007 = vst.msk [vmem:[#allocation5 + $0x38] sm:$0xff] %vm276, %v7992
        %8008 = vst.msk [vmem:[#allocation5 + $0x40] sm:$0xff] %vm276, %v7993
        %8009 = vst.msk [vmem:[#allocation5 + $0x48] sm:$0xff] %vm276, %v7994
        %8010 = vst.msk [vmem:[#allocation5 + $0x50] sm:$0xff] %vm276, %v7995
        %8011 = vst.msk [vmem:[#allocation5 + $0x58] sm:$0xff] %vm276, %v7996
        %8012 = vst.msk [vmem:[#allocation5 + $0x60] sm:$0xff] %vm276, %v7997
        %8013 = vst.msk [vmem:[#allocation5 + $0x68] sm:$0xff] %vm276, %v7998
        %8014 = vst.msk [vmem:[#allocation5 + $0x70] sm:$0xff] %vm276, %v7999
        %v8015 = vld [vmem:[#allocation4 + $0x18] sm:$0xff]
        %v8016 = vld [vmem:[#allocation4 + $0x20] sm:$0xff]
        %v8017 = vld [vmem:[#allocation4 + $0x28] sm:$0xff]
        %v8018 = vld [vmem:[#allocation4 + $0x30] sm:$0xff]
        %v8019 = vld [vmem:[#allocation4 + $0x38] sm:$0xff]
        %v8020 = vld [vmem:[#allocation4 + $0x40] sm:$0xff]
        %v8021 = vld [vmem:[#allocation4 + $0x48] sm:$0xff]
        %v8022 = vld [vmem:[#allocation4 + $0x50] sm:$0xff]
        %v8023 = vld [vmem:[#allocation4 + $0x58] sm:$0xff]
        %v8024 = vld [vmem:[#allocation4 + $0x60] sm:$0xff]
        %v8025 = vld [vmem:[#allocation4 + $0x68] sm:$0xff]
        %v8026 = vld [vmem:[#allocation4 + $0x70] sm:$0xff]
        %v8027 = vld [vmem:[#allocation4 + $0x78] sm:$0xff]
        %v8028 = vld [vmem:[#allocation4 + $0x80] sm:$0xff]
        %v8029 = vld [vmem:[#allocation4 + $0x88] sm:$0xff]
        %s8030 = scalar_lea.vmem %s4, 384
        %v8031 = vld [vmem:[%s8030] sm:$0xff]
        %v8032 = vld [vmem:[%s8030 + $0x8] sm:$0xff]
        %v8033 = vld [vmem:[%s8030 + $0x10] sm:$0xff]
        %v8034 = vld [vmem:[%s8030 + $0x18] sm:$0xff]
        %v8035 = vld [vmem:[%s8030 + $0x20] sm:$0xff]
        %v8036 = vld [vmem:[%s8030 + $0x28] sm:$0xff]
        %v8037 = vld [vmem:[%s8030 + $0x30] sm:$0xff]
        %v8038 = vld [vmem:[%s8030 + $0x38] sm:$0xff]
        %v8040 = vsel %vm276, %v8015, 0
        %v8043 = vsel %vm276, %v8016, 0
        %v8046 = vsel %vm276, %v8017, 0
        %v8049 = vsel %vm276, %v8018, 0
        %v8052 = vsel %vm276, %v8019, 0
        %v8055 = vsel %vm276, %v8020, 0
        %v8058 = vsel %vm276, %v8021, 0
        %v8061 = vsel %vm276, %v8022, 0
        %v8064 = vsel %vm276, %v8023, 0
        %v8067 = vsel %vm276, %v8024, 0
        %v8070 = vsel %vm276, %v8025, 0
        %v8073 = vsel %vm276, %v8026, 0
        %v8076 = vsel %vm276, %v8027, 0
        %v8079 = vsel %vm276, %v8028, 0
        %v8082 = vsel %vm276, %v8029, 0
        %8084 = vmatpush.msra.mxu0 0.0
        %8085 = vmatpush.msra.mxu0 0.0
        %8086 = vmatpush.msra.mxu0 0.0
        %8087 = vmatpush.msra.mxu0 0.0
        %8088 = vmatpush.msra.mxu0 0.0
        %8089 = vmatpush.msra.mxu0 0.0
        %8090 = vmatpush.msra.mxu0 0.0
        %8091 = vmatpush.msra.mxu0 0.0
        %8092 = vmatpush.msra.mxu0 %v8038
        %8093 = vmatpush.msra.mxu0 %v8037
        %8094 = vmatpush.msra.mxu0 %v8036
        %8095 = vmatpush.msra.mxu0 %v8035
        %8096 = vmatpush.msra.mxu0 %v8034
        %8097 = vmatpush.msra.mxu0 %v8033
        %8098 = vmatpush.msra.mxu0 %v8032
        %8099 = vmatpush.msra.mxu0 %v8031
        %8100 = vmatmul.f32.gmra.mxu0 %v8040
        %v8101 = vpop.f32.mrf.mxu0
        %v8102 = vadd.f32 0.0, %v8101
        %8103 = vmatmul.f32.gmra.mxu0 %v8043
        %v8104 = vpop.f32.mrf.mxu0
        %v8105 = vadd.f32 0.0, %v8104
        %8106 = vmatmul.f32.gmra.mxu0 %v8046
        %v8107 = vpop.f32.mrf.mxu0
        %v8108 = vadd.f32 0.0, %v8107
        %8109 = vmatmul.f32.gmra.mxu0 %v8049
        %v8110 = vpop.f32.mrf.mxu0
        %v8111 = vadd.f32 0.0, %v8110
        %8112 = vmatmul.f32.gmra.mxu0 %v8052
        %v8113 = vpop.f32.mrf.mxu0
        %v8114 = vadd.f32 0.0, %v8113
        %8115 = vmatmul.f32.gmra.mxu0 %v8055
        %v8116 = vpop.f32.mrf.mxu0
        %v8117 = vadd.f32 0.0, %v8116
        %8118 = vmatmul.f32.gmra.mxu0 %v8058
        %v8119 = vpop.f32.mrf.mxu0
        %v8120 = vadd.f32 0.0, %v8119
        %8121 = vmatmul.f32.gmra.mxu0 %v8061
        %v8122 = vpop.f32.mrf.mxu0
        %v8123 = vadd.f32 0.0, %v8122
        %8124 = vmatmul.f32.gmra.mxu0 %v8064
        %v8125 = vpop.f32.mrf.mxu0
        %v8126 = vadd.f32 0.0, %v8125
        %8127 = vmatmul.f32.gmra.mxu0 %v8067
        %v8128 = vpop.f32.mrf.mxu0
        %v8129 = vadd.f32 0.0, %v8128
        %8130 = vmatmul.f32.gmra.mxu0 %v8070
        %v8131 = vpop.f32.mrf.mxu0
        %v8132 = vadd.f32 0.0, %v8131
        %8133 = vmatmul.f32.gmra.mxu0 %v8073
        %v8134 = vpop.f32.mrf.mxu0
        %v8135 = vadd.f32 0.0, %v8134
        %8136 = vmatmul.f32.gmra.mxu0 %v8076
        %v8137 = vpop.f32.mrf.mxu0
        %v8138 = vadd.f32 0.0, %v8137
        %8139 = vmatmul.f32.gmra.mxu0 %v8079
        %v8140 = vpop.f32.mrf.mxu0
        %v8141 = vadd.f32 0.0, %v8140
        %8142 = vmatmul.f32.gmra.mxu0 %v8082
        %v8143 = vpop.f32.mrf.mxu0
        %v8144 = vadd.f32 0.0, %v8143
        %8145 = vdwg.mxu0
        %v8146 = vld [vmem:[#allocation5] sm:$0xff]
        %v8147 = vld [vmem:[#allocation5 + $0x8] sm:$0xff]
        %v8148 = vld [vmem:[#allocation5 + $0x10] sm:$0xff]
        %v8149 = vld [vmem:[#allocation5 + $0x18] sm:$0xff]
        %v8150 = vld [vmem:[#allocation5 + $0x20] sm:$0xff]
        %v8151 = vld [vmem:[#allocation5 + $0x28] sm:$0xff]
        %v8152 = vld [vmem:[#allocation5 + $0x30] sm:$0xff]
        %v8153 = vld [vmem:[#allocation5 + $0x38] sm:$0xff]
        %v8154 = vld [vmem:[#allocation5 + $0x40] sm:$0xff]
        %v8155 = vld [vmem:[#allocation5 + $0x48] sm:$0xff]
        %v8156 = vld [vmem:[#allocation5 + $0x50] sm:$0xff]
        %v8157 = vld [vmem:[#allocation5 + $0x58] sm:$0xff]
        %v8158 = vld [vmem:[#allocation5 + $0x60] sm:$0xff]
        %v8159 = vld [vmem:[#allocation5 + $0x68] sm:$0xff]
        %v8160 = vld [vmem:[#allocation5 + $0x70] sm:$0xff]
        %v8161 = vadd.f32 %v8146, %v8102
        %v8162 = vadd.f32 %v8147, %v8105
        %v8163 = vadd.f32 %v8148, %v8108
        %v8164 = vadd.f32 %v8149, %v8111
        %v8165 = vadd.f32 %v8150, %v8114
        %v8166 = vadd.f32 %v8151, %v8117
        %v8167 = vadd.f32 %v8152, %v8120
        %v8168 = vadd.f32 %v8153, %v8123
        %v8169 = vadd.f32 %v8154, %v8126
        %v8170 = vadd.f32 %v8155, %v8129
        %v8171 = vadd.f32 %v8156, %v8132
        %v8172 = vadd.f32 %v8157, %v8135
        %v8173 = vadd.f32 %v8158, %v8138
        %v8174 = vadd.f32 %v8159, %v8141
        %v8175 = vadd.f32 %v8160, %v8144
        %8176 = vst.msk [vmem:[#allocation5] sm:$0xff] %vm276, %v8161
        %8177 = vst.msk [vmem:[#allocation5 + $0x8] sm:$0xff] %vm276, %v8162
        %8178 = vst.msk [vmem:[#allocation5 + $0x10] sm:$0xff] %vm276, %v8163
        %8179 = vst.msk [vmem:[#allocation5 + $0x18] sm:$0xff] %vm276, %v8164
        %8180 = vst.msk [vmem:[#allocation5 + $0x20] sm:$0xff] %vm276, %v8165
        %8181 = vst.msk [vmem:[#allocation5 + $0x28] sm:$0xff] %vm276, %v8166
        %8182 = vst.msk [vmem:[#allocation5 + $0x30] sm:$0xff] %vm276, %v8167
        %8183 = vst.msk [vmem:[#allocation5 + $0x38] sm:$0xff] %vm276, %v8168
        %8184 = vst.msk [vmem:[#allocation5 + $0x40] sm:$0xff] %vm276, %v8169
        %8185 = vst.msk [vmem:[#allocation5 + $0x48] sm:$0xff] %vm276, %v8170
        %8186 = vst.msk [vmem:[#allocation5 + $0x50] sm:$0xff] %vm276, %v8171
        %8187 = vst.msk [vmem:[#allocation5 + $0x58] sm:$0xff] %vm276, %v8172
        %8188 = vst.msk [vmem:[#allocation5 + $0x60] sm:$0xff] %vm276, %v8173
        %8189 = vst.msk [vmem:[#allocation5 + $0x68] sm:$0xff] %vm276, %v8174
        %8190 = vst.msk [vmem:[#allocation5 + $0x70] sm:$0xff] %vm276, %v8175
        %v8191 = vld [vmem:[#allocation4 + $0x19] sm:$0xff]
        %v8192 = vld [vmem:[#allocation4 + $0x21] sm:$0xff]
        %v8193 = vld [vmem:[#allocation4 + $0x29] sm:$0xff]
        %v8194 = vld [vmem:[#allocation4 + $0x31] sm:$0xff]
        %v8195 = vld [vmem:[#allocation4 + $0x39] sm:$0xff]
        %v8196 = vld [vmem:[#allocation4 + $0x41] sm:$0xff]
        %v8197 = vld [vmem:[#allocation4 + $0x49] sm:$0xff]
        %v8198 = vld [vmem:[#allocation4 + $0x51] sm:$0xff]
        %v8199 = vld [vmem:[#allocation4 + $0x59] sm:$0xff]
        %v8200 = vld [vmem:[#allocation4 + $0x61] sm:$0xff]
        %v8201 = vld [vmem:[#allocation4 + $0x69] sm:$0xff]
        %v8202 = vld [vmem:[#allocation4 + $0x71] sm:$0xff]
        %v8203 = vld [vmem:[#allocation4 + $0x79] sm:$0xff]
        %v8204 = vld [vmem:[#allocation4 + $0x81] sm:$0xff]
        %v8205 = vld [vmem:[#allocation4 + $0x89] sm:$0xff]
        %s8206 = scalar_lea.vmem %s4, 448
        %v8207 = vld [vmem:[%s8206] sm:$0xff]
        %v8208 = vld [vmem:[%s8206 + $0x8] sm:$0xff]
        %v8209 = vld [vmem:[%s8206 + $0x10] sm:$0xff]
        %v8210 = vld [vmem:[%s8206 + $0x18] sm:$0xff]
        %v8211 = vld [vmem:[%s8206 + $0x20] sm:$0xff]
        %v8212 = vld [vmem:[%s8206 + $0x28] sm:$0xff]
        %v8213 = vld [vmem:[%s8206 + $0x30] sm:$0xff]
        %v8214 = vld [vmem:[%s8206 + $0x38] sm:$0xff]
        %v8216 = vsel %vm276, %v8191, 0
        %v8219 = vsel %vm276, %v8192, 0
        %v8222 = vsel %vm276, %v8193, 0
        %v8225 = vsel %vm276, %v8194, 0
        %v8228 = vsel %vm276, %v8195, 0
        %v8231 = vsel %vm276, %v8196, 0
        %v8234 = vsel %vm276, %v8197, 0
        %v8237 = vsel %vm276, %v8198, 0
        %v8240 = vsel %vm276, %v8199, 0
        %v8243 = vsel %vm276, %v8200, 0
        %v8246 = vsel %vm276, %v8201, 0
        %v8249 = vsel %vm276, %v8202, 0
        %v8252 = vsel %vm276, %v8203, 0
        %v8255 = vsel %vm276, %v8204, 0
        %v8258 = vsel %vm276, %v8205, 0
        %8260 = vmatpush.msra.mxu0 0.0
        %8261 = vmatpush.msra.mxu0 0.0
        %8262 = vmatpush.msra.mxu0 0.0
        %8263 = vmatpush.msra.mxu0 0.0
        %8264 = vmatpush.msra.mxu0 0.0
        %8265 = vmatpush.msra.mxu0 0.0
        %8266 = vmatpush.msra.mxu0 0.0
        %8267 = vmatpush.msra.mxu0 0.0
        %8268 = vmatpush.msra.mxu0 %v8214
        %8269 = vmatpush.msra.mxu0 %v8213
        %8270 = vmatpush.msra.mxu0 %v8212
        %8271 = vmatpush.msra.mxu0 %v8211
        %8272 = vmatpush.msra.mxu0 %v8210
        %8273 = vmatpush.msra.mxu0 %v8209
        %8274 = vmatpush.msra.mxu0 %v8208
        %8275 = vmatpush.msra.mxu0 %v8207
        %8276 = vmatmul.f32.gmra.mxu0 %v8216
        %v8277 = vpop.f32.mrf.mxu0
        %v8278 = vadd.f32 0.0, %v8277
        %8279 = vmatmul.f32.gmra.mxu0 %v8219
        %v8280 = vpop.f32.mrf.mxu0
        %v8281 = vadd.f32 0.0, %v8280
        %8282 = vmatmul.f32.gmra.mxu0 %v8222
        %v8283 = vpop.f32.mrf.mxu0
        %v8284 = vadd.f32 0.0, %v8283
        %8285 = vmatmul.f32.gmra.mxu0 %v8225
        %v8286 = vpop.f32.mrf.mxu0
        %v8287 = vadd.f32 0.0, %v8286
        %8288 = vmatmul.f32.gmra.mxu0 %v8228
        %v8289 = vpop.f32.mrf.mxu0
        %v8290 = vadd.f32 0.0, %v8289
        %8291 = vmatmul.f32.gmra.mxu0 %v8231
        %v8292 = vpop.f32.mrf.mxu0
        %v8293 = vadd.f32 0.0, %v8292
        %8294 = vmatmul.f32.gmra.mxu0 %v8234
        %v8295 = vpop.f32.mrf.mxu0
        %v8296 = vadd.f32 0.0, %v8295
        %8297 = vmatmul.f32.gmra.mxu0 %v8237
        %v8298 = vpop.f32.mrf.mxu0
        %v8299 = vadd.f32 0.0, %v8298
        %8300 = vmatmul.f32.gmra.mxu0 %v8240
        %v8301 = vpop.f32.mrf.mxu0
        %v8302 = vadd.f32 0.0, %v8301
        %8303 = vmatmul.f32.gmra.mxu0 %v8243
        %v8304 = vpop.f32.mrf.mxu0
        %v8305 = vadd.f32 0.0, %v8304
        %8306 = vmatmul.f32.gmra.mxu0 %v8246
        %v8307 = vpop.f32.mrf.mxu0
        %v8308 = vadd.f32 0.0, %v8307
        %8309 = vmatmul.f32.gmra.mxu0 %v8249
        %v8310 = vpop.f32.mrf.mxu0
        %v8311 = vadd.f32 0.0, %v8310
        %8312 = vmatmul.f32.gmra.mxu0 %v8252
        %v8313 = vpop.f32.mrf.mxu0
        %v8314 = vadd.f32 0.0, %v8313
        %8315 = vmatmul.f32.gmra.mxu0 %v8255
        %v8316 = vpop.f32.mrf.mxu0
        %v8317 = vadd.f32 0.0, %v8316
        %8318 = vmatmul.f32.gmra.mxu0 %v8258
        %v8319 = vpop.f32.mrf.mxu0
        %v8320 = vadd.f32 0.0, %v8319
        %8321 = vdwg.mxu0
        %v8322 = vld [vmem:[#allocation5] sm:$0xff]
        %v8323 = vld [vmem:[#allocation5 + $0x8] sm:$0xff]
        %v8324 = vld [vmem:[#allocation5 + $0x10] sm:$0xff]
        %v8325 = vld [vmem:[#allocation5 + $0x18] sm:$0xff]
        %v8326 = vld [vmem:[#allocation5 + $0x20] sm:$0xff]
        %v8327 = vld [vmem:[#allocation5 + $0x28] sm:$0xff]
        %v8328 = vld [vmem:[#allocation5 + $0x30] sm:$0xff]
        %v8329 = vld [vmem:[#allocation5 + $0x38] sm:$0xff]
        %v8330 = vld [vmem:[#allocation5 + $0x40] sm:$0xff]
        %v8331 = vld [vmem:[#allocation5 + $0x48] sm:$0xff]
        %v8332 = vld [vmem:[#allocation5 + $0x50] sm:$0xff]
        %v8333 = vld [vmem:[#allocation5 + $0x58] sm:$0xff]
        %v8334 = vld [vmem:[#allocation5 + $0x60] sm:$0xff]
        %v8335 = vld [vmem:[#allocation5 + $0x68] sm:$0xff]
        %v8336 = vld [vmem:[#allocation5 + $0x70] sm:$0xff]
        %v8337 = vadd.f32 %v8322, %v8278
        %v8338 = vadd.f32 %v8323, %v8281
        %v8339 = vadd.f32 %v8324, %v8284
        %v8340 = vadd.f32 %v8325, %v8287
        %v8341 = vadd.f32 %v8326, %v8290
        %v8342 = vadd.f32 %v8327, %v8293
        %v8343 = vadd.f32 %v8328, %v8296
        %v8344 = vadd.f32 %v8329, %v8299
        %v8345 = vadd.f32 %v8330, %v8302
        %v8346 = vadd.f32 %v8331, %v8305
        %v8347 = vadd.f32 %v8332, %v8308
        %v8348 = vadd.f32 %v8333, %v8311
        %v8349 = vadd.f32 %v8334, %v8314
        %v8350 = vadd.f32 %v8335, %v8317
        %v8351 = vadd.f32 %v8336, %v8320
        %8352 = vst.msk [vmem:[#allocation5] sm:$0xff] %vm276, %v8337
        %8353 = vst.msk [vmem:[#allocation5 + $0x8] sm:$0xff] %vm276, %v8338
        %8354 = vst.msk [vmem:[#allocation5 + $0x10] sm:$0xff] %vm276, %v8339
        %8355 = vst.msk [vmem:[#allocation5 + $0x18] sm:$0xff] %vm276, %v8340
        %8356 = vst.msk [vmem:[#allocation5 + $0x20] sm:$0xff] %vm276, %v8341
        %8357 = vst.msk [vmem:[#allocation5 + $0x28] sm:$0xff] %vm276, %v8342
        %8358 = vst.msk [vmem:[#allocation5 + $0x30] sm:$0xff] %vm276, %v8343
        %8359 = vst.msk [vmem:[#allocation5 + $0x38] sm:$0xff] %vm276, %v8344
        %8360 = vst.msk [vmem:[#allocation5 + $0x40] sm:$0xff] %vm276, %v8345
        %8361 = vst.msk [vmem:[#allocation5 + $0x48] sm:$0xff] %vm276, %v8346
        %8362 = vst.msk [vmem:[#allocation5 + $0x50] sm:$0xff] %vm276, %v8347
        %8363 = vst.msk [vmem:[#allocation5 + $0x58] sm:$0xff] %vm276, %v8348
        %8364 = vst.msk [vmem:[#allocation5 + $0x60] sm:$0xff] %vm276, %v8349
        %8365 = vst.msk [vmem:[#allocation5 + $0x68] sm:$0xff] %vm276, %v8350
        %8366 = vst.msk [vmem:[#allocation5 + $0x70] sm:$0xff] %vm276, %v8351
        %v8367 = vld [vmem:[#allocation4 + $0x1a] sm:$0xff]
        %v8368 = vld [vmem:[#allocation4 + $0x22] sm:$0xff]
        %v8369 = vld [vmem:[#allocation4 + $0x2a] sm:$0xff]
        %v8370 = vld [vmem:[#allocation4 + $0x32] sm:$0xff]
        %v8371 = vld [vmem:[#allocation4 + $0x3a] sm:$0xff]
        %v8372 = vld [vmem:[#allocation4 + $0x42] sm:$0xff]
        %v8373 = vld [vmem:[#allocation4 + $0x4a] sm:$0xff]
        %v8374 = vld [vmem:[#allocation4 + $0x52] sm:$0xff]
        %v8375 = vld [vmem:[#allocation4 + $0x5a] sm:$0xff]
        %v8376 = vld [vmem:[#allocation4 + $0x62] sm:$0xff]
        %v8377 = vld [vmem:[#allocation4 + $0x6a] sm:$0xff]
        %v8378 = vld [vmem:[#allocation4 + $0x72] sm:$0xff]
        %v8379 = vld [vmem:[#allocation4 + $0x7a] sm:$0xff]
        %v8380 = vld [vmem:[#allocation4 + $0x82] sm:$0xff]
        %v8381 = vld [vmem:[#allocation4 + $0x8a] sm:$0xff]
        %s8382 = scalar_lea.vmem %s4, 512
        %v8383 = vld [vmem:[%s8382] sm:$0xff]
        %v8384 = vld [vmem:[%s8382 + $0x8] sm:$0xff]
        %v8385 = vld [vmem:[%s8382 + $0x10] sm:$0xff]
        %v8386 = vld [vmem:[%s8382 + $0x18] sm:$0xff]
        %v8387 = vld [vmem:[%s8382 + $0x20] sm:$0xff]
        %v8388 = vld [vmem:[%s8382 + $0x28] sm:$0xff]
        %v8389 = vld [vmem:[%s8382 + $0x30] sm:$0xff]
        %v8390 = vld [vmem:[%s8382 + $0x38] sm:$0xff]
        %v8392 = vsel %vm276, %v8367, 0
        %v8395 = vsel %vm276, %v8368, 0
        %v8398 = vsel %vm276, %v8369, 0
        %v8401 = vsel %vm276, %v8370, 0
        %v8404 = vsel %vm276, %v8371, 0
        %v8407 = vsel %vm276, %v8372, 0
        %v8410 = vsel %vm276, %v8373, 0
        %v8413 = vsel %vm276, %v8374, 0
        %v8416 = vsel %vm276, %v8375, 0
        %v8419 = vsel %vm276, %v8376, 0
        %v8422 = vsel %vm276, %v8377, 0
        %v8425 = vsel %vm276, %v8378, 0
        %v8428 = vsel %vm276, %v8379, 0
        %v8431 = vsel %vm276, %v8380, 0
        %v8434 = vsel %vm276, %v8381, 0
        %8436 = vmatpush.msra.mxu0 0.0
        %8437 = vmatpush.msra.mxu0 0.0
        %8438 = vmatpush.msra.mxu0 0.0
        %8439 = vmatpush.msra.mxu0 0.0
        %8440 = vmatpush.msra.mxu0 0.0
        %8441 = vmatpush.msra.mxu0 0.0
        %8442 = vmatpush.msra.mxu0 0.0
        %8443 = vmatpush.msra.mxu0 0.0
        %8444 = vmatpush.msra.mxu0 %v8390
        %8445 = vmatpush.msra.mxu0 %v8389
        %8446 = vmatpush.msra.mxu0 %v8388
        %8447 = vmatpush.msra.mxu0 %v8387
        %8448 = vmatpush.msra.mxu0 %v8386
        %8449 = vmatpush.msra.mxu0 %v8385
        %8450 = vmatpush.msra.mxu0 %v8384
        %8451 = vmatpush.msra.mxu0 %v8383
        %8452 = vmatmul.f32.gmra.mxu0 %v8392
        %v8453 = vpop.f32.mrf.mxu0
        %v8454 = vadd.f32 0.0, %v8453
        %8455 = vmatmul.f32.gmra.mxu0 %v8395
        %v8456 = vpop.f32.mrf.mxu0
        %v8457 = vadd.f32 0.0, %v8456
        %8458 = vmatmul.f32.gmra.mxu0 %v8398
        %v8459 = vpop.f32.mrf.mxu0
        %v8460 = vadd.f32 0.0, %v8459
        %8461 = vmatmul.f32.gmra.mxu0 %v8401
        %v8462 = vpop.f32.mrf.mxu0
        %v8463 = vadd.f32 0.0, %v8462
        %8464 = vmatmul.f32.gmra.mxu0 %v8404
        %v8465 = vpop.f32.mrf.mxu0
        %v8466 = vadd.f32 0.0, %v8465
        %8467 = vmatmul.f32.gmra.mxu0 %v8407
        %v8468 = vpop.f32.mrf.mxu0
        %v8469 = vadd.f32 0.0, %v8468
        %8470 = vmatmul.f32.gmra.mxu0 %v8410
        %v8471 = vpop.f32.mrf.mxu0
        %v8472 = vadd.f32 0.0, %v8471
        %8473 = vmatmul.f32.gmra.mxu0 %v8413
        %v8474 = vpop.f32.mrf.mxu0
        %v8475 = vadd.f32 0.0, %v8474
        %8476 = vmatmul.f32.gmra.mxu0 %v8416
        %v8477 = vpop.f32.mrf.mxu0
        %v8478 = vadd.f32 0.0, %v8477
        %8479 = vmatmul.f32.gmra.mxu0 %v8419
        %v8480 = vpop.f32.mrf.mxu0
        %v8481 = vadd.f32 0.0, %v8480
        %8482 = vmatmul.f32.gmra.mxu0 %v8422
        %v8483 = vpop.f32.mrf.mxu0
        %v8484 = vadd.f32 0.0, %v8483
        %8485 = vmatmul.f32.gmra.mxu0 %v8425
        %v8486 = vpop.f32.mrf.mxu0
        %v8487 = vadd.f32 0.0, %v8486
        %8488 = vmatmul.f32.gmra.mxu0 %v8428
        %v8489 = vpop.f32.mrf.mxu0
        %v8490 = vadd.f32 0.0, %v8489
        %8491 = vmatmul.f32.gmra.mxu0 %v8431
        %v8492 = vpop.f32.mrf.mxu0
        %v8493 = vadd.f32 0.0, %v8492
        %8494 = vmatmul.f32.gmra.mxu0 %v8434
        %v8495 = vpop.f32.mrf.mxu0
        %v8496 = vadd.f32 0.0, %v8495
        %8497 = vdwg.mxu0
        %v8498 = vld [vmem:[#allocation5] sm:$0xff]
        %v8499 = vld [vmem:[#allocation5 + $0x8] sm:$0xff]
        %v8500 = vld [vmem:[#allocation5 + $0x10] sm:$0xff]
        %v8501 = vld [vmem:[#allocation5 + $0x18] sm:$0xff]
        %v8502 = vld [vmem:[#allocation5 + $0x20] sm:$0xff]
        %v8503 = vld [vmem:[#allocation5 + $0x28] sm:$0xff]
        %v8504 = vld [vmem:[#allocation5 + $0x30] sm:$0xff]
        %v8505 = vld [vmem:[#allocation5 + $0x38] sm:$0xff]
        %v8506 = vld [vmem:[#allocation5 + $0x40] sm:$0xff]
        %v8507 = vld [vmem:[#allocation5 + $0x48] sm:$0xff]
        %v8508 = vld [vmem:[#allocation5 + $0x50] sm:$0xff]
        %v8509 = vld [vmem:[#allocation5 + $0x58] sm:$0xff]
        %v8510 = vld [vmem:[#allocation5 + $0x60] sm:$0xff]
        %v8511 = vld [vmem:[#allocation5 + $0x68] sm:$0xff]
        %v8512 = vld [vmem:[#allocation5 + $0x70] sm:$0xff]
        %v8513 = vadd.f32 %v8498, %v8454
        %v8514 = vadd.f32 %v8499, %v8457
        %v8515 = vadd.f32 %v8500, %v8460
        %v8516 = vadd.f32 %v8501, %v8463
        %v8517 = vadd.f32 %v8502, %v8466
        %v8518 = vadd.f32 %v8503, %v8469
        %v8519 = vadd.f32 %v8504, %v8472
        %v8520 = vadd.f32 %v8505, %v8475
        %v8521 = vadd.f32 %v8506, %v8478
        %v8522 = vadd.f32 %v8507, %v8481
        %v8523 = vadd.f32 %v8508, %v8484
        %v8524 = vadd.f32 %v8509, %v8487
        %v8525 = vadd.f32 %v8510, %v8490
        %v8526 = vadd.f32 %v8511, %v8493
        %v8527 = vadd.f32 %v8512, %v8496
        %8528 = vst.msk [vmem:[#allocation5] sm:$0xff] %vm276, %v8513
        %8529 = vst.msk [vmem:[#allocation5 + $0x8] sm:$0xff] %vm276, %v8514
        %8530 = vst.msk [vmem:[#allocation5 + $0x10] sm:$0xff] %vm276, %v8515
        %8531 = vst.msk [vmem:[#allocation5 + $0x18] sm:$0xff] %vm276, %v8516
        %8532 = vst.msk [vmem:[#allocation5 + $0x20] sm:$0xff] %vm276, %v8517
        %8533 = vst.msk [vmem:[#allocation5 + $0x28] sm:$0xff] %vm276, %v8518
        %8534 = vst.msk [vmem:[#allocation5 + $0x30] sm:$0xff] %vm276, %v8519
        %8535 = vst.msk [vmem:[#allocation5 + $0x38] sm:$0xff] %vm276, %v8520
        %8536 = vst.msk [vmem:[#allocation5 + $0x40] sm:$0xff] %vm276, %v8521
        %8537 = vst.msk [vmem:[#allocation5 + $0x48] sm:$0xff] %vm276, %v8522
        %8538 = vst.msk [vmem:[#allocation5 + $0x50] sm:$0xff] %vm276, %v8523
        %8539 = vst.msk [vmem:[#allocation5 + $0x58] sm:$0xff] %vm276, %v8524
        %8540 = vst.msk [vmem:[#allocation5 + $0x60] sm:$0xff] %vm276, %v8525
        %8541 = vst.msk [vmem:[#allocation5 + $0x68] sm:$0xff] %vm276, %v8526
        %8542 = vst.msk [vmem:[#allocation5 + $0x70] sm:$0xff] %vm276, %v8527
        %v8543 = vld [vmem:[%s5] sm:$0x1]
        %v8544 = vld [vmem:[%s6] sm:$0x1]
        %v8545 = vld [vmem:[#allocation5] sm:$0xff]
        %v8546 = vld [vmem:[#allocation5 + $0x8] sm:$0x3]
        %v8548 = vperm.slane %v8543, 0
        %v8550 = vmul.f32 %v8545, %v8548
        %v8551 = vmul.f32 %v8546, %v8548
        %v8553 = vperm.slane %v8544, 0
        %v8555 = vadd.f32 %v8550, %v8553
        %v8556 = vadd.f32 %v8551, %v8553
        %v8557 = vld [vmem:[#allocation5 + $0xc] sm:$0xff]
        %v8558 = vld [vmem:[#allocation5 + $0x14] sm:$0x3]
        %v8559 = vmul.f32 %v8557, %v8548
        %v8560 = vmul.f32 %v8558, %v8548
        %v8561 = vadd.f32 %v8559, %v8553
        %v8562 = vadd.f32 %v8560, %v8553
        %v8563 = vmax.f32 %v8555, %v8561
        %v8564 = vmax.f32 %v8556, %v8562
        %v8565 = vld [vmem:[#allocation5 + $0x18] sm:$0xff]
        %v8566 = vld [vmem:[#allocation5 + $0x20] sm:$0x3]
        %v8567 = vmul.f32 %v8565, %v8548
        %v8568 = vmul.f32 %v8566, %v8548
        %v8569 = vadd.f32 %v8567, %v8553
        %v8570 = vadd.f32 %v8568, %v8553
        %v8571 = vmax.f32 %v8563, %v8569
        %v8572 = vmax.f32 %v8564, %v8570
        %v8573 = vld [vmem:[#allocation5 + $0x24] sm:$0xff]
        %v8574 = vld [vmem:[#allocation5 + $0x2c] sm:$0x3]
        %v8575 = vmul.f32 %v8573, %v8548
        %v8576 = vmul.f32 %v8574, %v8548
        %v8577 = vadd.f32 %v8575, %v8553
        %v8578 = vadd.f32 %v8576, %v8553
        %v8579 = vmax.f32 %v8571, %v8577
        %v8580 = vmax.f32 %v8572, %v8578
        %v8581 = vld [vmem:[#allocation5 + $0x30] sm:$0xff]
        %v8582 = vld [vmem:[#allocation5 + $0x38] sm:$0x3]
        %v8583 = vmul.f32 %v8581, %v8548
        %v8584 = vmul.f32 %v8582, %v8548
        %v8585 = vadd.f32 %v8583, %v8553
        %v8586 = vadd.f32 %v8584, %v8553
        %v8587 = vmax.f32 %v8579, %v8585
        %v8588 = vmax.f32 %v8580, %v8586
        %v8589 = vld [vmem:[#allocation5 + $0x3c] sm:$0xff]
        %v8590 = vld [vmem:[#allocation5 + $0x44] sm:$0x3]
        %v8591 = vmul.f32 %v8589, %v8548
        %v8592 = vmul.f32 %v8590, %v8548
        %v8593 = vadd.f32 %v8591, %v8553
        %v8594 = vadd.f32 %v8592, %v8553
        %v8595 = vmax.f32 %v8587, %v8593
        %v8596 = vmax.f32 %v8588, %v8594
        %v8597 = vld [vmem:[#allocation5 + $0x48] sm:$0xff]
        %v8598 = vld [vmem:[#allocation5 + $0x50] sm:$0x3]
        %v8599 = vmul.f32 %v8597, %v8548
        %v8600 = vmul.f32 %v8598, %v8548
        %v8601 = vadd.f32 %v8599, %v8553
        %v8602 = vadd.f32 %v8600, %v8553
        %v8603 = vmax.f32 %v8595, %v8601
        %v8604 = vmax.f32 %v8596, %v8602
        %v8605 = vld [vmem:[#allocation5 + $0x54] sm:$0xff]
        %v8606 = vld [vmem:[#allocation5 + $0x5c] sm:$0x3]
        %v8607 = vmul.f32 %v8605, %v8548
        %v8608 = vmul.f32 %v8606, %v8548
        %v8609 = vadd.f32 %v8607, %v8553
        %v8610 = vadd.f32 %v8608, %v8553
        %v8611 = vmax.f32 %v8603, %v8609
        %v8612 = vmax.f32 %v8604, %v8610
        %v8613 = vld [vmem:[#allocation5 + $0x60] sm:$0xff]
        %v8614 = vld [vmem:[#allocation5 + $0x68] sm:$0x3]
        %v8615 = vmul.f32 %v8613, %v8548
        %v8616 = vmul.f32 %v8614, %v8548
        %v8617 = vadd.f32 %v8615, %v8553
        %v8618 = vadd.f32 %v8616, %v8553
        %v8619 = vmax.f32 %v8611, %v8617
        %v8620 = vmax.f32 %v8612, %v8618
        %v8621 = vld [vmem:[#allocation5 + $0x6c] sm:$0xff]
        %v8622 = vld [vmem:[#allocation5 + $0x74] sm:$0x3]
        %v8623 = vmul.f32 %v8621, %v8548
        %v8624 = vmul.f32 %v8622, %v8548
        %v8625 = vadd.f32 %v8623, %v8553
        %v8626 = vadd.f32 %v8624, %v8553
        %v8627 = vmax.f32 %v8619, %v8625
        %v8628 = vmax.f32 %v8620, %v8626
        %v8629 = vsel %vm276, %v8627, -inf
        %v8630 = vsel %vm340, %v8628, -inf
        %v8631 = vmax.f32 %v8629, %v8630
        %v8632 = vrot.slane %v8631, 4
        %v8633 = vmax.f32 %v8631, %v8632
        %v8634 = vrot.slane %v8633, 2
        %v8635 = vmax.f32 %v8633, %v8634
        %v8636 = vrot.slane %v8635, 1
        %v8637 = vmax.f32 %v8635, %v8636
        %v8638 = vmax.f32 %v8637, 0.0
        %vm8639 = vcmask 516096
        %8640 = vst.msk [vmem:[%s270] sm:$0x1] %vm8639, %v8638
        %s8641 = sand.u32 %s181, 1
        %s8642 = scalar_lea.sflag [#allocation7], %s8641
        %s8643 = sand.u32 %s181, 1
        %s8644 = scalar_lea.vmem [#allocation6], %s8643
        // Predicated region
        $region49: #{tpu_custom_call.1} parent=47 // pred_check
          %p8645 = pneg %p191
        $region50: #{tpu_custom_call.1} parent=47 // pred_check_branch
          %8647 = sbr.rel (%p8645) target = $region52
        $region51: #{tpu_custom_call.1} parent=47 // pred_region
          %8649 = vsyncadd %s8642, 0
          %s8650 = scalar_lea.hbm %s7, %s21
          %s8652 = sshll.u32 %s8644, 4
          %s8653 = int_to_ptr.vmem [resolvable:$true] %s8652
          %s8654 = sshll.u32 %s8650, 4
          %s8655 = int_to_ptr.hbm [resolvable:$true] %s8654
          %8657 = dma.vmem_to_hbm [thread:$0]  %s8653, 16, %s8655, %s8642
        $region52: #{tpu_custom_call.1} parent=47 // pred_fallthru
          _
      $region48: #{tpu_custom_call.1} parent=5 // pred_fallthru
        _
      %p8658 = scmp.le.s32.totalorder 2, %s16
      // Predicated region
      $region53: #{tpu_custom_call.1} parent=5 // pred_check
        %p8659 = pneg %p8658
      $region54: #{tpu_custom_call.1} parent=5 // pred_check_branch
        %8661 = sbr.rel (%p8659) target = $region56
      $region55: #{tpu_custom_call.1} parent=5 // pred_region
        %s8662 = ssub.s32 %s16, 2
        // Predicated region
        $region57: #{tpu_custom_call.1} parent=55 // pred_check
          %p8663 = pneg %p197
        $region58: #{tpu_custom_call.1} parent=55 // pred_check_branch
          %8665 = sbr.rel (%p8663) target = $region60
        $region59: #{tpu_custom_call.1} parent=55 // pred_region
          %s8666 = sand.u32 %s182, 1
          %s8667 = scalar_lea.sflag [#allocation7], %s8666
          %s8668 = sand.u32 %s182, 1
          %s8669 = scalar_lea.vmem [#allocation6], %s8668
          %8671 = dma.done %s8667, 16
        $region60: #{tpu_custom_call.1} parent=55 // pred_fallthru
          _
      $region56: #{tpu_custom_call.1} parent=5 // pred_fallthru
        _
    $region6: #{tpu_custom_call.1} parent=1 // loop_footer
      %s20 = sadd.s32 1, %s16
    $region7: #{tpu_custom_call.1} parent=1 // loop_footer_branch
      %15 = sbr.rel target = $region3
    $region8: #{tpu_custom_call.1} parent=1 // loop_exit
      _
    %8672 = vsyncpa [#allocation7], 1
    %s8673 = scalar_lea.sflag [#allocation7], 1
    %8674 = vsyncpa %s8673, 1

</llo_original>
